<compile_context>
chip_gen: v7x
topology: tpu7x:2x2x1
jax: 0.10.0
libtpu: 0.0.40
codegen_flags: <defaults>
</compile_context>

<pallas_src>
import functools

import jax
import jax.numpy as jnp
import numpy as np
from jax.experimental import pallas as pl
from jax.experimental.pallas import tpu as pltpu


def _round_up(x, m):
    return (x + m - 1) // m * m


# ------------------------------ Fused kernel -------------------------------- #

def fused_residual_kernel(x_ref, w1_ref, w2_ref, ws_ref, p_ref, m_ref, o_ref,
                          xpad_ref, ypad_ref, slab1_ref, slab2_ref,
                          *, H, Wp, Cin):
    """Entire residual block for one batch element.

    x_ref:     (1, RT, Cin)       bf16  scanline-padded input (spatial pad done in wrapper)
    w1_ref:    (9*CP, CoP)        bf16  conv1 weight, concat-K tap-major
    w2_ref:    (9*CoP, CoP)       bf16  conv2 weight, concat-K tap-major
    ws_ref:    (CP, CoP)          bf16  1x1 shortcut weight
    p_ref:     (6, CoP)           f32   rows: [s1, t1, s2, t2, ss, ts] folded BN scale/shift
    m_ref:     (H*Wp, 1)          f32   1.0 on valid scanline columns (j < W), else 0.0
    o_ref:     (1, H*Wp, CoP)     f32   output (garbage columns sliced off in wrapper)
    xpad_ref:  (RT, CP)           bf16  scratch: padded input, 128 lanes
    ypad_ref:  (RT, CoP)          bf16  scratch: padded y1
    slab1/2:   (H*Wp, 9*C)        bf16  scratch: im2col slabs for conv1 / conv2
    """
    HWp = H * Wp
    CP = xpad_ref.shape[-1]
    CoP = o_ref.shape[-1]
    RT = xpad_ref.shape[0]

    # ---- Stage 0: lane-pad x into the scanline buffer (cast happened in wrapper). ----
    # Full zero is required (not just halo): the padded channel lanes [Cin, CP) feed the
    # K contraction and must be 0, not stale VMEM. Cost: ~28 vst for the bf16 buffer.
    xpad_ref[...] = jnp.zeros_like(xpad_ref)
    xpad_ref[:, :Cin] = x_ref[0]

    # ---- Stage 1: conv1 (3x3) as ONE matmul over a concatenated-K im2col slab. ----
    for t in range(9):
        kh, kw = divmod(t, 3)
        off = kh * Wp + kw                                    # static row offset per tap
        slab1_ref[:, t * CP:(t + 1) * CP] = xpad_ref[off:off + HWp, :]
    acc1 = jnp.dot(slab1_ref[...], w1_ref[...],
                   preferred_element_type=jnp.float32)        # (HWp, CoP) f32
    # Folded BN1 + ReLU (f32 epilogue), then zero the garbage scanline columns so the
    # re-padded y1 has exact zero halos for conv2.
    y1 = jnp.maximum(acc1 * p_ref[0:1, :] + p_ref[1:2, :], 0.0)
    y1 = (y1 * m_ref[...]).astype(ypad_ref.dtype)

    # ---- Stage 2: re-pad y1 (stays in VMEM), conv2 (3x3) as ONE matmul. ----
    # Interior store at flat offset Wp+1 realigns (row, col) -> (row+1, col+1); the
    # wrap-around element of each scanline is masked to 0 and lands on the next row's
    # left halo, which must be 0 anyway. Only two small edge strips need explicit zeros.
    ypad_ref[0:Wp + 1, :] = jnp.zeros((Wp + 1, CoP), ypad_ref.dtype)
    ypad_ref[Wp + 1:Wp + 1 + HWp, :] = y1
    ypad_ref[Wp + 1 + HWp:RT, :] = jnp.zeros((RT - (Wp + 1 + HWp), CoP), ypad_ref.dtype)

    for t in range(9):
        kh, kw = divmod(t, 3)
        off = kh * Wp + kw
        slab2_ref[:, t * CoP:(t + 1) * CoP] = ypad_ref[off:off + HWp, :]
    acc2 = jnp.dot(slab2_ref[...], w2_ref[...],
                   preferred_element_type=jnp.float32)
    y2 = acc2 * p_ref[2:3, :] + p_ref[3:4, :]                 # folded BN2 (no ReLU)

    # ---- Stage 3: shortcut 1x1 conv + folded BN, add, final ReLU. ----
    # The 1x1 conv input is exactly the center tap of the padded buffer -> reuse the
    # already-cast bf16 data, no second load/cast of x.
    xc = xpad_ref[Wp + 1:Wp + 1 + HWp, :]                     # (HWp, CP) bf16
    sc = jnp.dot(xc, ws_ref[...], preferred_element_type=jnp.float32)
    sc = sc * p_ref[4:5, :] + p_ref[5:6, :]

    # Lane-dense store: last dim CoP is a multiple of 128 -> unmasked vst.
    o_ref[0] = jnp.maximum(y2 + sc, 0.0).astype(o_ref.dtype)


# ------------------------------ JAX wrapper --------------------------------- #

def fold_bn(bias, gamma, beta, mean, var, eps=1e-5):
    """Fold conv bias + eval-mode BatchNorm into per-channel (scale, shift)."""
    scale = gamma / jnp.sqrt(var + eps)
    shift = beta + (bias - mean) * scale
    return scale.astype(jnp.float32), shift.astype(jnp.float32)


def residual_block(x, params):
    """x: (N, H, W, Cin) float32 -> (N, H, W, Cout) float32 (one fused pallas_call)."""
    N, H, W, Cin = x.shape
    Cout = params["w1"].shape[-1]
    CP = _round_up(Cin, 128)                 # lane-dense input channels (in-kernel pad)
    CoP = _round_up(Cout, 128)               # lane-dense output channels
    Wp = _round_up(W + 2, 8)                 # padded scanline width
    HWp = H * Wp
    RT = _round_up((H + 2) * Wp + 2, 16)     # scanline rows (+2 so the last tap slice stays in bounds)

    # Fold the three BatchNorms (+conv biases) into per-channel scale/shift.
    s1, t1 = fold_bn(params["b1"], params["g1"], params["be1"], params["m1"], params["v1"])
    s2, t2 = fold_bn(params["b2"], params["g2"], params["be2"], params["m2"], params["v2"])
    ss, ts = fold_bn(params["bs"], params["gs"], params["bes"], params["ms"], params["vs"])
    pvec = jnp.zeros((6, CoP), jnp.float32)
    for i, v in enumerate((s1, t1, s2, t2, ss, ts)):
        pvec = pvec.at[i, :Cout].set(v)
    # Padded channels: scale=shift=0 -> padded output lanes are exactly 0 through the block.

    # Input: bf16, spatially pre-padded to the scanline layout, channels left at Cin
    # (no 32x channel-pad inflation of the input DMA; lane padding happens in-kernel).
    xb = x.astype(jnp.bfloat16)
    xs = jnp.pad(xb, ((0, 0), (1, 1), (1, Wp - W - 1), (0, 0)))        # (N, H+2, Wp, Cin)
    xs = xs.reshape(N, (H + 2) * Wp, Cin)
    xs = jnp.pad(xs, ((0, 0), (0, RT - (H + 2) * Wp), (0, 0)))         # (N, RT, Cin)

    # Weights: concat-K tap-major packing (row t*C + ci is tap (t//3, t%3), channel ci).
    w1p = jnp.zeros((9, CP, CoP), jnp.bfloat16).at[:, :Cin, :Cout].set(
        params["w1"].reshape(9, Cin, Cout).astype(jnp.bfloat16)).reshape(9 * CP, CoP)
    w2p = jnp.zeros((9, CoP, CoP), jnp.bfloat16).at[:, :Cout, :Cout].set(
        params["w2"].reshape(9, Cout, Cout).astype(jnp.bfloat16)).reshape(9 * CoP, CoP)
    wsp = jnp.zeros((CP, CoP), jnp.bfloat16).at[:Cin, :Cout].set(
        params["ws"].astype(jnp.bfloat16))

    # Validity mask for the padded scanline columns (j < W), constant across the grid.
    colmask = (jnp.arange(HWp, dtype=jnp.int32) % Wp < W).astype(jnp.float32).reshape(HWp, 1)

    kernel = functools.partial(fused_residual_kernel, H=H, Wp=Wp, Cin=Cin)
    out = pl.pallas_call(
        kernel,
        out_shape=jax.ShapeDtypeStruct((N, HWp, CoP), jnp.float32),
        grid=(N,),
        in_specs=[
            pl.BlockSpec((1, RT, Cin), lambda n: (n, 0, 0)),
            pl.BlockSpec((9 * CP, CoP), lambda n: (0, 0)),
            pl.BlockSpec((9 * CoP, CoP), lambda n: (0, 0)),
            pl.BlockSpec((CP, CoP), lambda n: (0, 0)),
            pl.BlockSpec((6, CoP), lambda n: (0, 0)),
            pl.BlockSpec((HWp, 1), lambda n: (0, 0)),
        ],
        out_specs=pl.BlockSpec((1, HWp, CoP), lambda n: (n, 0, 0)),
        scratch_shapes=[
            pltpu.VMEM((RT, CP), jnp.bfloat16),        # padded x (scanline layout)
            pltpu.VMEM((RT, CoP), jnp.bfloat16),       # padded y1
            pltpu.VMEM((HWp, 9 * CP), jnp.bfloat16),   # conv1 im2col slab
            pltpu.VMEM((HWp, 9 * CoP), jnp.bfloat16),  # conv2 im2col slab
        ],
        compiler_params=pltpu.CompilerParams(dimension_semantics=("parallel",)),
    )(xs, w1p, w2p, wsp, pvec, colmask)

    # Drop the scanline padding columns and the channel padding, restore NHWC.
    return out.reshape(N, H, Wp, CoP)[:, :, :W, :Cout]


# -------------------------------- Reference ---------------------------------- #

def ref_residual_block(x, p, eps=1e-5):
    """Pure-JAX reference replicating the original (un-folded) PyTorch ops."""
    dn = ("NHWC", "HWIO", "NHWC")

    def conv(x, w, pad):
        return jax.lax.conv_general_dilated(
            x, w, window_strides=(1, 1), padding=pad, dimension_numbers=dn,
            precision=jax.lax.Precision.HIGHEST)

    def bn(x, g, b, m, v):
        return (x - m) / jnp.sqrt(v + eps) * g + b

    y = conv(x, p["w1"], "SAME") + p["b1"]
    y = jax.nn.relu(bn(y, p["g1"], p["be1"], p["m1"], p["v1"]))
    y = conv(y, p["w2"], "SAME") + p["b2"]
    y = bn(y, p["g2"], p["be2"], p["m2"], p["v2"])
    s = conv(x, p["ws"].reshape(1, 1, *p["ws"].shape), "VALID") + p["bs"]
    s = bn(s, p["gs"], p["bes"], p["ms"], p["vs"])
    return jax.nn.relu(y + s)


# ----------------------------------- Main ------------------------------------ #

if __name__ == "__main__":
    N, H, W = 2, 16, 16
    in_c, out_c = 4, 8

    key = jax.random.PRNGKey(0)
    keys = jax.random.split(key, 16)

    def nrm(k, shape, s=0.1):
        return jax.random.normal(k, shape, jnp.float32) * s

    params = {
        # conv1 (3x3, in_c->out_c) + BN1
        "w1": nrm(keys[0], (3, 3, in_c, out_c)),
        "b1": nrm(keys[1], (out_c,)),
        "g1": 1.0 + nrm(keys[2], (out_c,)),
        "be1": nrm(keys[3], (out_c,)),
        "m1": nrm(keys[4], (out_c,)),
        "v1": 1.0 + jnp.abs(nrm(keys[5], (out_c,))),
        # conv2 (3x3, out_c->out_c) + BN2
        "w2": nrm(keys[6], (3, 3, out_c, out_c)),
        "b2": nrm(keys[7], (out_c,)),
        "g2": 1.0 + nrm(keys[8], (out_c,)),
        "be2": nrm(keys[9], (out_c,)),
        "m2": nrm(keys[10], (out_c,)),
        "v2": 1.0 + jnp.abs(nrm(keys[11], (out_c,))),
        # shortcut conv (1x1, in_c->out_c) + BNs
        "ws": nrm(keys[12], (in_c, out_c)),
        "bs": nrm(keys[13], (out_c,)),
        "gs": 1.0 + nrm(keys[14], (out_c,)),
        "bes": nrm(keys[15], (out_c,)),
        "ms": jnp.zeros((out_c,), jnp.float32),
        "vs": jnp.ones((out_c,), jnp.float32),
    }

    # Input in NHWC (equivalent to a PyTorch NCHW input of shape (2, 4, 16, 16)).
    x = jax.random.normal(jax.random.PRNGKey(42), (N, H, W, in_c), jnp.float32)

    out = jax.block_until_ready(residual_block(x, params))
    ref = jax.block_until_ready(ref_residual_block(x, params))

    assert out.shape == (N, H, W, out_c), out.shape
    # bf16 MXU operands vs f32/HIGHEST reference -> relaxed tolerance.
    np.testing.assert_allclose(np.asarray(out), np.asarray(ref), rtol=2e-2, atol=2e-2)
    print("KERNEL_OK")
</pallas_src>

<mosaic_0001>
module attributes {stable_mosaic.version = 11 : i64} {
  func.func @fused_residual_kernel(%arg0: i32, %arg1: memref<1x448x4xbf16, #tpu.memory_space<vmem>>, %arg2: memref<1152x128xbf16, #tpu.memory_space<vmem>>, %arg3: memref<1152x128xbf16, #tpu.memory_space<vmem>>, %arg4: memref<128x128xbf16, #tpu.memory_space<vmem>>, %arg5: memref<6x128xf32, #tpu.memory_space<vmem>>, %arg6: memref<384x1xf32, #tpu.memory_space<vmem>>, %arg7: memref<1x384x128xf32, #tpu.memory_space<vmem>>, %arg8: memref<448x128xbf16, #tpu.memory_space<vmem>>, %arg9: memref<448x128xbf16, #tpu.memory_space<vmem>>, %arg10: memref<384x1152xbf16, #tpu.memory_space<vmem>>, %arg11: memref<384x1152xbf16, #tpu.memory_space<vmem>>) attributes {dimension_semantics = [#tpu.dimension_semantics<parallel>], iteration_bounds = array<i64: 2>, scalar_prefetch = 0 : i64, scratch_operands = 4 : i64, tpu.core_type = #tpu.core_type<tc>, window_params = [{transform_indices = @transform_0, window_bounds = array<i64: 1, 448, 4>}, {pipeline_mode = #tpu.pipeline_mode<synchronous>, transform_indices = @transform_1, window_bounds = array<i64: 1152, 128>}, {pipeline_mode = #tpu.pipeline_mode<synchronous>, transform_indices = @transform_2, window_bounds = array<i64: 1152, 128>}, {pipeline_mode = #tpu.pipeline_mode<synchronous>, transform_indices = @transform_3, window_bounds = array<i64: 128, 128>}, {pipeline_mode = #tpu.pipeline_mode<synchronous>, transform_indices = @transform_4, window_bounds = array<i64: 6, 128>}, {pipeline_mode = #tpu.pipeline_mode<synchronous>, transform_indices = @transform_5, window_bounds = array<i64: 384, 1>}, {transform_indices = @transform_6, window_bounds = array<i64: 1, 384, 128>}]} {
    %cst = arith.constant 0.000000e+00 : bf16
    %0 = vector.broadcast %cst : bf16 to vector<448x128xbf16>
    %c0 = arith.constant 0 : index
    %c0_0 = arith.constant 0 : index
    %1 = vector.load %arg8[%c0, %c0_0] : memref<448x128xbf16, #tpu.memory_space<vmem>>, vector<448x128xbf16>
    tpu.vector_store %arg8[%c0, %c0_0], %0 {strides = array<i32>} : memref<448x128xbf16, #tpu.memory_space<vmem>>, vector<448x128xbf16>,
    %c0_1 = arith.constant 0 : index
    %c0_2 = arith.constant 0 : index
    %c0_3 = arith.constant 0 : index
    %2 = vector.load %arg1[%c0_1, %c0_2, %c0_3] : memref<1x448x4xbf16, #tpu.memory_space<vmem>>, vector<1x448x4xbf16>
    %3 = vector.shape_cast %2 : vector<1x448x4xbf16> to vector<448x4xbf16>
    %c0_4 = arith.constant 0 : index
    %c0_5 = arith.constant 0 : index
    %4 = vector.load %arg8[%c0_4, %c0_5] : memref<448x128xbf16, #tpu.memory_space<vmem>>, vector<448x4xbf16>
    tpu.vector_store %arg8[%c0_4, %c0_5], %3 {strides = array<i32>} : memref<448x128xbf16, #tpu.memory_space<vmem>>, vector<448x4xbf16>,
    %c0_6 = arith.constant 0 : index
    %c0_7 = arith.constant 0 : index
    %5 = vector.load %arg8[%c0_6, %c0_7] : memref<448x128xbf16, #tpu.memory_space<vmem>>, vector<384x128xbf16>
    %c0_8 = arith.constant 0 : index
    %c0_9 = arith.constant 0 : index
    %6 = vector.load %arg10[%c0_8, %c0_9] : memref<384x1152xbf16, #tpu.memory_space<vmem>>, vector<384x128xbf16>
    tpu.vector_store %arg10[%c0_8, %c0_9], %5 {strides = array<i32>} : memref<384x1152xbf16, #tpu.memory_space<vmem>>, vector<384x128xbf16>,
    %c1 = arith.constant 1 : index
    %c0_10 = arith.constant 0 : index
    %7 = vector.load %arg8[%c1, %c0_10] : memref<448x128xbf16, #tpu.memory_space<vmem>>, vector<384x128xbf16>
    %c0_11 = arith.constant 0 : index
    %c128 = arith.constant 128 : index
    %8 = vector.load %arg10[%c0_11, %c128] : memref<384x1152xbf16, #tpu.memory_space<vmem>>, vector<384x128xbf16>
    tpu.vector_store %arg10[%c0_11, %c128], %7 {strides = array<i32>} : memref<384x1152xbf16, #tpu.memory_space<vmem>>, vector<384x128xbf16>,
    %c2 = arith.constant 2 : index
    %c0_12 = arith.constant 0 : index
    %9 = vector.load %arg8[%c2, %c0_12] : memref<448x128xbf16, #tpu.memory_space<vmem>>, vector<384x128xbf16>
    %c0_13 = arith.constant 0 : index
    %c256 = arith.constant 256 : index
    %10 = vector.load %arg10[%c0_13, %c256] : memref<384x1152xbf16, #tpu.memory_space<vmem>>, vector<384x128xbf16>
    tpu.vector_store %arg10[%c0_13, %c256], %9 {strides = array<i32>} : memref<384x1152xbf16, #tpu.memory_space<vmem>>, vector<384x128xbf16>,
    %c24 = arith.constant 24 : index
    %c0_14 = arith.constant 0 : index
    %11 = vector.load %arg8[%c24, %c0_14] : memref<448x128xbf16, #tpu.memory_space<vmem>>, vector<384x128xbf16>
    %c0_15 = arith.constant 0 : index
    %c384 = arith.constant 384 : index
    %12 = vector.load %arg10[%c0_15, %c384] : memref<384x1152xbf16, #tpu.memory_space<vmem>>, vector<384x128xbf16>
    tpu.vector_store %arg10[%c0_15, %c384], %11 {strides = array<i32>} : memref<384x1152xbf16, #tpu.memory_space<vmem>>, vector<384x128xbf16>,
    %c25 = arith.constant 25 : index
    %c0_16 = arith.constant 0 : index
    %13 = vector.load %arg8[%c25, %c0_16] : memref<448x128xbf16, #tpu.memory_space<vmem>>, vector<384x128xbf16>
    %c0_17 = arith.constant 0 : index
    %c512 = arith.constant 512 : index
    %14 = vector.load %arg10[%c0_17, %c512] : memref<384x1152xbf16, #tpu.memory_space<vmem>>, vector<384x128xbf16>
    tpu.vector_store %arg10[%c0_17, %c512], %13 {strides = array<i32>} : memref<384x1152xbf16, #tpu.memory_space<vmem>>, vector<384x128xbf16>,
    %c26 = arith.constant 26 : index
    %c0_18 = arith.constant 0 : index
    %15 = vector.load %arg8[%c26, %c0_18] : memref<448x128xbf16, #tpu.memory_space<vmem>>, vector<384x128xbf16>
    %c0_19 = arith.constant 0 : index
    %c640 = arith.constant 640 : index
    %16 = vector.load %arg10[%c0_19, %c640] : memref<384x1152xbf16, #tpu.memory_space<vmem>>, vector<384x128xbf16>
    tpu.vector_store %arg10[%c0_19, %c640], %15 {strides = array<i32>} : memref<384x1152xbf16, #tpu.memory_space<vmem>>, vector<384x128xbf16>,
    %c48 = arith.constant 48 : index
    %c0_20 = arith.constant 0 : index
    %17 = vector.load %arg8[%c48, %c0_20] : memref<448x128xbf16, #tpu.memory_space<vmem>>, vector<384x128xbf16>
    %c0_21 = arith.constant 0 : index
    %c768 = arith.constant 768 : index
    %18 = vector.load %arg10[%c0_21, %c768] : memref<384x1152xbf16, #tpu.memory_space<vmem>>, vector<384x128xbf16>
    tpu.vector_store %arg10[%c0_21, %c768], %17 {strides = array<i32>} : memref<384x1152xbf16, #tpu.memory_space<vmem>>, vector<384x128xbf16>,
    %c49 = arith.constant 49 : index
    %c0_22 = arith.constant 0 : index
    %19 = vector.load %arg8[%c49, %c0_22] : memref<448x128xbf16, #tpu.memory_space<vmem>>, vector<384x128xbf16>
    %c0_23 = arith.constant 0 : index
    %c896 = arith.constant 896 : index
    %20 = vector.load %arg10[%c0_23, %c896] : memref<384x1152xbf16, #tpu.memory_space<vmem>>, vector<384x128xbf16>
    tpu.vector_store %arg10[%c0_23, %c896], %19 {strides = array<i32>} : memref<384x1152xbf16, #tpu.memory_space<vmem>>, vector<384x128xbf16>,
    %c50 = arith.constant 50 : index
    %c0_24 = arith.constant 0 : index
    %21 = vector.load %arg8[%c50, %c0_24] : memref<448x128xbf16, #tpu.memory_space<vmem>>, vector<384x128xbf16>
    %c0_25 = arith.constant 0 : index
    %c1024 = arith.constant 1024 : index
    %22 = vector.load %arg10[%c0_25, %c1024] : memref<384x1152xbf16, #tpu.memory_space<vmem>>, vector<384x128xbf16>
    tpu.vector_store %arg10[%c0_25, %c1024], %21 {strides = array<i32>} : memref<384x1152xbf16, #tpu.memory_space<vmem>>, vector<384x128xbf16>,
    %c0_26 = arith.constant 0 : index
    %c0_27 = arith.constant 0 : index
    %23 = vector.load %arg10[%c0_26, %c0_27] : memref<384x1152xbf16, #tpu.memory_space<vmem>>, vector<384x1152xbf16>
    %c0_28 = arith.constant 0 : index
    %c0_29 = arith.constant 0 : index
    %24 = vector.load %arg2[%c0_28, %c0_29] : memref<1152x128xbf16, #tpu.memory_space<vmem>>, vector<1152x128xbf16>
    %cst_30 = arith.constant dense<0.000000e+00> : vector<384x128xf32>
    %25 = tpu.matmul %23, %24, %cst_30 {dimension_numbers = #tpu.dot_dimension_numbers<[1], [0], [0], [1], [0, 0, 1, 1], [], []>} : vector<384x1152xbf16>, vector<1152x128xbf16>, vector<384x128xf32> -> vector<384x128xf32>
    %c0_31 = arith.constant 0 : index
    %c0_32 = arith.constant 0 : index
    %26 = vector.load %arg5[%c0_31, %c0_32] : memref<6x128xf32, #tpu.memory_space<vmem>>, vector<1x128xf32>
    %27 = vector.broadcast %26 : vector<1x128xf32> to vector<384x128xf32>
    %28 = arith.mulf %25, %27 : vector<384x128xf32>
    %c1_33 = arith.constant 1 : index
    %c0_34 = arith.constant 0 : index
    %29 = vector.load %arg5[%c1_33, %c0_34] : memref<6x128xf32, #tpu.memory_space<vmem>>, vector<1x128xf32>
    %30 = vector.broadcast %29 : vector<1x128xf32> to vector<384x128xf32>
    %31 = arith.addf %28, %30 : vector<384x128xf32>
    %cst_35 = arith.constant 0.000000e+00 : f32
    %32 = vector.broadcast %cst_35 : f32 to vector<384x128xf32>
    %33 = arith.maximumf %31, %32 : vector<384x128xf32>
    %c0_36 = arith.constant 0 : index
    %c0_37 = arith.constant 0 : index
    %34 = vector.load %arg6[%c0_36, %c0_37] : memref<384x1xf32, #tpu.memory_space<vmem>>, vector<384x1xf32>
    %35 = vector.broadcast %34 : vector<384x1xf32> to vector<384x128xf32>
    %36 = arith.mulf %33, %35 : vector<384x128xf32>
    %37 = arith.truncf %36 : vector<384x128xf32> to vector<384x128xbf16>
    %cst_38 = arith.constant 0.000000e+00 : bf16
    %38 = vector.broadcast %cst_38 : bf16 to vector<25x128xbf16>
    %c0_39 = arith.constant 0 : index
    %c0_40 = arith.constant 0 : index
    %39 = vector.load %arg9[%c0_39, %c0_40] : memref<448x128xbf16, #tpu.memory_space<vmem>>, vector<25x128xbf16>
    tpu.vector_store %arg9[%c0_39, %c0_40], %38 {strides = array<i32>} : memref<448x128xbf16, #tpu.memory_space<vmem>>, vector<25x128xbf16>,
    %c25_41 = arith.constant 25 : index
    %c0_42 = arith.constant 0 : index
    %40 = vector.load %arg9[%c25_41, %c0_42] : memref<448x128xbf16, #tpu.memory_space<vmem>>, vector<384x128xbf16>
    tpu.vector_store %arg9[%c25_41, %c0_42], %37 {strides = array<i32>} : memref<448x128xbf16, #tpu.memory_space<vmem>>, vector<384x128xbf16>,
    %cst_43 = arith.constant 0.000000e+00 : bf16
    %41 = vector.broadcast %cst_43 : bf16 to vector<39x128xbf16>
    %c409 = arith.constant 409 : index
    %c0_44 = arith.constant 0 : index
    %42 = vector.load %arg9[%c409, %c0_44] : memref<448x128xbf16, #tpu.memory_space<vmem>>, vector<39x128xbf16>
    tpu.vector_store %arg9[%c409, %c0_44], %41 {strides = array<i32>} : memref<448x128xbf16, #tpu.memory_space<vmem>>, vector<39x128xbf16>,
    %c0_45 = arith.constant 0 : index
    %c0_46 = arith.constant 0 : index
    %43 = vector.load %arg9[%c0_45, %c0_46] : memref<448x128xbf16, #tpu.memory_space<vmem>>, vector<384x128xbf16>
    %c0_47 = arith.constant 0 : index
    %c0_48 = arith.constant 0 : index
    %44 = vector.load %arg11[%c0_47, %c0_48] : memref<384x1152xbf16, #tpu.memory_space<vmem>>, vector<384x128xbf16>
    tpu.vector_store %arg11[%c0_47, %c0_48], %43 {strides = array<i32>} : memref<384x1152xbf16, #tpu.memory_space<vmem>>, vector<384x128xbf16>,
    %c1_49 = arith.constant 1 : index
    %c0_50 = arith.constant 0 : index
    %45 = vector.load %arg9[%c1_49, %c0_50] : memref<448x128xbf16, #tpu.memory_space<vmem>>, vector<384x128xbf16>
    %c0_51 = arith.constant 0 : index
    %c128_52 = arith.constant 128 : index
    %46 = vector.load %arg11[%c0_51, %c128_52] : memref<384x1152xbf16, #tpu.memory_space<vmem>>, vector<384x128xbf16>
    tpu.vector_store %arg11[%c0_51, %c128_52], %45 {strides = array<i32>} : memref<384x1152xbf16, #tpu.memory_space<vmem>>, vector<384x128xbf16>,
    %c2_53 = arith.constant 2 : index
    %c0_54 = arith.constant 0 : index
    %47 = vector.load %arg9[%c2_53, %c0_54] : memref<448x128xbf16, #tpu.memory_space<vmem>>, vector<384x128xbf16>
    %c0_55 = arith.constant 0 : index
    %c256_56 = arith.constant 256 : index
    %48 = vector.load %arg11[%c0_55, %c256_56] : memref<384x1152xbf16, #tpu.memory_space<vmem>>, vector<384x128xbf16>
    tpu.vector_store %arg11[%c0_55, %c256_56], %47 {strides = array<i32>} : memref<384x1152xbf16, #tpu.memory_space<vmem>>, vector<384x128xbf16>,
    %c24_57 = arith.constant 24 : index
    %c0_58 = arith.constant 0 : index
    %49 = vector.load %arg9[%c24_57, %c0_58] : memref<448x128xbf16, #tpu.memory_space<vmem>>, vector<384x128xbf16>
    %c0_59 = arith.constant 0 : index
    %c384_60 = arith.constant 384 : index
    %50 = vector.load %arg11[%c0_59, %c384_60] : memref<384x1152xbf16, #tpu.memory_space<vmem>>, vector<384x128xbf16>
    tpu.vector_store %arg11[%c0_59, %c384_60], %49 {strides = array<i32>} : memref<384x1152xbf16, #tpu.memory_space<vmem>>, vector<384x128xbf16>,
    %c25_61 = arith.constant 25 : index
    %c0_62 = arith.constant 0 : index
    %51 = vector.load %arg9[%c25_61, %c0_62] : memref<448x128xbf16, #tpu.memory_space<vmem>>, vector<384x128xbf16>
    %c0_63 = arith.constant 0 : index
    %c512_64 = arith.constant 512 : index
    %52 = vector.load %arg11[%c0_63, %c512_64] : memref<384x1152xbf16, #tpu.memory_space<vmem>>, vector<384x128xbf16>
    tpu.vector_store %arg11[%c0_63, %c512_64], %51 {strides = array<i32>} : memref<384x1152xbf16, #tpu.memory_space<vmem>>, vector<384x128xbf16>,
    %c26_65 = arith.constant 26 : index
    %c0_66 = arith.constant 0 : index
    %53 = vector.load %arg9[%c26_65, %c0_66] : memref<448x128xbf16, #tpu.memory_space<vmem>>, vector<384x128xbf16>
    %c0_67 = arith.constant 0 : index
    %c640_68 = arith.constant 640 : index
    %54 = vector.load %arg11[%c0_67, %c640_68] : memref<384x1152xbf16, #tpu.memory_space<vmem>>, vector<384x128xbf16>
    tpu.vector_store %arg11[%c0_67, %c640_68], %53 {strides = array<i32>} : memref<384x1152xbf16, #tpu.memory_space<vmem>>, vector<384x128xbf16>,
    %c48_69 = arith.constant 48 : index
    %c0_70 = arith.constant 0 : index
    %55 = vector.load %arg9[%c48_69, %c0_70] : memref<448x128xbf16, #tpu.memory_space<vmem>>, vector<384x128xbf16>
    %c0_71 = arith.constant 0 : index
    %c768_72 = arith.constant 768 : index
    %56 = vector.load %arg11[%c0_71, %c768_72] : memref<384x1152xbf16, #tpu.memory_space<vmem>>, vector<384x128xbf16>
    tpu.vector_store %arg11[%c0_71, %c768_72], %55 {strides = array<i32>} : memref<384x1152xbf16, #tpu.memory_space<vmem>>, vector<384x128xbf16>,
    %c49_73 = arith.constant 49 : index
    %c0_74 = arith.constant 0 : index
    %57 = vector.load %arg9[%c49_73, %c0_74] : memref<448x128xbf16, #tpu.memory_space<vmem>>, vector<384x128xbf16>
    %c0_75 = arith.constant 0 : index
    %c896_76 = arith.constant 896 : index
    %58 = vector.load %arg11[%c0_75, %c896_76] : memref<384x1152xbf16, #tpu.memory_space<vmem>>, vector<384x128xbf16>
    tpu.vector_store %arg11[%c0_75, %c896_76], %57 {strides = array<i32>} : memref<384x1152xbf16, #tpu.memory_space<vmem>>, vector<384x128xbf16>,
    %c50_77 = arith.constant 50 : index
    %c0_78 = arith.constant 0 : index
    %59 = vector.load %arg9[%c50_77, %c0_78] : memref<448x128xbf16, #tpu.memory_space<vmem>>, vector<384x128xbf16>
    %c0_79 = arith.constant 0 : index
    %c1024_80 = arith.constant 1024 : index
    %60 = vector.load %arg11[%c0_79, %c1024_80] : memref<384x1152xbf16, #tpu.memory_space<vmem>>, vector<384x128xbf16>
    tpu.vector_store %arg11[%c0_79, %c1024_80], %59 {strides = array<i32>} : memref<384x1152xbf16, #tpu.memory_space<vmem>>, vector<384x128xbf16>,
    %c0_81 = arith.constant 0 : index
    %c0_82 = arith.constant 0 : index
    %61 = vector.load %arg11[%c0_81, %c0_82] : memref<384x1152xbf16, #tpu.memory_space<vmem>>, vector<384x1152xbf16>
    %c0_83 = arith.constant 0 : index
    %c0_84 = arith.constant 0 : index
    %62 = vector.load %arg3[%c0_83, %c0_84] : memref<1152x128xbf16, #tpu.memory_space<vmem>>, vector<1152x128xbf16>
    %cst_85 = arith.constant dense<0.000000e+00> : vector<384x128xf32>
    %63 = tpu.matmul %61, %62, %cst_85 {dimension_numbers = #tpu.dot_dimension_numbers<[1], [0], [0], [1], [0, 0, 1, 1], [], []>} : vector<384x1152xbf16>, vector<1152x128xbf16>, vector<384x128xf32> -> vector<384x128xf32>
    %c2_86 = arith.constant 2 : index
    %c0_87 = arith.constant 0 : index
    %64 = vector.load %arg5[%c2_86, %c0_87] : memref<6x128xf32, #tpu.memory_space<vmem>>, vector<1x128xf32>
    %65 = vector.broadcast %64 : vector<1x128xf32> to vector<384x128xf32>
    %66 = arith.mulf %63, %65 : vector<384x128xf32>
    %c3 = arith.constant 3 : index
    %c0_88 = arith.constant 0 : index
    %67 = vector.load %arg5[%c3, %c0_88] : memref<6x128xf32, #tpu.memory_space<vmem>>, vector<1x128xf32>
    %68 = vector.broadcast %67 : vector<1x128xf32> to vector<384x128xf32>
    %69 = arith.addf %66, %68 : vector<384x128xf32>
    %c25_89 = arith.constant 25 : index
    %c0_90 = arith.constant 0 : index
    %70 = vector.load %arg8[%c25_89, %c0_90] : memref<448x128xbf16, #tpu.memory_space<vmem>>, vector<384x128xbf16>
    %c0_91 = arith.constant 0 : index
    %c0_92 = arith.constant 0 : index
    %71 = vector.load %arg4[%c0_91, %c0_92] : memref<128x128xbf16, #tpu.memory_space<vmem>>, vector<128x128xbf16>
    %cst_93 = arith.constant dense<0.000000e+00> : vector<384x128xf32>
    %72 = tpu.matmul %70, %71, %cst_93 {dimension_numbers = #tpu.dot_dimension_numbers<[1], [0], [0], [1], [0, 0, 1, 1], [], []>} : vector<384x128xbf16>, vector<128x128xbf16>, vector<384x128xf32> -> vector<384x128xf32>
    %c4 = arith.constant 4 : index
    %c0_94 = arith.constant 0 : index
    %73 = vector.load %arg5[%c4, %c0_94] : memref<6x128xf32, #tpu.memory_space<vmem>>, vector<1x128xf32>
    %74 = vector.broadcast %73 : vector<1x128xf32> to vector<384x128xf32>
    %75 = arith.mulf %72, %74 : vector<384x128xf32>
    %c5 = arith.constant 5 : index
    %c0_95 = arith.constant 0 : index
    %76 = vector.load %arg5[%c5, %c0_95] : memref<6x128xf32, #tpu.memory_space<vmem>>, vector<1x128xf32>
    %77 = vector.broadcast %76 : vector<1x128xf32> to vector<384x128xf32>
    %78 = arith.addf %75, %77 : vector<384x128xf32>
    %79 = arith.addf %69, %78 : vector<384x128xf32>
    %cst_96 = arith.constant 0.000000e+00 : f32
    %80 = vector.broadcast %cst_96 : f32 to vector<384x128xf32>
    %81 = arith.maximumf %79, %80 : vector<384x128xf32>
    %c0_97 = arith.constant 0 : index
    %c0_98 = arith.constant 0 : index
    %c0_99 = arith.constant 0 : index
    %82 = vector.load %arg7[%c0_97, %c0_98, %c0_99] : memref<1x384x128xf32, #tpu.memory_space<vmem>>, vector<1x384x128xf32>
    %83 = vector.shape_cast %82 : vector<1x384x128xf32> to vector<384x128xf32>
    %84 = vector.shape_cast %81 : vector<384x128xf32> to vector<1x384x128xf32>
    tpu.vector_store %arg7[%c0_97, %c0_98, %c0_99], %84 {strides = array<i32>} : memref<1x384x128xf32, #tpu.memory_space<vmem>>, vector<1x384x128xf32>,
    return
  }
  func.func @transform_0(%arg0: i32) -> (i32, i32, i32) {
    %c0_i32 = arith.constant 0 : i32
    %c0_i32_0 = arith.constant 0 : i32
    %c0_i32_1 = arith.constant 0 : i32
    return %arg0, %c0_i32, %c0_i32_0 : i32, i32, i32
  }
  func.func @transform_1(%arg0: i32) -> (i32, i32) {
    %c0_i32 = arith.constant 0 : i32
    %c0_i32_0 = arith.constant 0 : i32
    %c0_i32_1 = arith.constant 0 : i32
    return %c0_i32, %c0_i32_0 : i32, i32
  }
  func.func @transform_2(%arg0: i32) -> (i32, i32) {
    %c0_i32 = arith.constant 0 : i32
    %c0_i32_0 = arith.constant 0 : i32
    %c0_i32_1 = arith.constant 0 : i32
    return %c0_i32, %c0_i32_0 : i32, i32
  }
  func.func @transform_3(%arg0: i32) -> (i32, i32) {
    %c0_i32 = arith.constant 0 : i32
    %c0_i32_0 = arith.constant 0 : i32
    %c0_i32_1 = arith.constant 0 : i32
    return %c0_i32, %c0_i32_0 : i32, i32
  }
  func.func @transform_4(%arg0: i32) -> (i32, i32) {
    %c0_i32 = arith.constant 0 : i32
    %c0_i32_0 = arith.constant 0 : i32
    %c0_i32_1 = arith.constant 0 : i32
    return %c0_i32, %c0_i32_0 : i32, i32
  }
  func.func @transform_5(%arg0: i32) -> (i32, i32) {
    %c0_i32 = arith.constant 0 : i32
    %c0_i32_0 = arith.constant 0 : i32
    %c0_i32_1 = arith.constant 0 : i32
    return %c0_i32, %c0_i32_0 : i32, i32
  }
  func.func @transform_6(%arg0: i32) -> (i32, i32, i32) {
    %c0_i32 = arith.constant 0 : i32
    %c0_i32_0 = arith.constant 0 : i32
    %c0_i32_1 = arith.constant 0 : i32
    return %arg0, %c0_i32, %c0_i32_0 : i32, i32, i32
  }
}

</mosaic_0001>

<llo_original>
// kernel: tpu_custom_call.1
$region0: #{tpu_custom_call.1}
  #allocation0 [shape = 'u32[]', space=smem, size = 0x4, offset = 0x4, fixed_abs, tag = 'smem constant byte address 0x4 - core index']
  #allocation1 [shape = 'u32[144,128]{1,0:T(1,128)}', space=vmem, size = 0x12000, scoped, tag = 'internal scratch']
  #allocation2 [shape = 'bf16[448,128]{1,0:T(16,128)(2,1)}', space=vmem, size = 0x1c000, scoped, tag = 'scratch operand']
  #allocation3 [shape = 'bf16[448,128]{1,0:T(16,128)(2,1)}', space=vmem, size = 0x1c000, scoped, tag = 'scratch operand']
  #allocation4 [shape = 'bf16[384,1152]{1,0:T(16,128)(2,1)}', space=vmem, size = 0xd8000, scoped, tag = 'scratch operand']
  #allocation5 [shape = 'bf16[384,1152]{1,0:T(16,128)(2,1)}', space=vmem, size = 0xd8000, scoped, tag = 'scratch operand']
  %s0 = inlined_call_operand.vmem [shape: bf16[2,448,4], index: 0, kind: input, shape index: {}]
  %s1 = inlined_call_operand.vmem [shape: bf16[1152,128], index: 1, kind: input, shape index: {}]
  %s2 = inlined_call_operand.hbm [shape: bf16[1152,128], index: 2, kind: input, shape index: {}]
  %s3 = inlined_call_operand.vmem [shape: bf16[128,128], index: 3, kind: input, shape index: {}]
  %s4 = inlined_call_operand.vmem [shape: f32[6,128], index: 4, kind: input, shape index: {}]
  %s5 = inlined_call_operand.vmem [shape: f32[384,1], index: 5, kind: input, shape index: {}]
  %s6 = inlined_call_operand.hbm [shape: f32[2,384,128], index: 6, kind: output, shape index: {}]
  %s7 = sld [smem:[#allocation0]]
  $region61: #{tpu_custom_call.1} parent=0
    _
  %s9 = ssub.s32 1, %s7
  %s10 = scalar_select 0, %s9, %s7
  $region1: #{tpu_custom_call.1} parent=0
    #allocation6 [shape = 'u8[294912]{0}', space=vmem, size = 0x48000, scoped, tag = 'input window, operand 2, single buffered']
    #allocation7 [shape = 's32[2]{0}', space=sflag, size = 0x8, scoped, tag = 'scoped memory for tpu_custom_call.1']
    #allocation8 [shape = 's32[2]{0}', space=sflag, size = 0x8, scoped, tag = 'scoped memory for tpu_custom_call.1']
    #allocation9 [shape = 'u8[393216]{0}', space=vmem, size = 0x60000, scoped, tag = 'output window, operand 0']
    %11 = vsyncpa [#allocation7], 0
    %12 = vsyncpa [#allocation8], 0
    %s13 = scalar_lea.sflag [#allocation8], 1
    %14 = vsyncpa %s13, 0
    loop: start=0, step=1, limit=4
    $region2: #{tpu_custom_call.1} parent=1 // loop_pre_header
      _
    $region3: #{tpu_custom_call.1} parent=1 // loop_header
      %s16 = sphi 0, %s20
      %p17 = scmp.ge.s32.totalorder %s16, 4
      %s26 = sphi 0, %s28
      %s29 = sphi 0, %s26
      %s30 = sphi 0, %s29
      %s46 = sphi 0, %s30
      %s50 = sphi 0, %s50
      %s52 = sphi 0, %s50
      %s53 = sphi 0, %s52
      %s67 = sphi 0, %s53
      %s71 = sphi 0, %s71
      %s73 = sphi 0, %s71
      %s74 = sphi 0, %s73
      %s88 = sphi 0, %s74
      %s92 = sphi 0, %s92
      %s94 = sphi 0, %s92
      %s95 = sphi 0, %s94
      %s109 = sphi 0, %s95
      %s113 = sphi 0, %s113
      %s115 = sphi 0, %s113
      %s116 = sphi 0, %s115
      %s130 = sphi 0, %s116
      %s134 = sphi 0, %s134
      %s136 = sphi 0, %s134
      %s137 = sphi 0, %s136
      %s151 = sphi 0, %s137
      %s157 = sphi 0, %s159
      %s160 = sphi 0, %s157
      %s161 = sphi 0, %s160
      %s177 = sphi 0, %s161
    $region4: #{tpu_custom_call.1} parent=1 // loop_header_branch
      %19 = sbr.rel (%p17) target = $region8
    $region5: #{tpu_custom_call.1} parent=1 // loop_body
      %s21 = ssub.s32 %s16, 1
      %s22 = ssub.s32 %s16, 2
      %s23 = sadd.s32 %s16, 1
      %s24 = ssub.s32 %s16, %s23
      %p25 = scmp.eq.s32.totalorder %s24, 0
      %s27 = sadd.s32 %s26, 1
      %s28 = scalar_select %p25, %s26, %s27
      %p31 = pneg %p25
      %p32 = scmp.eq.s32.totalorder %s16, 1
      %p33 = por %p31, %p32
      %p34 = scmp.ne.s32.totalorder %s26, %s29
      %p35 = scmp.eq.s32.totalorder %s16, 0
      %p36 = por %p34, %p35
      %p37 = scmp.ne.s32.totalorder %s26, %s29
      %p38 = scmp.eq.s32.totalorder %s21, 1
      %p39 = por %p37, %p38
      %p40 = scmp.ne.s32.totalorder %s29, %s30
      %p41 = scmp.eq.s32.totalorder %s21, 0
      %p42 = por %p40, %p41
      %p43 = scmp.ne.s32.totalorder %s29, %s30
      %p44 = scmp.eq.s32.totalorder %s22, 1
      %p45 = por %p43, %p44
      %p47 = scmp.ne.s32.totalorder %s30, %s46
      %p48 = scmp.eq.s32.totalorder %s22, 0
      %p49 = por %p47, %p48
      %s51 = sadd.s32 %s50, 1
      %p54 = scmp.eq.s32.totalorder %s16, 1
      %p55 = scmp.ne.s32.totalorder %s50, %s52
      %p56 = scmp.eq.s32.totalorder %s16, 0
      %p57 = por %p55, %p56
      %p58 = scmp.ne.s32.totalorder %s50, %s52
      %p59 = scmp.eq.s32.totalorder %s21, 1
      %p60 = por %p58, %p59
      %p61 = scmp.ne.s32.totalorder %s52, %s53
      %p62 = scmp.eq.s32.totalorder %s21, 0
      %p63 = por %p61, %p62
      %p64 = scmp.ne.s32.totalorder %s52, %s53
      %p65 = scmp.eq.s32.totalorder %s22, 1
      %p66 = por %p64, %p65
      %p68 = scmp.ne.s32.totalorder %s53, %s67
      %p69 = scmp.eq.s32.totalorder %s22, 0
      %p70 = por %p68, %p69
      %s72 = sadd.s32 %s71, 1
      %p75 = scmp.eq.s32.totalorder %s16, 1
      %p76 = scmp.ne.s32.totalorder %s71, %s73
      %p77 = scmp.eq.s32.totalorder %s16, 0
      %p78 = por %p76, %p77
      %p79 = scmp.ne.s32.totalorder %s71, %s73
      %p80 = scmp.eq.s32.totalorder %s21, 1
      %p81 = por %p79, %p80
      %p82 = scmp.ne.s32.totalorder %s73, %s74
      %p83 = scmp.eq.s32.totalorder %s21, 0
      %p84 = por %p82, %p83
      %p85 = scmp.ne.s32.totalorder %s73, %s74
      %p86 = scmp.eq.s32.totalorder %s22, 1
      %p87 = por %p85, %p86
      %p89 = scmp.ne.s32.totalorder %s74, %s88
      %p90 = scmp.eq.s32.totalorder %s22, 0
      %p91 = por %p89, %p90
      %s93 = sadd.s32 %s92, 1
      %p96 = scmp.eq.s32.totalorder %s16, 1
      %p97 = scmp.ne.s32.totalorder %s92, %s94
      %p98 = scmp.eq.s32.totalorder %s16, 0
      %p99 = por %p97, %p98
      %p100 = scmp.ne.s32.totalorder %s92, %s94
      %p101 = scmp.eq.s32.totalorder %s21, 1
      %p102 = por %p100, %p101
      %p103 = scmp.ne.s32.totalorder %s94, %s95
      %p104 = scmp.eq.s32.totalorder %s21, 0
      %p105 = por %p103, %p104
      %p106 = scmp.ne.s32.totalorder %s94, %s95
      %p107 = scmp.eq.s32.totalorder %s22, 1
      %p108 = por %p106, %p107
      %p110 = scmp.ne.s32.totalorder %s95, %s109
      %p111 = scmp.eq.s32.totalorder %s22, 0
      %p112 = por %p110, %p111
      %s114 = sadd.s32 %s113, 1
      %p117 = scmp.eq.s32.totalorder %s16, 1
      %p118 = scmp.ne.s32.totalorder %s113, %s115
      %p119 = scmp.eq.s32.totalorder %s16, 0
      %p120 = por %p118, %p119
      %p121 = scmp.ne.s32.totalorder %s113, %s115
      %p122 = scmp.eq.s32.totalorder %s21, 1
      %p123 = por %p121, %p122
      %p124 = scmp.ne.s32.totalorder %s115, %s116
      %p125 = scmp.eq.s32.totalorder %s21, 0
      %p126 = por %p124, %p125
      %p127 = scmp.ne.s32.totalorder %s115, %s116
      %p128 = scmp.eq.s32.totalorder %s22, 1
      %p129 = por %p127, %p128
      %p131 = scmp.ne.s32.totalorder %s116, %s130
      %p132 = scmp.eq.s32.totalorder %s22, 0
      %p133 = por %p131, %p132
      %s135 = sadd.s32 %s134, 1
      %p138 = scmp.eq.s32.totalorder %s16, 1
      %p139 = scmp.ne.s32.totalorder %s134, %s136
      %p140 = scmp.eq.s32.totalorder %s16, 0
      %p141 = por %p139, %p140
      %p142 = scmp.ne.s32.totalorder %s134, %s136
      %p143 = scmp.eq.s32.totalorder %s21, 1
      %p144 = por %p142, %p143
      %p145 = scmp.ne.s32.totalorder %s136, %s137
      %p146 = scmp.eq.s32.totalorder %s21, 0
      %p147 = por %p145, %p146
      %p148 = scmp.ne.s32.totalorder %s136, %s137
      %p149 = scmp.eq.s32.totalorder %s22, 1
      %p150 = por %p148, %p149
      %p152 = scmp.ne.s32.totalorder %s137, %s151
      %p153 = scmp.eq.s32.totalorder %s22, 0
      %p154 = por %p152, %p153
      %s155 = ssub.s32 %s16, %s23
      %p156 = scmp.eq.s32.totalorder %s155, 0
      %s158 = sadd.s32 %s157, 1
      %s159 = scalar_select %p156, %s157, %s158
      %p162 = pneg %p156
      %p163 = scmp.eq.s32.totalorder %s16, 1
      %p164 = por %p162, %p163
      %p165 = scmp.ne.s32.totalorder %s157, %s160
      %p166 = scmp.eq.s32.totalorder %s16, 0
      %p167 = por %p165, %p166
      %p168 = scmp.ne.s32.totalorder %s157, %s160
      %p169 = scmp.eq.s32.totalorder %s21, 1
      %p170 = por %p168, %p169
      %p171 = scmp.ne.s32.totalorder %s160, %s161
      %p172 = scmp.eq.s32.totalorder %s21, 0
      %p173 = por %p171, %p172
      %p174 = scmp.ne.s32.totalorder %s160, %s161
      %p175 = scmp.eq.s32.totalorder %s22, 1
      %p176 = por %p174, %p175
      %p178 = scmp.ne.s32.totalorder %s161, %s177
      %p179 = scmp.eq.s32.totalorder %s22, 0
      %p180 = por %p178, %p179
      %p181 = scmp.le.s32.totalorder 1, %s16
      %p182 = scmp.lt.s32.totalorder %s16, 3
      %p183 = pnand %p181, %p182
      %p184 = pneg %p183
      // Predicated region
      $region9: #{tpu_custom_call.1} parent=5 // pred_check
        _
      $region10: #{tpu_custom_call.1} parent=5 // pred_check_branch
        %186 = sbr.rel (%p183) target = $region12
      $region11: #{tpu_custom_call.1} parent=5 // pred_region
        %s187 = ssub.s32 %s16, 1
        // Predicated region
        $region13: #{tpu_custom_call.1} parent=11 // pred_check
          %p188 = pneg %p63
        $region14: #{tpu_custom_call.1} parent=11 // pred_check_branch
          %190 = sbr.rel (%p188) target = $region16
        $region15: #{tpu_custom_call.1} parent=11 // pred_region
          _
        $region16: #{tpu_custom_call.1} parent=11 // pred_fallthru
          _
        // Predicated region
        $region17: #{tpu_custom_call.1} parent=11 // pred_check
          %p191 = pneg %p84
        $region18: #{tpu_custom_call.1} parent=11 // pred_check_branch
          %193 = sbr.rel (%p191) target = $region20
        $region19: #{tpu_custom_call.1} parent=11 // pred_region
          %s195 = ssub.s32 9216, 9216
          %196 = vsyncadd [#allocation7], %s195
          %s197 = sshll.u32 [#allocation6], 4
          %s198 = int_to_ptr.vmem [resolvable:$true] %s197
          %203 = dma.hbm_to_vmem [thread:$0]  %s2, 9216, %s198, [#allocation7], 64, 64, 4
        $region20: #{tpu_custom_call.1} parent=11 // pred_fallthru
          _
        // Predicated region
        $region21: #{tpu_custom_call.1} parent=11 // pred_check
          %p204 = pneg %p105
        $region22: #{tpu_custom_call.1} parent=11 // pred_check_branch
          %206 = sbr.rel (%p204) target = $region24
        $region23: #{tpu_custom_call.1} parent=11 // pred_region
          _
        $region24: #{tpu_custom_call.1} parent=11 // pred_fallthru
          _
        // Predicated region
        $region25: #{tpu_custom_call.1} parent=11 // pred_check
          %p207 = pneg %p126
        $region26: #{tpu_custom_call.1} parent=11 // pred_check_branch
          %209 = sbr.rel (%p207) target = $region28
        $region27: #{tpu_custom_call.1} parent=11 // pred_region
          _
        $region28: #{tpu_custom_call.1} parent=11 // pred_fallthru
          _
        // Predicated region
        $region29: #{tpu_custom_call.1} parent=11 // pred_check
          %p210 = pneg %p147
        $region30: #{tpu_custom_call.1} parent=11 // pred_check_branch
          %212 = sbr.rel (%p210) target = $region32
        $region31: #{tpu_custom_call.1} parent=11 // pred_region
          _
        $region32: #{tpu_custom_call.1} parent=11 // pred_fallthru
          _
      $region12: #{tpu_custom_call.1} parent=5 // pred_fallthru
        _
      %p213 = scmp.lt.s32.totalorder %s16, 2
      // Predicated region
      $region33: #{tpu_custom_call.1} parent=5 // pred_check
        %p214 = pneg %p213
      $region34: #{tpu_custom_call.1} parent=5 // pred_check_branch
        %216 = sbr.rel (%p214) target = $region36
      $region35: #{tpu_custom_call.1} parent=5 // pred_region
        // Predicated region
        $region37: #{tpu_custom_call.1} parent=35 // pred_check
          %p217 = pneg %p36
        $region38: #{tpu_custom_call.1} parent=35 // pred_check_branch
          %219 = sbr.rel (%p217) target = $region40
        $region39: #{tpu_custom_call.1} parent=35 // pred_region
          %p220 = scmp.lt.s32.totalorder %s16, 1
          %s221 = scalar_select %p220, %s16, 1
          %s222 = smul.addr %s221, 56
          %s223 = smul.addr %s222, 4
          %s224 = scalar_lea.vmem %s0, %s223
        $region40: #{tpu_custom_call.1} parent=35 // pred_fallthru
          _
      $region36: #{tpu_custom_call.1} parent=5 // pred_fallthru
        _
      %p225 = scmp.le.s32.totalorder 1, %s16
      %p226 = scmp.lt.s32.totalorder %s16, 3
      %p227 = pnand %p225, %p226
      %p228 = pneg %p227
      // Predicated region
      $region41: #{tpu_custom_call.1} parent=5 // pred_check
        _
      $region42: #{tpu_custom_call.1} parent=5 // pred_check_branch
        %230 = sbr.rel (%p227) target = $region44
      $region43: #{tpu_custom_call.1} parent=5 // pred_region
        %s231 = ssub.s32 %s16, 1
        // Predicated region
        $region45: #{tpu_custom_call.1} parent=43 // pred_check
          %p232 = pneg %p84
        $region46: #{tpu_custom_call.1} parent=43 // pred_check_branch
          %234 = sbr.rel (%p232) target = $region48
        $region47: #{tpu_custom_call.1} parent=43 // pred_region
          %235 = dma.done [#allocation7], 9216
        $region48: #{tpu_custom_call.1} parent=43 // pred_fallthru
          _
        %p236 = scmp.lt.s32.totalorder %s21, 1
        %s237 = scalar_select %p236, %s21, 1
        %s238 = smul.addr %s237, 56
        %s239 = smul.addr %s238, 4
        %s240 = scalar_lea.vmem %s0, %s239
        %p241 = pneg %p42
        %p242 = pneg %p39
        %p243 = pneg %p63
        %p244 = pneg %p60
        %p245 = pneg %p84
        %p246 = pneg %p81
        %p247 = pneg %p105
        %p248 = pneg %p102
        %p249 = pneg %p126
        %p250 = pneg %p123
        %p251 = pneg %p147
        %p252 = pneg %p144
        %p253 = pneg %p173
        %p254 = pneg %p170
        %s255 = sand.u32 %s160, 1
        %s256 = scalar_lea.sflag [#allocation8], %s255
        %s257 = sand.u32 %s160, 1
        %s258 = smul.addr %s257, 384
        %s259 = scalar_lea.vmem [#allocation9], %s258
        %p260 = scmp.lt.s32.totalorder %s21, 1
        %s261 = scalar_select %p260, %s21, 1
        %s262 = smul.addr %s261, 56
        %s263 = smul.addr %s262, 4
        %s264 = scalar_lea.vmem %s0, %s263
        %266 = vst [vmem:[#allocation2] sm:$0xff] 0
        %267 = vst [vmem:[#allocation2 + $0x8] sm:$0xff] 0
        %268 = vst [vmem:[#allocation2 + $0x10] sm:$0xff] 0
        %269 = vst [vmem:[#allocation2 + $0x18] sm:$0xff] 0
        %270 = vst [vmem:[#allocation2 + $0x20] sm:$0xff] 0
        %271 = vst [vmem:[#allocation2 + $0x28] sm:$0xff] 0
        %272 = vst [vmem:[#allocation2 + $0x30] sm:$0xff] 0
        %273 = vst [vmem:[#allocation2 + $0x38] sm:$0xff] 0
        %274 = vst [vmem:[#allocation2 + $0x40] sm:$0xff] 0
        %275 = vst [vmem:[#allocation2 + $0x48] sm:$0xff] 0
        %276 = vst [vmem:[#allocation2 + $0x50] sm:$0xff] 0
        %277 = vst [vmem:[#allocation2 + $0x58] sm:$0xff] 0
        %278 = vst [vmem:[#allocation2 + $0x60] sm:$0xff] 0
        %279 = vst [vmem:[#allocation2 + $0x68] sm:$0xff] 0
        %280 = vst [vmem:[#allocation2 + $0x70] sm:$0xff] 0
        %281 = vst [vmem:[#allocation2 + $0x78] sm:$0xff] 0
        %282 = vst [vmem:[#allocation2 + $0x80] sm:$0xff] 0
        %283 = vst [vmem:[#allocation2 + $0x88] sm:$0xff] 0
        %284 = vst [vmem:[#allocation2 + $0x90] sm:$0xff] 0
        %285 = vst [vmem:[#allocation2 + $0x98] sm:$0xff] 0
        %286 = vst [vmem:[#allocation2 + $0xa0] sm:$0xff] 0
        %287 = vst [vmem:[#allocation2 + $0xa8] sm:$0xff] 0
        %288 = vst [vmem:[#allocation2 + $0xb0] sm:$0xff] 0
        %289 = vst [vmem:[#allocation2 + $0xb8] sm:$0xff] 0
        %290 = vst [vmem:[#allocation2 + $0xc0] sm:$0xff] 0
        %291 = vst [vmem:[#allocation2 + $0xc8] sm:$0xff] 0
        %292 = vst [vmem:[#allocation2 + $0xd0] sm:$0xff] 0
        %293 = vst [vmem:[#allocation2 + $0xd8] sm:$0xff] 0
        %v294 = vld [vmem:[%s264] sm:$0xf]
        %v295 = vld [vmem:[%s264 + $0x4] sm:$0xf]
        %v296 = vld [vmem:[%s264 + $0x8] sm:$0xf]
        %v297 = vld [vmem:[%s264 + $0xc] sm:$0xf]
        %v298 = vld [vmem:[%s264 + $0x10] sm:$0xf]
        %v299 = vld [vmem:[%s264 + $0x14] sm:$0xf]
        %v300 = vld [vmem:[%s264 + $0x18] sm:$0xf]
        %v301 = vld [vmem:[%s264 + $0x1c] sm:$0xf]
        %v302 = vld [vmem:[%s264 + $0x20] sm:$0xf]
        %v303 = vld [vmem:[%s264 + $0x24] sm:$0xf]
        %v304 = vld [vmem:[%s264 + $0x28] sm:$0xf]
        %v305 = vld [vmem:[%s264 + $0x2c] sm:$0xf]
        %v306 = vld [vmem:[%s264 + $0x30] sm:$0xf]
        %v307 = vld [vmem:[%s264 + $0x34] sm:$0xf]
        %v308 = vld [vmem:[%s264 + $0x38] sm:$0xf]
        %v309 = vld [vmem:[%s264 + $0x3c] sm:$0xf]
        %v310 = vld [vmem:[%s264 + $0x40] sm:$0xf]
        %v311 = vld [vmem:[%s264 + $0x44] sm:$0xf]
        %v312 = vld [vmem:[%s264 + $0x48] sm:$0xf]
        %v313 = vld [vmem:[%s264 + $0x4c] sm:$0xf]
        %v314 = vld [vmem:[%s264 + $0x50] sm:$0xf]
        %v315 = vld [vmem:[%s264 + $0x54] sm:$0xf]
        %v316 = vld [vmem:[%s264 + $0x58] sm:$0xf]
        %v317 = vld [vmem:[%s264 + $0x5c] sm:$0xf]
        %v318 = vld [vmem:[%s264 + $0x60] sm:$0xf]
        %v319 = vld [vmem:[%s264 + $0x64] sm:$0xf]
        %v320 = vld [vmem:[%s264 + $0x68] sm:$0xf]
        %v321 = vld [vmem:[%s264 + $0x6c] sm:$0xf]
        %v322 = vld [vmem:[%s264 + $0x70] sm:$0xf]
        %v323 = vld [vmem:[%s264 + $0x74] sm:$0xf]
        %v324 = vld [vmem:[%s264 + $0x78] sm:$0xf]
        %v325 = vld [vmem:[%s264 + $0x7c] sm:$0xf]
        %v326 = vld [vmem:[%s264 + $0x80] sm:$0xf]
        %v327 = vld [vmem:[%s264 + $0x84] sm:$0xf]
        %v328 = vld [vmem:[%s264 + $0x88] sm:$0xf]
        %v329 = vld [vmem:[%s264 + $0x8c] sm:$0xf]
        %v330 = vld [vmem:[%s264 + $0x90] sm:$0xf]
        %v331 = vld [vmem:[%s264 + $0x94] sm:$0xf]
        %v332 = vld [vmem:[%s264 + $0x98] sm:$0xf]
        %v333 = vld [vmem:[%s264 + $0x9c] sm:$0xf]
        %v334 = vld [vmem:[%s264 + $0xa0] sm:$0xf]
        %v335 = vld [vmem:[%s264 + $0xa4] sm:$0xf]
        %v336 = vld [vmem:[%s264 + $0xa8] sm:$0xf]
        %v337 = vld [vmem:[%s264 + $0xac] sm:$0xf]
        %v338 = vld [vmem:[%s264 + $0xb0] sm:$0xf]
        %v339 = vld [vmem:[%s264 + $0xb4] sm:$0xf]
        %v340 = vld [vmem:[%s264 + $0xb8] sm:$0xf]
        %v341 = vld [vmem:[%s264 + $0xbc] sm:$0xf]
        %v342 = vld [vmem:[%s264 + $0xc0] sm:$0xf]
        %v343 = vld [vmem:[%s264 + $0xc4] sm:$0xf]
        %v344 = vld [vmem:[%s264 + $0xc8] sm:$0xf]
        %v345 = vld [vmem:[%s264 + $0xcc] sm:$0xf]
        %v346 = vld [vmem:[%s264 + $0xd0] sm:$0xf]
        %v347 = vld [vmem:[%s264 + $0xd4] sm:$0xf]
        %v348 = vld [vmem:[%s264 + $0xd8] sm:$0xf]
        %v349 = vld [vmem:[%s264 + $0xdc] sm:$0xf]
        %v406 = vunpack.c.l.b16 %v294
        %v407 = vunpack.c.l.b16 %v295
        %v408 = vunpack.c.l.b16 %v296
        %v409 = vunpack.c.l.b16 %v297
        %v410 = vunpack.c.l.b16 %v298
        %v411 = vunpack.c.l.b16 %v299
        %v412 = vunpack.c.l.b16 %v300
        %v413 = vunpack.c.l.b16 %v301
        %v414 = vunpack.c.l.b16 %v302
        %v415 = vunpack.c.l.b16 %v303
        %v416 = vunpack.c.l.b16 %v304
        %v417 = vunpack.c.l.b16 %v305
        %v418 = vunpack.c.l.b16 %v306
        %v419 = vunpack.c.l.b16 %v307
        %v420 = vunpack.c.l.b16 %v308
        %v421 = vunpack.c.l.b16 %v309
        %v422 = vunpack.c.l.b16 %v310
        %v423 = vunpack.c.l.b16 %v311
        %v424 = vunpack.c.l.b16 %v312
        %v425 = vunpack.c.l.b16 %v313
        %v426 = vunpack.c.l.b16 %v314
        %v427 = vunpack.c.l.b16 %v315
        %v428 = vunpack.c.l.b16 %v316
        %v429 = vunpack.c.l.b16 %v317
        %v430 = vunpack.c.l.b16 %v318
        %v431 = vunpack.c.l.b16 %v319
        %v432 = vunpack.c.l.b16 %v320
        %v433 = vunpack.c.l.b16 %v321
        %v434 = vunpack.c.l.b16 %v322
        %v435 = vunpack.c.l.b16 %v323
        %v436 = vunpack.c.l.b16 %v324
        %v437 = vunpack.c.l.b16 %v325
        %v438 = vunpack.c.l.b16 %v326
        %v439 = vunpack.c.l.b16 %v327
        %v440 = vunpack.c.l.b16 %v328
        %v441 = vunpack.c.l.b16 %v329
        %v442 = vunpack.c.l.b16 %v330
        %v443 = vunpack.c.l.b16 %v331
        %v444 = vunpack.c.l.b16 %v332
        %v445 = vunpack.c.l.b16 %v333
        %v446 = vunpack.c.l.b16 %v334
        %v447 = vunpack.c.l.b16 %v335
        %v448 = vunpack.c.l.b16 %v336
        %v449 = vunpack.c.l.b16 %v337
        %v450 = vunpack.c.l.b16 %v338
        %v451 = vunpack.c.l.b16 %v339
        %v452 = vunpack.c.l.b16 %v340
        %v453 = vunpack.c.l.b16 %v341
        %v454 = vunpack.c.l.b16 %v342
        %v455 = vunpack.c.l.b16 %v343
        %v456 = vunpack.c.l.b16 %v344
        %v457 = vunpack.c.l.b16 %v345
        %v458 = vunpack.c.l.b16 %v346
        %v459 = vunpack.c.l.b16 %v347
        %v460 = vunpack.c.l.b16 %v348
        %v461 = vunpack.c.l.b16 %v349
        %v462 = vpack.c.b16 %v407, %v406
        %v463 = vpack.c.b16 %v409, %v408
        %v464 = vpack.c.b16 %v411, %v410
        %v465 = vpack.c.b16 %v413, %v412
        %v466 = vpack.c.b16 %v415, %v414
        %v467 = vpack.c.b16 %v417, %v416
        %v468 = vpack.c.b16 %v419, %v418
        %v469 = vpack.c.b16 %v421, %v420
        %v470 = vpack.c.b16 %v423, %v422
        %v471 = vpack.c.b16 %v425, %v424
        %v472 = vpack.c.b16 %v427, %v426
        %v473 = vpack.c.b16 %v429, %v428
        %v474 = vpack.c.b16 %v431, %v430
        %v475 = vpack.c.b16 %v433, %v432
        %v476 = vpack.c.b16 %v435, %v434
        %v477 = vpack.c.b16 %v437, %v436
        %v478 = vpack.c.b16 %v439, %v438
        %v479 = vpack.c.b16 %v441, %v440
        %v480 = vpack.c.b16 %v443, %v442
        %v481 = vpack.c.b16 %v445, %v444
        %v482 = vpack.c.b16 %v447, %v446
        %v483 = vpack.c.b16 %v449, %v448
        %v484 = vpack.c.b16 %v451, %v450
        %v485 = vpack.c.b16 %v453, %v452
        %v486 = vpack.c.b16 %v455, %v454
        %v487 = vpack.c.b16 %v457, %v456
        %v488 = vpack.c.b16 %v459, %v458
        %v489 = vpack.c.b16 %v461, %v460
        %vm518 = vcmask 31744
        %519 = vst.msk [vmem:[#allocation2] sm:$0xff] %vm518, %v462
        %520 = vst.msk [vmem:[#allocation2 + $0x8] sm:$0xff] %vm518, %v463
        %521 = vst.msk [vmem:[#allocation2 + $0x10] sm:$0xff] %vm518, %v464
        %522 = vst.msk [vmem:[#allocation2 + $0x18] sm:$0xff] %vm518, %v465
        %523 = vst.msk [vmem:[#allocation2 + $0x20] sm:$0xff] %vm518, %v466
        %524 = vst.msk [vmem:[#allocation2 + $0x28] sm:$0xff] %vm518, %v467
        %525 = vst.msk [vmem:[#allocation2 + $0x30] sm:$0xff] %vm518, %v468
        %526 = vst.msk [vmem:[#allocation2 + $0x38] sm:$0xff] %vm518, %v469
        %527 = vst.msk [vmem:[#allocation2 + $0x40] sm:$0xff] %vm518, %v470
        %528 = vst.msk [vmem:[#allocation2 + $0x48] sm:$0xff] %vm518, %v471
        %529 = vst.msk [vmem:[#allocation2 + $0x50] sm:$0xff] %vm518, %v472
        %530 = vst.msk [vmem:[#allocation2 + $0x58] sm:$0xff] %vm518, %v473
        %531 = vst.msk [vmem:[#allocation2 + $0x60] sm:$0xff] %vm518, %v474
        %532 = vst.msk [vmem:[#allocation2 + $0x68] sm:$0xff] %vm518, %v475
        %533 = vst.msk [vmem:[#allocation2 + $0x70] sm:$0xff] %vm518, %v476
        %534 = vst.msk [vmem:[#allocation2 + $0x78] sm:$0xff] %vm518, %v477
        %535 = vst.msk [vmem:[#allocation2 + $0x80] sm:$0xff] %vm518, %v478
        %536 = vst.msk [vmem:[#allocation2 + $0x88] sm:$0xff] %vm518, %v479
        %537 = vst.msk [vmem:[#allocation2 + $0x90] sm:$0xff] %vm518, %v480
        %538 = vst.msk [vmem:[#allocation2 + $0x98] sm:$0xff] %vm518, %v481
        %539 = vst.msk [vmem:[#allocation2 + $0xa0] sm:$0xff] %vm518, %v482
        %540 = vst.msk [vmem:[#allocation2 + $0xa8] sm:$0xff] %vm518, %v483
        %541 = vst.msk [vmem:[#allocation2 + $0xb0] sm:$0xff] %vm518, %v484
        %542 = vst.msk [vmem:[#allocation2 + $0xb8] sm:$0xff] %vm518, %v485
        %543 = vst.msk [vmem:[#allocation2 + $0xc0] sm:$0xff] %vm518, %v486
        %544 = vst.msk [vmem:[#allocation2 + $0xc8] sm:$0xff] %vm518, %v487
        %545 = vst.msk [vmem:[#allocation2 + $0xd0] sm:$0xff] %vm518, %v488
        %546 = vst.msk [vmem:[#allocation2 + $0xd8] sm:$0xff] %vm518, %v489
        %v547 = vld [vmem:[#allocation2] sm:$0xff]
        %v548 = vld [vmem:[#allocation2 + $0x8] sm:$0xff]
        %v549 = vld [vmem:[#allocation2 + $0x10] sm:$0xff]
        %v550 = vld [vmem:[#allocation2 + $0x18] sm:$0xff]
        %v551 = vld [vmem:[#allocation2 + $0x20] sm:$0xff]
        %v552 = vld [vmem:[#allocation2 + $0x28] sm:$0xff]
        %v553 = vld [vmem:[#allocation2 + $0x30] sm:$0xff]
        %v554 = vld [vmem:[#allocation2 + $0x38] sm:$0xff]
        %v555 = vld [vmem:[#allocation2 + $0x40] sm:$0xff]
        %v556 = vld [vmem:[#allocation2 + $0x48] sm:$0xff]
        %v557 = vld [vmem:[#allocation2 + $0x50] sm:$0xff]
        %v558 = vld [vmem:[#allocation2 + $0x58] sm:$0xff]
        %v559 = vld [vmem:[#allocation2 + $0x60] sm:$0xff]
        %v560 = vld [vmem:[#allocation2 + $0x68] sm:$0xff]
        %v561 = vld [vmem:[#allocation2 + $0x70] sm:$0xff]
        %v562 = vld [vmem:[#allocation2 + $0x78] sm:$0xff]
        %v563 = vld [vmem:[#allocation2 + $0x80] sm:$0xff]
        %v564 = vld [vmem:[#allocation2 + $0x88] sm:$0xff]
        %v565 = vld [vmem:[#allocation2 + $0x90] sm:$0xff]
        %v566 = vld [vmem:[#allocation2 + $0x98] sm:$0xff]
        %v567 = vld [vmem:[#allocation2 + $0xa0] sm:$0xff]
        %v568 = vld [vmem:[#allocation2 + $0xa8] sm:$0xff]
        %v569 = vld [vmem:[#allocation2 + $0xb0] sm:$0xff]
        %v570 = vld [vmem:[#allocation2 + $0xb8] sm:$0xff]
        %571 = vst [vmem:[#allocation4] sm:$0xff] %v547
        %572 = vst [vmem:[#allocation4 + $0x48] sm:$0xff] %v548
        %573 = vst [vmem:[#allocation4 + $0x90] sm:$0xff] %v549
        %574 = vst [vmem:[#allocation4 + $0xd8] sm:$0xff] %v550
        %575 = vst [vmem:[#allocation4 + $0x120] sm:$0xff] %v551
        %576 = vst [vmem:[#allocation4 + $0x168] sm:$0xff] %v552
        %577 = vst [vmem:[#allocation4 + $0x1b0] sm:$0xff] %v553
        %578 = vst [vmem:[#allocation4 + $0x1f8] sm:$0xff] %v554
        %579 = vst [vmem:[#allocation4 + $0x240] sm:$0xff] %v555
        %580 = vst [vmem:[#allocation4 + $0x288] sm:$0xff] %v556
        %581 = vst [vmem:[#allocation4 + $0x2d0] sm:$0xff] %v557
        %582 = vst [vmem:[#allocation4 + $0x318] sm:$0xff] %v558
        %583 = vst [vmem:[#allocation4 + $0x360] sm:$0xff] %v559
        %584 = vst [vmem:[#allocation4 + $0x3a8] sm:$0xff] %v560
        %585 = vst [vmem:[#allocation4 + $0x3f0] sm:$0xff] %v561
        %586 = vst [vmem:[#allocation4 + $0x438] sm:$0xff] %v562
        %587 = vst [vmem:[#allocation4 + $0x480] sm:$0xff] %v563
        %588 = vst [vmem:[#allocation4 + $0x4c8] sm:$0xff] %v564
        %589 = vst [vmem:[#allocation4 + $0x510] sm:$0xff] %v565
        %590 = vst [vmem:[#allocation4 + $0x558] sm:$0xff] %v566
        %591 = vst [vmem:[#allocation4 + $0x5a0] sm:$0xff] %v567
        %592 = vst [vmem:[#allocation4 + $0x5e8] sm:$0xff] %v568
        %593 = vst [vmem:[#allocation4 + $0x630] sm:$0xff] %v569
        %594 = vst [vmem:[#allocation4 + $0x678] sm:$0xff] %v570
        %v595 = vld [vmem:[#allocation2] sm:$0xff]
        %v596 = vld [vmem:[#allocation2 + $0x8] sm:$0xff]
        %v597 = vld [vmem:[#allocation2 + $0x10] sm:$0xff]
        %v598 = vld [vmem:[#allocation2 + $0x18] sm:$0xff]
        %v599 = vld [vmem:[#allocation2 + $0x20] sm:$0xff]
        %v600 = vld [vmem:[#allocation2 + $0x28] sm:$0xff]
        %v601 = vld [vmem:[#allocation2 + $0x30] sm:$0xff]
        %v602 = vld [vmem:[#allocation2 + $0x38] sm:$0xff]
        %v603 = vld [vmem:[#allocation2 + $0x40] sm:$0xff]
        %v604 = vld [vmem:[#allocation2 + $0x48] sm:$0xff]
        %v605 = vld [vmem:[#allocation2 + $0x50] sm:$0xff]
        %v606 = vld [vmem:[#allocation2 + $0x58] sm:$0xff]
        %v607 = vld [vmem:[#allocation2 + $0x60] sm:$0xff]
        %v608 = vld [vmem:[#allocation2 + $0x68] sm:$0xff]
        %v609 = vld [vmem:[#allocation2 + $0x70] sm:$0xff]
        %v610 = vld [vmem:[#allocation2 + $0x78] sm:$0xff]
        %v611 = vld [vmem:[#allocation2 + $0x80] sm:$0xff]
        %v612 = vld [vmem:[#allocation2 + $0x88] sm:$0xff]
        %v613 = vld [vmem:[#allocation2 + $0x90] sm:$0xff]
        %v614 = vld [vmem:[#allocation2 + $0x98] sm:$0xff]
        %v615 = vld [vmem:[#allocation2 + $0xa0] sm:$0xff]
        %v616 = vld [vmem:[#allocation2 + $0xa8] sm:$0xff]
        %v617 = vld [vmem:[#allocation2 + $0xb0] sm:$0xff]
        %v618 = vld [vmem:[#allocation2 + $0xb8] sm:$0xff]
        %v619 = vld [vmem:[#allocation2 + $0xc0] sm:$0x1]
        %vm620 = vsmask.f32 7424
        %v622 = vshrl.u32 %v595, 16
        %v624 = vshll.u32 %v595, 16
        %v626 = vrot.slane %v624, 1
        %v627 = vor.u32 %v622, %v626
        %v629 = vshll.u32 %v596, 16
        %v631 = vrot.slane %v629, 1
        %v632 = vsel %vm620, %v627, %v631
        %v633 = vshrl.u32 %v596, 16
        %v635 = vor.u32 %v633, %v631
        %v637 = vshll.u32 %v597, 16
        %v639 = vrot.slane %v637, 1
        %v640 = vsel %vm620, %v635, %v639
        %v641 = vshrl.u32 %v597, 16
        %v643 = vor.u32 %v641, %v639
        %v645 = vshll.u32 %v598, 16
        %v647 = vrot.slane %v645, 1
        %v648 = vsel %vm620, %v643, %v647
        %v649 = vshrl.u32 %v598, 16
        %v651 = vor.u32 %v649, %v647
        %v653 = vshll.u32 %v599, 16
        %v655 = vrot.slane %v653, 1
        %v656 = vsel %vm620, %v651, %v655
        %v657 = vshrl.u32 %v599, 16
        %v659 = vor.u32 %v657, %v655
        %v661 = vshll.u32 %v600, 16
        %v663 = vrot.slane %v661, 1
        %v664 = vsel %vm620, %v659, %v663
        %v665 = vshrl.u32 %v600, 16
        %v667 = vor.u32 %v665, %v663
        %v669 = vshll.u32 %v601, 16
        %v671 = vrot.slane %v669, 1
        %v672 = vsel %vm620, %v667, %v671
        %v673 = vshrl.u32 %v601, 16
        %v675 = vor.u32 %v673, %v671
        %v677 = vshll.u32 %v602, 16
        %v679 = vrot.slane %v677, 1
        %v680 = vsel %vm620, %v675, %v679
        %v681 = vshrl.u32 %v602, 16
        %v683 = vor.u32 %v681, %v679
        %v685 = vshll.u32 %v603, 16
        %v687 = vrot.slane %v685, 1
        %v688 = vsel %vm620, %v683, %v687
        %v689 = vshrl.u32 %v603, 16
        %v691 = vor.u32 %v689, %v687
        %v693 = vshll.u32 %v604, 16
        %v695 = vrot.slane %v693, 1
        %v696 = vsel %vm620, %v691, %v695
        %v697 = vshrl.u32 %v604, 16
        %v699 = vor.u32 %v697, %v695
        %v701 = vshll.u32 %v605, 16
        %v703 = vrot.slane %v701, 1
        %v704 = vsel %vm620, %v699, %v703
        %v705 = vshrl.u32 %v605, 16
        %v707 = vor.u32 %v705, %v703
        %v709 = vshll.u32 %v606, 16
        %v711 = vrot.slane %v709, 1
        %v712 = vsel %vm620, %v707, %v711
        %v713 = vshrl.u32 %v606, 16
        %v715 = vor.u32 %v713, %v711
        %v717 = vshll.u32 %v607, 16
        %v719 = vrot.slane %v717, 1
        %v720 = vsel %vm620, %v715, %v719
        %v721 = vshrl.u32 %v607, 16
        %v723 = vor.u32 %v721, %v719
        %v725 = vshll.u32 %v608, 16
        %v727 = vrot.slane %v725, 1
        %v728 = vsel %vm620, %v723, %v727
        %v729 = vshrl.u32 %v608, 16
        %v731 = vor.u32 %v729, %v727
        %v733 = vshll.u32 %v609, 16
        %v735 = vrot.slane %v733, 1
        %v736 = vsel %vm620, %v731, %v735
        %v737 = vshrl.u32 %v609, 16
        %v739 = vor.u32 %v737, %v735
        %v741 = vshll.u32 %v610, 16
        %v743 = vrot.slane %v741, 1
        %v744 = vsel %vm620, %v739, %v743
        %v745 = vshrl.u32 %v610, 16
        %v747 = vor.u32 %v745, %v743
        %v749 = vshll.u32 %v611, 16
        %v751 = vrot.slane %v749, 1
        %v752 = vsel %vm620, %v747, %v751
        %v753 = vshrl.u32 %v611, 16
        %v755 = vor.u32 %v753, %v751
        %v757 = vshll.u32 %v612, 16
        %v759 = vrot.slane %v757, 1
        %v760 = vsel %vm620, %v755, %v759
        %v761 = vshrl.u32 %v612, 16
        %v763 = vor.u32 %v761, %v759
        %v765 = vshll.u32 %v613, 16
        %v767 = vrot.slane %v765, 1
        %v768 = vsel %vm620, %v763, %v767
        %v769 = vshrl.u32 %v613, 16
        %v771 = vor.u32 %v769, %v767
        %v773 = vshll.u32 %v614, 16
        %v775 = vrot.slane %v773, 1
        %v776 = vsel %vm620, %v771, %v775
        %v777 = vshrl.u32 %v614, 16
        %v779 = vor.u32 %v777, %v775
        %v781 = vshll.u32 %v615, 16
        %v783 = vrot.slane %v781, 1
        %v784 = vsel %vm620, %v779, %v783
        %v785 = vshrl.u32 %v615, 16
        %v787 = vor.u32 %v785, %v783
        %v789 = vshll.u32 %v616, 16
        %v791 = vrot.slane %v789, 1
        %v792 = vsel %vm620, %v787, %v791
        %v793 = vshrl.u32 %v616, 16
        %v795 = vor.u32 %v793, %v791
        %v797 = vshll.u32 %v617, 16
        %v799 = vrot.slane %v797, 1
        %v800 = vsel %vm620, %v795, %v799
        %v801 = vshrl.u32 %v617, 16
        %v803 = vor.u32 %v801, %v799
        %v805 = vshll.u32 %v618, 16
        %v807 = vrot.slane %v805, 1
        %v808 = vsel %vm620, %v803, %v807
        %v809 = vshrl.u32 %v618, 16
        %v811 = vor.u32 %v809, %v807
        %v813 = vshll.u32 %v619, 16
        %v815 = vrot.slane %v813, 1
        %v816 = vsel %vm620, %v811, %v815
        %841 = vst [vmem:[#allocation4 + $0x8] sm:$0xff] %v632
        %842 = vst [vmem:[#allocation4 + $0x50] sm:$0xff] %v640
        %843 = vst [vmem:[#allocation4 + $0x98] sm:$0xff] %v648
        %844 = vst [vmem:[#allocation4 + $0xe0] sm:$0xff] %v656
        %845 = vst [vmem:[#allocation4 + $0x128] sm:$0xff] %v664
        %846 = vst [vmem:[#allocation4 + $0x170] sm:$0xff] %v672
        %847 = vst [vmem:[#allocation4 + $0x1b8] sm:$0xff] %v680
        %848 = vst [vmem:[#allocation4 + $0x200] sm:$0xff] %v688
        %849 = vst [vmem:[#allocation4 + $0x248] sm:$0xff] %v696
        %850 = vst [vmem:[#allocation4 + $0x290] sm:$0xff] %v704
        %851 = vst [vmem:[#allocation4 + $0x2d8] sm:$0xff] %v712
        %852 = vst [vmem:[#allocation4 + $0x320] sm:$0xff] %v720
        %853 = vst [vmem:[#allocation4 + $0x368] sm:$0xff] %v728
        %854 = vst [vmem:[#allocation4 + $0x3b0] sm:$0xff] %v736
        %855 = vst [vmem:[#allocation4 + $0x3f8] sm:$0xff] %v744
        %856 = vst [vmem:[#allocation4 + $0x440] sm:$0xff] %v752
        %857 = vst [vmem:[#allocation4 + $0x488] sm:$0xff] %v760
        %858 = vst [vmem:[#allocation4 + $0x4d0] sm:$0xff] %v768
        %859 = vst [vmem:[#allocation4 + $0x518] sm:$0xff] %v776
        %860 = vst [vmem:[#allocation4 + $0x560] sm:$0xff] %v784
        %861 = vst [vmem:[#allocation4 + $0x5a8] sm:$0xff] %v792
        %862 = vst [vmem:[#allocation4 + $0x5f0] sm:$0xff] %v800
        %863 = vst [vmem:[#allocation4 + $0x638] sm:$0xff] %v808
        %864 = vst [vmem:[#allocation4 + $0x680] sm:$0xff] %v816
        %v865 = vld [vmem:[#allocation2] sm:$0xfe]
        %v866 = vld [vmem:[#allocation2 + $0x8] sm:$0xff]
        %v867 = vld [vmem:[#allocation2 + $0x10] sm:$0xff]
        %v868 = vld [vmem:[#allocation2 + $0x18] sm:$0xff]
        %v869 = vld [vmem:[#allocation2 + $0x20] sm:$0xff]
        %v870 = vld [vmem:[#allocation2 + $0x28] sm:$0xff]
        %v871 = vld [vmem:[#allocation2 + $0x30] sm:$0xff]
        %v872 = vld [vmem:[#allocation2 + $0x38] sm:$0xff]
        %v873 = vld [vmem:[#allocation2 + $0x40] sm:$0xff]
        %v874 = vld [vmem:[#allocation2 + $0x48] sm:$0xff]
        %v875 = vld [vmem:[#allocation2 + $0x50] sm:$0xff]
        %v876 = vld [vmem:[#allocation2 + $0x58] sm:$0xff]
        %v877 = vld [vmem:[#allocation2 + $0x60] sm:$0xff]
        %v878 = vld [vmem:[#allocation2 + $0x68] sm:$0xff]
        %v879 = vld [vmem:[#allocation2 + $0x70] sm:$0xff]
        %v880 = vld [vmem:[#allocation2 + $0x78] sm:$0xff]
        %v881 = vld [vmem:[#allocation2 + $0x80] sm:$0xff]
        %v882 = vld [vmem:[#allocation2 + $0x88] sm:$0xff]
        %v883 = vld [vmem:[#allocation2 + $0x90] sm:$0xff]
        %v884 = vld [vmem:[#allocation2 + $0x98] sm:$0xff]
        %v885 = vld [vmem:[#allocation2 + $0xa0] sm:$0xff]
        %v886 = vld [vmem:[#allocation2 + $0xa8] sm:$0xff]
        %v887 = vld [vmem:[#allocation2 + $0xb0] sm:$0xff]
        %v888 = vld [vmem:[#allocation2 + $0xb8] sm:$0xff]
        %v889 = vld [vmem:[#allocation2 + $0xc0] sm:$0x1]
        %vm915 = vcmask 1046528
        %v916 = vrot.slane %v865, 1
        %v917 = vrot.slane %v866, 1
        %v918 = vsel %vm915, %v916, %v917
        %v919 = vrot.slane %v867, 1
        %v920 = vsel %vm915, %v917, %v919
        %v921 = vrot.slane %v868, 1
        %v922 = vsel %vm915, %v919, %v921
        %v923 = vrot.slane %v869, 1
        %v924 = vsel %vm915, %v921, %v923
        %v925 = vrot.slane %v870, 1
        %v926 = vsel %vm915, %v923, %v925
        %v927 = vrot.slane %v871, 1
        %v928 = vsel %vm915, %v925, %v927
        %v929 = vrot.slane %v872, 1
        %v930 = vsel %vm915, %v927, %v929
        %v931 = vrot.slane %v873, 1
        %v932 = vsel %vm915, %v929, %v931
        %v933 = vrot.slane %v874, 1
        %v934 = vsel %vm915, %v931, %v933
        %v935 = vrot.slane %v875, 1
        %v936 = vsel %vm915, %v933, %v935
        %v937 = vrot.slane %v876, 1
        %v938 = vsel %vm915, %v935, %v937
        %v939 = vrot.slane %v877, 1
        %v940 = vsel %vm915, %v937, %v939
        %v941 = vrot.slane %v878, 1
        %v942 = vsel %vm915, %v939, %v941
        %v943 = vrot.slane %v879, 1
        %v944 = vsel %vm915, %v941, %v943
        %v945 = vrot.slane %v880, 1
        %v946 = vsel %vm915, %v943, %v945
        %v947 = vrot.slane %v881, 1
        %v948 = vsel %vm915, %v945, %v947
        %v949 = vrot.slane %v882, 1
        %v950 = vsel %vm915, %v947, %v949
        %v951 = vrot.slane %v883, 1
        %v952 = vsel %vm915, %v949, %v951
        %v953 = vrot.slane %v884, 1
        %v954 = vsel %vm915, %v951, %v953
        %v955 = vrot.slane %v885, 1
        %v956 = vsel %vm915, %v953, %v955
        %v957 = vrot.slane %v886, 1
        %v958 = vsel %vm915, %v955, %v957
        %v959 = vrot.slane %v887, 1
        %v960 = vsel %vm915, %v957, %v959
        %v961 = vrot.slane %v888, 1
        %v962 = vsel %vm915, %v959, %v961
        %v963 = vrot.slane %v889, 1
        %v964 = vsel %vm915, %v961, %v963
        %989 = vst [vmem:[#allocation4 + $0x10] sm:$0xff] %v918
        %990 = vst [vmem:[#allocation4 + $0x58] sm:$0xff] %v920
        %991 = vst [vmem:[#allocation4 + $0xa0] sm:$0xff] %v922
        %992 = vst [vmem:[#allocation4 + $0xe8] sm:$0xff] %v924
        %993 = vst [vmem:[#allocation4 + $0x130] sm:$0xff] %v926
        %994 = vst [vmem:[#allocation4 + $0x178] sm:$0xff] %v928
        %995 = vst [vmem:[#allocation4 + $0x1c0] sm:$0xff] %v930
        %996 = vst [vmem:[#allocation4 + $0x208] sm:$0xff] %v932
        %997 = vst [vmem:[#allocation4 + $0x250] sm:$0xff] %v934
        %998 = vst [vmem:[#allocation4 + $0x298] sm:$0xff] %v936
        %999 = vst [vmem:[#allocation4 + $0x2e0] sm:$0xff] %v938
        %1000 = vst [vmem:[#allocation4 + $0x328] sm:$0xff] %v940
        %1001 = vst [vmem:[#allocation4 + $0x370] sm:$0xff] %v942
        %1002 = vst [vmem:[#allocation4 + $0x3b8] sm:$0xff] %v944
        %1003 = vst [vmem:[#allocation4 + $0x400] sm:$0xff] %v946
        %1004 = vst [vmem:[#allocation4 + $0x448] sm:$0xff] %v948
        %1005 = vst [vmem:[#allocation4 + $0x490] sm:$0xff] %v950
        %1006 = vst [vmem:[#allocation4 + $0x4d8] sm:$0xff] %v952
        %1007 = vst [vmem:[#allocation4 + $0x520] sm:$0xff] %v954
        %1008 = vst [vmem:[#allocation4 + $0x568] sm:$0xff] %v956
        %1009 = vst [vmem:[#allocation4 + $0x5b0] sm:$0xff] %v958
        %1010 = vst [vmem:[#allocation4 + $0x5f8] sm:$0xff] %v960
        %1011 = vst [vmem:[#allocation4 + $0x640] sm:$0xff] %v962
        %1012 = vst [vmem:[#allocation4 + $0x688] sm:$0xff] %v964
        %v1013 = vld [vmem:[#allocation2 + $0x8] sm:$0xf0]
        %v1014 = vld [vmem:[#allocation2 + $0x10] sm:$0xff]
        %v1015 = vld [vmem:[#allocation2 + $0x18] sm:$0xff]
        %v1016 = vld [vmem:[#allocation2 + $0x20] sm:$0xff]
        %v1017 = vld [vmem:[#allocation2 + $0x28] sm:$0xff]
        %v1018 = vld [vmem:[#allocation2 + $0x30] sm:$0xff]
        %v1019 = vld [vmem:[#allocation2 + $0x38] sm:$0xff]
        %v1020 = vld [vmem:[#allocation2 + $0x40] sm:$0xff]
        %v1021 = vld [vmem:[#allocation2 + $0x48] sm:$0xff]
        %v1022 = vld [vmem:[#allocation2 + $0x50] sm:$0xff]
        %v1023 = vld [vmem:[#allocation2 + $0x58] sm:$0xff]
        %v1024 = vld [vmem:[#allocation2 + $0x60] sm:$0xff]
        %v1025 = vld [vmem:[#allocation2 + $0x68] sm:$0xff]
        %v1026 = vld [vmem:[#allocation2 + $0x70] sm:$0xff]
        %v1027 = vld [vmem:[#allocation2 + $0x78] sm:$0xff]
        %v1028 = vld [vmem:[#allocation2 + $0x80] sm:$0xff]
        %v1029 = vld [vmem:[#allocation2 + $0x88] sm:$0xff]
        %v1030 = vld [vmem:[#allocation2 + $0x90] sm:$0xff]
        %v1031 = vld [vmem:[#allocation2 + $0x98] sm:$0xff]
        %v1032 = vld [vmem:[#allocation2 + $0xa0] sm:$0xff]
        %v1033 = vld [vmem:[#allocation2 + $0xa8] sm:$0xff]
        %v1034 = vld [vmem:[#allocation2 + $0xb0] sm:$0xff]
        %v1035 = vld [vmem:[#allocation2 + $0xb8] sm:$0xff]
        %v1036 = vld [vmem:[#allocation2 + $0xc0] sm:$0xff]
        %v1037 = vld [vmem:[#allocation2 + $0xc8] sm:$0xf]
        %vm1063 = vcmask 1043456
        %v1064 = vrot.slane %v1013, 4
        %v1065 = vrot.slane %v1014, 4
        %v1066 = vsel %vm1063, %v1064, %v1065
        %v1067 = vrot.slane %v1015, 4
        %v1068 = vsel %vm1063, %v1065, %v1067
        %v1069 = vrot.slane %v1016, 4
        %v1070 = vsel %vm1063, %v1067, %v1069
        %v1071 = vrot.slane %v1017, 4
        %v1072 = vsel %vm1063, %v1069, %v1071
        %v1073 = vrot.slane %v1018, 4
        %v1074 = vsel %vm1063, %v1071, %v1073
        %v1075 = vrot.slane %v1019, 4
        %v1076 = vsel %vm1063, %v1073, %v1075
        %v1077 = vrot.slane %v1020, 4
        %v1078 = vsel %vm1063, %v1075, %v1077
        %v1079 = vrot.slane %v1021, 4
        %v1080 = vsel %vm1063, %v1077, %v1079
        %v1081 = vrot.slane %v1022, 4
        %v1082 = vsel %vm1063, %v1079, %v1081
        %v1083 = vrot.slane %v1023, 4
        %v1084 = vsel %vm1063, %v1081, %v1083
        %v1085 = vrot.slane %v1024, 4
        %v1086 = vsel %vm1063, %v1083, %v1085
        %v1087 = vrot.slane %v1025, 4
        %v1088 = vsel %vm1063, %v1085, %v1087
        %v1089 = vrot.slane %v1026, 4
        %v1090 = vsel %vm1063, %v1087, %v1089
        %v1091 = vrot.slane %v1027, 4
        %v1092 = vsel %vm1063, %v1089, %v1091
        %v1093 = vrot.slane %v1028, 4
        %v1094 = vsel %vm1063, %v1091, %v1093
        %v1095 = vrot.slane %v1029, 4
        %v1096 = vsel %vm1063, %v1093, %v1095
        %v1097 = vrot.slane %v1030, 4
        %v1098 = vsel %vm1063, %v1095, %v1097
        %v1099 = vrot.slane %v1031, 4
        %v1100 = vsel %vm1063, %v1097, %v1099
        %v1101 = vrot.slane %v1032, 4
        %v1102 = vsel %vm1063, %v1099, %v1101
        %v1103 = vrot.slane %v1033, 4
        %v1104 = vsel %vm1063, %v1101, %v1103
        %v1105 = vrot.slane %v1034, 4
        %v1106 = vsel %vm1063, %v1103, %v1105
        %v1107 = vrot.slane %v1035, 4
        %v1108 = vsel %vm1063, %v1105, %v1107
        %v1109 = vrot.slane %v1036, 4
        %v1110 = vsel %vm1063, %v1107, %v1109
        %v1111 = vrot.slane %v1037, 4
        %v1112 = vsel %vm1063, %v1109, %v1111
        %1137 = vst [vmem:[#allocation4 + $0x18] sm:$0xff] %v1066
        %1138 = vst [vmem:[#allocation4 + $0x60] sm:$0xff] %v1068
        %1139 = vst [vmem:[#allocation4 + $0xa8] sm:$0xff] %v1070
        %1140 = vst [vmem:[#allocation4 + $0xf0] sm:$0xff] %v1072
        %1141 = vst [vmem:[#allocation4 + $0x138] sm:$0xff] %v1074
        %1142 = vst [vmem:[#allocation4 + $0x180] sm:$0xff] %v1076
        %1143 = vst [vmem:[#allocation4 + $0x1c8] sm:$0xff] %v1078
        %1144 = vst [vmem:[#allocation4 + $0x210] sm:$0xff] %v1080
        %1145 = vst [vmem:[#allocation4 + $0x258] sm:$0xff] %v1082
        %1146 = vst [vmem:[#allocation4 + $0x2a0] sm:$0xff] %v1084
        %1147 = vst [vmem:[#allocation4 + $0x2e8] sm:$0xff] %v1086
        %1148 = vst [vmem:[#allocation4 + $0x330] sm:$0xff] %v1088
        %1149 = vst [vmem:[#allocation4 + $0x378] sm:$0xff] %v1090
        %1150 = vst [vmem:[#allocation4 + $0x3c0] sm:$0xff] %v1092
        %1151 = vst [vmem:[#allocation4 + $0x408] sm:$0xff] %v1094
        %1152 = vst [vmem:[#allocation4 + $0x450] sm:$0xff] %v1096
        %1153 = vst [vmem:[#allocation4 + $0x498] sm:$0xff] %v1098
        %1154 = vst [vmem:[#allocation4 + $0x4e0] sm:$0xff] %v1100
        %1155 = vst [vmem:[#allocation4 + $0x528] sm:$0xff] %v1102
        %1156 = vst [vmem:[#allocation4 + $0x570] sm:$0xff] %v1104
        %1157 = vst [vmem:[#allocation4 + $0x5b8] sm:$0xff] %v1106
        %1158 = vst [vmem:[#allocation4 + $0x600] sm:$0xff] %v1108
        %1159 = vst [vmem:[#allocation4 + $0x648] sm:$0xff] %v1110
        %1160 = vst [vmem:[#allocation4 + $0x690] sm:$0xff] %v1112
        %v1161 = vld [vmem:[#allocation2 + $0x8] sm:$0xf0]
        %v1162 = vld [vmem:[#allocation2 + $0x10] sm:$0xff]
        %v1163 = vld [vmem:[#allocation2 + $0x18] sm:$0xff]
        %v1164 = vld [vmem:[#allocation2 + $0x20] sm:$0xff]
        %v1165 = vld [vmem:[#allocation2 + $0x28] sm:$0xff]
        %v1166 = vld [vmem:[#allocation2 + $0x30] sm:$0xff]
        %v1167 = vld [vmem:[#allocation2 + $0x38] sm:$0xff]
        %v1168 = vld [vmem:[#allocation2 + $0x40] sm:$0xff]
        %v1169 = vld [vmem:[#allocation2 + $0x48] sm:$0xff]
        %v1170 = vld [vmem:[#allocation2 + $0x50] sm:$0xff]
        %v1171 = vld [vmem:[#allocation2 + $0x58] sm:$0xff]
        %v1172 = vld [vmem:[#allocation2 + $0x60] sm:$0xff]
        %v1173 = vld [vmem:[#allocation2 + $0x68] sm:$0xff]
        %v1174 = vld [vmem:[#allocation2 + $0x70] sm:$0xff]
        %v1175 = vld [vmem:[#allocation2 + $0x78] sm:$0xff]
        %v1176 = vld [vmem:[#allocation2 + $0x80] sm:$0xff]
        %v1177 = vld [vmem:[#allocation2 + $0x88] sm:$0xff]
        %v1178 = vld [vmem:[#allocation2 + $0x90] sm:$0xff]
        %v1179 = vld [vmem:[#allocation2 + $0x98] sm:$0xff]
        %v1180 = vld [vmem:[#allocation2 + $0xa0] sm:$0xff]
        %v1181 = vld [vmem:[#allocation2 + $0xa8] sm:$0xff]
        %v1182 = vld [vmem:[#allocation2 + $0xb0] sm:$0xff]
        %v1183 = vld [vmem:[#allocation2 + $0xb8] sm:$0xff]
        %v1184 = vld [vmem:[#allocation2 + $0xc0] sm:$0xff]
        %v1185 = vld [vmem:[#allocation2 + $0xc8] sm:$0x1f]
        %vm1186 = vsmask.f32 3328
        %v1188 = vshrl.u32 %v1161, 16
        %v1190 = vrot.slane %v1188, 4
        %v1191 = vshll.u32 %v1161, 16
        %v1193 = vrot.slane %v1191, 5
        %v1194 = vor.u32 %v1190, %v1193
        %v1196 = vshrl.u32 %v1162, 16
        %v1198 = vrot.slane %v1196, 4
        %v1199 = vshll.u32 %v1162, 16
        %v1201 = vrot.slane %v1199, 5
        %v1202 = vor.u32 %v1198, %v1201
        %v1203 = vsel %vm1186, %v1194, %v1202
        %v1205 = vshrl.u32 %v1163, 16
        %v1207 = vrot.slane %v1205, 4
        %v1208 = vshll.u32 %v1163, 16
        %v1210 = vrot.slane %v1208, 5
        %v1211 = vor.u32 %v1207, %v1210
        %v1212 = vsel %vm1186, %v1202, %v1211
        %v1214 = vshrl.u32 %v1164, 16
        %v1216 = vrot.slane %v1214, 4
        %v1217 = vshll.u32 %v1164, 16
        %v1219 = vrot.slane %v1217, 5
        %v1220 = vor.u32 %v1216, %v1219
        %v1221 = vsel %vm1186, %v1211, %v1220
        %v1223 = vshrl.u32 %v1165, 16
        %v1225 = vrot.slane %v1223, 4
        %v1226 = vshll.u32 %v1165, 16
        %v1228 = vrot.slane %v1226, 5
        %v1229 = vor.u32 %v1225, %v1228
        %v1230 = vsel %vm1186, %v1220, %v1229
        %v1232 = vshrl.u32 %v1166, 16
        %v1234 = vrot.slane %v1232, 4
        %v1235 = vshll.u32 %v1166, 16
        %v1237 = vrot.slane %v1235, 5
        %v1238 = vor.u32 %v1234, %v1237
        %v1239 = vsel %vm1186, %v1229, %v1238
        %v1241 = vshrl.u32 %v1167, 16
        %v1243 = vrot.slane %v1241, 4
        %v1244 = vshll.u32 %v1167, 16
        %v1246 = vrot.slane %v1244, 5
        %v1247 = vor.u32 %v1243, %v1246
        %v1248 = vsel %vm1186, %v1238, %v1247
        %v1250 = vshrl.u32 %v1168, 16
        %v1252 = vrot.slane %v1250, 4
        %v1253 = vshll.u32 %v1168, 16
        %v1255 = vrot.slane %v1253, 5
        %v1256 = vor.u32 %v1252, %v1255
        %v1257 = vsel %vm1186, %v1247, %v1256
        %v1259 = vshrl.u32 %v1169, 16
        %v1261 = vrot.slane %v1259, 4
        %v1262 = vshll.u32 %v1169, 16
        %v1264 = vrot.slane %v1262, 5
        %v1265 = vor.u32 %v1261, %v1264
        %v1266 = vsel %vm1186, %v1256, %v1265
        %v1268 = vshrl.u32 %v1170, 16
        %v1270 = vrot.slane %v1268, 4
        %v1271 = vshll.u32 %v1170, 16
        %v1273 = vrot.slane %v1271, 5
        %v1274 = vor.u32 %v1270, %v1273
        %v1275 = vsel %vm1186, %v1265, %v1274
        %v1277 = vshrl.u32 %v1171, 16
        %v1279 = vrot.slane %v1277, 4
        %v1280 = vshll.u32 %v1171, 16
        %v1282 = vrot.slane %v1280, 5
        %v1283 = vor.u32 %v1279, %v1282
        %v1284 = vsel %vm1186, %v1274, %v1283
        %v1286 = vshrl.u32 %v1172, 16
        %v1288 = vrot.slane %v1286, 4
        %v1289 = vshll.u32 %v1172, 16
        %v1291 = vrot.slane %v1289, 5
        %v1292 = vor.u32 %v1288, %v1291
        %v1293 = vsel %vm1186, %v1283, %v1292
        %v1295 = vshrl.u32 %v1173, 16
        %v1297 = vrot.slane %v1295, 4
        %v1298 = vshll.u32 %v1173, 16
        %v1300 = vrot.slane %v1298, 5
        %v1301 = vor.u32 %v1297, %v1300
        %v1302 = vsel %vm1186, %v1292, %v1301
        %v1304 = vshrl.u32 %v1174, 16
        %v1306 = vrot.slane %v1304, 4
        %v1307 = vshll.u32 %v1174, 16
        %v1309 = vrot.slane %v1307, 5
        %v1310 = vor.u32 %v1306, %v1309
        %v1311 = vsel %vm1186, %v1301, %v1310
        %v1313 = vshrl.u32 %v1175, 16
        %v1315 = vrot.slane %v1313, 4
        %v1316 = vshll.u32 %v1175, 16
        %v1318 = vrot.slane %v1316, 5
        %v1319 = vor.u32 %v1315, %v1318
        %v1320 = vsel %vm1186, %v1310, %v1319
        %v1322 = vshrl.u32 %v1176, 16
        %v1324 = vrot.slane %v1322, 4
        %v1325 = vshll.u32 %v1176, 16
        %v1327 = vrot.slane %v1325, 5
        %v1328 = vor.u32 %v1324, %v1327
        %v1329 = vsel %vm1186, %v1319, %v1328
        %v1331 = vshrl.u32 %v1177, 16
        %v1333 = vrot.slane %v1331, 4
        %v1334 = vshll.u32 %v1177, 16
        %v1336 = vrot.slane %v1334, 5
        %v1337 = vor.u32 %v1333, %v1336
        %v1338 = vsel %vm1186, %v1328, %v1337
        %v1340 = vshrl.u32 %v1178, 16
        %v1342 = vrot.slane %v1340, 4
        %v1343 = vshll.u32 %v1178, 16
        %v1345 = vrot.slane %v1343, 5
        %v1346 = vor.u32 %v1342, %v1345
        %v1347 = vsel %vm1186, %v1337, %v1346
        %v1349 = vshrl.u32 %v1179, 16
        %v1351 = vrot.slane %v1349, 4
        %v1352 = vshll.u32 %v1179, 16
        %v1354 = vrot.slane %v1352, 5
        %v1355 = vor.u32 %v1351, %v1354
        %v1356 = vsel %vm1186, %v1346, %v1355
        %v1358 = vshrl.u32 %v1180, 16
        %v1360 = vrot.slane %v1358, 4
        %v1361 = vshll.u32 %v1180, 16
        %v1363 = vrot.slane %v1361, 5
        %v1364 = vor.u32 %v1360, %v1363
        %v1365 = vsel %vm1186, %v1355, %v1364
        %v1367 = vshrl.u32 %v1181, 16
        %v1369 = vrot.slane %v1367, 4
        %v1370 = vshll.u32 %v1181, 16
        %v1372 = vrot.slane %v1370, 5
        %v1373 = vor.u32 %v1369, %v1372
        %v1374 = vsel %vm1186, %v1364, %v1373
        %v1376 = vshrl.u32 %v1182, 16
        %v1378 = vrot.slane %v1376, 4
        %v1379 = vshll.u32 %v1182, 16
        %v1381 = vrot.slane %v1379, 5
        %v1382 = vor.u32 %v1378, %v1381
        %v1383 = vsel %vm1186, %v1373, %v1382
        %v1385 = vshrl.u32 %v1183, 16
        %v1387 = vrot.slane %v1385, 4
        %v1388 = vshll.u32 %v1183, 16
        %v1390 = vrot.slane %v1388, 5
        %v1391 = vor.u32 %v1387, %v1390
        %v1392 = vsel %vm1186, %v1382, %v1391
        %v1394 = vshrl.u32 %v1184, 16
        %v1396 = vrot.slane %v1394, 4
        %v1397 = vshll.u32 %v1184, 16
        %v1399 = vrot.slane %v1397, 5
        %v1400 = vor.u32 %v1396, %v1399
        %v1401 = vsel %vm1186, %v1391, %v1400
        %v1403 = vshrl.u32 %v1185, 16
        %v1405 = vrot.slane %v1403, 4
        %v1406 = vshll.u32 %v1185, 16
        %v1408 = vrot.slane %v1406, 5
        %v1409 = vor.u32 %v1405, %v1408
        %v1410 = vsel %vm1186, %v1400, %v1409
        %1435 = vst [vmem:[#allocation4 + $0x20] sm:$0xff] %v1203
        %1436 = vst [vmem:[#allocation4 + $0x68] sm:$0xff] %v1212
        %1437 = vst [vmem:[#allocation4 + $0xb0] sm:$0xff] %v1221
        %1438 = vst [vmem:[#allocation4 + $0xf8] sm:$0xff] %v1230
        %1439 = vst [vmem:[#allocation4 + $0x140] sm:$0xff] %v1239
        %1440 = vst [vmem:[#allocation4 + $0x188] sm:$0xff] %v1248
        %1441 = vst [vmem:[#allocation4 + $0x1d0] sm:$0xff] %v1257
        %1442 = vst [vmem:[#allocation4 + $0x218] sm:$0xff] %v1266
        %1443 = vst [vmem:[#allocation4 + $0x260] sm:$0xff] %v1275
        %1444 = vst [vmem:[#allocation4 + $0x2a8] sm:$0xff] %v1284
        %1445 = vst [vmem:[#allocation4 + $0x2f0] sm:$0xff] %v1293
        %1446 = vst [vmem:[#allocation4 + $0x338] sm:$0xff] %v1302
        %1447 = vst [vmem:[#allocation4 + $0x380] sm:$0xff] %v1311
        %1448 = vst [vmem:[#allocation4 + $0x3c8] sm:$0xff] %v1320
        %1449 = vst [vmem:[#allocation4 + $0x410] sm:$0xff] %v1329
        %1450 = vst [vmem:[#allocation4 + $0x458] sm:$0xff] %v1338
        %1451 = vst [vmem:[#allocation4 + $0x4a0] sm:$0xff] %v1347
        %1452 = vst [vmem:[#allocation4 + $0x4e8] sm:$0xff] %v1356
        %1453 = vst [vmem:[#allocation4 + $0x530] sm:$0xff] %v1365
        %1454 = vst [vmem:[#allocation4 + $0x578] sm:$0xff] %v1374
        %1455 = vst [vmem:[#allocation4 + $0x5c0] sm:$0xff] %v1383
        %1456 = vst [vmem:[#allocation4 + $0x608] sm:$0xff] %v1392
        %1457 = vst [vmem:[#allocation4 + $0x650] sm:$0xff] %v1401
        %1458 = vst [vmem:[#allocation4 + $0x698] sm:$0xff] %v1410
        %v1459 = vld [vmem:[#allocation2 + $0x8] sm:$0xe0]
        %v1460 = vld [vmem:[#allocation2 + $0x10] sm:$0xff]
        %v1461 = vld [vmem:[#allocation2 + $0x18] sm:$0xff]
        %v1462 = vld [vmem:[#allocation2 + $0x20] sm:$0xff]
        %v1463 = vld [vmem:[#allocation2 + $0x28] sm:$0xff]
        %v1464 = vld [vmem:[#allocation2 + $0x30] sm:$0xff]
        %v1465 = vld [vmem:[#allocation2 + $0x38] sm:$0xff]
        %v1466 = vld [vmem:[#allocation2 + $0x40] sm:$0xff]
        %v1467 = vld [vmem:[#allocation2 + $0x48] sm:$0xff]
        %v1468 = vld [vmem:[#allocation2 + $0x50] sm:$0xff]
        %v1469 = vld [vmem:[#allocation2 + $0x58] sm:$0xff]
        %v1470 = vld [vmem:[#allocation2 + $0x60] sm:$0xff]
        %v1471 = vld [vmem:[#allocation2 + $0x68] sm:$0xff]
        %v1472 = vld [vmem:[#allocation2 + $0x70] sm:$0xff]
        %v1473 = vld [vmem:[#allocation2 + $0x78] sm:$0xff]
        %v1474 = vld [vmem:[#allocation2 + $0x80] sm:$0xff]
        %v1475 = vld [vmem:[#allocation2 + $0x88] sm:$0xff]
        %v1476 = vld [vmem:[#allocation2 + $0x90] sm:$0xff]
        %v1477 = vld [vmem:[#allocation2 + $0x98] sm:$0xff]
        %v1478 = vld [vmem:[#allocation2 + $0xa0] sm:$0xff]
        %v1479 = vld [vmem:[#allocation2 + $0xa8] sm:$0xff]
        %v1480 = vld [vmem:[#allocation2 + $0xb0] sm:$0xff]
        %v1481 = vld [vmem:[#allocation2 + $0xb8] sm:$0xff]
        %v1482 = vld [vmem:[#allocation2 + $0xc0] sm:$0xff]
        %v1483 = vld [vmem:[#allocation2 + $0xc8] sm:$0x1f]
        %vm1509 = vcmask 1042432
        %v1510 = vrot.slane %v1459, 5
        %v1511 = vrot.slane %v1460, 5
        %v1512 = vsel %vm1509, %v1510, %v1511
        %v1513 = vrot.slane %v1461, 5
        %v1514 = vsel %vm1509, %v1511, %v1513
        %v1515 = vrot.slane %v1462, 5
        %v1516 = vsel %vm1509, %v1513, %v1515
        %v1517 = vrot.slane %v1463, 5
        %v1518 = vsel %vm1509, %v1515, %v1517
        %v1519 = vrot.slane %v1464, 5
        %v1520 = vsel %vm1509, %v1517, %v1519
        %v1521 = vrot.slane %v1465, 5
        %v1522 = vsel %vm1509, %v1519, %v1521
        %v1523 = vrot.slane %v1466, 5
        %v1524 = vsel %vm1509, %v1521, %v1523
        %v1525 = vrot.slane %v1467, 5
        %v1526 = vsel %vm1509, %v1523, %v1525
        %v1527 = vrot.slane %v1468, 5
        %v1528 = vsel %vm1509, %v1525, %v1527
        %v1529 = vrot.slane %v1469, 5
        %v1530 = vsel %vm1509, %v1527, %v1529
        %v1531 = vrot.slane %v1470, 5
        %v1532 = vsel %vm1509, %v1529, %v1531
        %v1533 = vrot.slane %v1471, 5
        %v1534 = vsel %vm1509, %v1531, %v1533
        %v1535 = vrot.slane %v1472, 5
        %v1536 = vsel %vm1509, %v1533, %v1535
        %v1537 = vrot.slane %v1473, 5
        %v1538 = vsel %vm1509, %v1535, %v1537
        %v1539 = vrot.slane %v1474, 5
        %v1540 = vsel %vm1509, %v1537, %v1539
        %v1541 = vrot.slane %v1475, 5
        %v1542 = vsel %vm1509, %v1539, %v1541
        %v1543 = vrot.slane %v1476, 5
        %v1544 = vsel %vm1509, %v1541, %v1543
        %v1545 = vrot.slane %v1477, 5
        %v1546 = vsel %vm1509, %v1543, %v1545
        %v1547 = vrot.slane %v1478, 5
        %v1548 = vsel %vm1509, %v1545, %v1547
        %v1549 = vrot.slane %v1479, 5
        %v1550 = vsel %vm1509, %v1547, %v1549
        %v1551 = vrot.slane %v1480, 5
        %v1552 = vsel %vm1509, %v1549, %v1551
        %v1553 = vrot.slane %v1481, 5
        %v1554 = vsel %vm1509, %v1551, %v1553
        %v1555 = vrot.slane %v1482, 5
        %v1556 = vsel %vm1509, %v1553, %v1555
        %v1557 = vrot.slane %v1483, 5
        %v1558 = vsel %vm1509, %v1555, %v1557
        %1583 = vst [vmem:[#allocation4 + $0x28] sm:$0xff] %v1512
        %1584 = vst [vmem:[#allocation4 + $0x70] sm:$0xff] %v1514
        %1585 = vst [vmem:[#allocation4 + $0xb8] sm:$0xff] %v1516
        %1586 = vst [vmem:[#allocation4 + $0x100] sm:$0xff] %v1518
        %1587 = vst [vmem:[#allocation4 + $0x148] sm:$0xff] %v1520
        %1588 = vst [vmem:[#allocation4 + $0x190] sm:$0xff] %v1522
        %1589 = vst [vmem:[#allocation4 + $0x1d8] sm:$0xff] %v1524
        %1590 = vst [vmem:[#allocation4 + $0x220] sm:$0xff] %v1526
        %1591 = vst [vmem:[#allocation4 + $0x268] sm:$0xff] %v1528
        %1592 = vst [vmem:[#allocation4 + $0x2b0] sm:$0xff] %v1530
        %1593 = vst [vmem:[#allocation4 + $0x2f8] sm:$0xff] %v1532
        %1594 = vst [vmem:[#allocation4 + $0x340] sm:$0xff] %v1534
        %1595 = vst [vmem:[#allocation4 + $0x388] sm:$0xff] %v1536
        %1596 = vst [vmem:[#allocation4 + $0x3d0] sm:$0xff] %v1538
        %1597 = vst [vmem:[#allocation4 + $0x418] sm:$0xff] %v1540
        %1598 = vst [vmem:[#allocation4 + $0x460] sm:$0xff] %v1542
        %1599 = vst [vmem:[#allocation4 + $0x4a8] sm:$0xff] %v1544
        %1600 = vst [vmem:[#allocation4 + $0x4f0] sm:$0xff] %v1546
        %1601 = vst [vmem:[#allocation4 + $0x538] sm:$0xff] %v1548
        %1602 = vst [vmem:[#allocation4 + $0x580] sm:$0xff] %v1550
        %1603 = vst [vmem:[#allocation4 + $0x5c8] sm:$0xff] %v1552
        %1604 = vst [vmem:[#allocation4 + $0x610] sm:$0xff] %v1554
        %1605 = vst [vmem:[#allocation4 + $0x658] sm:$0xff] %v1556
        %1606 = vst [vmem:[#allocation4 + $0x6a0] sm:$0xff] %v1558
        %v1607 = vld [vmem:[#allocation2 + $0x18] sm:$0xff]
        %v1608 = vld [vmem:[#allocation2 + $0x20] sm:$0xff]
        %v1609 = vld [vmem:[#allocation2 + $0x28] sm:$0xff]
        %v1610 = vld [vmem:[#allocation2 + $0x30] sm:$0xff]
        %v1611 = vld [vmem:[#allocation2 + $0x38] sm:$0xff]
        %v1612 = vld [vmem:[#allocation2 + $0x40] sm:$0xff]
        %v1613 = vld [vmem:[#allocation2 + $0x48] sm:$0xff]
        %v1614 = vld [vmem:[#allocation2 + $0x50] sm:$0xff]
        %v1615 = vld [vmem:[#allocation2 + $0x58] sm:$0xff]
        %v1616 = vld [vmem:[#allocation2 + $0x60] sm:$0xff]
        %v1617 = vld [vmem:[#allocation2 + $0x68] sm:$0xff]
        %v1618 = vld [vmem:[#allocation2 + $0x70] sm:$0xff]
        %v1619 = vld [vmem:[#allocation2 + $0x78] sm:$0xff]
        %v1620 = vld [vmem:[#allocation2 + $0x80] sm:$0xff]
        %v1621 = vld [vmem:[#allocation2 + $0x88] sm:$0xff]
        %v1622 = vld [vmem:[#allocation2 + $0x90] sm:$0xff]
        %v1623 = vld [vmem:[#allocation2 + $0x98] sm:$0xff]
        %v1624 = vld [vmem:[#allocation2 + $0xa0] sm:$0xff]
        %v1625 = vld [vmem:[#allocation2 + $0xa8] sm:$0xff]
        %v1626 = vld [vmem:[#allocation2 + $0xb0] sm:$0xff]
        %v1627 = vld [vmem:[#allocation2 + $0xb8] sm:$0xff]
        %v1628 = vld [vmem:[#allocation2 + $0xc0] sm:$0xff]
        %v1629 = vld [vmem:[#allocation2 + $0xc8] sm:$0xff]
        %v1630 = vld [vmem:[#allocation2 + $0xd0] sm:$0xff]
        %1631 = vst [vmem:[#allocation4 + $0x30] sm:$0xff] %v1607
        %1632 = vst [vmem:[#allocation4 + $0x78] sm:$0xff] %v1608
        %1633 = vst [vmem:[#allocation4 + $0xc0] sm:$0xff] %v1609
        %1634 = vst [vmem:[#allocation4 + $0x108] sm:$0xff] %v1610
        %1635 = vst [vmem:[#allocation4 + $0x150] sm:$0xff] %v1611
        %1636 = vst [vmem:[#allocation4 + $0x198] sm:$0xff] %v1612
        %1637 = vst [vmem:[#allocation4 + $0x1e0] sm:$0xff] %v1613
        %1638 = vst [vmem:[#allocation4 + $0x228] sm:$0xff] %v1614
        %1639 = vst [vmem:[#allocation4 + $0x270] sm:$0xff] %v1615
        %1640 = vst [vmem:[#allocation4 + $0x2b8] sm:$0xff] %v1616
        %1641 = vst [vmem:[#allocation4 + $0x300] sm:$0xff] %v1617
        %1642 = vst [vmem:[#allocation4 + $0x348] sm:$0xff] %v1618
        %1643 = vst [vmem:[#allocation4 + $0x390] sm:$0xff] %v1619
        %1644 = vst [vmem:[#allocation4 + $0x3d8] sm:$0xff] %v1620
        %1645 = vst [vmem:[#allocation4 + $0x420] sm:$0xff] %v1621
        %1646 = vst [vmem:[#allocation4 + $0x468] sm:$0xff] %v1622
        %1647 = vst [vmem:[#allocation4 + $0x4b0] sm:$0xff] %v1623
        %1648 = vst [vmem:[#allocation4 + $0x4f8] sm:$0xff] %v1624
        %1649 = vst [vmem:[#allocation4 + $0x540] sm:$0xff] %v1625
        %1650 = vst [vmem:[#allocation4 + $0x588] sm:$0xff] %v1626
        %1651 = vst [vmem:[#allocation4 + $0x5d0] sm:$0xff] %v1627
        %1652 = vst [vmem:[#allocation4 + $0x618] sm:$0xff] %v1628
        %1653 = vst [vmem:[#allocation4 + $0x660] sm:$0xff] %v1629
        %1654 = vst [vmem:[#allocation4 + $0x6a8] sm:$0xff] %v1630
        %v1655 = vld [vmem:[#allocation2 + $0x18] sm:$0xff]
        %v1656 = vld [vmem:[#allocation2 + $0x20] sm:$0xff]
        %v1657 = vld [vmem:[#allocation2 + $0x28] sm:$0xff]
        %v1658 = vld [vmem:[#allocation2 + $0x30] sm:$0xff]
        %v1659 = vld [vmem:[#allocation2 + $0x38] sm:$0xff]
        %v1660 = vld [vmem:[#allocation2 + $0x40] sm:$0xff]
        %v1661 = vld [vmem:[#allocation2 + $0x48] sm:$0xff]
        %v1662 = vld [vmem:[#allocation2 + $0x50] sm:$0xff]
        %v1663 = vld [vmem:[#allocation2 + $0x58] sm:$0xff]
        %v1664 = vld [vmem:[#allocation2 + $0x60] sm:$0xff]
        %v1665 = vld [vmem:[#allocation2 + $0x68] sm:$0xff]
        %v1666 = vld [vmem:[#allocation2 + $0x70] sm:$0xff]
        %v1667 = vld [vmem:[#allocation2 + $0x78] sm:$0xff]
        %v1668 = vld [vmem:[#allocation2 + $0x80] sm:$0xff]
        %v1669 = vld [vmem:[#allocation2 + $0x88] sm:$0xff]
        %v1670 = vld [vmem:[#allocation2 + $0x90] sm:$0xff]
        %v1671 = vld [vmem:[#allocation2 + $0x98] sm:$0xff]
        %v1672 = vld [vmem:[#allocation2 + $0xa0] sm:$0xff]
        %v1673 = vld [vmem:[#allocation2 + $0xa8] sm:$0xff]
        %v1674 = vld [vmem:[#allocation2 + $0xb0] sm:$0xff]
        %v1675 = vld [vmem:[#allocation2 + $0xb8] sm:$0xff]
        %v1676 = vld [vmem:[#allocation2 + $0xc0] sm:$0xff]
        %v1677 = vld [vmem:[#allocation2 + $0xc8] sm:$0xff]
        %v1678 = vld [vmem:[#allocation2 + $0xd0] sm:$0xff]
        %v1679 = vld [vmem:[#allocation2 + $0xd8] sm:$0x1]
        %v1681 = vshrl.u32 %v1655, 16
        %v1683 = vshll.u32 %v1655, 16
        %v1685 = vrot.slane %v1683, 1
        %v1686 = vor.u32 %v1681, %v1685
        %v1688 = vshll.u32 %v1656, 16
        %v1690 = vrot.slane %v1688, 1
        %v1691 = vsel %vm620, %v1686, %v1690
        %v1692 = vshrl.u32 %v1656, 16
        %v1694 = vor.u32 %v1692, %v1690
        %v1696 = vshll.u32 %v1657, 16
        %v1698 = vrot.slane %v1696, 1
        %v1699 = vsel %vm620, %v1694, %v1698
        %v1700 = vshrl.u32 %v1657, 16
        %v1702 = vor.u32 %v1700, %v1698
        %v1704 = vshll.u32 %v1658, 16
        %v1706 = vrot.slane %v1704, 1
        %v1707 = vsel %vm620, %v1702, %v1706
        %v1708 = vshrl.u32 %v1658, 16
        %v1710 = vor.u32 %v1708, %v1706
        %v1712 = vshll.u32 %v1659, 16
        %v1714 = vrot.slane %v1712, 1
        %v1715 = vsel %vm620, %v1710, %v1714
        %v1716 = vshrl.u32 %v1659, 16
        %v1718 = vor.u32 %v1716, %v1714
        %v1720 = vshll.u32 %v1660, 16
        %v1722 = vrot.slane %v1720, 1
        %v1723 = vsel %vm620, %v1718, %v1722
        %v1724 = vshrl.u32 %v1660, 16
        %v1726 = vor.u32 %v1724, %v1722
        %v1728 = vshll.u32 %v1661, 16
        %v1730 = vrot.slane %v1728, 1
        %v1731 = vsel %vm620, %v1726, %v1730
        %v1732 = vshrl.u32 %v1661, 16
        %v1734 = vor.u32 %v1732, %v1730
        %v1736 = vshll.u32 %v1662, 16
        %v1738 = vrot.slane %v1736, 1
        %v1739 = vsel %vm620, %v1734, %v1738
        %v1740 = vshrl.u32 %v1662, 16
        %v1742 = vor.u32 %v1740, %v1738
        %v1744 = vshll.u32 %v1663, 16
        %v1746 = vrot.slane %v1744, 1
        %v1747 = vsel %vm620, %v1742, %v1746
        %v1748 = vshrl.u32 %v1663, 16
        %v1750 = vor.u32 %v1748, %v1746
        %v1752 = vshll.u32 %v1664, 16
        %v1754 = vrot.slane %v1752, 1
        %v1755 = vsel %vm620, %v1750, %v1754
        %v1756 = vshrl.u32 %v1664, 16
        %v1758 = vor.u32 %v1756, %v1754
        %v1760 = vshll.u32 %v1665, 16
        %v1762 = vrot.slane %v1760, 1
        %v1763 = vsel %vm620, %v1758, %v1762
        %v1764 = vshrl.u32 %v1665, 16
        %v1766 = vor.u32 %v1764, %v1762
        %v1768 = vshll.u32 %v1666, 16
        %v1770 = vrot.slane %v1768, 1
        %v1771 = vsel %vm620, %v1766, %v1770
        %v1772 = vshrl.u32 %v1666, 16
        %v1774 = vor.u32 %v1772, %v1770
        %v1776 = vshll.u32 %v1667, 16
        %v1778 = vrot.slane %v1776, 1
        %v1779 = vsel %vm620, %v1774, %v1778
        %v1780 = vshrl.u32 %v1667, 16
        %v1782 = vor.u32 %v1780, %v1778
        %v1784 = vshll.u32 %v1668, 16
        %v1786 = vrot.slane %v1784, 1
        %v1787 = vsel %vm620, %v1782, %v1786
        %v1788 = vshrl.u32 %v1668, 16
        %v1790 = vor.u32 %v1788, %v1786
        %v1792 = vshll.u32 %v1669, 16
        %v1794 = vrot.slane %v1792, 1
        %v1795 = vsel %vm620, %v1790, %v1794
        %v1796 = vshrl.u32 %v1669, 16
        %v1798 = vor.u32 %v1796, %v1794
        %v1800 = vshll.u32 %v1670, 16
        %v1802 = vrot.slane %v1800, 1
        %v1803 = vsel %vm620, %v1798, %v1802
        %v1804 = vshrl.u32 %v1670, 16
        %v1806 = vor.u32 %v1804, %v1802
        %v1808 = vshll.u32 %v1671, 16
        %v1810 = vrot.slane %v1808, 1
        %v1811 = vsel %vm620, %v1806, %v1810
        %v1812 = vshrl.u32 %v1671, 16
        %v1814 = vor.u32 %v1812, %v1810
        %v1816 = vshll.u32 %v1672, 16
        %v1818 = vrot.slane %v1816, 1
        %v1819 = vsel %vm620, %v1814, %v1818
        %v1820 = vshrl.u32 %v1672, 16
        %v1822 = vor.u32 %v1820, %v1818
        %v1824 = vshll.u32 %v1673, 16
        %v1826 = vrot.slane %v1824, 1
        %v1827 = vsel %vm620, %v1822, %v1826
        %v1828 = vshrl.u32 %v1673, 16
        %v1830 = vor.u32 %v1828, %v1826
        %v1832 = vshll.u32 %v1674, 16
        %v1834 = vrot.slane %v1832, 1
        %v1835 = vsel %vm620, %v1830, %v1834
        %v1836 = vshrl.u32 %v1674, 16
        %v1838 = vor.u32 %v1836, %v1834
        %v1840 = vshll.u32 %v1675, 16
        %v1842 = vrot.slane %v1840, 1
        %v1843 = vsel %vm620, %v1838, %v1842
        %v1844 = vshrl.u32 %v1675, 16
        %v1846 = vor.u32 %v1844, %v1842
        %v1848 = vshll.u32 %v1676, 16
        %v1850 = vrot.slane %v1848, 1
        %v1851 = vsel %vm620, %v1846, %v1850
        %v1852 = vshrl.u32 %v1676, 16
        %v1854 = vor.u32 %v1852, %v1850
        %v1856 = vshll.u32 %v1677, 16
        %v1858 = vrot.slane %v1856, 1
        %v1859 = vsel %vm620, %v1854, %v1858
        %v1860 = vshrl.u32 %v1677, 16
        %v1862 = vor.u32 %v1860, %v1858
        %v1864 = vshll.u32 %v1678, 16
        %v1866 = vrot.slane %v1864, 1
        %v1867 = vsel %vm620, %v1862, %v1866
        %v1868 = vshrl.u32 %v1678, 16
        %v1870 = vor.u32 %v1868, %v1866
        %v1872 = vshll.u32 %v1679, 16
        %v1874 = vrot.slane %v1872, 1
        %v1875 = vsel %vm620, %v1870, %v1874
        %1900 = vst [vmem:[#allocation4 + $0x38] sm:$0xff] %v1691
        %1901 = vst [vmem:[#allocation4 + $0x80] sm:$0xff] %v1699
        %1902 = vst [vmem:[#allocation4 + $0xc8] sm:$0xff] %v1707
        %1903 = vst [vmem:[#allocation4 + $0x110] sm:$0xff] %v1715
        %1904 = vst [vmem:[#allocation4 + $0x158] sm:$0xff] %v1723
        %1905 = vst [vmem:[#allocation4 + $0x1a0] sm:$0xff] %v1731
        %1906 = vst [vmem:[#allocation4 + $0x1e8] sm:$0xff] %v1739
        %1907 = vst [vmem:[#allocation4 + $0x230] sm:$0xff] %v1747
        %1908 = vst [vmem:[#allocation4 + $0x278] sm:$0xff] %v1755
        %1909 = vst [vmem:[#allocation4 + $0x2c0] sm:$0xff] %v1763
        %1910 = vst [vmem:[#allocation4 + $0x308] sm:$0xff] %v1771
        %1911 = vst [vmem:[#allocation4 + $0x350] sm:$0xff] %v1779
        %1912 = vst [vmem:[#allocation4 + $0x398] sm:$0xff] %v1787
        %1913 = vst [vmem:[#allocation4 + $0x3e0] sm:$0xff] %v1795
        %1914 = vst [vmem:[#allocation4 + $0x428] sm:$0xff] %v1803
        %1915 = vst [vmem:[#allocation4 + $0x470] sm:$0xff] %v1811
        %1916 = vst [vmem:[#allocation4 + $0x4b8] sm:$0xff] %v1819
        %1917 = vst [vmem:[#allocation4 + $0x500] sm:$0xff] %v1827
        %1918 = vst [vmem:[#allocation4 + $0x548] sm:$0xff] %v1835
        %1919 = vst [vmem:[#allocation4 + $0x590] sm:$0xff] %v1843
        %1920 = vst [vmem:[#allocation4 + $0x5d8] sm:$0xff] %v1851
        %1921 = vst [vmem:[#allocation4 + $0x620] sm:$0xff] %v1859
        %1922 = vst [vmem:[#allocation4 + $0x668] sm:$0xff] %v1867
        %1923 = vst [vmem:[#allocation4 + $0x6b0] sm:$0xff] %v1875
        %v1924 = vld [vmem:[#allocation2 + $0x18] sm:$0xfe]
        %v1925 = vld [vmem:[#allocation2 + $0x20] sm:$0xff]
        %v1926 = vld [vmem:[#allocation2 + $0x28] sm:$0xff]
        %v1927 = vld [vmem:[#allocation2 + $0x30] sm:$0xff]
        %v1928 = vld [vmem:[#allocation2 + $0x38] sm:$0xff]
        %v1929 = vld [vmem:[#allocation2 + $0x40] sm:$0xff]
        %v1930 = vld [vmem:[#allocation2 + $0x48] sm:$0xff]
        %v1931 = vld [vmem:[#allocation2 + $0x50] sm:$0xff]
        %v1932 = vld [vmem:[#allocation2 + $0x58] sm:$0xff]
        %v1933 = vld [vmem:[#allocation2 + $0x60] sm:$0xff]
        %v1934 = vld [vmem:[#allocation2 + $0x68] sm:$0xff]
        %v1935 = vld [vmem:[#allocation2 + $0x70] sm:$0xff]
        %v1936 = vld [vmem:[#allocation2 + $0x78] sm:$0xff]
        %v1937 = vld [vmem:[#allocation2 + $0x80] sm:$0xff]
        %v1938 = vld [vmem:[#allocation2 + $0x88] sm:$0xff]
        %v1939 = vld [vmem:[#allocation2 + $0x90] sm:$0xff]
        %v1940 = vld [vmem:[#allocation2 + $0x98] sm:$0xff]
        %v1941 = vld [vmem:[#allocation2 + $0xa0] sm:$0xff]
        %v1942 = vld [vmem:[#allocation2 + $0xa8] sm:$0xff]
        %v1943 = vld [vmem:[#allocation2 + $0xb0] sm:$0xff]
        %v1944 = vld [vmem:[#allocation2 + $0xb8] sm:$0xff]
        %v1945 = vld [vmem:[#allocation2 + $0xc0] sm:$0xff]
        %v1946 = vld [vmem:[#allocation2 + $0xc8] sm:$0xff]
        %v1947 = vld [vmem:[#allocation2 + $0xd0] sm:$0xff]
        %v1948 = vld [vmem:[#allocation2 + $0xd8] sm:$0x1]
        %v1974 = vrot.slane %v1924, 1
        %v1975 = vrot.slane %v1925, 1
        %v1976 = vsel %vm915, %v1974, %v1975
        %v1977 = vrot.slane %v1926, 1
        %v1978 = vsel %vm915, %v1975, %v1977
        %v1979 = vrot.slane %v1927, 1
        %v1980 = vsel %vm915, %v1977, %v1979
        %v1981 = vrot.slane %v1928, 1
        %v1982 = vsel %vm915, %v1979, %v1981
        %v1983 = vrot.slane %v1929, 1
        %v1984 = vsel %vm915, %v1981, %v1983
        %v1985 = vrot.slane %v1930, 1
        %v1986 = vsel %vm915, %v1983, %v1985
        %v1987 = vrot.slane %v1931, 1
        %v1988 = vsel %vm915, %v1985, %v1987
        %v1989 = vrot.slane %v1932, 1
        %v1990 = vsel %vm915, %v1987, %v1989
        %v1991 = vrot.slane %v1933, 1
        %v1992 = vsel %vm915, %v1989, %v1991
        %v1993 = vrot.slane %v1934, 1
        %v1994 = vsel %vm915, %v1991, %v1993
        %v1995 = vrot.slane %v1935, 1
        %v1996 = vsel %vm915, %v1993, %v1995
        %v1997 = vrot.slane %v1936, 1
        %v1998 = vsel %vm915, %v1995, %v1997
        %v1999 = vrot.slane %v1937, 1
        %v2000 = vsel %vm915, %v1997, %v1999
        %v2001 = vrot.slane %v1938, 1
        %v2002 = vsel %vm915, %v1999, %v2001
        %v2003 = vrot.slane %v1939, 1
        %v2004 = vsel %vm915, %v2001, %v2003
        %v2005 = vrot.slane %v1940, 1
        %v2006 = vsel %vm915, %v2003, %v2005
        %v2007 = vrot.slane %v1941, 1
        %v2008 = vsel %vm915, %v2005, %v2007
        %v2009 = vrot.slane %v1942, 1
        %v2010 = vsel %vm915, %v2007, %v2009
        %v2011 = vrot.slane %v1943, 1
        %v2012 = vsel %vm915, %v2009, %v2011
        %v2013 = vrot.slane %v1944, 1
        %v2014 = vsel %vm915, %v2011, %v2013
        %v2015 = vrot.slane %v1945, 1
        %v2016 = vsel %vm915, %v2013, %v2015
        %v2017 = vrot.slane %v1946, 1
        %v2018 = vsel %vm915, %v2015, %v2017
        %v2019 = vrot.slane %v1947, 1
        %v2020 = vsel %vm915, %v2017, %v2019
        %v2021 = vrot.slane %v1948, 1
        %v2022 = vsel %vm915, %v2019, %v2021
        %2047 = vst [vmem:[#allocation4 + $0x40] sm:$0xff] %v1976
        %2048 = vst [vmem:[#allocation4 + $0x88] sm:$0xff] %v1978
        %2049 = vst [vmem:[#allocation4 + $0xd0] sm:$0xff] %v1980
        %2050 = vst [vmem:[#allocation4 + $0x118] sm:$0xff] %v1982
        %2051 = vst [vmem:[#allocation4 + $0x160] sm:$0xff] %v1984
        %2052 = vst [vmem:[#allocation4 + $0x1a8] sm:$0xff] %v1986
        %2053 = vst [vmem:[#allocation4 + $0x1f0] sm:$0xff] %v1988
        %2054 = vst [vmem:[#allocation4 + $0x238] sm:$0xff] %v1990
        %2055 = vst [vmem:[#allocation4 + $0x280] sm:$0xff] %v1992
        %2056 = vst [vmem:[#allocation4 + $0x2c8] sm:$0xff] %v1994
        %2057 = vst [vmem:[#allocation4 + $0x310] sm:$0xff] %v1996
        %2058 = vst [vmem:[#allocation4 + $0x358] sm:$0xff] %v1998
        %2059 = vst [vmem:[#allocation4 + $0x3a0] sm:$0xff] %v2000
        %2060 = vst [vmem:[#allocation4 + $0x3e8] sm:$0xff] %v2002
        %2061 = vst [vmem:[#allocation4 + $0x430] sm:$0xff] %v2004
        %2062 = vst [vmem:[#allocation4 + $0x478] sm:$0xff] %v2006
        %2063 = vst [vmem:[#allocation4 + $0x4c0] sm:$0xff] %v2008
        %2064 = vst [vmem:[#allocation4 + $0x508] sm:$0xff] %v2010
        %2065 = vst [vmem:[#allocation4 + $0x550] sm:$0xff] %v2012
        %2066 = vst [vmem:[#allocation4 + $0x598] sm:$0xff] %v2014
        %2067 = vst [vmem:[#allocation4 + $0x5e0] sm:$0xff] %v2016
        %2068 = vst [vmem:[#allocation4 + $0x628] sm:$0xff] %v2018
        %2069 = vst [vmem:[#allocation4 + $0x670] sm:$0xff] %v2020
        %2070 = vst [vmem:[#allocation4 + $0x6b8] sm:$0xff] %v2022
        %v2071 = vld [vmem:[#allocation4] sm:$0xff]
        %v2072 = vld [vmem:[#allocation4 + $0x8] sm:$0xff]
        %v2073 = vld [vmem:[#allocation4 + $0x10] sm:$0xff]
        %v2074 = vld [vmem:[#allocation4 + $0x18] sm:$0xff]
        %v2075 = vld [vmem:[#allocation4 + $0x20] sm:$0xff]
        %v2076 = vld [vmem:[#allocation4 + $0x28] sm:$0xff]
        %v2077 = vld [vmem:[#allocation4 + $0x30] sm:$0xff]
        %v2078 = vld [vmem:[#allocation4 + $0x38] sm:$0xff]
        %v2079 = vld [vmem:[#allocation4 + $0x40] sm:$0xff]
        %v2080 = vld [vmem:[#allocation4 + $0x48] sm:$0xff]
        %v2081 = vld [vmem:[#allocation4 + $0x50] sm:$0xff]
        %v2082 = vld [vmem:[#allocation4 + $0x58] sm:$0xff]
        %v2083 = vld [vmem:[#allocation4 + $0x60] sm:$0xff]
        %v2084 = vld [vmem:[#allocation4 + $0x68] sm:$0xff]
        %v2085 = vld [vmem:[#allocation4 + $0x70] sm:$0xff]
        %v2086 = vld [vmem:[#allocation4 + $0x78] sm:$0xff]
        %v2087 = vld [vmem:[#allocation4 + $0x80] sm:$0xff]
        %v2088 = vld [vmem:[#allocation4 + $0x88] sm:$0xff]
        %v2089 = vld [vmem:[#allocation4 + $0x90] sm:$0xff]
        %v2090 = vld [vmem:[#allocation4 + $0x98] sm:$0xff]
        %v2091 = vld [vmem:[#allocation4 + $0xa0] sm:$0xff]
        %v2092 = vld [vmem:[#allocation4 + $0xa8] sm:$0xff]
        %v2093 = vld [vmem:[#allocation4 + $0xb0] sm:$0xff]
        %v2094 = vld [vmem:[#allocation4 + $0xb8] sm:$0xff]
        %v2095 = vld [vmem:[#allocation4 + $0xc0] sm:$0xff]
        %v2096 = vld [vmem:[#allocation4 + $0xc8] sm:$0xff]
        %v2097 = vld [vmem:[#allocation4 + $0xd0] sm:$0xff]
        %v2098 = vld [vmem:[#allocation4 + $0xd8] sm:$0xff]
        %v2099 = vld [vmem:[#allocation4 + $0xe0] sm:$0xff]
        %v2100 = vld [vmem:[#allocation4 + $0xe8] sm:$0xff]
        %v2101 = vld [vmem:[#allocation4 + $0xf0] sm:$0xff]
        %v2102 = vld [vmem:[#allocation4 + $0xf8] sm:$0xff]
        %v2103 = vld [vmem:[#allocation4 + $0x100] sm:$0xff]
        %v2104 = vld [vmem:[#allocation4 + $0x108] sm:$0xff]
        %v2105 = vld [vmem:[#allocation4 + $0x110] sm:$0xff]
        %v2106 = vld [vmem:[#allocation4 + $0x118] sm:$0xff]
        %v2107 = vld [vmem:[#allocation4 + $0x120] sm:$0xff]
        %v2108 = vld [vmem:[#allocation4 + $0x128] sm:$0xff]
        %v2109 = vld [vmem:[#allocation4 + $0x130] sm:$0xff]
        %v2110 = vld [vmem:[#allocation4 + $0x138] sm:$0xff]
        %v2111 = vld [vmem:[#allocation4 + $0x140] sm:$0xff]
        %v2112 = vld [vmem:[#allocation4 + $0x148] sm:$0xff]
        %v2113 = vld [vmem:[#allocation4 + $0x150] sm:$0xff]
        %v2114 = vld [vmem:[#allocation4 + $0x158] sm:$0xff]
        %v2115 = vld [vmem:[#allocation4 + $0x160] sm:$0xff]
        %v2116 = vld [vmem:[#allocation4 + $0x168] sm:$0xff]
        %v2117 = vld [vmem:[#allocation4 + $0x170] sm:$0xff]
        %v2118 = vld [vmem:[#allocation4 + $0x178] sm:$0xff]
        %v2119 = vld [vmem:[#allocation4 + $0x180] sm:$0xff]
        %v2120 = vld [vmem:[#allocation4 + $0x188] sm:$0xff]
        %v2121 = vld [vmem:[#allocation4 + $0x190] sm:$0xff]
        %v2122 = vld [vmem:[#allocation4 + $0x198] sm:$0xff]
        %v2123 = vld [vmem:[#allocation4 + $0x1a0] sm:$0xff]
        %v2124 = vld [vmem:[#allocation4 + $0x1a8] sm:$0xff]
        %v2125 = vld [vmem:[#allocation4 + $0x1b0] sm:$0xff]
        %v2126 = vld [vmem:[#allocation4 + $0x1b8] sm:$0xff]
        %v2127 = vld [vmem:[#allocation4 + $0x1c0] sm:$0xff]
        %v2128 = vld [vmem:[#allocation4 + $0x1c8] sm:$0xff]
        %v2129 = vld [vmem:[#allocation4 + $0x1d0] sm:$0xff]
        %v2130 = vld [vmem:[#allocation4 + $0x1d8] sm:$0xff]
        %v2131 = vld [vmem:[#allocation4 + $0x1e0] sm:$0xff]
        %v2132 = vld [vmem:[#allocation4 + $0x1e8] sm:$0xff]
        %v2133 = vld [vmem:[#allocation4 + $0x1f0] sm:$0xff]
        %v2134 = vld [vmem:[#allocation4 + $0x1f8] sm:$0xff]
        %v2135 = vld [vmem:[#allocation4 + $0x200] sm:$0xff]
        %v2136 = vld [vmem:[#allocation4 + $0x208] sm:$0xff]
        %v2137 = vld [vmem:[#allocation4 + $0x210] sm:$0xff]
        %v2138 = vld [vmem:[#allocation4 + $0x218] sm:$0xff]
        %v2139 = vld [vmem:[#allocation4 + $0x220] sm:$0xff]
        %v2140 = vld [vmem:[#allocation4 + $0x228] sm:$0xff]
        %v2141 = vld [vmem:[#allocation4 + $0x230] sm:$0xff]
        %v2142 = vld [vmem:[#allocation4 + $0x238] sm:$0xff]
        %v2143 = vld [vmem:[#allocation4 + $0x240] sm:$0xff]
        %v2144 = vld [vmem:[#allocation4 + $0x248] sm:$0xff]
        %v2145 = vld [vmem:[#allocation4 + $0x250] sm:$0xff]
        %v2146 = vld [vmem:[#allocation4 + $0x258] sm:$0xff]
        %v2147 = vld [vmem:[#allocation4 + $0x260] sm:$0xff]
        %v2148 = vld [vmem:[#allocation4 + $0x268] sm:$0xff]
        %v2149 = vld [vmem:[#allocation4 + $0x270] sm:$0xff]
        %v2150 = vld [vmem:[#allocation4 + $0x278] sm:$0xff]
        %v2151 = vld [vmem:[#allocation4 + $0x280] sm:$0xff]
        %v2152 = vld [vmem:[#allocation4 + $0x288] sm:$0xff]
        %v2153 = vld [vmem:[#allocation4 + $0x290] sm:$0xff]
        %v2154 = vld [vmem:[#allocation4 + $0x298] sm:$0xff]
        %v2155 = vld [vmem:[#allocation4 + $0x2a0] sm:$0xff]
        %v2156 = vld [vmem:[#allocation4 + $0x2a8] sm:$0xff]
        %v2157 = vld [vmem:[#allocation4 + $0x2b0] sm:$0xff]
        %v2158 = vld [vmem:[#allocation4 + $0x2b8] sm:$0xff]
        %v2159 = vld [vmem:[#allocation4 + $0x2c0] sm:$0xff]
        %v2160 = vld [vmem:[#allocation4 + $0x2c8] sm:$0xff]
        %v2161 = vld [vmem:[#allocation4 + $0x2d0] sm:$0xff]
        %v2162 = vld [vmem:[#allocation4 + $0x2d8] sm:$0xff]
        %v2163 = vld [vmem:[#allocation4 + $0x2e0] sm:$0xff]
        %v2164 = vld [vmem:[#allocation4 + $0x2e8] sm:$0xff]
        %v2165 = vld [vmem:[#allocation4 + $0x2f0] sm:$0xff]
        %v2166 = vld [vmem:[#allocation4 + $0x2f8] sm:$0xff]
        %v2167 = vld [vmem:[#allocation4 + $0x300] sm:$0xff]
        %v2168 = vld [vmem:[#allocation4 + $0x308] sm:$0xff]
        %v2169 = vld [vmem:[#allocation4 + $0x310] sm:$0xff]
        %v2170 = vld [vmem:[#allocation4 + $0x318] sm:$0xff]
        %v2171 = vld [vmem:[#allocation4 + $0x320] sm:$0xff]
        %v2172 = vld [vmem:[#allocation4 + $0x328] sm:$0xff]
        %v2173 = vld [vmem:[#allocation4 + $0x330] sm:$0xff]
        %v2174 = vld [vmem:[#allocation4 + $0x338] sm:$0xff]
        %v2175 = vld [vmem:[#allocation4 + $0x340] sm:$0xff]
        %v2176 = vld [vmem:[#allocation4 + $0x348] sm:$0xff]
        %v2177 = vld [vmem:[#allocation4 + $0x350] sm:$0xff]
        %v2178 = vld [vmem:[#allocation4 + $0x358] sm:$0xff]
        %v2179 = vld [vmem:[#allocation4 + $0x360] sm:$0xff]
        %v2180 = vld [vmem:[#allocation4 + $0x368] sm:$0xff]
        %v2181 = vld [vmem:[#allocation4 + $0x370] sm:$0xff]
        %v2182 = vld [vmem:[#allocation4 + $0x378] sm:$0xff]
        %v2183 = vld [vmem:[#allocation4 + $0x380] sm:$0xff]
        %v2184 = vld [vmem:[#allocation4 + $0x388] sm:$0xff]
        %v2185 = vld [vmem:[#allocation4 + $0x390] sm:$0xff]
        %v2186 = vld [vmem:[#allocation4 + $0x398] sm:$0xff]
        %v2187 = vld [vmem:[#allocation4 + $0x3a0] sm:$0xff]
        %v2188 = vld [vmem:[#allocation4 + $0x3a8] sm:$0xff]
        %v2189 = vld [vmem:[#allocation4 + $0x3b0] sm:$0xff]
        %v2190 = vld [vmem:[#allocation4 + $0x3b8] sm:$0xff]
        %v2191 = vld [vmem:[#allocation4 + $0x3c0] sm:$0xff]
        %v2192 = vld [vmem:[#allocation4 + $0x3c8] sm:$0xff]
        %v2193 = vld [vmem:[#allocation4 + $0x3d0] sm:$0xff]
        %v2194 = vld [vmem:[#allocation4 + $0x3d8] sm:$0xff]
        %v2195 = vld [vmem:[#allocation4 + $0x3e0] sm:$0xff]
        %v2196 = vld [vmem:[#allocation4 + $0x3e8] sm:$0xff]
        %v2197 = vld [vmem:[#allocation4 + $0x3f0] sm:$0xff]
        %v2198 = vld [vmem:[#allocation4 + $0x3f8] sm:$0xff]
        %v2199 = vld [vmem:[#allocation4 + $0x400] sm:$0xff]
        %v2200 = vld [vmem:[#allocation4 + $0x408] sm:$0xff]
        %v2201 = vld [vmem:[#allocation4 + $0x410] sm:$0xff]
        %v2202 = vld [vmem:[#allocation4 + $0x418] sm:$0xff]
        %v2203 = vld [vmem:[#allocation4 + $0x420] sm:$0xff]
        %v2204 = vld [vmem:[#allocation4 + $0x428] sm:$0xff]
        %v2205 = vld [vmem:[#allocation4 + $0x430] sm:$0xff]
        %v2206 = vld [vmem:[#allocation4 + $0x438] sm:$0xff]
        %v2207 = vld [vmem:[#allocation4 + $0x440] sm:$0xff]
        %v2208 = vld [vmem:[#allocation4 + $0x448] sm:$0xff]
        %v2209 = vld [vmem:[#allocation4 + $0x450] sm:$0xff]
        %v2210 = vld [vmem:[#allocation4 + $0x458] sm:$0xff]
        %v2211 = vld [vmem:[#allocation4 + $0x460] sm:$0xff]
        %v2212 = vld [vmem:[#allocation4 + $0x468] sm:$0xff]
        %v2213 = vld [vmem:[#allocation4 + $0x470] sm:$0xff]
        %v2214 = vld [vmem:[#allocation4 + $0x478] sm:$0xff]
        %v2215 = vld [vmem:[#allocation4 + $0x480] sm:$0xff]
        %v2216 = vld [vmem:[#allocation4 + $0x488] sm:$0xff]
        %v2217 = vld [vmem:[#allocation4 + $0x490] sm:$0xff]
        %v2218 = vld [vmem:[#allocation4 + $0x498] sm:$0xff]
        %v2219 = vld [vmem:[#allocation4 + $0x4a0] sm:$0xff]
        %v2220 = vld [vmem:[#allocation4 + $0x4a8] sm:$0xff]
        %v2221 = vld [vmem:[#allocation4 + $0x4b0] sm:$0xff]
        %v2222 = vld [vmem:[#allocation4 + $0x4b8] sm:$0xff]
        %v2223 = vld [vmem:[#allocation4 + $0x4c0] sm:$0xff]
        %v2224 = vld [vmem:[#allocation4 + $0x4c8] sm:$0xff]
        %v2225 = vld [vmem:[#allocation4 + $0x4d0] sm:$0xff]
        %v2226 = vld [vmem:[#allocation4 + $0x4d8] sm:$0xff]
        %v2227 = vld [vmem:[#allocation4 + $0x4e0] sm:$0xff]
        %v2228 = vld [vmem:[#allocation4 + $0x4e8] sm:$0xff]
        %v2229 = vld [vmem:[#allocation4 + $0x4f0] sm:$0xff]
        %v2230 = vld [vmem:[#allocation4 + $0x4f8] sm:$0xff]
        %v2231 = vld [vmem:[#allocation4 + $0x500] sm:$0xff]
        %v2232 = vld [vmem:[#allocation4 + $0x508] sm:$0xff]
        %v2233 = vld [vmem:[#allocation4 + $0x510] sm:$0xff]
        %v2234 = vld [vmem:[#allocation4 + $0x518] sm:$0xff]
        %v2235 = vld [vmem:[#allocation4 + $0x520] sm:$0xff]
        %v2236 = vld [vmem:[#allocation4 + $0x528] sm:$0xff]
        %v2237 = vld [vmem:[#allocation4 + $0x530] sm:$0xff]
        %v2238 = vld [vmem:[#allocation4 + $0x538] sm:$0xff]
        %v2239 = vld [vmem:[#allocation4 + $0x540] sm:$0xff]
        %v2240 = vld [vmem:[#allocation4 + $0x548] sm:$0xff]
        %v2241 = vld [vmem:[#allocation4 + $0x550] sm:$0xff]
        %v2242 = vld [vmem:[#allocation4 + $0x558] sm:$0xff]
        %v2243 = vld [vmem:[#allocation4 + $0x560] sm:$0xff]
        %v2244 = vld [vmem:[#allocation4 + $0x568] sm:$0xff]
        %v2245 = vld [vmem:[#allocation4 + $0x570] sm:$0xff]
        %v2246 = vld [vmem:[#allocation4 + $0x578] sm:$0xff]
        %v2247 = vld [vmem:[#allocation4 + $0x580] sm:$0xff]
        %v2248 = vld [vmem:[#allocation4 + $0x588] sm:$0xff]
        %v2249 = vld [vmem:[#allocation4 + $0x590] sm:$0xff]
        %v2250 = vld [vmem:[#allocation4 + $0x598] sm:$0xff]
        %v2251 = vld [vmem:[#allocation4 + $0x5a0] sm:$0xff]
        %v2252 = vld [vmem:[#allocation4 + $0x5a8] sm:$0xff]
        %v2253 = vld [vmem:[#allocation4 + $0x5b0] sm:$0xff]
        %v2254 = vld [vmem:[#allocation4 + $0x5b8] sm:$0xff]
        %v2255 = vld [vmem:[#allocation4 + $0x5c0] sm:$0xff]
        %v2256 = vld [vmem:[#allocation4 + $0x5c8] sm:$0xff]
        %v2257 = vld [vmem:[#allocation4 + $0x5d0] sm:$0xff]
        %v2258 = vld [vmem:[#allocation4 + $0x5d8] sm:$0xff]
        %v2259 = vld [vmem:[#allocation4 + $0x5e0] sm:$0xff]
        %v2260 = vld [vmem:[#allocation4 + $0x5e8] sm:$0xff]
        %v2261 = vld [vmem:[#allocation4 + $0x5f0] sm:$0xff]
        %v2262 = vld [vmem:[#allocation4 + $0x5f8] sm:$0xff]
        %v2263 = vld [vmem:[#allocation4 + $0x600] sm:$0xff]
        %v2264 = vld [vmem:[#allocation4 + $0x608] sm:$0xff]
        %v2265 = vld [vmem:[#allocation4 + $0x610] sm:$0xff]
        %v2266 = vld [vmem:[#allocation4 + $0x618] sm:$0xff]
        %v2267 = vld [vmem:[#allocation4 + $0x620] sm:$0xff]
        %v2268 = vld [vmem:[#allocation4 + $0x628] sm:$0xff]
        %v2269 = vld [vmem:[#allocation4 + $0x630] sm:$0xff]
        %v2270 = vld [vmem:[#allocation4 + $0x638] sm:$0xff]
        %v2271 = vld [vmem:[#allocation4 + $0x640] sm:$0xff]
        %v2272 = vld [vmem:[#allocation4 + $0x648] sm:$0xff]
        %v2273 = vld [vmem:[#allocation4 + $0x650] sm:$0xff]
        %v2274 = vld [vmem:[#allocation4 + $0x658] sm:$0xff]
        %v2275 = vld [vmem:[#allocation4 + $0x660] sm:$0xff]
        %v2276 = vld [vmem:[#allocation4 + $0x668] sm:$0xff]
        %v2277 = vld [vmem:[#allocation4 + $0x670] sm:$0xff]
        %v2278 = vld [vmem:[#allocation4 + $0x678] sm:$0xff]
        %v2279 = vld [vmem:[#allocation4 + $0x680] sm:$0xff]
        %v2280 = vld [vmem:[#allocation4 + $0x688] sm:$0xff]
        %v2281 = vld [vmem:[#allocation4 + $0x690] sm:$0xff]
        %v2282 = vld [vmem:[#allocation4 + $0x698] sm:$0xff]
        %v2283 = vld [vmem:[#allocation4 + $0x6a0] sm:$0xff]
        %v2284 = vld [vmem:[#allocation4 + $0x6a8] sm:$0xff]
        %v2285 = vld [vmem:[#allocation4 + $0x6b0] sm:$0xff]
        %v2286 = vld [vmem:[#allocation4 + $0x6b8] sm:$0xff]
        %v2287 = vld [vmem:[%s1] sm:$0xf]
        %v2288 = vld [vmem:[%s1 + $0x4] sm:$0xf]
        %v2289 = vld [vmem:[%s1 + $0x8] sm:$0xf]
        %v2290 = vld [vmem:[%s1 + $0xc] sm:$0xf]
        %v2291 = vld [vmem:[%s1 + $0x10] sm:$0xf]
        %v2292 = vld [vmem:[%s1 + $0x14] sm:$0xf]
        %v2293 = vld [vmem:[%s1 + $0x18] sm:$0xf]
        %v2294 = vld [vmem:[%s1 + $0x1c] sm:$0xf]
        %v2295 = vld [vmem:[%s1 + $0x20] sm:$0xf]
        %v2296 = vld [vmem:[%s1 + $0x24] sm:$0xf]
        %v2297 = vld [vmem:[%s1 + $0x28] sm:$0xf]
        %v2298 = vld [vmem:[%s1 + $0x2c] sm:$0xf]
        %v2299 = vld [vmem:[%s1 + $0x30] sm:$0xf]
        %v2300 = vld [vmem:[%s1 + $0x34] sm:$0xf]
        %v2301 = vld [vmem:[%s1 + $0x38] sm:$0xf]
        %v2302 = vld [vmem:[%s1 + $0x3c] sm:$0xf]
        %v2303 = vld [vmem:[%s1 + $0x40] sm:$0xf]
        %v2304 = vld [vmem:[%s1 + $0x44] sm:$0xf]
        %v2305 = vld [vmem:[%s1 + $0x48] sm:$0xf]
        %v2306 = vld [vmem:[%s1 + $0x4c] sm:$0xf]
        %v2307 = vld [vmem:[%s1 + $0x50] sm:$0xf]
        %v2308 = vld [vmem:[%s1 + $0x54] sm:$0xf]
        %v2309 = vld [vmem:[%s1 + $0x58] sm:$0xf]
        %v2310 = vld [vmem:[%s1 + $0x5c] sm:$0xf]
        %v2311 = vld [vmem:[%s1 + $0x60] sm:$0xf]
        %v2312 = vld [vmem:[%s1 + $0x64] sm:$0xf]
        %v2313 = vld [vmem:[%s1 + $0x68] sm:$0xf]
        %v2314 = vld [vmem:[%s1 + $0x6c] sm:$0xf]
        %v2315 = vld [vmem:[%s1 + $0x70] sm:$0xf]
        %v2316 = vld [vmem:[%s1 + $0x74] sm:$0xf]
        %v2317 = vld [vmem:[%s1 + $0x78] sm:$0xf]
        %v2318 = vld [vmem:[%s1 + $0x7c] sm:$0xf]
        %v2319 = vld [vmem:[%s1 + $0x80] sm:$0xf]
        %v2320 = vld [vmem:[%s1 + $0x84] sm:$0xf]
        %v2321 = vld [vmem:[%s1 + $0x88] sm:$0xf]
        %v2322 = vld [vmem:[%s1 + $0x8c] sm:$0xf]
        %v2323 = vld [vmem:[%s1 + $0x90] sm:$0xf]
        %v2324 = vld [vmem:[%s1 + $0x94] sm:$0xf]
        %v2325 = vld [vmem:[%s1 + $0x98] sm:$0xf]
        %v2326 = vld [vmem:[%s1 + $0x9c] sm:$0xf]
        %v2327 = vld [vmem:[%s1 + $0xa0] sm:$0xf]
        %v2328 = vld [vmem:[%s1 + $0xa4] sm:$0xf]
        %v2329 = vld [vmem:[%s1 + $0xa8] sm:$0xf]
        %v2330 = vld [vmem:[%s1 + $0xac] sm:$0xf]
        %v2331 = vld [vmem:[%s1 + $0xb0] sm:$0xf]
        %v2332 = vld [vmem:[%s1 + $0xb4] sm:$0xf]
        %v2333 = vld [vmem:[%s1 + $0xb8] sm:$0xf]
        %v2334 = vld [vmem:[%s1 + $0xbc] sm:$0xf]
        %v2335 = vld [vmem:[%s1 + $0xc0] sm:$0xf]
        %v2336 = vld [vmem:[%s1 + $0xc4] sm:$0xf]
        %v2337 = vld [vmem:[%s1 + $0xc8] sm:$0xf]
        %v2338 = vld [vmem:[%s1 + $0xcc] sm:$0xf]
        %v2339 = vld [vmem:[%s1 + $0xd0] sm:$0xf]
        %v2340 = vld [vmem:[%s1 + $0xd4] sm:$0xf]
        %v2341 = vld [vmem:[%s1 + $0xd8] sm:$0xf]
        %v2342 = vld [vmem:[%s1 + $0xdc] sm:$0xf]
        %v2343 = vld [vmem:[%s1 + $0xe0] sm:$0xf]
        %v2344 = vld [vmem:[%s1 + $0xe4] sm:$0xf]
        %v2345 = vld [vmem:[%s1 + $0xe8] sm:$0xf]
        %v2346 = vld [vmem:[%s1 + $0xec] sm:$0xf]
        %v2347 = vld [vmem:[%s1 + $0xf0] sm:$0xf]
        %v2348 = vld [vmem:[%s1 + $0xf4] sm:$0xf]
        %v2349 = vld [vmem:[%s1 + $0xf8] sm:$0xf]
        %v2350 = vld [vmem:[%s1 + $0xfc] sm:$0xf]
        %v2351 = vld [vmem:[%s1 + $0x100] sm:$0xf]
        %v2352 = vld [vmem:[%s1 + $0x104] sm:$0xf]
        %v2353 = vld [vmem:[%s1 + $0x108] sm:$0xf]
        %v2354 = vld [vmem:[%s1 + $0x10c] sm:$0xf]
        %v2355 = vld [vmem:[%s1 + $0x110] sm:$0xf]
        %v2356 = vld [vmem:[%s1 + $0x114] sm:$0xf]
        %v2357 = vld [vmem:[%s1 + $0x118] sm:$0xf]
        %v2358 = vld [vmem:[%s1 + $0x11c] sm:$0xf]
        %v2359 = vld [vmem:[%s1 + $0x120] sm:$0xf]
        %v2360 = vld [vmem:[%s1 + $0x124] sm:$0xf]
        %v2361 = vld [vmem:[%s1 + $0x128] sm:$0xf]
        %v2362 = vld [vmem:[%s1 + $0x12c] sm:$0xf]
        %v2363 = vld [vmem:[%s1 + $0x130] sm:$0xf]
        %v2364 = vld [vmem:[%s1 + $0x134] sm:$0xf]
        %v2365 = vld [vmem:[%s1 + $0x138] sm:$0xf]
        %v2366 = vld [vmem:[%s1 + $0x13c] sm:$0xf]
        %v2367 = vld [vmem:[%s1 + $0x140] sm:$0xf]
        %v2368 = vld [vmem:[%s1 + $0x144] sm:$0xf]
        %v2369 = vld [vmem:[%s1 + $0x148] sm:$0xf]
        %v2370 = vld [vmem:[%s1 + $0x14c] sm:$0xf]
        %v2371 = vld [vmem:[%s1 + $0x150] sm:$0xf]
        %v2372 = vld [vmem:[%s1 + $0x154] sm:$0xf]
        %v2373 = vld [vmem:[%s1 + $0x158] sm:$0xf]
        %v2374 = vld [vmem:[%s1 + $0x15c] sm:$0xf]
        %v2375 = vld [vmem:[%s1 + $0x160] sm:$0xf]
        %v2376 = vld [vmem:[%s1 + $0x164] sm:$0xf]
        %v2377 = vld [vmem:[%s1 + $0x168] sm:$0xf]
        %v2378 = vld [vmem:[%s1 + $0x16c] sm:$0xf]
        %v2379 = vld [vmem:[%s1 + $0x170] sm:$0xf]
        %v2380 = vld [vmem:[%s1 + $0x174] sm:$0xf]
        %v2381 = vld [vmem:[%s1 + $0x178] sm:$0xf]
        %v2382 = vld [vmem:[%s1 + $0x17c] sm:$0xf]
        %v2383 = vld [vmem:[%s1 + $0x180] sm:$0xf]
        %v2384 = vld [vmem:[%s1 + $0x184] sm:$0xf]
        %v2385 = vld [vmem:[%s1 + $0x188] sm:$0xf]
        %v2386 = vld [vmem:[%s1 + $0x18c] sm:$0xf]
        %v2387 = vld [vmem:[%s1 + $0x190] sm:$0xf]
        %v2388 = vld [vmem:[%s1 + $0x194] sm:$0xf]
        %v2389 = vld [vmem:[%s1 + $0x198] sm:$0xf]
        %v2390 = vld [vmem:[%s1 + $0x19c] sm:$0xf]
        %v2391 = vld [vmem:[%s1 + $0x1a0] sm:$0xf]
        %v2392 = vld [vmem:[%s1 + $0x1a4] sm:$0xf]
        %v2393 = vld [vmem:[%s1 + $0x1a8] sm:$0xf]
        %v2394 = vld [vmem:[%s1 + $0x1ac] sm:$0xf]
        %v2395 = vld [vmem:[%s1 + $0x1b0] sm:$0xf]
        %v2396 = vld [vmem:[%s1 + $0x1b4] sm:$0xf]
        %v2397 = vld [vmem:[%s1 + $0x1b8] sm:$0xf]
        %v2398 = vld [vmem:[%s1 + $0x1bc] sm:$0xf]
        %v2399 = vld [vmem:[%s1 + $0x1c0] sm:$0xf]
        %v2400 = vld [vmem:[%s1 + $0x1c4] sm:$0xf]
        %v2401 = vld [vmem:[%s1 + $0x1c8] sm:$0xf]
        %v2402 = vld [vmem:[%s1 + $0x1cc] sm:$0xf]
        %v2403 = vld [vmem:[%s1 + $0x1d0] sm:$0xf]
        %v2404 = vld [vmem:[%s1 + $0x1d4] sm:$0xf]
        %v2405 = vld [vmem:[%s1 + $0x1d8] sm:$0xf]
        %v2406 = vld [vmem:[%s1 + $0x1dc] sm:$0xf]
        %v2407 = vld [vmem:[%s1 + $0x1e0] sm:$0xf]
        %v2408 = vld [vmem:[%s1 + $0x1e4] sm:$0xf]
        %v2409 = vld [vmem:[%s1 + $0x1e8] sm:$0xf]
        %v2410 = vld [vmem:[%s1 + $0x1ec] sm:$0xf]
        %v2411 = vld [vmem:[%s1 + $0x1f0] sm:$0xf]
        %v2412 = vld [vmem:[%s1 + $0x1f4] sm:$0xf]
        %v2413 = vld [vmem:[%s1 + $0x1f8] sm:$0xf]
        %v2414 = vld [vmem:[%s1 + $0x1fc] sm:$0xf]
        %v2415 = vld [vmem:[%s1 + $0x200] sm:$0xf]
        %v2416 = vld [vmem:[%s1 + $0x204] sm:$0xf]
        %v2417 = vld [vmem:[%s1 + $0x208] sm:$0xf]
        %v2418 = vld [vmem:[%s1 + $0x20c] sm:$0xf]
        %v2419 = vld [vmem:[%s1 + $0x210] sm:$0xf]
        %v2420 = vld [vmem:[%s1 + $0x214] sm:$0xf]
        %v2421 = vld [vmem:[%s1 + $0x218] sm:$0xf]
        %v2422 = vld [vmem:[%s1 + $0x21c] sm:$0xf]
        %v2423 = vld [vmem:[%s1 + $0x220] sm:$0xf]
        %v2424 = vld [vmem:[%s1 + $0x224] sm:$0xf]
        %v2425 = vld [vmem:[%s1 + $0x228] sm:$0xf]
        %v2426 = vld [vmem:[%s1 + $0x22c] sm:$0xf]
        %v2427 = vld [vmem:[%s1 + $0x230] sm:$0xf]
        %v2428 = vld [vmem:[%s1 + $0x234] sm:$0xf]
        %v2429 = vld [vmem:[%s1 + $0x238] sm:$0xf]
        %v2430 = vld [vmem:[%s1 + $0x23c] sm:$0xf]
        %v2575 = vunpack.c.l.b16 %v2287
        %v2576 = vunpack.c.l.b16 %v2288
        %v2577 = vunpack.c.l.b16 %v2289
        %v2578 = vunpack.c.l.b16 %v2290
        %v2579 = vunpack.c.l.b16 %v2291
        %v2580 = vunpack.c.l.b16 %v2292
        %v2581 = vunpack.c.l.b16 %v2293
        %v2582 = vunpack.c.l.b16 %v2294
        %v2583 = vunpack.c.l.b16 %v2295
        %v2584 = vunpack.c.l.b16 %v2296
        %v2585 = vunpack.c.l.b16 %v2297
        %v2586 = vunpack.c.l.b16 %v2298
        %v2587 = vunpack.c.l.b16 %v2299
        %v2588 = vunpack.c.l.b16 %v2300
        %v2589 = vunpack.c.l.b16 %v2301
        %v2590 = vunpack.c.l.b16 %v2302
        %v2591 = vunpack.c.l.b16 %v2303
        %v2592 = vunpack.c.l.b16 %v2304
        %v2593 = vunpack.c.l.b16 %v2305
        %v2594 = vunpack.c.l.b16 %v2306
        %v2595 = vunpack.c.l.b16 %v2307
        %v2596 = vunpack.c.l.b16 %v2308
        %v2597 = vunpack.c.l.b16 %v2309
        %v2598 = vunpack.c.l.b16 %v2310
        %v2599 = vunpack.c.l.b16 %v2311
        %v2600 = vunpack.c.l.b16 %v2312
        %v2601 = vunpack.c.l.b16 %v2313
        %v2602 = vunpack.c.l.b16 %v2314
        %v2603 = vunpack.c.l.b16 %v2315
        %v2604 = vunpack.c.l.b16 %v2316
        %v2605 = vunpack.c.l.b16 %v2317
        %v2606 = vunpack.c.l.b16 %v2318
        %v2607 = vunpack.c.l.b16 %v2319
        %v2608 = vunpack.c.l.b16 %v2320
        %v2609 = vunpack.c.l.b16 %v2321
        %v2610 = vunpack.c.l.b16 %v2322
        %v2611 = vunpack.c.l.b16 %v2323
        %v2612 = vunpack.c.l.b16 %v2324
        %v2613 = vunpack.c.l.b16 %v2325
        %v2614 = vunpack.c.l.b16 %v2326
        %v2615 = vunpack.c.l.b16 %v2327
        %v2616 = vunpack.c.l.b16 %v2328
        %v2617 = vunpack.c.l.b16 %v2329
        %v2618 = vunpack.c.l.b16 %v2330
        %v2619 = vunpack.c.l.b16 %v2331
        %v2620 = vunpack.c.l.b16 %v2332
        %v2621 = vunpack.c.l.b16 %v2333
        %v2622 = vunpack.c.l.b16 %v2334
        %v2623 = vunpack.c.l.b16 %v2335
        %v2624 = vunpack.c.l.b16 %v2336
        %v2625 = vunpack.c.l.b16 %v2337
        %v2626 = vunpack.c.l.b16 %v2338
        %v2627 = vunpack.c.l.b16 %v2339
        %v2628 = vunpack.c.l.b16 %v2340
        %v2629 = vunpack.c.l.b16 %v2341
        %v2630 = vunpack.c.l.b16 %v2342
        %v2631 = vunpack.c.l.b16 %v2343
        %v2632 = vunpack.c.l.b16 %v2344
        %v2633 = vunpack.c.l.b16 %v2345
        %v2634 = vunpack.c.l.b16 %v2346
        %v2635 = vunpack.c.l.b16 %v2347
        %v2636 = vunpack.c.l.b16 %v2348
        %v2637 = vunpack.c.l.b16 %v2349
        %v2638 = vunpack.c.l.b16 %v2350
        %v2639 = vunpack.c.l.b16 %v2351
        %v2640 = vunpack.c.l.b16 %v2352
        %v2641 = vunpack.c.l.b16 %v2353
        %v2642 = vunpack.c.l.b16 %v2354
        %v2643 = vunpack.c.l.b16 %v2355
        %v2644 = vunpack.c.l.b16 %v2356
        %v2645 = vunpack.c.l.b16 %v2357
        %v2646 = vunpack.c.l.b16 %v2358
        %v2647 = vunpack.c.l.b16 %v2359
        %v2648 = vunpack.c.l.b16 %v2360
        %v2649 = vunpack.c.l.b16 %v2361
        %v2650 = vunpack.c.l.b16 %v2362
        %v2651 = vunpack.c.l.b16 %v2363
        %v2652 = vunpack.c.l.b16 %v2364
        %v2653 = vunpack.c.l.b16 %v2365
        %v2654 = vunpack.c.l.b16 %v2366
        %v2655 = vunpack.c.l.b16 %v2367
        %v2656 = vunpack.c.l.b16 %v2368
        %v2657 = vunpack.c.l.b16 %v2369
        %v2658 = vunpack.c.l.b16 %v2370
        %v2659 = vunpack.c.l.b16 %v2371
        %v2660 = vunpack.c.l.b16 %v2372
        %v2661 = vunpack.c.l.b16 %v2373
        %v2662 = vunpack.c.l.b16 %v2374
        %v2663 = vunpack.c.l.b16 %v2375
        %v2664 = vunpack.c.l.b16 %v2376
        %v2665 = vunpack.c.l.b16 %v2377
        %v2666 = vunpack.c.l.b16 %v2378
        %v2667 = vunpack.c.l.b16 %v2379
        %v2668 = vunpack.c.l.b16 %v2380
        %v2669 = vunpack.c.l.b16 %v2381
        %v2670 = vunpack.c.l.b16 %v2382
        %v2671 = vunpack.c.l.b16 %v2383
        %v2672 = vunpack.c.l.b16 %v2384
        %v2673 = vunpack.c.l.b16 %v2385
        %v2674 = vunpack.c.l.b16 %v2386
        %v2675 = vunpack.c.l.b16 %v2387
        %v2676 = vunpack.c.l.b16 %v2388
        %v2677 = vunpack.c.l.b16 %v2389
        %v2678 = vunpack.c.l.b16 %v2390
        %v2679 = vunpack.c.l.b16 %v2391
        %v2680 = vunpack.c.l.b16 %v2392
        %v2681 = vunpack.c.l.b16 %v2393
        %v2682 = vunpack.c.l.b16 %v2394
        %v2683 = vunpack.c.l.b16 %v2395
        %v2684 = vunpack.c.l.b16 %v2396
        %v2685 = vunpack.c.l.b16 %v2397
        %v2686 = vunpack.c.l.b16 %v2398
        %v2687 = vunpack.c.l.b16 %v2399
        %v2688 = vunpack.c.l.b16 %v2400
        %v2689 = vunpack.c.l.b16 %v2401
        %v2690 = vunpack.c.l.b16 %v2402
        %v2691 = vunpack.c.l.b16 %v2403
        %v2692 = vunpack.c.l.b16 %v2404
        %v2693 = vunpack.c.l.b16 %v2405
        %v2694 = vunpack.c.l.b16 %v2406
        %v2695 = vunpack.c.l.b16 %v2407
        %v2696 = vunpack.c.l.b16 %v2408
        %v2697 = vunpack.c.l.b16 %v2409
        %v2698 = vunpack.c.l.b16 %v2410
        %v2699 = vunpack.c.l.b16 %v2411
        %v2700 = vunpack.c.l.b16 %v2412
        %v2701 = vunpack.c.l.b16 %v2413
        %v2702 = vunpack.c.l.b16 %v2414
        %v2703 = vunpack.c.l.b16 %v2415
        %v2704 = vunpack.c.l.b16 %v2416
        %v2705 = vunpack.c.l.b16 %v2417
        %v2706 = vunpack.c.l.b16 %v2418
        %v2707 = vunpack.c.l.b16 %v2419
        %v2708 = vunpack.c.l.b16 %v2420
        %v2709 = vunpack.c.l.b16 %v2421
        %v2710 = vunpack.c.l.b16 %v2422
        %v2711 = vunpack.c.l.b16 %v2423
        %v2712 = vunpack.c.l.b16 %v2424
        %v2713 = vunpack.c.l.b16 %v2425
        %v2714 = vunpack.c.l.b16 %v2426
        %v2715 = vunpack.c.l.b16 %v2427
        %v2716 = vunpack.c.l.b16 %v2428
        %v2717 = vunpack.c.l.b16 %v2429
        %v2718 = vunpack.c.l.b16 %v2430
        %v2719 = vpack.c.b16 %v2576, %v2575
        %v2720 = vpack.c.b16 %v2578, %v2577
        %v2721 = vpack.c.b16 %v2580, %v2579
        %v2722 = vpack.c.b16 %v2582, %v2581
        %v2723 = vpack.c.b16 %v2584, %v2583
        %v2724 = vpack.c.b16 %v2586, %v2585
        %v2725 = vpack.c.b16 %v2588, %v2587
        %v2726 = vpack.c.b16 %v2590, %v2589
        %v2727 = vpack.c.b16 %v2592, %v2591
        %v2728 = vpack.c.b16 %v2594, %v2593
        %v2729 = vpack.c.b16 %v2596, %v2595
        %v2730 = vpack.c.b16 %v2598, %v2597
        %v2731 = vpack.c.b16 %v2600, %v2599
        %v2732 = vpack.c.b16 %v2602, %v2601
        %v2733 = vpack.c.b16 %v2604, %v2603
        %v2734 = vpack.c.b16 %v2606, %v2605
        %v2735 = vpack.c.b16 %v2608, %v2607
        %v2736 = vpack.c.b16 %v2610, %v2609
        %v2737 = vpack.c.b16 %v2612, %v2611
        %v2738 = vpack.c.b16 %v2614, %v2613
        %v2739 = vpack.c.b16 %v2616, %v2615
        %v2740 = vpack.c.b16 %v2618, %v2617
        %v2741 = vpack.c.b16 %v2620, %v2619
        %v2742 = vpack.c.b16 %v2622, %v2621
        %v2743 = vpack.c.b16 %v2624, %v2623
        %v2744 = vpack.c.b16 %v2626, %v2625
        %v2745 = vpack.c.b16 %v2628, %v2627
        %v2746 = vpack.c.b16 %v2630, %v2629
        %v2747 = vpack.c.b16 %v2632, %v2631
        %v2748 = vpack.c.b16 %v2634, %v2633
        %v2749 = vpack.c.b16 %v2636, %v2635
        %v2750 = vpack.c.b16 %v2638, %v2637
        %v2751 = vpack.c.b16 %v2640, %v2639
        %v2752 = vpack.c.b16 %v2642, %v2641
        %v2753 = vpack.c.b16 %v2644, %v2643
        %v2754 = vpack.c.b16 %v2646, %v2645
        %v2755 = vpack.c.b16 %v2648, %v2647
        %v2756 = vpack.c.b16 %v2650, %v2649
        %v2757 = vpack.c.b16 %v2652, %v2651
        %v2758 = vpack.c.b16 %v2654, %v2653
        %v2759 = vpack.c.b16 %v2656, %v2655
        %v2760 = vpack.c.b16 %v2658, %v2657
        %v2761 = vpack.c.b16 %v2660, %v2659
        %v2762 = vpack.c.b16 %v2662, %v2661
        %v2763 = vpack.c.b16 %v2664, %v2663
        %v2764 = vpack.c.b16 %v2666, %v2665
        %v2765 = vpack.c.b16 %v2668, %v2667
        %v2766 = vpack.c.b16 %v2670, %v2669
        %v2767 = vpack.c.b16 %v2672, %v2671
        %v2768 = vpack.c.b16 %v2674, %v2673
        %v2769 = vpack.c.b16 %v2676, %v2675
        %v2770 = vpack.c.b16 %v2678, %v2677
        %v2771 = vpack.c.b16 %v2680, %v2679
        %v2772 = vpack.c.b16 %v2682, %v2681
        %v2773 = vpack.c.b16 %v2684, %v2683
        %v2774 = vpack.c.b16 %v2686, %v2685
        %v2775 = vpack.c.b16 %v2688, %v2687
        %v2776 = vpack.c.b16 %v2690, %v2689
        %v2777 = vpack.c.b16 %v2692, %v2691
        %v2778 = vpack.c.b16 %v2694, %v2693
        %v2779 = vpack.c.b16 %v2696, %v2695
        %v2780 = vpack.c.b16 %v2698, %v2697
        %v2781 = vpack.c.b16 %v2700, %v2699
        %v2782 = vpack.c.b16 %v2702, %v2701
        %v2783 = vpack.c.b16 %v2704, %v2703
        %v2784 = vpack.c.b16 %v2706, %v2705
        %v2785 = vpack.c.b16 %v2708, %v2707
        %v2786 = vpack.c.b16 %v2710, %v2709
        %v2787 = vpack.c.b16 %v2712, %v2711
        %v2788 = vpack.c.b16 %v2714, %v2713
        %v2789 = vpack.c.b16 %v2716, %v2715
        %v2790 = vpack.c.b16 %v2718, %v2717
        %2863 = vmatprep.subr.bf16.mxu0 0
        %2864 = vmatpush1.bf16.msra.mxu0 %v2719
        %2865 = vmatprep.subr.bf16.mxu0 0
        %2866 = vmatpush1.bf16.msra.mxu0 %v2720
        %2867 = vmatprep.subr.bf16.mxu0 0
        %2868 = vmatpush1.bf16.msra.mxu0 %v2721
        %2869 = vmatprep.subr.bf16.mxu0 0
        %2870 = vmatpush1.bf16.msra.mxu0 %v2722
        %2871 = vmatprep.subr.bf16.mxu0 0
        %2872 = vmatpush1.bf16.msra.mxu0 %v2723
        %2873 = vmatprep.subr.bf16.mxu0 0
        %2874 = vmatpush1.bf16.msra.mxu0 %v2724
        %2875 = vmatprep.subr.bf16.mxu0 0
        %2876 = vmatpush1.bf16.msra.mxu0 %v2725
        %2877 = vmatprep.subr.bf16.mxu0 0
        %2878 = vmatpush1.bf16.msra.mxu0 %v2726
        %2879 = vmatprep.subr.bf16.mxu0 0
        %2880 = vmatpush1.bf16.msra.mxu0 %v2727
        %2881 = vmatprep.subr.bf16.mxu0 0
        %2882 = vmatpush1.bf16.msra.mxu0 %v2728
        %2883 = vmatprep.subr.bf16.mxu0 0
        %2884 = vmatpush1.bf16.msra.mxu0 %v2729
        %2885 = vmatprep.subr.bf16.mxu0 0
        %2886 = vmatpush1.bf16.msra.mxu0 %v2730
        %2887 = vmatprep.subr.bf16.mxu0 0
        %2888 = vmatpush1.bf16.msra.mxu0 %v2731
        %2889 = vmatprep.subr.bf16.mxu0 0
        %2890 = vmatpush1.bf16.msra.mxu0 %v2732
        %2891 = vmatprep.subr.bf16.mxu0 0
        %2892 = vmatpush1.bf16.msra.mxu0 %v2733
        %2893 = vmatprep.subr.bf16.mxu0 0
        %2894 = vmatpush1.bf16.msra.mxu0 %v2734
        %2895 = vmatprep.mubr.bf16.mxu0 %v2072
        %2896 = vmatmul.mubr.bf16.gmra.mrb[0].mxu0 %v2071
        %v2897 = vpop.f32.mrb[0].mxu0
        %v2898 = vadd.f32 0.0, %v2897
        %v2899 = vpop.f32.mrb[0].mxu0
        %v2900 = vpop.f32.mrb[0].mxu0
        %v2901 = vadd.f32 0.0, %v2900
        %v2902 = vpop.f32.mrb[0].mxu0
        %2903 = vmatprep.mubr.bf16.mxu0 %v2081
        %2904 = vmatmul.mubr.bf16.gmra.mrb[0].mxu0 %v2080
        %v2905 = vpop.f32.mrb[0].mxu0
        %v2906 = vadd.f32 0.0, %v2905
        %v2907 = vpop.f32.mrb[0].mxu0
        %v2908 = vpop.f32.mrb[0].mxu0
        %v2909 = vadd.f32 0.0, %v2908
        %v2910 = vpop.f32.mrb[0].mxu0
        %2911 = vmatprep.mubr.bf16.mxu0 %v2090
        %2912 = vmatmul.mubr.bf16.gmra.mrb[0].mxu0 %v2089
        %v2913 = vpop.f32.mrb[0].mxu0
        %v2914 = vadd.f32 0.0, %v2913
        %v2915 = vpop.f32.mrb[0].mxu0
        %v2916 = vpop.f32.mrb[0].mxu0
        %v2917 = vadd.f32 0.0, %v2916
        %v2918 = vpop.f32.mrb[0].mxu0
        %2919 = vmatprep.mubr.bf16.mxu0 %v2099
        %2920 = vmatmul.mubr.bf16.gmra.mrb[0].mxu0 %v2098
        %v2921 = vpop.f32.mrb[0].mxu0
        %v2922 = vadd.f32 0.0, %v2921
        %v2923 = vpop.f32.mrb[0].mxu0
        %v2924 = vpop.f32.mrb[0].mxu0
        %v2925 = vadd.f32 0.0, %v2924
        %v2926 = vpop.f32.mrb[0].mxu0
        %2927 = vmatprep.mubr.bf16.mxu0 %v2108
        %2928 = vmatmul.mubr.bf16.gmra.mrb[0].mxu0 %v2107
        %v2929 = vpop.f32.mrb[0].mxu0
        %v2930 = vadd.f32 0.0, %v2929
        %v2931 = vpop.f32.mrb[0].mxu0
        %v2932 = vpop.f32.mrb[0].mxu0
        %v2933 = vadd.f32 0.0, %v2932
        %v2934 = vpop.f32.mrb[0].mxu0
        %2935 = vmatprep.mubr.bf16.mxu0 %v2117
        %2936 = vmatmul.mubr.bf16.gmra.mrb[0].mxu0 %v2116
        %v2937 = vpop.f32.mrb[0].mxu0
        %v2938 = vadd.f32 0.0, %v2937
        %v2939 = vpop.f32.mrb[0].mxu0
        %v2940 = vpop.f32.mrb[0].mxu0
        %v2941 = vadd.f32 0.0, %v2940
        %v2942 = vpop.f32.mrb[0].mxu0
        %2943 = vmatprep.mubr.bf16.mxu0 %v2126
        %2944 = vmatmul.mubr.bf16.gmra.mrb[0].mxu0 %v2125
        %v2945 = vpop.f32.mrb[0].mxu0
        %v2946 = vadd.f32 0.0, %v2945
        %v2947 = vpop.f32.mrb[0].mxu0
        %v2948 = vpop.f32.mrb[0].mxu0
        %v2949 = vadd.f32 0.0, %v2948
        %v2950 = vpop.f32.mrb[0].mxu0
        %2951 = vmatprep.mubr.bf16.mxu0 %v2135
        %2952 = vmatmul.mubr.bf16.gmra.mrb[0].mxu0 %v2134
        %v2953 = vpop.f32.mrb[0].mxu0
        %v2954 = vadd.f32 0.0, %v2953
        %v2955 = vpop.f32.mrb[0].mxu0
        %v2956 = vpop.f32.mrb[0].mxu0
        %v2957 = vadd.f32 0.0, %v2956
        %v2958 = vpop.f32.mrb[0].mxu0
        %2959 = vmatprep.mubr.bf16.mxu0 %v2144
        %2960 = vmatmul.mubr.bf16.gmra.mrb[0].mxu0 %v2143
        %v2961 = vpop.f32.mrb[0].mxu0
        %v2962 = vadd.f32 0.0, %v2961
        %v2963 = vpop.f32.mrb[0].mxu0
        %v2964 = vpop.f32.mrb[0].mxu0
        %v2965 = vadd.f32 0.0, %v2964
        %v2966 = vpop.f32.mrb[0].mxu0
        %2967 = vmatprep.mubr.bf16.mxu0 %v2153
        %2968 = vmatmul.mubr.bf16.gmra.mrb[0].mxu0 %v2152
        %v2969 = vpop.f32.mrb[0].mxu0
        %v2970 = vadd.f32 0.0, %v2969
        %v2971 = vpop.f32.mrb[0].mxu0
        %v2972 = vpop.f32.mrb[0].mxu0
        %v2973 = vadd.f32 0.0, %v2972
        %v2974 = vpop.f32.mrb[0].mxu0
        %2975 = vmatprep.mubr.bf16.mxu0 %v2162
        %2976 = vmatmul.mubr.bf16.gmra.mrb[0].mxu0 %v2161
        %v2977 = vpop.f32.mrb[0].mxu0
        %v2978 = vadd.f32 0.0, %v2977
        %v2979 = vpop.f32.mrb[0].mxu0
        %v2980 = vpop.f32.mrb[0].mxu0
        %v2981 = vadd.f32 0.0, %v2980
        %v2982 = vpop.f32.mrb[0].mxu0
        %2983 = vmatprep.mubr.bf16.mxu0 %v2171
        %2984 = vmatmul.mubr.bf16.gmra.mrb[0].mxu0 %v2170
        %v2985 = vpop.f32.mrb[0].mxu0
        %v2986 = vadd.f32 0.0, %v2985
        %v2987 = vpop.f32.mrb[0].mxu0
        %v2988 = vpop.f32.mrb[0].mxu0
        %v2989 = vadd.f32 0.0, %v2988
        %v2990 = vpop.f32.mrb[0].mxu0
        %2991 = vmatprep.mubr.bf16.mxu0 %v2180
        %2992 = vmatmul.mubr.bf16.gmra.mrb[0].mxu0 %v2179
        %v2993 = vpop.f32.mrb[0].mxu0
        %v2994 = vadd.f32 0.0, %v2993
        %v2995 = vpop.f32.mrb[0].mxu0
        %v2996 = vpop.f32.mrb[0].mxu0
        %v2997 = vadd.f32 0.0, %v2996
        %v2998 = vpop.f32.mrb[0].mxu0
        %2999 = vmatprep.mubr.bf16.mxu0 %v2189
        %3000 = vmatmul.mubr.bf16.gmra.mrb[0].mxu0 %v2188
        %v3001 = vpop.f32.mrb[0].mxu0
        %v3002 = vadd.f32 0.0, %v3001
        %v3003 = vpop.f32.mrb[0].mxu0
        %v3004 = vpop.f32.mrb[0].mxu0
        %v3005 = vadd.f32 0.0, %v3004
        %v3006 = vpop.f32.mrb[0].mxu0
        %3007 = vmatprep.mubr.bf16.mxu0 %v2198
        %3008 = vmatmul.mubr.bf16.gmra.mrb[0].mxu0 %v2197
        %v3009 = vpop.f32.mrb[0].mxu0
        %v3010 = vadd.f32 0.0, %v3009
        %v3011 = vpop.f32.mrb[0].mxu0
        %v3012 = vpop.f32.mrb[0].mxu0
        %v3013 = vadd.f32 0.0, %v3012
        %v3014 = vpop.f32.mrb[0].mxu0
        %3015 = vmatprep.mubr.bf16.mxu0 %v2207
        %3016 = vmatmul.mubr.bf16.gmra.mrb[0].mxu0 %v2206
        %v3017 = vpop.f32.mrb[0].mxu0
        %v3018 = vadd.f32 0.0, %v3017
        %v3019 = vpop.f32.mrb[0].mxu0
        %v3020 = vpop.f32.mrb[0].mxu0
        %v3021 = vadd.f32 0.0, %v3020
        %v3022 = vpop.f32.mrb[0].mxu0
        %3023 = vmatprep.mubr.bf16.mxu0 %v2216
        %3024 = vmatmul.mubr.bf16.gmra.mrb[0].mxu0 %v2215
        %v3025 = vpop.f32.mrb[0].mxu0
        %v3026 = vadd.f32 0.0, %v3025
        %v3027 = vpop.f32.mrb[0].mxu0
        %v3028 = vpop.f32.mrb[0].mxu0
        %v3029 = vadd.f32 0.0, %v3028
        %v3030 = vpop.f32.mrb[0].mxu0
        %3031 = vmatprep.mubr.bf16.mxu0 %v2225
        %3032 = vmatmul.mubr.bf16.gmra.mrb[0].mxu0 %v2224
        %v3033 = vpop.f32.mrb[0].mxu0
        %v3034 = vadd.f32 0.0, %v3033
        %v3035 = vpop.f32.mrb[0].mxu0
        %v3036 = vpop.f32.mrb[0].mxu0
        %v3037 = vadd.f32 0.0, %v3036
        %v3038 = vpop.f32.mrb[0].mxu0
        %3039 = vmatprep.mubr.bf16.mxu0 %v2234
        %3040 = vmatmul.mubr.bf16.gmra.mrb[0].mxu0 %v2233
        %v3041 = vpop.f32.mrb[0].mxu0
        %v3042 = vadd.f32 0.0, %v3041
        %v3043 = vpop.f32.mrb[0].mxu0
        %v3044 = vpop.f32.mrb[0].mxu0
        %v3045 = vadd.f32 0.0, %v3044
        %v3046 = vpop.f32.mrb[0].mxu0
        %3047 = vmatprep.mubr.bf16.mxu0 %v2243
        %3048 = vmatmul.mubr.bf16.gmra.mrb[0].mxu0 %v2242
        %v3049 = vpop.f32.mrb[0].mxu0
        %v3050 = vadd.f32 0.0, %v3049
        %v3051 = vpop.f32.mrb[0].mxu0
        %v3052 = vpop.f32.mrb[0].mxu0
        %v3053 = vadd.f32 0.0, %v3052
        %v3054 = vpop.f32.mrb[0].mxu0
        %3055 = vmatprep.mubr.bf16.mxu0 %v2252
        %3056 = vmatmul.mubr.bf16.gmra.mrb[0].mxu0 %v2251
        %v3057 = vpop.f32.mrb[0].mxu0
        %v3058 = vadd.f32 0.0, %v3057
        %v3059 = vpop.f32.mrb[0].mxu0
        %v3060 = vpop.f32.mrb[0].mxu0
        %v3061 = vadd.f32 0.0, %v3060
        %v3062 = vpop.f32.mrb[0].mxu0
        %3063 = vmatprep.mubr.bf16.mxu0 %v2261
        %3064 = vmatmul.mubr.bf16.gmra.mrb[0].mxu0 %v2260
        %v3065 = vpop.f32.mrb[0].mxu0
        %v3066 = vadd.f32 0.0, %v3065
        %v3067 = vpop.f32.mrb[0].mxu0
        %v3068 = vpop.f32.mrb[0].mxu0
        %v3069 = vadd.f32 0.0, %v3068
        %v3070 = vpop.f32.mrb[0].mxu0
        %3071 = vmatprep.mubr.bf16.mxu0 %v2270
        %3072 = vmatmul.mubr.bf16.gmra.mrb[0].mxu0 %v2269
        %v3073 = vpop.f32.mrb[0].mxu0
        %v3074 = vadd.f32 0.0, %v3073
        %v3075 = vpop.f32.mrb[0].mxu0
        %v3076 = vpop.f32.mrb[0].mxu0
        %v3077 = vadd.f32 0.0, %v3076
        %v3078 = vpop.f32.mrb[0].mxu0
        %3079 = vmatprep.mubr.bf16.mxu0 %v2279
        %3080 = vmatmul.mubr.bf16.gmra.mrb[0].mxu0 %v2278
        %v3081 = vpop.f32.mrb[0].mxu0
        %v3082 = vadd.f32 0.0, %v3081
        %v3083 = vpop.f32.mrb[0].mxu0
        %v3084 = vpop.f32.mrb[0].mxu0
        %v3085 = vadd.f32 0.0, %v3084
        %v3086 = vpop.f32.mrb[0].mxu0
        %3087 = vdwg.mxu0
        %3088 = vmatprep.subr.bf16.mxu0 0
        %3089 = vmatpush1.bf16.msra.mxu0 %v2735
        %3090 = vmatprep.subr.bf16.mxu0 0
        %3091 = vmatpush1.bf16.msra.mxu0 %v2736
        %3092 = vmatprep.subr.bf16.mxu0 0
        %3093 = vmatpush1.bf16.msra.mxu0 %v2737
        %3094 = vmatprep.subr.bf16.mxu0 0
        %3095 = vmatpush1.bf16.msra.mxu0 %v2738
        %3096 = vmatprep.subr.bf16.mxu0 0
        %3097 = vmatpush1.bf16.msra.mxu0 %v2739
        %3098 = vmatprep.subr.bf16.mxu0 0
        %3099 = vmatpush1.bf16.msra.mxu0 %v2740
        %3100 = vmatprep.subr.bf16.mxu0 0
        %3101 = vmatpush1.bf16.msra.mxu0 %v2741
        %3102 = vmatprep.subr.bf16.mxu0 0
        %3103 = vmatpush1.bf16.msra.mxu0 %v2742
        %3104 = vmatprep.subr.bf16.mxu0 0
        %3105 = vmatpush1.bf16.msra.mxu0 %v2743
        %3106 = vmatprep.subr.bf16.mxu0 0
        %3107 = vmatpush1.bf16.msra.mxu0 %v2744
        %3108 = vmatprep.subr.bf16.mxu0 0
        %3109 = vmatpush1.bf16.msra.mxu0 %v2745
        %3110 = vmatprep.subr.bf16.mxu0 0
        %3111 = vmatpush1.bf16.msra.mxu0 %v2746
        %3112 = vmatprep.subr.bf16.mxu0 0
        %3113 = vmatpush1.bf16.msra.mxu0 %v2747
        %3114 = vmatprep.subr.bf16.mxu0 0
        %3115 = vmatpush1.bf16.msra.mxu0 %v2748
        %3116 = vmatprep.subr.bf16.mxu0 0
        %3117 = vmatpush1.bf16.msra.mxu0 %v2749
        %3118 = vmatprep.subr.bf16.mxu0 0
        %3119 = vmatpush1.bf16.msra.mxu0 %v2750
        %3120 = vmatprep.mubr.bf16.mxu0 %v2074
        %3121 = vmatmul.mubr.bf16.gmra.mrb[0].mxu0 %v2073
        %v3122 = vpop.f32.mrb[0].mxu0
        %v3123 = vadd.f32 %v2898, %v3122
        %v3124 = vpop.f32.mrb[0].mxu0
        %v3125 = vpop.f32.mrb[0].mxu0
        %v3126 = vadd.f32 %v2901, %v3125
        %v3127 = vpop.f32.mrb[0].mxu0
        %3128 = vmatprep.mubr.bf16.mxu0 %v2083
        %3129 = vmatmul.mubr.bf16.gmra.mrb[0].mxu0 %v2082
        %v3130 = vpop.f32.mrb[0].mxu0
        %v3131 = vadd.f32 %v2906, %v3130
        %v3132 = vpop.f32.mrb[0].mxu0
        %v3133 = vpop.f32.mrb[0].mxu0
        %v3134 = vadd.f32 %v2909, %v3133
        %v3135 = vpop.f32.mrb[0].mxu0
        %3136 = vmatprep.mubr.bf16.mxu0 %v2092
        %3137 = vmatmul.mubr.bf16.gmra.mrb[0].mxu0 %v2091
        %v3138 = vpop.f32.mrb[0].mxu0
        %v3139 = vadd.f32 %v2914, %v3138
        %v3140 = vpop.f32.mrb[0].mxu0
        %v3141 = vpop.f32.mrb[0].mxu0
        %v3142 = vadd.f32 %v2917, %v3141
        %v3143 = vpop.f32.mrb[0].mxu0
        %3144 = vmatprep.mubr.bf16.mxu0 %v2101
        %3145 = vmatmul.mubr.bf16.gmra.mrb[0].mxu0 %v2100
        %v3146 = vpop.f32.mrb[0].mxu0
        %v3147 = vadd.f32 %v2922, %v3146
        %v3148 = vpop.f32.mrb[0].mxu0
        %v3149 = vpop.f32.mrb[0].mxu0
        %v3150 = vadd.f32 %v2925, %v3149
        %v3151 = vpop.f32.mrb[0].mxu0
        %3152 = vmatprep.mubr.bf16.mxu0 %v2110
        %3153 = vmatmul.mubr.bf16.gmra.mrb[0].mxu0 %v2109
        %v3154 = vpop.f32.mrb[0].mxu0
        %v3155 = vadd.f32 %v2930, %v3154
        %v3156 = vpop.f32.mrb[0].mxu0
        %v3157 = vpop.f32.mrb[0].mxu0
        %v3158 = vadd.f32 %v2933, %v3157
        %v3159 = vpop.f32.mrb[0].mxu0
        %3160 = vmatprep.mubr.bf16.mxu0 %v2119
        %3161 = vmatmul.mubr.bf16.gmra.mrb[0].mxu0 %v2118
        %v3162 = vpop.f32.mrb[0].mxu0
        %v3163 = vadd.f32 %v2938, %v3162
        %v3164 = vpop.f32.mrb[0].mxu0
        %v3165 = vpop.f32.mrb[0].mxu0
        %v3166 = vadd.f32 %v2941, %v3165
        %v3167 = vpop.f32.mrb[0].mxu0
        %3168 = vmatprep.mubr.bf16.mxu0 %v2128
        %3169 = vmatmul.mubr.bf16.gmra.mrb[0].mxu0 %v2127
        %v3170 = vpop.f32.mrb[0].mxu0
        %v3171 = vadd.f32 %v2946, %v3170
        %v3172 = vpop.f32.mrb[0].mxu0
        %v3173 = vpop.f32.mrb[0].mxu0
        %v3174 = vadd.f32 %v2949, %v3173
        %v3175 = vpop.f32.mrb[0].mxu0
        %3176 = vmatprep.mubr.bf16.mxu0 %v2137
        %3177 = vmatmul.mubr.bf16.gmra.mrb[0].mxu0 %v2136
        %v3178 = vpop.f32.mrb[0].mxu0
        %v3179 = vadd.f32 %v2954, %v3178
        %v3180 = vpop.f32.mrb[0].mxu0
        %v3181 = vpop.f32.mrb[0].mxu0
        %v3182 = vadd.f32 %v2957, %v3181
        %v3183 = vpop.f32.mrb[0].mxu0
        %3184 = vmatprep.mubr.bf16.mxu0 %v2146
        %3185 = vmatmul.mubr.bf16.gmra.mrb[0].mxu0 %v2145
        %v3186 = vpop.f32.mrb[0].mxu0
        %v3187 = vadd.f32 %v2962, %v3186
        %v3188 = vpop.f32.mrb[0].mxu0
        %v3189 = vpop.f32.mrb[0].mxu0
        %v3190 = vadd.f32 %v2965, %v3189
        %v3191 = vpop.f32.mrb[0].mxu0
        %3192 = vmatprep.mubr.bf16.mxu0 %v2155
        %3193 = vmatmul.mubr.bf16.gmra.mrb[0].mxu0 %v2154
        %v3194 = vpop.f32.mrb[0].mxu0
        %v3195 = vadd.f32 %v2970, %v3194
        %v3196 = vpop.f32.mrb[0].mxu0
        %v3197 = vpop.f32.mrb[0].mxu0
        %v3198 = vadd.f32 %v2973, %v3197
        %v3199 = vpop.f32.mrb[0].mxu0
        %3200 = vmatprep.mubr.bf16.mxu0 %v2164
        %3201 = vmatmul.mubr.bf16.gmra.mrb[0].mxu0 %v2163
        %v3202 = vpop.f32.mrb[0].mxu0
        %v3203 = vadd.f32 %v2978, %v3202
        %v3204 = vpop.f32.mrb[0].mxu0
        %v3205 = vpop.f32.mrb[0].mxu0
        %v3206 = vadd.f32 %v2981, %v3205
        %v3207 = vpop.f32.mrb[0].mxu0
        %3208 = vmatprep.mubr.bf16.mxu0 %v2173
        %3209 = vmatmul.mubr.bf16.gmra.mrb[0].mxu0 %v2172
        %v3210 = vpop.f32.mrb[0].mxu0
        %v3211 = vadd.f32 %v2986, %v3210
        %v3212 = vpop.f32.mrb[0].mxu0
        %v3213 = vpop.f32.mrb[0].mxu0
        %v3214 = vadd.f32 %v2989, %v3213
        %v3215 = vpop.f32.mrb[0].mxu0
        %3216 = vmatprep.mubr.bf16.mxu0 %v2182
        %3217 = vmatmul.mubr.bf16.gmra.mrb[0].mxu0 %v2181
        %v3218 = vpop.f32.mrb[0].mxu0
        %v3219 = vadd.f32 %v2994, %v3218
        %v3220 = vpop.f32.mrb[0].mxu0
        %v3221 = vpop.f32.mrb[0].mxu0
        %v3222 = vadd.f32 %v2997, %v3221
        %v3223 = vpop.f32.mrb[0].mxu0
        %3224 = vmatprep.mubr.bf16.mxu0 %v2191
        %3225 = vmatmul.mubr.bf16.gmra.mrb[0].mxu0 %v2190
        %v3226 = vpop.f32.mrb[0].mxu0
        %v3227 = vadd.f32 %v3002, %v3226
        %v3228 = vpop.f32.mrb[0].mxu0
        %v3229 = vpop.f32.mrb[0].mxu0
        %v3230 = vadd.f32 %v3005, %v3229
        %v3231 = vpop.f32.mrb[0].mxu0
        %3232 = vmatprep.mubr.bf16.mxu0 %v2200
        %3233 = vmatmul.mubr.bf16.gmra.mrb[0].mxu0 %v2199
        %v3234 = vpop.f32.mrb[0].mxu0
        %v3235 = vadd.f32 %v3010, %v3234
        %v3236 = vpop.f32.mrb[0].mxu0
        %v3237 = vpop.f32.mrb[0].mxu0
        %v3238 = vadd.f32 %v3013, %v3237
        %v3239 = vpop.f32.mrb[0].mxu0
        %3240 = vmatprep.mubr.bf16.mxu0 %v2209
        %3241 = vmatmul.mubr.bf16.gmra.mrb[0].mxu0 %v2208
        %v3242 = vpop.f32.mrb[0].mxu0
        %v3243 = vadd.f32 %v3018, %v3242
        %v3244 = vpop.f32.mrb[0].mxu0
        %v3245 = vpop.f32.mrb[0].mxu0
        %v3246 = vadd.f32 %v3021, %v3245
        %v3247 = vpop.f32.mrb[0].mxu0
        %3248 = vmatprep.mubr.bf16.mxu0 %v2218
        %3249 = vmatmul.mubr.bf16.gmra.mrb[0].mxu0 %v2217
        %v3250 = vpop.f32.mrb[0].mxu0
        %v3251 = vadd.f32 %v3026, %v3250
        %v3252 = vpop.f32.mrb[0].mxu0
        %v3253 = vpop.f32.mrb[0].mxu0
        %v3254 = vadd.f32 %v3029, %v3253
        %v3255 = vpop.f32.mrb[0].mxu0
        %3256 = vmatprep.mubr.bf16.mxu0 %v2227
        %3257 = vmatmul.mubr.bf16.gmra.mrb[0].mxu0 %v2226
        %v3258 = vpop.f32.mrb[0].mxu0
        %v3259 = vadd.f32 %v3034, %v3258
        %v3260 = vpop.f32.mrb[0].mxu0
        %v3261 = vpop.f32.mrb[0].mxu0
        %v3262 = vadd.f32 %v3037, %v3261
        %v3263 = vpop.f32.mrb[0].mxu0
        %3264 = vmatprep.mubr.bf16.mxu0 %v2236
        %3265 = vmatmul.mubr.bf16.gmra.mrb[0].mxu0 %v2235
        %v3266 = vpop.f32.mrb[0].mxu0
        %v3267 = vadd.f32 %v3042, %v3266
        %v3268 = vpop.f32.mrb[0].mxu0
        %v3269 = vpop.f32.mrb[0].mxu0
        %v3270 = vadd.f32 %v3045, %v3269
        %v3271 = vpop.f32.mrb[0].mxu0
        %3272 = vmatprep.mubr.bf16.mxu0 %v2245
        %3273 = vmatmul.mubr.bf16.gmra.mrb[0].mxu0 %v2244
        %v3274 = vpop.f32.mrb[0].mxu0
        %v3275 = vadd.f32 %v3050, %v3274
        %v3276 = vpop.f32.mrb[0].mxu0
        %v3277 = vpop.f32.mrb[0].mxu0
        %v3278 = vadd.f32 %v3053, %v3277
        %v3279 = vpop.f32.mrb[0].mxu0
        %3280 = vmatprep.mubr.bf16.mxu0 %v2254
        %3281 = vmatmul.mubr.bf16.gmra.mrb[0].mxu0 %v2253
        %v3282 = vpop.f32.mrb[0].mxu0
        %v3283 = vadd.f32 %v3058, %v3282
        %v3284 = vpop.f32.mrb[0].mxu0
        %v3285 = vpop.f32.mrb[0].mxu0
        %v3286 = vadd.f32 %v3061, %v3285
        %v3287 = vpop.f32.mrb[0].mxu0
        %3288 = vmatprep.mubr.bf16.mxu0 %v2263
        %3289 = vmatmul.mubr.bf16.gmra.mrb[0].mxu0 %v2262
        %v3290 = vpop.f32.mrb[0].mxu0
        %v3291 = vadd.f32 %v3066, %v3290
        %v3292 = vpop.f32.mrb[0].mxu0
        %v3293 = vpop.f32.mrb[0].mxu0
        %v3294 = vadd.f32 %v3069, %v3293
        %v3295 = vpop.f32.mrb[0].mxu0
        %3296 = vmatprep.mubr.bf16.mxu0 %v2272
        %3297 = vmatmul.mubr.bf16.gmra.mrb[0].mxu0 %v2271
        %v3298 = vpop.f32.mrb[0].mxu0
        %v3299 = vadd.f32 %v3074, %v3298
        %v3300 = vpop.f32.mrb[0].mxu0
        %v3301 = vpop.f32.mrb[0].mxu0
        %v3302 = vadd.f32 %v3077, %v3301
        %v3303 = vpop.f32.mrb[0].mxu0
        %3304 = vmatprep.mubr.bf16.mxu0 %v2281
        %3305 = vmatmul.mubr.bf16.gmra.mrb[0].mxu0 %v2280
        %v3306 = vpop.f32.mrb[0].mxu0
        %v3307 = vadd.f32 %v3082, %v3306
        %v3308 = vpop.f32.mrb[0].mxu0
        %v3309 = vpop.f32.mrb[0].mxu0
        %v3310 = vadd.f32 %v3085, %v3309
        %v3311 = vpop.f32.mrb[0].mxu0
        %3312 = vdwg.mxu0
        %3313 = vmatprep.subr.bf16.mxu0 0
        %3314 = vmatpush1.bf16.msra.mxu0 %v2751
        %3315 = vmatprep.subr.bf16.mxu0 0
        %3316 = vmatpush1.bf16.msra.mxu0 %v2752
        %3317 = vmatprep.subr.bf16.mxu0 0
        %3318 = vmatpush1.bf16.msra.mxu0 %v2753
        %3319 = vmatprep.subr.bf16.mxu0 0
        %3320 = vmatpush1.bf16.msra.mxu0 %v2754
        %3321 = vmatprep.subr.bf16.mxu0 0
        %3322 = vmatpush1.bf16.msra.mxu0 %v2755
        %3323 = vmatprep.subr.bf16.mxu0 0
        %3324 = vmatpush1.bf16.msra.mxu0 %v2756
        %3325 = vmatprep.subr.bf16.mxu0 0
        %3326 = vmatpush1.bf16.msra.mxu0 %v2757
        %3327 = vmatprep.subr.bf16.mxu0 0
        %3328 = vmatpush1.bf16.msra.mxu0 %v2758
        %3329 = vmatprep.subr.bf16.mxu0 0
        %3330 = vmatpush1.bf16.msra.mxu0 %v2759
        %3331 = vmatprep.subr.bf16.mxu0 0
        %3332 = vmatpush1.bf16.msra.mxu0 %v2760
        %3333 = vmatprep.subr.bf16.mxu0 0
        %3334 = vmatpush1.bf16.msra.mxu0 %v2761
        %3335 = vmatprep.subr.bf16.mxu0 0
        %3336 = vmatpush1.bf16.msra.mxu0 %v2762
        %3337 = vmatprep.subr.bf16.mxu0 0
        %3338 = vmatpush1.bf16.msra.mxu0 %v2763
        %3339 = vmatprep.subr.bf16.mxu0 0
        %3340 = vmatpush1.bf16.msra.mxu0 %v2764
        %3341 = vmatprep.subr.bf16.mxu0 0
        %3342 = vmatpush1.bf16.msra.mxu0 %v2765
        %3343 = vmatprep.subr.bf16.mxu0 0
        %3344 = vmatpush1.bf16.msra.mxu0 %v2766
        %3345 = vmatprep.mubr.bf16.mxu0 %v2076
        %3346 = vmatmul.mubr.bf16.gmra.mrb[0].mxu0 %v2075
        %v3347 = vpop.f32.mrb[0].mxu0
        %v3348 = vadd.f32 %v3123, %v3347
        %v3349 = vpop.f32.mrb[0].mxu0
        %v3350 = vpop.f32.mrb[0].mxu0
        %v3351 = vadd.f32 %v3126, %v3350
        %v3352 = vpop.f32.mrb[0].mxu0
        %3353 = vmatprep.mubr.bf16.mxu0 %v2085
        %3354 = vmatmul.mubr.bf16.gmra.mrb[0].mxu0 %v2084
        %v3355 = vpop.f32.mrb[0].mxu0
        %v3356 = vadd.f32 %v3131, %v3355
        %v3357 = vpop.f32.mrb[0].mxu0
        %v3358 = vpop.f32.mrb[0].mxu0
        %v3359 = vadd.f32 %v3134, %v3358
        %v3360 = vpop.f32.mrb[0].mxu0
        %3361 = vmatprep.mubr.bf16.mxu0 %v2094
        %3362 = vmatmul.mubr.bf16.gmra.mrb[0].mxu0 %v2093
        %v3363 = vpop.f32.mrb[0].mxu0
        %v3364 = vadd.f32 %v3139, %v3363
        %v3365 = vpop.f32.mrb[0].mxu0
        %v3366 = vpop.f32.mrb[0].mxu0
        %v3367 = vadd.f32 %v3142, %v3366
        %v3368 = vpop.f32.mrb[0].mxu0
        %3369 = vmatprep.mubr.bf16.mxu0 %v2103
        %3370 = vmatmul.mubr.bf16.gmra.mrb[0].mxu0 %v2102
        %v3371 = vpop.f32.mrb[0].mxu0
        %v3372 = vadd.f32 %v3147, %v3371
        %v3373 = vpop.f32.mrb[0].mxu0
        %v3374 = vpop.f32.mrb[0].mxu0
        %v3375 = vadd.f32 %v3150, %v3374
        %v3376 = vpop.f32.mrb[0].mxu0
        %3377 = vmatprep.mubr.bf16.mxu0 %v2112
        %3378 = vmatmul.mubr.bf16.gmra.mrb[0].mxu0 %v2111
        %v3379 = vpop.f32.mrb[0].mxu0
        %v3380 = vadd.f32 %v3155, %v3379
        %v3381 = vpop.f32.mrb[0].mxu0
        %v3382 = vpop.f32.mrb[0].mxu0
        %v3383 = vadd.f32 %v3158, %v3382
        %v3384 = vpop.f32.mrb[0].mxu0
        %3385 = vmatprep.mubr.bf16.mxu0 %v2121
        %3386 = vmatmul.mubr.bf16.gmra.mrb[0].mxu0 %v2120
        %v3387 = vpop.f32.mrb[0].mxu0
        %v3388 = vadd.f32 %v3163, %v3387
        %v3389 = vpop.f32.mrb[0].mxu0
        %v3390 = vpop.f32.mrb[0].mxu0
        %v3391 = vadd.f32 %v3166, %v3390
        %v3392 = vpop.f32.mrb[0].mxu0
        %3393 = vmatprep.mubr.bf16.mxu0 %v2130
        %3394 = vmatmul.mubr.bf16.gmra.mrb[0].mxu0 %v2129
        %v3395 = vpop.f32.mrb[0].mxu0
        %v3396 = vadd.f32 %v3171, %v3395
        %v3397 = vpop.f32.mrb[0].mxu0
        %v3398 = vpop.f32.mrb[0].mxu0
        %v3399 = vadd.f32 %v3174, %v3398
        %v3400 = vpop.f32.mrb[0].mxu0
        %3401 = vmatprep.mubr.bf16.mxu0 %v2139
        %3402 = vmatmul.mubr.bf16.gmra.mrb[0].mxu0 %v2138
        %v3403 = vpop.f32.mrb[0].mxu0
        %v3404 = vadd.f32 %v3179, %v3403
        %v3405 = vpop.f32.mrb[0].mxu0
        %v3406 = vpop.f32.mrb[0].mxu0
        %v3407 = vadd.f32 %v3182, %v3406
        %v3408 = vpop.f32.mrb[0].mxu0
        %3409 = vmatprep.mubr.bf16.mxu0 %v2148
        %3410 = vmatmul.mubr.bf16.gmra.mrb[0].mxu0 %v2147
        %v3411 = vpop.f32.mrb[0].mxu0
        %v3412 = vadd.f32 %v3187, %v3411
        %v3413 = vpop.f32.mrb[0].mxu0
        %v3414 = vpop.f32.mrb[0].mxu0
        %v3415 = vadd.f32 %v3190, %v3414
        %v3416 = vpop.f32.mrb[0].mxu0
        %3417 = vmatprep.mubr.bf16.mxu0 %v2157
        %3418 = vmatmul.mubr.bf16.gmra.mrb[0].mxu0 %v2156
        %v3419 = vpop.f32.mrb[0].mxu0
        %v3420 = vadd.f32 %v3195, %v3419
        %v3421 = vpop.f32.mrb[0].mxu0
        %v3422 = vpop.f32.mrb[0].mxu0
        %v3423 = vadd.f32 %v3198, %v3422
        %v3424 = vpop.f32.mrb[0].mxu0
        %3425 = vmatprep.mubr.bf16.mxu0 %v2166
        %3426 = vmatmul.mubr.bf16.gmra.mrb[0].mxu0 %v2165
        %v3427 = vpop.f32.mrb[0].mxu0
        %v3428 = vadd.f32 %v3203, %v3427
        %v3429 = vpop.f32.mrb[0].mxu0
        %v3430 = vpop.f32.mrb[0].mxu0
        %v3431 = vadd.f32 %v3206, %v3430
        %v3432 = vpop.f32.mrb[0].mxu0
        %3433 = vmatprep.mubr.bf16.mxu0 %v2175
        %3434 = vmatmul.mubr.bf16.gmra.mrb[0].mxu0 %v2174
        %v3435 = vpop.f32.mrb[0].mxu0
        %v3436 = vadd.f32 %v3211, %v3435
        %v3437 = vpop.f32.mrb[0].mxu0
        %v3438 = vpop.f32.mrb[0].mxu0
        %v3439 = vadd.f32 %v3214, %v3438
        %v3440 = vpop.f32.mrb[0].mxu0
        %3441 = vmatprep.mubr.bf16.mxu0 %v2184
        %3442 = vmatmul.mubr.bf16.gmra.mrb[0].mxu0 %v2183
        %v3443 = vpop.f32.mrb[0].mxu0
        %v3444 = vadd.f32 %v3219, %v3443
        %v3445 = vpop.f32.mrb[0].mxu0
        %v3446 = vpop.f32.mrb[0].mxu0
        %v3447 = vadd.f32 %v3222, %v3446
        %v3448 = vpop.f32.mrb[0].mxu0
        %3449 = vmatprep.mubr.bf16.mxu0 %v2193
        %3450 = vmatmul.mubr.bf16.gmra.mrb[0].mxu0 %v2192
        %v3451 = vpop.f32.mrb[0].mxu0
        %v3452 = vadd.f32 %v3227, %v3451
        %v3453 = vpop.f32.mrb[0].mxu0
        %v3454 = vpop.f32.mrb[0].mxu0
        %v3455 = vadd.f32 %v3230, %v3454
        %v3456 = vpop.f32.mrb[0].mxu0
        %3457 = vmatprep.mubr.bf16.mxu0 %v2202
        %3458 = vmatmul.mubr.bf16.gmra.mrb[0].mxu0 %v2201
        %v3459 = vpop.f32.mrb[0].mxu0
        %v3460 = vadd.f32 %v3235, %v3459
        %v3461 = vpop.f32.mrb[0].mxu0
        %v3462 = vpop.f32.mrb[0].mxu0
        %v3463 = vadd.f32 %v3238, %v3462
        %v3464 = vpop.f32.mrb[0].mxu0
        %3465 = vmatprep.mubr.bf16.mxu0 %v2211
        %3466 = vmatmul.mubr.bf16.gmra.mrb[0].mxu0 %v2210
        %v3467 = vpop.f32.mrb[0].mxu0
        %v3468 = vadd.f32 %v3243, %v3467
        %v3469 = vpop.f32.mrb[0].mxu0
        %v3470 = vpop.f32.mrb[0].mxu0
        %v3471 = vadd.f32 %v3246, %v3470
        %v3472 = vpop.f32.mrb[0].mxu0
        %3473 = vmatprep.mubr.bf16.mxu0 %v2220
        %3474 = vmatmul.mubr.bf16.gmra.mrb[0].mxu0 %v2219
        %v3475 = vpop.f32.mrb[0].mxu0
        %v3476 = vadd.f32 %v3251, %v3475
        %v3477 = vpop.f32.mrb[0].mxu0
        %v3478 = vpop.f32.mrb[0].mxu0
        %v3479 = vadd.f32 %v3254, %v3478
        %v3480 = vpop.f32.mrb[0].mxu0
        %3481 = vmatprep.mubr.bf16.mxu0 %v2229
        %3482 = vmatmul.mubr.bf16.gmra.mrb[0].mxu0 %v2228
        %v3483 = vpop.f32.mrb[0].mxu0
        %v3484 = vadd.f32 %v3259, %v3483
        %v3485 = vpop.f32.mrb[0].mxu0
        %v3486 = vpop.f32.mrb[0].mxu0
        %v3487 = vadd.f32 %v3262, %v3486
        %v3488 = vpop.f32.mrb[0].mxu0
        %3489 = vmatprep.mubr.bf16.mxu0 %v2238
        %3490 = vmatmul.mubr.bf16.gmra.mrb[0].mxu0 %v2237
        %v3491 = vpop.f32.mrb[0].mxu0
        %v3492 = vadd.f32 %v3267, %v3491
        %v3493 = vpop.f32.mrb[0].mxu0
        %v3494 = vpop.f32.mrb[0].mxu0
        %v3495 = vadd.f32 %v3270, %v3494
        %v3496 = vpop.f32.mrb[0].mxu0
        %3497 = vmatprep.mubr.bf16.mxu0 %v2247
        %3498 = vmatmul.mubr.bf16.gmra.mrb[0].mxu0 %v2246
        %v3499 = vpop.f32.mrb[0].mxu0
        %v3500 = vadd.f32 %v3275, %v3499
        %v3501 = vpop.f32.mrb[0].mxu0
        %v3502 = vpop.f32.mrb[0].mxu0
        %v3503 = vadd.f32 %v3278, %v3502
        %v3504 = vpop.f32.mrb[0].mxu0
        %3505 = vmatprep.mubr.bf16.mxu0 %v2256
        %3506 = vmatmul.mubr.bf16.gmra.mrb[0].mxu0 %v2255
        %v3507 = vpop.f32.mrb[0].mxu0
        %v3508 = vadd.f32 %v3283, %v3507
        %v3509 = vpop.f32.mrb[0].mxu0
        %v3510 = vpop.f32.mrb[0].mxu0
        %v3511 = vadd.f32 %v3286, %v3510
        %v3512 = vpop.f32.mrb[0].mxu0
        %3513 = vmatprep.mubr.bf16.mxu0 %v2265
        %3514 = vmatmul.mubr.bf16.gmra.mrb[0].mxu0 %v2264
        %v3515 = vpop.f32.mrb[0].mxu0
        %v3516 = vadd.f32 %v3291, %v3515
        %v3517 = vpop.f32.mrb[0].mxu0
        %v3518 = vpop.f32.mrb[0].mxu0
        %v3519 = vadd.f32 %v3294, %v3518
        %v3520 = vpop.f32.mrb[0].mxu0
        %3521 = vmatprep.mubr.bf16.mxu0 %v2274
        %3522 = vmatmul.mubr.bf16.gmra.mrb[0].mxu0 %v2273
        %v3523 = vpop.f32.mrb[0].mxu0
        %v3524 = vadd.f32 %v3299, %v3523
        %v3525 = vpop.f32.mrb[0].mxu0
        %v3526 = vpop.f32.mrb[0].mxu0
        %v3527 = vadd.f32 %v3302, %v3526
        %v3528 = vpop.f32.mrb[0].mxu0
        %3529 = vmatprep.mubr.bf16.mxu0 %v2283
        %3530 = vmatmul.mubr.bf16.gmra.mrb[0].mxu0 %v2282
        %v3531 = vpop.f32.mrb[0].mxu0
        %v3532 = vadd.f32 %v3307, %v3531
        %v3533 = vpop.f32.mrb[0].mxu0
        %v3534 = vpop.f32.mrb[0].mxu0
        %v3535 = vadd.f32 %v3310, %v3534
        %v3536 = vpop.f32.mrb[0].mxu0
        %3537 = vdwg.mxu0
        %3538 = vmatprep.subr.bf16.mxu0 0
        %3539 = vmatpush1.bf16.msra.mxu0 %v2767
        %3540 = vmatprep.subr.bf16.mxu0 0
        %3541 = vmatpush1.bf16.msra.mxu0 %v2768
        %3542 = vmatprep.subr.bf16.mxu0 0
        %3543 = vmatpush1.bf16.msra.mxu0 %v2769
        %3544 = vmatprep.subr.bf16.mxu0 0
        %3545 = vmatpush1.bf16.msra.mxu0 %v2770
        %3546 = vmatprep.subr.bf16.mxu0 0
        %3547 = vmatpush1.bf16.msra.mxu0 %v2771
        %3548 = vmatprep.subr.bf16.mxu0 0
        %3549 = vmatpush1.bf16.msra.mxu0 %v2772
        %3550 = vmatprep.subr.bf16.mxu0 0
        %3551 = vmatpush1.bf16.msra.mxu0 %v2773
        %3552 = vmatprep.subr.bf16.mxu0 0
        %3553 = vmatpush1.bf16.msra.mxu0 %v2774
        %3554 = vmatprep.subr.bf16.mxu0 0
        %3555 = vmatpush1.bf16.msra.mxu0 %v2775
        %3556 = vmatprep.subr.bf16.mxu0 0
        %3557 = vmatpush1.bf16.msra.mxu0 %v2776
        %3558 = vmatprep.subr.bf16.mxu0 0
        %3559 = vmatpush1.bf16.msra.mxu0 %v2777
        %3560 = vmatprep.subr.bf16.mxu0 0
        %3561 = vmatpush1.bf16.msra.mxu0 %v2778
        %3562 = vmatprep.subr.bf16.mxu0 0
        %3563 = vmatpush1.bf16.msra.mxu0 %v2779
        %3564 = vmatprep.subr.bf16.mxu0 0
        %3565 = vmatpush1.bf16.msra.mxu0 %v2780
        %3566 = vmatprep.subr.bf16.mxu0 0
        %3567 = vmatpush1.bf16.msra.mxu0 %v2781
        %3568 = vmatprep.subr.bf16.mxu0 0
        %3569 = vmatpush1.bf16.msra.mxu0 %v2782
        %3570 = vmatprep.mubr.bf16.mxu0 %v2078
        %3571 = vmatmul.mubr.bf16.gmra.mrb[0].mxu0 %v2077
        %v3572 = vpop.f32.mrb[0].mxu0
        %v3573 = vadd.f32 %v3348, %v3572
        %v3574 = vpop.f32.mrb[0].mxu0
        %v3575 = vpop.f32.mrb[0].mxu0
        %v3576 = vadd.f32 %v3351, %v3575
        %v3577 = vpop.f32.mrb[0].mxu0
        %3578 = vmatprep.mubr.bf16.mxu0 %v2087
        %3579 = vmatmul.mubr.bf16.gmra.mrb[0].mxu0 %v2086
        %v3580 = vpop.f32.mrb[0].mxu0
        %v3581 = vadd.f32 %v3356, %v3580
        %v3582 = vpop.f32.mrb[0].mxu0
        %v3583 = vpop.f32.mrb[0].mxu0
        %v3584 = vadd.f32 %v3359, %v3583
        %v3585 = vpop.f32.mrb[0].mxu0
        %3586 = vmatprep.mubr.bf16.mxu0 %v2096
        %3587 = vmatmul.mubr.bf16.gmra.mrb[0].mxu0 %v2095
        %v3588 = vpop.f32.mrb[0].mxu0
        %v3589 = vadd.f32 %v3364, %v3588
        %v3590 = vpop.f32.mrb[0].mxu0
        %v3591 = vpop.f32.mrb[0].mxu0
        %v3592 = vadd.f32 %v3367, %v3591
        %v3593 = vpop.f32.mrb[0].mxu0
        %3594 = vmatprep.mubr.bf16.mxu0 %v2105
        %3595 = vmatmul.mubr.bf16.gmra.mrb[0].mxu0 %v2104
        %v3596 = vpop.f32.mrb[0].mxu0
        %v3597 = vadd.f32 %v3372, %v3596
        %v3598 = vpop.f32.mrb[0].mxu0
        %v3599 = vpop.f32.mrb[0].mxu0
        %v3600 = vadd.f32 %v3375, %v3599
        %v3601 = vpop.f32.mrb[0].mxu0
        %3602 = vmatprep.mubr.bf16.mxu0 %v2114
        %3603 = vmatmul.mubr.bf16.gmra.mrb[0].mxu0 %v2113
        %v3604 = vpop.f32.mrb[0].mxu0
        %v3605 = vadd.f32 %v3380, %v3604
        %v3606 = vpop.f32.mrb[0].mxu0
        %v3607 = vpop.f32.mrb[0].mxu0
        %v3608 = vadd.f32 %v3383, %v3607
        %v3609 = vpop.f32.mrb[0].mxu0
        %3610 = vmatprep.mubr.bf16.mxu0 %v2123
        %3611 = vmatmul.mubr.bf16.gmra.mrb[0].mxu0 %v2122
        %v3612 = vpop.f32.mrb[0].mxu0
        %v3613 = vadd.f32 %v3388, %v3612
        %v3614 = vpop.f32.mrb[0].mxu0
        %v3615 = vpop.f32.mrb[0].mxu0
        %v3616 = vadd.f32 %v3391, %v3615
        %v3617 = vpop.f32.mrb[0].mxu0
        %3618 = vmatprep.mubr.bf16.mxu0 %v2132
        %3619 = vmatmul.mubr.bf16.gmra.mrb[0].mxu0 %v2131
        %v3620 = vpop.f32.mrb[0].mxu0
        %v3621 = vadd.f32 %v3396, %v3620
        %v3622 = vpop.f32.mrb[0].mxu0
        %v3623 = vpop.f32.mrb[0].mxu0
        %v3624 = vadd.f32 %v3399, %v3623
        %v3625 = vpop.f32.mrb[0].mxu0
        %3626 = vmatprep.mubr.bf16.mxu0 %v2141
        %3627 = vmatmul.mubr.bf16.gmra.mrb[0].mxu0 %v2140
        %v3628 = vpop.f32.mrb[0].mxu0
        %v3629 = vadd.f32 %v3404, %v3628
        %v3630 = vpop.f32.mrb[0].mxu0
        %v3631 = vpop.f32.mrb[0].mxu0
        %v3632 = vadd.f32 %v3407, %v3631
        %v3633 = vpop.f32.mrb[0].mxu0
        %3634 = vmatprep.mubr.bf16.mxu0 %v2150
        %3635 = vmatmul.mubr.bf16.gmra.mrb[0].mxu0 %v2149
        %v3636 = vpop.f32.mrb[0].mxu0
        %v3637 = vadd.f32 %v3412, %v3636
        %v3638 = vpop.f32.mrb[0].mxu0
        %v3639 = vpop.f32.mrb[0].mxu0
        %v3640 = vadd.f32 %v3415, %v3639
        %v3641 = vpop.f32.mrb[0].mxu0
        %3642 = vmatprep.mubr.bf16.mxu0 %v2159
        %3643 = vmatmul.mubr.bf16.gmra.mrb[0].mxu0 %v2158
        %v3644 = vpop.f32.mrb[0].mxu0
        %v3645 = vadd.f32 %v3420, %v3644
        %v3646 = vpop.f32.mrb[0].mxu0
        %v3647 = vpop.f32.mrb[0].mxu0
        %v3648 = vadd.f32 %v3423, %v3647
        %v3649 = vpop.f32.mrb[0].mxu0
        %3650 = vmatprep.mubr.bf16.mxu0 %v2168
        %3651 = vmatmul.mubr.bf16.gmra.mrb[0].mxu0 %v2167
        %v3652 = vpop.f32.mrb[0].mxu0
        %v3653 = vadd.f32 %v3428, %v3652
        %v3654 = vpop.f32.mrb[0].mxu0
        %v3655 = vpop.f32.mrb[0].mxu0
        %v3656 = vadd.f32 %v3431, %v3655
        %v3657 = vpop.f32.mrb[0].mxu0
        %3658 = vmatprep.mubr.bf16.mxu0 %v2177
        %3659 = vmatmul.mubr.bf16.gmra.mrb[0].mxu0 %v2176
        %v3660 = vpop.f32.mrb[0].mxu0
        %v3661 = vadd.f32 %v3436, %v3660
        %v3662 = vpop.f32.mrb[0].mxu0
        %v3663 = vpop.f32.mrb[0].mxu0
        %v3664 = vadd.f32 %v3439, %v3663
        %v3665 = vpop.f32.mrb[0].mxu0
        %3666 = vmatprep.mubr.bf16.mxu0 %v2186
        %3667 = vmatmul.mubr.bf16.gmra.mrb[0].mxu0 %v2185
        %v3668 = vpop.f32.mrb[0].mxu0
        %v3669 = vadd.f32 %v3444, %v3668
        %v3670 = vpop.f32.mrb[0].mxu0
        %v3671 = vpop.f32.mrb[0].mxu0
        %v3672 = vadd.f32 %v3447, %v3671
        %v3673 = vpop.f32.mrb[0].mxu0
        %3674 = vmatprep.mubr.bf16.mxu0 %v2195
        %3675 = vmatmul.mubr.bf16.gmra.mrb[0].mxu0 %v2194
        %v3676 = vpop.f32.mrb[0].mxu0
        %v3677 = vadd.f32 %v3452, %v3676
        %v3678 = vpop.f32.mrb[0].mxu0
        %v3679 = vpop.f32.mrb[0].mxu0
        %v3680 = vadd.f32 %v3455, %v3679
        %v3681 = vpop.f32.mrb[0].mxu0
        %3682 = vmatprep.mubr.bf16.mxu0 %v2204
        %3683 = vmatmul.mubr.bf16.gmra.mrb[0].mxu0 %v2203
        %v3684 = vpop.f32.mrb[0].mxu0
        %v3685 = vadd.f32 %v3460, %v3684
        %v3686 = vpop.f32.mrb[0].mxu0
        %v3687 = vpop.f32.mrb[0].mxu0
        %v3688 = vadd.f32 %v3463, %v3687
        %v3689 = vpop.f32.mrb[0].mxu0
        %3690 = vmatprep.mubr.bf16.mxu0 %v2213
        %3691 = vmatmul.mubr.bf16.gmra.mrb[0].mxu0 %v2212
        %v3692 = vpop.f32.mrb[0].mxu0
        %v3693 = vadd.f32 %v3468, %v3692
        %v3694 = vpop.f32.mrb[0].mxu0
        %v3695 = vpop.f32.mrb[0].mxu0
        %v3696 = vadd.f32 %v3471, %v3695
        %v3697 = vpop.f32.mrb[0].mxu0
        %3698 = vmatprep.mubr.bf16.mxu0 %v2222
        %3699 = vmatmul.mubr.bf16.gmra.mrb[0].mxu0 %v2221
        %v3700 = vpop.f32.mrb[0].mxu0
        %v3701 = vadd.f32 %v3476, %v3700
        %v3702 = vpop.f32.mrb[0].mxu0
        %v3703 = vpop.f32.mrb[0].mxu0
        %v3704 = vadd.f32 %v3479, %v3703
        %v3705 = vpop.f32.mrb[0].mxu0
        %3706 = vmatprep.mubr.bf16.mxu0 %v2231
        %3707 = vmatmul.mubr.bf16.gmra.mrb[0].mxu0 %v2230
        %v3708 = vpop.f32.mrb[0].mxu0
        %v3709 = vadd.f32 %v3484, %v3708
        %v3710 = vpop.f32.mrb[0].mxu0
        %v3711 = vpop.f32.mrb[0].mxu0
        %v3712 = vadd.f32 %v3487, %v3711
        %v3713 = vpop.f32.mrb[0].mxu0
        %3714 = vmatprep.mubr.bf16.mxu0 %v2240
        %3715 = vmatmul.mubr.bf16.gmra.mrb[0].mxu0 %v2239
        %v3716 = vpop.f32.mrb[0].mxu0
        %v3717 = vadd.f32 %v3492, %v3716
        %v3718 = vpop.f32.mrb[0].mxu0
        %v3719 = vpop.f32.mrb[0].mxu0
        %v3720 = vadd.f32 %v3495, %v3719
        %v3721 = vpop.f32.mrb[0].mxu0
        %3722 = vmatprep.mubr.bf16.mxu0 %v2249
        %3723 = vmatmul.mubr.bf16.gmra.mrb[0].mxu0 %v2248
        %v3724 = vpop.f32.mrb[0].mxu0
        %v3725 = vadd.f32 %v3500, %v3724
        %v3726 = vpop.f32.mrb[0].mxu0
        %v3727 = vpop.f32.mrb[0].mxu0
        %v3728 = vadd.f32 %v3503, %v3727
        %v3729 = vpop.f32.mrb[0].mxu0
        %3730 = vmatprep.mubr.bf16.mxu0 %v2258
        %3731 = vmatmul.mubr.bf16.gmra.mrb[0].mxu0 %v2257
        %v3732 = vpop.f32.mrb[0].mxu0
        %v3733 = vadd.f32 %v3508, %v3732
        %v3734 = vpop.f32.mrb[0].mxu0
        %v3735 = vpop.f32.mrb[0].mxu0
        %v3736 = vadd.f32 %v3511, %v3735
        %v3737 = vpop.f32.mrb[0].mxu0
        %3738 = vmatprep.mubr.bf16.mxu0 %v2267
        %3739 = vmatmul.mubr.bf16.gmra.mrb[0].mxu0 %v2266
        %v3740 = vpop.f32.mrb[0].mxu0
        %v3741 = vadd.f32 %v3516, %v3740
        %v3742 = vpop.f32.mrb[0].mxu0
        %v3743 = vpop.f32.mrb[0].mxu0
        %v3744 = vadd.f32 %v3519, %v3743
        %v3745 = vpop.f32.mrb[0].mxu0
        %3746 = vmatprep.mubr.bf16.mxu0 %v2276
        %3747 = vmatmul.mubr.bf16.gmra.mrb[0].mxu0 %v2275
        %v3748 = vpop.f32.mrb[0].mxu0
        %v3749 = vadd.f32 %v3524, %v3748
        %v3750 = vpop.f32.mrb[0].mxu0
        %v3751 = vpop.f32.mrb[0].mxu0
        %v3752 = vadd.f32 %v3527, %v3751
        %v3753 = vpop.f32.mrb[0].mxu0
        %3754 = vmatprep.mubr.bf16.mxu0 %v2285
        %3755 = vmatmul.mubr.bf16.gmra.mrb[0].mxu0 %v2284
        %v3756 = vpop.f32.mrb[0].mxu0
        %v3757 = vadd.f32 %v3532, %v3756
        %v3758 = vpop.f32.mrb[0].mxu0
        %v3759 = vpop.f32.mrb[0].mxu0
        %v3760 = vadd.f32 %v3535, %v3759
        %v3761 = vpop.f32.mrb[0].mxu0
        %3762 = vdwg.mxu0
        %3763 = vmatprep.subr.bf16.mxu0 0
        %3764 = vmatpush1.bf16.msra.mxu0 %v2783
        %3765 = vmatprep.subr.bf16.mxu0 0
        %3766 = vmatpush1.bf16.msra.mxu0 %v2784
        %3767 = vmatprep.subr.bf16.mxu0 0
        %3768 = vmatpush1.bf16.msra.mxu0 %v2785
        %3769 = vmatprep.subr.bf16.mxu0 0
        %3770 = vmatpush1.bf16.msra.mxu0 %v2786
        %3771 = vmatprep.subr.bf16.mxu0 0
        %3772 = vmatpush1.bf16.msra.mxu0 %v2787
        %3773 = vmatprep.subr.bf16.mxu0 0
        %3774 = vmatpush1.bf16.msra.mxu0 %v2788
        %3775 = vmatprep.subr.bf16.mxu0 0
        %3776 = vmatpush1.bf16.msra.mxu0 %v2789
        %3777 = vmatprep.subr.bf16.mxu0 0
        %3778 = vmatpush1.bf16.msra.mxu0 %v2790
        %3779 = vmatprep.subr.bf16.mxu0 0
        %3780 = vmatpush1.bf16.msra.mxu0 0
        %3781 = vmatprep.subr.bf16.mxu0 0
        %3782 = vmatpush1.bf16.msra.mxu0 0
        %3783 = vmatprep.subr.bf16.mxu0 0
        %3784 = vmatpush1.bf16.msra.mxu0 0
        %3785 = vmatprep.subr.bf16.mxu0 0
        %3786 = vmatpush1.bf16.msra.mxu0 0
        %3787 = vmatprep.subr.bf16.mxu0 0
        %3788 = vmatpush1.bf16.msra.mxu0 0
        %3789 = vmatprep.subr.bf16.mxu0 0
        %3790 = vmatpush1.bf16.msra.mxu0 0
        %3791 = vmatprep.subr.bf16.mxu0 0
        %3792 = vmatpush1.bf16.msra.mxu0 0
        %3793 = vmatprep.subr.bf16.mxu0 0
        %3794 = vmatpush1.bf16.msra.mxu0 0
        %3795 = vmatprep.mubr.bf16.mxu0 0
        %3796 = vmatmul.mubr.bf16.gmra.mrb[0].mxu0 %v2079
        %v3797 = vpop.f32.mrb[0].mxu0
        %v3798 = vadd.f32 %v3573, %v3797
        %v3799 = vpop.f32.mrb[0].mxu0
        %v3800 = vpop.f32.mrb[0].mxu0
        %v3801 = vadd.f32 %v3576, %v3800
        %v3802 = vpop.f32.mrb[0].mxu0
        %3803 = vmatprep.mubr.bf16.mxu0 0
        %3804 = vmatmul.mubr.bf16.gmra.mrb[0].mxu0 %v2088
        %v3805 = vpop.f32.mrb[0].mxu0
        %v3806 = vadd.f32 %v3581, %v3805
        %v3807 = vpop.f32.mrb[0].mxu0
        %v3808 = vpop.f32.mrb[0].mxu0
        %v3809 = vadd.f32 %v3584, %v3808
        %v3810 = vpop.f32.mrb[0].mxu0
        %3811 = vmatprep.mubr.bf16.mxu0 0
        %3812 = vmatmul.mubr.bf16.gmra.mrb[0].mxu0 %v2097
        %v3813 = vpop.f32.mrb[0].mxu0
        %v3814 = vadd.f32 %v3589, %v3813
        %v3815 = vpop.f32.mrb[0].mxu0
        %v3816 = vpop.f32.mrb[0].mxu0
        %v3817 = vadd.f32 %v3592, %v3816
        %v3818 = vpop.f32.mrb[0].mxu0
        %3819 = vmatprep.mubr.bf16.mxu0 0
        %3820 = vmatmul.mubr.bf16.gmra.mrb[0].mxu0 %v2106
        %v3821 = vpop.f32.mrb[0].mxu0
        %v3822 = vadd.f32 %v3597, %v3821
        %v3823 = vpop.f32.mrb[0].mxu0
        %v3824 = vpop.f32.mrb[0].mxu0
        %v3825 = vadd.f32 %v3600, %v3824
        %v3826 = vpop.f32.mrb[0].mxu0
        %3827 = vmatprep.mubr.bf16.mxu0 0
        %3828 = vmatmul.mubr.bf16.gmra.mrb[0].mxu0 %v2115
        %v3829 = vpop.f32.mrb[0].mxu0
        %v3830 = vadd.f32 %v3605, %v3829
        %v3831 = vpop.f32.mrb[0].mxu0
        %v3832 = vpop.f32.mrb[0].mxu0
        %v3833 = vadd.f32 %v3608, %v3832
        %v3834 = vpop.f32.mrb[0].mxu0
        %3835 = vmatprep.mubr.bf16.mxu0 0
        %3836 = vmatmul.mubr.bf16.gmra.mrb[0].mxu0 %v2124
        %v3837 = vpop.f32.mrb[0].mxu0
        %v3838 = vadd.f32 %v3613, %v3837
        %v3839 = vpop.f32.mrb[0].mxu0
        %v3840 = vpop.f32.mrb[0].mxu0
        %v3841 = vadd.f32 %v3616, %v3840
        %v3842 = vpop.f32.mrb[0].mxu0
        %3843 = vmatprep.mubr.bf16.mxu0 0
        %3844 = vmatmul.mubr.bf16.gmra.mrb[0].mxu0 %v2133
        %v3845 = vpop.f32.mrb[0].mxu0
        %v3846 = vadd.f32 %v3621, %v3845
        %v3847 = vpop.f32.mrb[0].mxu0
        %v3848 = vpop.f32.mrb[0].mxu0
        %v3849 = vadd.f32 %v3624, %v3848
        %v3850 = vpop.f32.mrb[0].mxu0
        %3851 = vmatprep.mubr.bf16.mxu0 0
        %3852 = vmatmul.mubr.bf16.gmra.mrb[0].mxu0 %v2142
        %v3853 = vpop.f32.mrb[0].mxu0
        %v3854 = vadd.f32 %v3629, %v3853
        %v3855 = vpop.f32.mrb[0].mxu0
        %v3856 = vpop.f32.mrb[0].mxu0
        %v3857 = vadd.f32 %v3632, %v3856
        %v3858 = vpop.f32.mrb[0].mxu0
        %3859 = vmatprep.mubr.bf16.mxu0 0
        %3860 = vmatmul.mubr.bf16.gmra.mrb[0].mxu0 %v2151
        %v3861 = vpop.f32.mrb[0].mxu0
        %v3862 = vadd.f32 %v3637, %v3861
        %v3863 = vpop.f32.mrb[0].mxu0
        %v3864 = vpop.f32.mrb[0].mxu0
        %v3865 = vadd.f32 %v3640, %v3864
        %v3866 = vpop.f32.mrb[0].mxu0
        %3867 = vmatprep.mubr.bf16.mxu0 0
        %3868 = vmatmul.mubr.bf16.gmra.mrb[0].mxu0 %v2160
        %v3869 = vpop.f32.mrb[0].mxu0
        %v3870 = vadd.f32 %v3645, %v3869
        %v3871 = vpop.f32.mrb[0].mxu0
        %v3872 = vpop.f32.mrb[0].mxu0
        %v3873 = vadd.f32 %v3648, %v3872
        %v3874 = vpop.f32.mrb[0].mxu0
        %3875 = vmatprep.mubr.bf16.mxu0 0
        %3876 = vmatmul.mubr.bf16.gmra.mrb[0].mxu0 %v2169
        %v3877 = vpop.f32.mrb[0].mxu0
        %v3878 = vadd.f32 %v3653, %v3877
        %v3879 = vpop.f32.mrb[0].mxu0
        %v3880 = vpop.f32.mrb[0].mxu0
        %v3881 = vadd.f32 %v3656, %v3880
        %v3882 = vpop.f32.mrb[0].mxu0
        %3883 = vmatprep.mubr.bf16.mxu0 0
        %3884 = vmatmul.mubr.bf16.gmra.mrb[0].mxu0 %v2178
        %v3885 = vpop.f32.mrb[0].mxu0
        %v3886 = vadd.f32 %v3661, %v3885
        %v3887 = vpop.f32.mrb[0].mxu0
        %v3888 = vpop.f32.mrb[0].mxu0
        %v3889 = vadd.f32 %v3664, %v3888
        %v3890 = vpop.f32.mrb[0].mxu0
        %3891 = vmatprep.mubr.bf16.mxu0 0
        %3892 = vmatmul.mubr.bf16.gmra.mrb[0].mxu0 %v2187
        %v3893 = vpop.f32.mrb[0].mxu0
        %v3894 = vadd.f32 %v3669, %v3893
        %v3895 = vpop.f32.mrb[0].mxu0
        %v3896 = vpop.f32.mrb[0].mxu0
        %v3897 = vadd.f32 %v3672, %v3896
        %v3898 = vpop.f32.mrb[0].mxu0
        %3899 = vmatprep.mubr.bf16.mxu0 0
        %3900 = vmatmul.mubr.bf16.gmra.mrb[0].mxu0 %v2196
        %v3901 = vpop.f32.mrb[0].mxu0
        %v3902 = vadd.f32 %v3677, %v3901
        %v3903 = vpop.f32.mrb[0].mxu0
        %v3904 = vpop.f32.mrb[0].mxu0
        %v3905 = vadd.f32 %v3680, %v3904
        %v3906 = vpop.f32.mrb[0].mxu0
        %3907 = vmatprep.mubr.bf16.mxu0 0
        %3908 = vmatmul.mubr.bf16.gmra.mrb[0].mxu0 %v2205
        %v3909 = vpop.f32.mrb[0].mxu0
        %v3910 = vadd.f32 %v3685, %v3909
        %v3911 = vpop.f32.mrb[0].mxu0
        %v3912 = vpop.f32.mrb[0].mxu0
        %v3913 = vadd.f32 %v3688, %v3912
        %v3914 = vpop.f32.mrb[0].mxu0
        %3915 = vmatprep.mubr.bf16.mxu0 0
        %3916 = vmatmul.mubr.bf16.gmra.mrb[0].mxu0 %v2214
        %v3917 = vpop.f32.mrb[0].mxu0
        %v3918 = vadd.f32 %v3693, %v3917
        %v3919 = vpop.f32.mrb[0].mxu0
        %v3920 = vpop.f32.mrb[0].mxu0
        %v3921 = vadd.f32 %v3696, %v3920
        %v3922 = vpop.f32.mrb[0].mxu0
        %3923 = vmatprep.mubr.bf16.mxu0 0
        %3924 = vmatmul.mubr.bf16.gmra.mrb[0].mxu0 %v2223
        %v3925 = vpop.f32.mrb[0].mxu0
        %v3926 = vadd.f32 %v3701, %v3925
        %v3927 = vpop.f32.mrb[0].mxu0
        %v3928 = vpop.f32.mrb[0].mxu0
        %v3929 = vadd.f32 %v3704, %v3928
        %v3930 = vpop.f32.mrb[0].mxu0
        %3931 = vmatprep.mubr.bf16.mxu0 0
        %3932 = vmatmul.mubr.bf16.gmra.mrb[0].mxu0 %v2232
        %v3933 = vpop.f32.mrb[0].mxu0
        %v3934 = vadd.f32 %v3709, %v3933
        %v3935 = vpop.f32.mrb[0].mxu0
        %v3936 = vpop.f32.mrb[0].mxu0
        %v3937 = vadd.f32 %v3712, %v3936
        %v3938 = vpop.f32.mrb[0].mxu0
        %3939 = vmatprep.mubr.bf16.mxu0 0
        %3940 = vmatmul.mubr.bf16.gmra.mrb[0].mxu0 %v2241
        %v3941 = vpop.f32.mrb[0].mxu0
        %v3942 = vadd.f32 %v3717, %v3941
        %v3943 = vpop.f32.mrb[0].mxu0
        %v3944 = vpop.f32.mrb[0].mxu0
        %v3945 = vadd.f32 %v3720, %v3944
        %v3946 = vpop.f32.mrb[0].mxu0
        %3947 = vmatprep.mubr.bf16.mxu0 0
        %3948 = vmatmul.mubr.bf16.gmra.mrb[0].mxu0 %v2250
        %v3949 = vpop.f32.mrb[0].mxu0
        %v3950 = vadd.f32 %v3725, %v3949
        %v3951 = vpop.f32.mrb[0].mxu0
        %v3952 = vpop.f32.mrb[0].mxu0
        %v3953 = vadd.f32 %v3728, %v3952
        %v3954 = vpop.f32.mrb[0].mxu0
        %3955 = vmatprep.mubr.bf16.mxu0 0
        %3956 = vmatmul.mubr.bf16.gmra.mrb[0].mxu0 %v2259
        %v3957 = vpop.f32.mrb[0].mxu0
        %v3958 = vadd.f32 %v3733, %v3957
        %v3959 = vpop.f32.mrb[0].mxu0
        %v3960 = vpop.f32.mrb[0].mxu0
        %v3961 = vadd.f32 %v3736, %v3960
        %v3962 = vpop.f32.mrb[0].mxu0
        %3963 = vmatprep.mubr.bf16.mxu0 0
        %3964 = vmatmul.mubr.bf16.gmra.mrb[0].mxu0 %v2268
        %v3965 = vpop.f32.mrb[0].mxu0
        %v3966 = vadd.f32 %v3741, %v3965
        %v3967 = vpop.f32.mrb[0].mxu0
        %v3968 = vpop.f32.mrb[0].mxu0
        %v3969 = vadd.f32 %v3744, %v3968
        %v3970 = vpop.f32.mrb[0].mxu0
        %3971 = vmatprep.mubr.bf16.mxu0 0
        %3972 = vmatmul.mubr.bf16.gmra.mrb[0].mxu0 %v2277
        %v3973 = vpop.f32.mrb[0].mxu0
        %v3974 = vadd.f32 %v3749, %v3973
        %v3975 = vpop.f32.mrb[0].mxu0
        %v3976 = vpop.f32.mrb[0].mxu0
        %v3977 = vadd.f32 %v3752, %v3976
        %v3978 = vpop.f32.mrb[0].mxu0
        %3979 = vmatprep.mubr.bf16.mxu0 0
        %3980 = vmatmul.mubr.bf16.gmra.mrb[0].mxu0 %v2286
        %v3981 = vpop.f32.mrb[0].mxu0
        %v3982 = vadd.f32 %v3757, %v3981
        %v3983 = vpop.f32.mrb[0].mxu0
        %v3984 = vpop.f32.mrb[0].mxu0
        %v3985 = vadd.f32 %v3760, %v3984
        %v3986 = vpop.f32.mrb[0].mxu0
        %3987 = vdwg.mxu0
        %v3988 = vld [vmem:[%s4] sm:$0x1]
        %v3989 = vlaneseq
        %v3990 = vshrl.u32 %v3989, 7
        %v3991 = vsub.s32 0, %v3990
        %v3992 = vrot.slane %v3988, %v3991
        %v3993 = vmul.f32 %v3798, %v3992
        %v3994 = vmul.f32 %v3801, %v3992
        %v3995 = vmul.f32 %v3806, %v3992
        %v3996 = vmul.f32 %v3809, %v3992
        %v3997 = vmul.f32 %v3814, %v3992
        %v3998 = vmul.f32 %v3817, %v3992
        %v3999 = vmul.f32 %v3822, %v3992
        %v4000 = vmul.f32 %v3825, %v3992
        %v4001 = vmul.f32 %v3830, %v3992
        %v4002 = vmul.f32 %v3833, %v3992
        %v4003 = vmul.f32 %v3838, %v3992
        %v4004 = vmul.f32 %v3841, %v3992
        %v4005 = vmul.f32 %v3846, %v3992
        %v4006 = vmul.f32 %v3849, %v3992
        %v4007 = vmul.f32 %v3854, %v3992
        %v4008 = vmul.f32 %v3857, %v3992
        %v4009 = vmul.f32 %v3862, %v3992
        %v4010 = vmul.f32 %v3865, %v3992
        %v4011 = vmul.f32 %v3870, %v3992
        %v4012 = vmul.f32 %v3873, %v3992
        %v4013 = vmul.f32 %v3878, %v3992
        %v4014 = vmul.f32 %v3881, %v3992
        %v4015 = vmul.f32 %v3886, %v3992
        %v4016 = vmul.f32 %v3889, %v3992
        %v4017 = vmul.f32 %v3894, %v3992
        %v4018 = vmul.f32 %v3897, %v3992
        %v4019 = vmul.f32 %v3902, %v3992
        %v4020 = vmul.f32 %v3905, %v3992
        %v4021 = vmul.f32 %v3910, %v3992
        %v4022 = vmul.f32 %v3913, %v3992
        %v4023 = vmul.f32 %v3918, %v3992
        %v4024 = vmul.f32 %v3921, %v3992
        %v4025 = vmul.f32 %v3926, %v3992
        %v4026 = vmul.f32 %v3929, %v3992
        %v4027 = vmul.f32 %v3934, %v3992
        %v4028 = vmul.f32 %v3937, %v3992
        %v4029 = vmul.f32 %v3942, %v3992
        %v4030 = vmul.f32 %v3945, %v3992
        %v4031 = vmul.f32 %v3950, %v3992
        %v4032 = vmul.f32 %v3953, %v3992
        %v4033 = vmul.f32 %v3958, %v3992
        %v4034 = vmul.f32 %v3961, %v3992
        %v4035 = vmul.f32 %v3966, %v3992
        %v4036 = vmul.f32 %v3969, %v3992
        %v4037 = vmul.f32 %v3974, %v3992
        %v4038 = vmul.f32 %v3977, %v3992
        %v4039 = vmul.f32 %v3982, %v3992
        %v4040 = vmul.f32 %v3985, %v3992
        %v4041 = vld [vmem:[%s4 + $0x1] sm:$0x1]
        %v4042 = vlaneseq
        %v4043 = vshrl.u32 %v4042, 7
        %v4044 = vsub.s32 0, %v4043
        %v4045 = vrot.slane %v4041, %v4044
        %v4046 = vadd.f32 %v3993, %v4045
        %v4047 = vadd.f32 %v3994, %v4045
        %v4048 = vadd.f32 %v3995, %v4045
        %v4049 = vadd.f32 %v3996, %v4045
        %v4050 = vadd.f32 %v3997, %v4045
        %v4051 = vadd.f32 %v3998, %v4045
        %v4052 = vadd.f32 %v3999, %v4045
        %v4053 = vadd.f32 %v4000, %v4045
        %v4054 = vadd.f32 %v4001, %v4045
        %v4055 = vadd.f32 %v4002, %v4045
        %v4056 = vadd.f32 %v4003, %v4045
        %v4057 = vadd.f32 %v4004, %v4045
        %v4058 = vadd.f32 %v4005, %v4045
        %v4059 = vadd.f32 %v4006, %v4045
        %v4060 = vadd.f32 %v4007, %v4045
        %v4061 = vadd.f32 %v4008, %v4045
        %v4062 = vadd.f32 %v4009, %v4045
        %v4063 = vadd.f32 %v4010, %v4045
        %v4064 = vadd.f32 %v4011, %v4045
        %v4065 = vadd.f32 %v4012, %v4045
        %v4066 = vadd.f32 %v4013, %v4045
        %v4067 = vadd.f32 %v4014, %v4045
        %v4068 = vadd.f32 %v4015, %v4045
        %v4069 = vadd.f32 %v4016, %v4045
        %v4070 = vadd.f32 %v4017, %v4045
        %v4071 = vadd.f32 %v4018, %v4045
        %v4072 = vadd.f32 %v4019, %v4045
        %v4073 = vadd.f32 %v4020, %v4045
        %v4074 = vadd.f32 %v4021, %v4045
        %v4075 = vadd.f32 %v4022, %v4045
        %v4076 = vadd.f32 %v4023, %v4045
        %v4077 = vadd.f32 %v4024, %v4045
        %v4078 = vadd.f32 %v4025, %v4045
        %v4079 = vadd.f32 %v4026, %v4045
        %v4080 = vadd.f32 %v4027, %v4045
        %v4081 = vadd.f32 %v4028, %v4045
        %v4082 = vadd.f32 %v4029, %v4045
        %v4083 = vadd.f32 %v4030, %v4045
        %v4084 = vadd.f32 %v4031, %v4045
        %v4085 = vadd.f32 %v4032, %v4045
        %v4086 = vadd.f32 %v4033, %v4045
        %v4087 = vadd.f32 %v4034, %v4045
        %v4088 = vadd.f32 %v4035, %v4045
        %v4089 = vadd.f32 %v4036, %v4045
        %v4090 = vadd.f32 %v4037, %v4045
        %v4091 = vadd.f32 %v4038, %v4045
        %v4092 = vadd.f32 %v4039, %v4045
        %v4093 = vadd.f32 %v4040, %v4045
        %v4094 = vmax.f32 %v4046, 0.0
        %v4095 = vmax.f32 %v4047, 0.0
        %v4096 = vmax.f32 %v4048, 0.0
        %v4097 = vmax.f32 %v4049, 0.0
        %v4098 = vmax.f32 %v4050, 0.0
        %v4099 = vmax.f32 %v4051, 0.0
        %v4100 = vmax.f32 %v4052, 0.0
        %v4101 = vmax.f32 %v4053, 0.0
        %v4102 = vmax.f32 %v4054, 0.0
        %v4103 = vmax.f32 %v4055, 0.0
        %v4104 = vmax.f32 %v4056, 0.0
        %v4105 = vmax.f32 %v4057, 0.0
        %v4106 = vmax.f32 %v4058, 0.0
        %v4107 = vmax.f32 %v4059, 0.0
        %v4108 = vmax.f32 %v4060, 0.0
        %v4109 = vmax.f32 %v4061, 0.0
        %v4110 = vmax.f32 %v4062, 0.0
        %v4111 = vmax.f32 %v4063, 0.0
        %v4112 = vmax.f32 %v4064, 0.0
        %v4113 = vmax.f32 %v4065, 0.0
        %v4114 = vmax.f32 %v4066, 0.0
        %v4115 = vmax.f32 %v4067, 0.0
        %v4116 = vmax.f32 %v4068, 0.0
        %v4117 = vmax.f32 %v4069, 0.0
        %v4118 = vmax.f32 %v4070, 0.0
        %v4119 = vmax.f32 %v4071, 0.0
        %v4120 = vmax.f32 %v4072, 0.0
        %v4121 = vmax.f32 %v4073, 0.0
        %v4122 = vmax.f32 %v4074, 0.0
        %v4123 = vmax.f32 %v4075, 0.0
        %v4124 = vmax.f32 %v4076, 0.0
        %v4125 = vmax.f32 %v4077, 0.0
        %v4126 = vmax.f32 %v4078, 0.0
        %v4127 = vmax.f32 %v4079, 0.0
        %v4128 = vmax.f32 %v4080, 0.0
        %v4129 = vmax.f32 %v4081, 0.0
        %v4130 = vmax.f32 %v4082, 0.0
        %v4131 = vmax.f32 %v4083, 0.0
        %v4132 = vmax.f32 %v4084, 0.0
        %v4133 = vmax.f32 %v4085, 0.0
        %v4134 = vmax.f32 %v4086, 0.0
        %v4135 = vmax.f32 %v4087, 0.0
        %v4136 = vmax.f32 %v4088, 0.0
        %v4137 = vmax.f32 %v4089, 0.0
        %v4138 = vmax.f32 %v4090, 0.0
        %v4139 = vmax.f32 %v4091, 0.0
        %v4140 = vmax.f32 %v4092, 0.0
        %v4141 = vmax.f32 %v4093, 0.0
        %v4142 = vld [vmem:[%s5] sm:$0xff]
        %v4143 = vld [vmem:[%s5 + $0x8] sm:$0xff]
        %v4144 = vld [vmem:[%s5 + $0x10] sm:$0xff]
        %v4145 = vld [vmem:[%s5 + $0x18] sm:$0xff]
        %v4146 = vld [vmem:[%s5 + $0x20] sm:$0xff]
        %v4147 = vld [vmem:[%s5 + $0x28] sm:$0xff]
        %v4148 = vld [vmem:[%s5 + $0x30] sm:$0xff]
        %v4149 = vld [vmem:[%s5 + $0x38] sm:$0xff]
        %v4150 = vld [vmem:[%s5 + $0x40] sm:$0xff]
        %v4151 = vld [vmem:[%s5 + $0x48] sm:$0xff]
        %v4152 = vld [vmem:[%s5 + $0x50] sm:$0xff]
        %v4153 = vld [vmem:[%s5 + $0x58] sm:$0xff]
        %v4154 = vld [vmem:[%s5 + $0x60] sm:$0xff]
        %v4155 = vld [vmem:[%s5 + $0x68] sm:$0xff]
        %v4156 = vld [vmem:[%s5 + $0x70] sm:$0xff]
        %v4157 = vld [vmem:[%s5 + $0x78] sm:$0xff]
        %v4158 = vld [vmem:[%s5 + $0x80] sm:$0xff]
        %v4159 = vld [vmem:[%s5 + $0x88] sm:$0xff]
        %v4160 = vld [vmem:[%s5 + $0x90] sm:$0xff]
        %v4161 = vld [vmem:[%s5 + $0x98] sm:$0xff]
        %v4162 = vld [vmem:[%s5 + $0xa0] sm:$0xff]
        %v4163 = vld [vmem:[%s5 + $0xa8] sm:$0xff]
        %v4164 = vld [vmem:[%s5 + $0xb0] sm:$0xff]
        %v4165 = vld [vmem:[%s5 + $0xb8] sm:$0xff]
        %v4166 = vld [vmem:[%s5 + $0xc0] sm:$0xff]
        %v4167 = vld [vmem:[%s5 + $0xc8] sm:$0xff]
        %v4168 = vld [vmem:[%s5 + $0xd0] sm:$0xff]
        %v4169 = vld [vmem:[%s5 + $0xd8] sm:$0xff]
        %v4170 = vld [vmem:[%s5 + $0xe0] sm:$0xff]
        %v4171 = vld [vmem:[%s5 + $0xe8] sm:$0xff]
        %v4172 = vld [vmem:[%s5 + $0xf0] sm:$0xff]
        %v4173 = vld [vmem:[%s5 + $0xf8] sm:$0xff]
        %v4174 = vld [vmem:[%s5 + $0x100] sm:$0xff]
        %v4175 = vld [vmem:[%s5 + $0x108] sm:$0xff]
        %v4176 = vld [vmem:[%s5 + $0x110] sm:$0xff]
        %v4177 = vld [vmem:[%s5 + $0x118] sm:$0xff]
        %v4178 = vld [vmem:[%s5 + $0x120] sm:$0xff]
        %v4179 = vld [vmem:[%s5 + $0x128] sm:$0xff]
        %v4180 = vld [vmem:[%s5 + $0x130] sm:$0xff]
        %v4181 = vld [vmem:[%s5 + $0x138] sm:$0xff]
        %v4182 = vld [vmem:[%s5 + $0x140] sm:$0xff]
        %v4183 = vld [vmem:[%s5 + $0x148] sm:$0xff]
        %v4184 = vld [vmem:[%s5 + $0x150] sm:$0xff]
        %v4185 = vld [vmem:[%s5 + $0x158] sm:$0xff]
        %v4186 = vld [vmem:[%s5 + $0x160] sm:$0xff]
        %v4187 = vld [vmem:[%s5 + $0x168] sm:$0xff]
        %v4188 = vld [vmem:[%s5 + $0x170] sm:$0xff]
        %v4189 = vld [vmem:[%s5 + $0x178] sm:$0xff]
        %4191 = vset.pattern.permute.xlu0 0
        %4192 = vperm.xlu0 %4191, %v4142
        %v4193 = vpop.permute.xlu0 %4192
        %4196 = vset.pattern.permute.xlu0 0
        %4197 = vperm.xlu0 %4196, %v4143
        %v4198 = vpop.permute.xlu0 %4197
        %4201 = vset.pattern.permute.xlu0 0
        %4202 = vperm.xlu0 %4201, %v4144
        %v4203 = vpop.permute.xlu0 %4202
        %4206 = vset.pattern.permute.xlu0 0
        %4207 = vperm.xlu0 %4206, %v4145
        %v4208 = vpop.permute.xlu0 %4207
        %4211 = vset.pattern.permute.xlu0 0
        %4212 = vperm.xlu0 %4211, %v4146
        %v4213 = vpop.permute.xlu0 %4212
        %4216 = vset.pattern.permute.xlu0 0
        %4217 = vperm.xlu0 %4216, %v4147
        %v4218 = vpop.permute.xlu0 %4217
        %4221 = vset.pattern.permute.xlu0 0
        %4222 = vperm.xlu0 %4221, %v4148
        %v4223 = vpop.permute.xlu0 %4222
        %4226 = vset.pattern.permute.xlu0 0
        %4227 = vperm.xlu0 %4226, %v4149
        %v4228 = vpop.permute.xlu0 %4227
        %4231 = vset.pattern.permute.xlu0 0
        %4232 = vperm.xlu0 %4231, %v4150
        %v4233 = vpop.permute.xlu0 %4232
        %4236 = vset.pattern.permute.xlu0 0
        %4237 = vperm.xlu0 %4236, %v4151
        %v4238 = vpop.permute.xlu0 %4237
        %4241 = vset.pattern.permute.xlu0 0
        %4242 = vperm.xlu0 %4241, %v4152
        %v4243 = vpop.permute.xlu0 %4242
        %4246 = vset.pattern.permute.xlu0 0
        %4247 = vperm.xlu0 %4246, %v4153
        %v4248 = vpop.permute.xlu0 %4247
        %4251 = vset.pattern.permute.xlu0 0
        %4252 = vperm.xlu0 %4251, %v4154
        %v4253 = vpop.permute.xlu0 %4252
        %4256 = vset.pattern.permute.xlu0 0
        %4257 = vperm.xlu0 %4256, %v4155
        %v4258 = vpop.permute.xlu0 %4257
        %4261 = vset.pattern.permute.xlu0 0
        %4262 = vperm.xlu0 %4261, %v4156
        %v4263 = vpop.permute.xlu0 %4262
        %4266 = vset.pattern.permute.xlu0 0
        %4267 = vperm.xlu0 %4266, %v4157
        %v4268 = vpop.permute.xlu0 %4267
        %4271 = vset.pattern.permute.xlu0 0
        %4272 = vperm.xlu0 %4271, %v4158
        %v4273 = vpop.permute.xlu0 %4272
        %4276 = vset.pattern.permute.xlu0 0
        %4277 = vperm.xlu0 %4276, %v4159
        %v4278 = vpop.permute.xlu0 %4277
        %4281 = vset.pattern.permute.xlu0 0
        %4282 = vperm.xlu0 %4281, %v4160
        %v4283 = vpop.permute.xlu0 %4282
        %4286 = vset.pattern.permute.xlu0 0
        %4287 = vperm.xlu0 %4286, %v4161
        %v4288 = vpop.permute.xlu0 %4287
        %4291 = vset.pattern.permute.xlu0 0
        %4292 = vperm.xlu0 %4291, %v4162
        %v4293 = vpop.permute.xlu0 %4292
        %4296 = vset.pattern.permute.xlu0 0
        %4297 = vperm.xlu0 %4296, %v4163
        %v4298 = vpop.permute.xlu0 %4297
        %4301 = vset.pattern.permute.xlu0 0
        %4302 = vperm.xlu0 %4301, %v4164
        %v4303 = vpop.permute.xlu0 %4302
        %4306 = vset.pattern.permute.xlu0 0
        %4307 = vperm.xlu0 %4306, %v4165
        %v4308 = vpop.permute.xlu0 %4307
        %4311 = vset.pattern.permute.xlu0 0
        %4312 = vperm.xlu0 %4311, %v4166
        %v4313 = vpop.permute.xlu0 %4312
        %4316 = vset.pattern.permute.xlu0 0
        %4317 = vperm.xlu0 %4316, %v4167
        %v4318 = vpop.permute.xlu0 %4317
        %4321 = vset.pattern.permute.xlu0 0
        %4322 = vperm.xlu0 %4321, %v4168
        %v4323 = vpop.permute.xlu0 %4322
        %4326 = vset.pattern.permute.xlu0 0
        %4327 = vperm.xlu0 %4326, %v4169
        %v4328 = vpop.permute.xlu0 %4327
        %4331 = vset.pattern.permute.xlu0 0
        %4332 = vperm.xlu0 %4331, %v4170
        %v4333 = vpop.permute.xlu0 %4332
        %4336 = vset.pattern.permute.xlu0 0
        %4337 = vperm.xlu0 %4336, %v4171
        %v4338 = vpop.permute.xlu0 %4337
        %4341 = vset.pattern.permute.xlu0 0
        %4342 = vperm.xlu0 %4341, %v4172
        %v4343 = vpop.permute.xlu0 %4342
        %4346 = vset.pattern.permute.xlu0 0
        %4347 = vperm.xlu0 %4346, %v4173
        %v4348 = vpop.permute.xlu0 %4347
        %4351 = vset.pattern.permute.xlu0 0
        %4352 = vperm.xlu0 %4351, %v4174
        %v4353 = vpop.permute.xlu0 %4352
        %4356 = vset.pattern.permute.xlu0 0
        %4357 = vperm.xlu0 %4356, %v4175
        %v4358 = vpop.permute.xlu0 %4357
        %4361 = vset.pattern.permute.xlu0 0
        %4362 = vperm.xlu0 %4361, %v4176
        %v4363 = vpop.permute.xlu0 %4362
        %4366 = vset.pattern.permute.xlu0 0
        %4367 = vperm.xlu0 %4366, %v4177
        %v4368 = vpop.permute.xlu0 %4367
        %4371 = vset.pattern.permute.xlu0 0
        %4372 = vperm.xlu0 %4371, %v4178
        %v4373 = vpop.permute.xlu0 %4372
        %4376 = vset.pattern.permute.xlu0 0
        %4377 = vperm.xlu0 %4376, %v4179
        %v4378 = vpop.permute.xlu0 %4377
        %4381 = vset.pattern.permute.xlu0 0
        %4382 = vperm.xlu0 %4381, %v4180
        %v4383 = vpop.permute.xlu0 %4382
        %4386 = vset.pattern.permute.xlu0 0
        %4387 = vperm.xlu0 %4386, %v4181
        %v4388 = vpop.permute.xlu0 %4387
        %4391 = vset.pattern.permute.xlu0 0
        %4392 = vperm.xlu0 %4391, %v4182
        %v4393 = vpop.permute.xlu0 %4392
        %4396 = vset.pattern.permute.xlu0 0
        %4397 = vperm.xlu0 %4396, %v4183
        %v4398 = vpop.permute.xlu0 %4397
        %4401 = vset.pattern.permute.xlu0 0
        %4402 = vperm.xlu0 %4401, %v4184
        %v4403 = vpop.permute.xlu0 %4402
        %4406 = vset.pattern.permute.xlu0 0
        %4407 = vperm.xlu0 %4406, %v4185
        %v4408 = vpop.permute.xlu0 %4407
        %4411 = vset.pattern.permute.xlu0 0
        %4412 = vperm.xlu0 %4411, %v4186
        %v4413 = vpop.permute.xlu0 %4412
        %4416 = vset.pattern.permute.xlu0 0
        %4417 = vperm.xlu0 %4416, %v4187
        %v4418 = vpop.permute.xlu0 %4417
        %4421 = vset.pattern.permute.xlu0 0
        %4422 = vperm.xlu0 %4421, %v4188
        %v4423 = vpop.permute.xlu0 %4422
        %4426 = vset.pattern.permute.xlu0 0
        %4427 = vperm.xlu0 %4426, %v4189
        %v4428 = vpop.permute.xlu0 %4427
        %v4430 = vmul.f32 %v4094, %v4193
        %v4431 = vmul.f32 %v4095, %v4198
        %v4432 = vmul.f32 %v4096, %v4203
        %v4433 = vmul.f32 %v4097, %v4208
        %v4434 = vmul.f32 %v4098, %v4213
        %v4435 = vmul.f32 %v4099, %v4218
        %v4436 = vmul.f32 %v4100, %v4223
        %v4437 = vmul.f32 %v4101, %v4228
        %v4438 = vmul.f32 %v4102, %v4233
        %v4439 = vmul.f32 %v4103, %v4238
        %v4440 = vmul.f32 %v4104, %v4243
        %v4441 = vmul.f32 %v4105, %v4248
        %v4442 = vmul.f32 %v4106, %v4253
        %v4443 = vmul.f32 %v4107, %v4258
        %v4444 = vmul.f32 %v4108, %v4263
        %v4445 = vmul.f32 %v4109, %v4268
        %v4446 = vmul.f32 %v4110, %v4273
        %v4447 = vmul.f32 %v4111, %v4278
        %v4448 = vmul.f32 %v4112, %v4283
        %v4449 = vmul.f32 %v4113, %v4288
        %v4450 = vmul.f32 %v4114, %v4293
        %v4451 = vmul.f32 %v4115, %v4298
        %v4452 = vmul.f32 %v4116, %v4303
        %v4453 = vmul.f32 %v4117, %v4308
        %v4454 = vmul.f32 %v4118, %v4313
        %v4455 = vmul.f32 %v4119, %v4318
        %v4456 = vmul.f32 %v4120, %v4323
        %v4457 = vmul.f32 %v4121, %v4328
        %v4458 = vmul.f32 %v4122, %v4333
        %v4459 = vmul.f32 %v4123, %v4338
        %v4460 = vmul.f32 %v4124, %v4343
        %v4461 = vmul.f32 %v4125, %v4348
        %v4462 = vmul.f32 %v4126, %v4353
        %v4463 = vmul.f32 %v4127, %v4358
        %v4464 = vmul.f32 %v4128, %v4363
        %v4465 = vmul.f32 %v4129, %v4368
        %v4466 = vmul.f32 %v4130, %v4373
        %v4467 = vmul.f32 %v4131, %v4378
        %v4468 = vmul.f32 %v4132, %v4383
        %v4469 = vmul.f32 %v4133, %v4388
        %v4470 = vmul.f32 %v4134, %v4393
        %v4471 = vmul.f32 %v4135, %v4398
        %v4472 = vmul.f32 %v4136, %v4403
        %v4473 = vmul.f32 %v4137, %v4408
        %v4474 = vmul.f32 %v4138, %v4413
        %v4475 = vmul.f32 %v4139, %v4418
        %v4476 = vmul.f32 %v4140, %v4423
        %v4477 = vmul.f32 %v4141, %v4428
        %v4478 = vpack.c.bf16 %v4431, %v4430
        %v4479 = vpack.c.bf16 %v4433, %v4432
        %v4480 = vpack.c.bf16 %v4435, %v4434
        %v4481 = vpack.c.bf16 %v4437, %v4436
        %v4482 = vpack.c.bf16 %v4439, %v4438
        %v4483 = vpack.c.bf16 %v4441, %v4440
        %v4484 = vpack.c.bf16 %v4443, %v4442
        %v4485 = vpack.c.bf16 %v4445, %v4444
        %v4486 = vpack.c.bf16 %v4447, %v4446
        %v4487 = vpack.c.bf16 %v4449, %v4448
        %v4488 = vpack.c.bf16 %v4451, %v4450
        %v4489 = vpack.c.bf16 %v4453, %v4452
        %v4490 = vpack.c.bf16 %v4455, %v4454
        %v4491 = vpack.c.bf16 %v4457, %v4456
        %v4492 = vpack.c.bf16 %v4459, %v4458
        %v4493 = vpack.c.bf16 %v4461, %v4460
        %v4494 = vpack.c.bf16 %v4463, %v4462
        %v4495 = vpack.c.bf16 %v4465, %v4464
        %v4496 = vpack.c.bf16 %v4467, %v4466
        %v4497 = vpack.c.bf16 %v4469, %v4468
        %v4498 = vpack.c.bf16 %v4471, %v4470
        %v4499 = vpack.c.bf16 %v4473, %v4472
        %v4500 = vpack.c.bf16 %v4475, %v4474
        %v4501 = vpack.c.bf16 %v4477, %v4476
        %4502 = vst [vmem:[#allocation3] sm:$0xff] 0
        %vm4503 = vcmask 1044480
        %vm4504 = vsmask.f32 4352
        %vm4505 = vmand %vm4503, %vm4504
        %v4506 = vld [vmem:[#allocation3 + $0x8] sm:$0x1f]
        %v4507 = vsel %vm4505, 0, %v4506
        %4508 = vst [vmem:[#allocation3 + $0x8] sm:$0x1f] %v4507
        %v4510 = vshrl.u32 %v4478, 16
        %v4512 = vrot.slane %v4510, 3
        %v4513 = vshll.u32 %v4478, 16
        %v4515 = vrot.slane %v4513, 4
        %v4516 = vor.u32 %v4512, %v4515
        %v4518 = vshrl.u32 %v4479, 16
        %v4520 = vrot.slane %v4518, 3
        %v4521 = vshll.u32 %v4479, 16
        %v4523 = vrot.slane %v4521, 4
        %v4524 = vor.u32 %v4520, %v4523
        %v4525 = vsel %vm4504, %v4516, %v4524
        %v4527 = vshrl.u32 %v4480, 16
        %v4529 = vrot.slane %v4527, 3
        %v4530 = vshll.u32 %v4480, 16
        %v4532 = vrot.slane %v4530, 4
        %v4533 = vor.u32 %v4529, %v4532
        %v4534 = vsel %vm4504, %v4524, %v4533
        %v4536 = vshrl.u32 %v4481, 16
        %v4538 = vrot.slane %v4536, 3
        %v4539 = vshll.u32 %v4481, 16
        %v4541 = vrot.slane %v4539, 4
        %v4542 = vor.u32 %v4538, %v4541
        %v4543 = vsel %vm4504, %v4533, %v4542
        %v4545 = vshrl.u32 %v4482, 16
        %v4547 = vrot.slane %v4545, 3
        %v4548 = vshll.u32 %v4482, 16
        %v4550 = vrot.slane %v4548, 4
        %v4551 = vor.u32 %v4547, %v4550
        %v4552 = vsel %vm4504, %v4542, %v4551
        %v4554 = vshrl.u32 %v4483, 16
        %v4556 = vrot.slane %v4554, 3
        %v4557 = vshll.u32 %v4483, 16
        %v4559 = vrot.slane %v4557, 4
        %v4560 = vor.u32 %v4556, %v4559
        %v4561 = vsel %vm4504, %v4551, %v4560
        %v4563 = vshrl.u32 %v4484, 16
        %v4565 = vrot.slane %v4563, 3
        %v4566 = vshll.u32 %v4484, 16
        %v4568 = vrot.slane %v4566, 4
        %v4569 = vor.u32 %v4565, %v4568
        %v4570 = vsel %vm4504, %v4560, %v4569
        %v4572 = vshrl.u32 %v4485, 16
        %v4574 = vrot.slane %v4572, 3
        %v4575 = vshll.u32 %v4485, 16
        %v4577 = vrot.slane %v4575, 4
        %v4578 = vor.u32 %v4574, %v4577
        %v4579 = vsel %vm4504, %v4569, %v4578
        %v4581 = vshrl.u32 %v4486, 16
        %v4583 = vrot.slane %v4581, 3
        %v4584 = vshll.u32 %v4486, 16
        %v4586 = vrot.slane %v4584, 4
        %v4587 = vor.u32 %v4583, %v4586
        %v4588 = vsel %vm4504, %v4578, %v4587
        %v4590 = vshrl.u32 %v4487, 16
        %v4592 = vrot.slane %v4590, 3
        %v4593 = vshll.u32 %v4487, 16
        %v4595 = vrot.slane %v4593, 4
        %v4596 = vor.u32 %v4592, %v4595
        %v4597 = vsel %vm4504, %v4587, %v4596
        %v4599 = vshrl.u32 %v4488, 16
        %v4601 = vrot.slane %v4599, 3
        %v4602 = vshll.u32 %v4488, 16
        %v4604 = vrot.slane %v4602, 4
        %v4605 = vor.u32 %v4601, %v4604
        %v4606 = vsel %vm4504, %v4596, %v4605
        %v4608 = vshrl.u32 %v4489, 16
        %v4610 = vrot.slane %v4608, 3
        %v4611 = vshll.u32 %v4489, 16
        %v4613 = vrot.slane %v4611, 4
        %v4614 = vor.u32 %v4610, %v4613
        %v4615 = vsel %vm4504, %v4605, %v4614
        %v4617 = vshrl.u32 %v4490, 16
        %v4619 = vrot.slane %v4617, 3
        %v4620 = vshll.u32 %v4490, 16
        %v4622 = vrot.slane %v4620, 4
        %v4623 = vor.u32 %v4619, %v4622
        %v4624 = vsel %vm4504, %v4614, %v4623
        %v4626 = vshrl.u32 %v4491, 16
        %v4628 = vrot.slane %v4626, 3
        %v4629 = vshll.u32 %v4491, 16
        %v4631 = vrot.slane %v4629, 4
        %v4632 = vor.u32 %v4628, %v4631
        %v4633 = vsel %vm4504, %v4623, %v4632
        %v4635 = vshrl.u32 %v4492, 16
        %v4637 = vrot.slane %v4635, 3
        %v4638 = vshll.u32 %v4492, 16
        %v4640 = vrot.slane %v4638, 4
        %v4641 = vor.u32 %v4637, %v4640
        %v4642 = vsel %vm4504, %v4632, %v4641
        %v4644 = vshrl.u32 %v4493, 16
        %v4646 = vrot.slane %v4644, 3
        %v4647 = vshll.u32 %v4493, 16
        %v4649 = vrot.slane %v4647, 4
        %v4650 = vor.u32 %v4646, %v4649
        %v4651 = vsel %vm4504, %v4641, %v4650
        %v4653 = vshrl.u32 %v4494, 16
        %v4655 = vrot.slane %v4653, 3
        %v4656 = vshll.u32 %v4494, 16
        %v4658 = vrot.slane %v4656, 4
        %v4659 = vor.u32 %v4655, %v4658
        %v4660 = vsel %vm4504, %v4650, %v4659
        %v4662 = vshrl.u32 %v4495, 16
        %v4664 = vrot.slane %v4662, 3
        %v4665 = vshll.u32 %v4495, 16
        %v4667 = vrot.slane %v4665, 4
        %v4668 = vor.u32 %v4664, %v4667
        %v4669 = vsel %vm4504, %v4659, %v4668
        %v4671 = vshrl.u32 %v4496, 16
        %v4673 = vrot.slane %v4671, 3
        %v4674 = vshll.u32 %v4496, 16
        %v4676 = vrot.slane %v4674, 4
        %v4677 = vor.u32 %v4673, %v4676
        %v4678 = vsel %vm4504, %v4668, %v4677
        %v4680 = vshrl.u32 %v4497, 16
        %v4682 = vrot.slane %v4680, 3
        %v4683 = vshll.u32 %v4497, 16
        %v4685 = vrot.slane %v4683, 4
        %v4686 = vor.u32 %v4682, %v4685
        %v4687 = vsel %vm4504, %v4677, %v4686
        %v4689 = vshrl.u32 %v4498, 16
        %v4691 = vrot.slane %v4689, 3
        %v4692 = vshll.u32 %v4498, 16
        %v4694 = vrot.slane %v4692, 4
        %v4695 = vor.u32 %v4691, %v4694
        %v4696 = vsel %vm4504, %v4686, %v4695
        %v4698 = vshrl.u32 %v4499, 16
        %v4700 = vrot.slane %v4698, 3
        %v4701 = vshll.u32 %v4499, 16
        %v4703 = vrot.slane %v4701, 4
        %v4704 = vor.u32 %v4700, %v4703
        %v4705 = vsel %vm4504, %v4695, %v4704
        %v4707 = vshrl.u32 %v4500, 16
        %v4709 = vrot.slane %v4707, 3
        %v4710 = vshll.u32 %v4500, 16
        %v4712 = vrot.slane %v4710, 4
        %v4713 = vor.u32 %v4709, %v4712
        %v4714 = vsel %vm4504, %v4704, %v4713
        %v4716 = vshrl.u32 %v4501, 16
        %v4718 = vrot.slane %v4716, 3
        %v4719 = vshll.u32 %v4501, 16
        %v4721 = vrot.slane %v4719, 4
        %v4722 = vor.u32 %v4718, %v4721
        %v4723 = vsel %vm4504, %v4713, %v4722
        %vm4749 = vcmask 1047556
        %vm4750 = vsmask.f32 7954
        %vm4751 = vmand %vm4749, %vm4750
        %v4752 = vld [vmem:[#allocation3 + $0x8] sm:$0xf0]
        %v4753 = vsel %vm4751, %v4516, %v4752
        %4754 = vst [vmem:[#allocation3 + $0x8] sm:$0xf0] %v4753
        %4755 = vst [vmem:[#allocation3 + $0x10] sm:$0xff] %v4525
        %4756 = vst [vmem:[#allocation3 + $0x18] sm:$0xff] %v4534
        %4757 = vst [vmem:[#allocation3 + $0x20] sm:$0xff] %v4543
        %4758 = vst [vmem:[#allocation3 + $0x28] sm:$0xff] %v4552
        %4759 = vst [vmem:[#allocation3 + $0x30] sm:$0xff] %v4561
        %4760 = vst [vmem:[#allocation3 + $0x38] sm:$0xff] %v4570
        %4761 = vst [vmem:[#allocation3 + $0x40] sm:$0xff] %v4579
        %4762 = vst [vmem:[#allocation3 + $0x48] sm:$0xff] %v4588
        %4763 = vst [vmem:[#allocation3 + $0x50] sm:$0xff] %v4597
        %4764 = vst [vmem:[#allocation3 + $0x58] sm:$0xff] %v4606
        %4765 = vst [vmem:[#allocation3 + $0x60] sm:$0xff] %v4615
        %4766 = vst [vmem:[#allocation3 + $0x68] sm:$0xff] %v4624
        %4767 = vst [vmem:[#allocation3 + $0x70] sm:$0xff] %v4633
        %4768 = vst [vmem:[#allocation3 + $0x78] sm:$0xff] %v4642
        %4769 = vst [vmem:[#allocation3 + $0x80] sm:$0xff] %v4651
        %4770 = vst [vmem:[#allocation3 + $0x88] sm:$0xff] %v4660
        %4771 = vst [vmem:[#allocation3 + $0x90] sm:$0xff] %v4669
        %4772 = vst [vmem:[#allocation3 + $0x98] sm:$0xff] %v4678
        %4773 = vst [vmem:[#allocation3 + $0xa0] sm:$0xff] %v4687
        %4774 = vst [vmem:[#allocation3 + $0xa8] sm:$0xff] %v4696
        %4775 = vst [vmem:[#allocation3 + $0xb0] sm:$0xff] %v4705
        %4776 = vst [vmem:[#allocation3 + $0xb8] sm:$0xff] %v4714
        %4777 = vst [vmem:[#allocation3 + $0xc0] sm:$0xff] %v4723
        %v4778 = vld [vmem:[#allocation3 + $0xc8] sm:$0x1f]
        %v4779 = vsel %vm4505, %v4722, %v4778
        %4780 = vst [vmem:[#allocation3 + $0xc8] sm:$0x1f] %v4779
        %v4781 = vld [vmem:[#allocation3 + $0xc8] sm:$0xf0]
        %v4782 = vsel %vm4751, 0, %v4781
        %4783 = vst [vmem:[#allocation3 + $0xc8] sm:$0xf0] %v4782
        %4784 = vst [vmem:[#allocation3 + $0xd0] sm:$0xff] 0
        %4785 = vst [vmem:[#allocation3 + $0xd8] sm:$0xff] 0
        %v4786 = vld [vmem:[#allocation3] sm:$0xff]
        %v4787 = vld [vmem:[#allocation3 + $0x8] sm:$0xff]
        %v4788 = vld [vmem:[#allocation3 + $0x10] sm:$0xff]
        %v4789 = vld [vmem:[#allocation3 + $0x18] sm:$0xff]
        %v4790 = vld [vmem:[#allocation3 + $0x20] sm:$0xff]
        %v4791 = vld [vmem:[#allocation3 + $0x28] sm:$0xff]
        %v4792 = vld [vmem:[#allocation3 + $0x30] sm:$0xff]
        %v4793 = vld [vmem:[#allocation3 + $0x38] sm:$0xff]
        %v4794 = vld [vmem:[#allocation3 + $0x40] sm:$0xff]
        %v4795 = vld [vmem:[#allocation3 + $0x48] sm:$0xff]
        %v4796 = vld [vmem:[#allocation3 + $0x50] sm:$0xff]
        %v4797 = vld [vmem:[#allocation3 + $0x58] sm:$0xff]
        %v4798 = vld [vmem:[#allocation3 + $0x60] sm:$0xff]
        %v4799 = vld [vmem:[#allocation3 + $0x68] sm:$0xff]
        %v4800 = vld [vmem:[#allocation3 + $0x70] sm:$0xff]
        %v4801 = vld [vmem:[#allocation3 + $0x78] sm:$0xff]
        %v4802 = vld [vmem:[#allocation3 + $0x80] sm:$0xff]
        %v4803 = vld [vmem:[#allocation3 + $0x88] sm:$0xff]
        %v4804 = vld [vmem:[#allocation3 + $0x90] sm:$0xff]
        %v4805 = vld [vmem:[#allocation3 + $0x98] sm:$0xff]
        %v4806 = vld [vmem:[#allocation3 + $0xa0] sm:$0xff]
        %v4807 = vld [vmem:[#allocation3 + $0xa8] sm:$0xff]
        %v4808 = vld [vmem:[#allocation3 + $0xb0] sm:$0xff]
        %v4809 = vld [vmem:[#allocation3 + $0xb8] sm:$0xff]
        %4810 = vst [vmem:[#allocation5] sm:$0xff] %v4786
        %4811 = vst [vmem:[#allocation5 + $0x48] sm:$0xff] %v4787
        %4812 = vst [vmem:[#allocation5 + $0x90] sm:$0xff] %v4788
        %4813 = vst [vmem:[#allocation5 + $0xd8] sm:$0xff] %v4789
        %4814 = vst [vmem:[#allocation5 + $0x120] sm:$0xff] %v4790
        %4815 = vst [vmem:[#allocation5 + $0x168] sm:$0xff] %v4791
        %4816 = vst [vmem:[#allocation5 + $0x1b0] sm:$0xff] %v4792
        %4817 = vst [vmem:[#allocation5 + $0x1f8] sm:$0xff] %v4793
        %4818 = vst [vmem:[#allocation5 + $0x240] sm:$0xff] %v4794
        %4819 = vst [vmem:[#allocation5 + $0x288] sm:$0xff] %v4795
        %4820 = vst [vmem:[#allocation5 + $0x2d0] sm:$0xff] %v4796
        %4821 = vst [vmem:[#allocation5 + $0x318] sm:$0xff] %v4797
        %4822 = vst [vmem:[#allocation5 + $0x360] sm:$0xff] %v4798
        %4823 = vst [vmem:[#allocation5 + $0x3a8] sm:$0xff] %v4799
        %4824 = vst [vmem:[#allocation5 + $0x3f0] sm:$0xff] %v4800
        %4825 = vst [vmem:[#allocation5 + $0x438] sm:$0xff] %v4801
        %4826 = vst [vmem:[#allocation5 + $0x480] sm:$0xff] %v4802
        %4827 = vst [vmem:[#allocation5 + $0x4c8] sm:$0xff] %v4803
        %4828 = vst [vmem:[#allocation5 + $0x510] sm:$0xff] %v4804
        %4829 = vst [vmem:[#allocation5 + $0x558] sm:$0xff] %v4805
        %4830 = vst [vmem:[#allocation5 + $0x5a0] sm:$0xff] %v4806
        %4831 = vst [vmem:[#allocation5 + $0x5e8] sm:$0xff] %v4807
        %4832 = vst [vmem:[#allocation5 + $0x630] sm:$0xff] %v4808
        %4833 = vst [vmem:[#allocation5 + $0x678] sm:$0xff] %v4809
        %v4834 = vld [vmem:[#allocation3] sm:$0xff]
        %v4835 = vld [vmem:[#allocation3 + $0x8] sm:$0xff]
        %v4836 = vld [vmem:[#allocation3 + $0x10] sm:$0xff]
        %v4837 = vld [vmem:[#allocation3 + $0x18] sm:$0xff]
        %v4838 = vld [vmem:[#allocation3 + $0x20] sm:$0xff]
        %v4839 = vld [vmem:[#allocation3 + $0x28] sm:$0xff]
        %v4840 = vld [vmem:[#allocation3 + $0x30] sm:$0xff]
        %v4841 = vld [vmem:[#allocation3 + $0x38] sm:$0xff]
        %v4842 = vld [vmem:[#allocation3 + $0x40] sm:$0xff]
        %v4843 = vld [vmem:[#allocation3 + $0x48] sm:$0xff]
        %v4844 = vld [vmem:[#allocation3 + $0x50] sm:$0xff]
        %v4845 = vld [vmem:[#allocation3 + $0x58] sm:$0xff]
        %v4846 = vld [vmem:[#allocation3 + $0x60] sm:$0xff]
        %v4847 = vld [vmem:[#allocation3 + $0x68] sm:$0xff]
        %v4848 = vld [vmem:[#allocation3 + $0x70] sm:$0xff]
        %v4849 = vld [vmem:[#allocation3 + $0x78] sm:$0xff]
        %v4850 = vld [vmem:[#allocation3 + $0x80] sm:$0xff]
        %v4851 = vld [vmem:[#allocation3 + $0x88] sm:$0xff]
        %v4852 = vld [vmem:[#allocation3 + $0x90] sm:$0xff]
        %v4853 = vld [vmem:[#allocation3 + $0x98] sm:$0xff]
        %v4854 = vld [vmem:[#allocation3 + $0xa0] sm:$0xff]
        %v4855 = vld [vmem:[#allocation3 + $0xa8] sm:$0xff]
        %v4856 = vld [vmem:[#allocation3 + $0xb0] sm:$0xff]
        %v4857 = vld [vmem:[#allocation3 + $0xb8] sm:$0xff]
        %v4858 = vld [vmem:[#allocation3 + $0xc0] sm:$0x1]
        %v4860 = vshrl.u32 %v4834, 16
        %v4862 = vshll.u32 %v4834, 16
        %v4864 = vrot.slane %v4862, 1
        %v4865 = vor.u32 %v4860, %v4864
        %v4867 = vshll.u32 %v4835, 16
        %v4869 = vrot.slane %v4867, 1
        %v4870 = vsel %vm620, %v4865, %v4869
        %v4871 = vshrl.u32 %v4835, 16
        %v4873 = vor.u32 %v4871, %v4869
        %v4875 = vshll.u32 %v4836, 16
        %v4877 = vrot.slane %v4875, 1
        %v4878 = vsel %vm620, %v4873, %v4877
        %v4879 = vshrl.u32 %v4836, 16
        %v4881 = vor.u32 %v4879, %v4877
        %v4883 = vshll.u32 %v4837, 16
        %v4885 = vrot.slane %v4883, 1
        %v4886 = vsel %vm620, %v4881, %v4885
        %v4887 = vshrl.u32 %v4837, 16
        %v4889 = vor.u32 %v4887, %v4885
        %v4891 = vshll.u32 %v4838, 16
        %v4893 = vrot.slane %v4891, 1
        %v4894 = vsel %vm620, %v4889, %v4893
        %v4895 = vshrl.u32 %v4838, 16
        %v4897 = vor.u32 %v4895, %v4893
        %v4899 = vshll.u32 %v4839, 16
        %v4901 = vrot.slane %v4899, 1
        %v4902 = vsel %vm620, %v4897, %v4901
        %v4903 = vshrl.u32 %v4839, 16
        %v4905 = vor.u32 %v4903, %v4901
        %v4907 = vshll.u32 %v4840, 16
        %v4909 = vrot.slane %v4907, 1
        %v4910 = vsel %vm620, %v4905, %v4909
        %v4911 = vshrl.u32 %v4840, 16
        %v4913 = vor.u32 %v4911, %v4909
        %v4915 = vshll.u32 %v4841, 16
        %v4917 = vrot.slane %v4915, 1
        %v4918 = vsel %vm620, %v4913, %v4917
        %v4919 = vshrl.u32 %v4841, 16
        %v4921 = vor.u32 %v4919, %v4917
        %v4923 = vshll.u32 %v4842, 16
        %v4925 = vrot.slane %v4923, 1
        %v4926 = vsel %vm620, %v4921, %v4925
        %v4927 = vshrl.u32 %v4842, 16
        %v4929 = vor.u32 %v4927, %v4925
        %v4931 = vshll.u32 %v4843, 16
        %v4933 = vrot.slane %v4931, 1
        %v4934 = vsel %vm620, %v4929, %v4933
        %v4935 = vshrl.u32 %v4843, 16
        %v4937 = vor.u32 %v4935, %v4933
        %v4939 = vshll.u32 %v4844, 16
        %v4941 = vrot.slane %v4939, 1
        %v4942 = vsel %vm620, %v4937, %v4941
        %v4943 = vshrl.u32 %v4844, 16
        %v4945 = vor.u32 %v4943, %v4941
        %v4947 = vshll.u32 %v4845, 16
        %v4949 = vrot.slane %v4947, 1
        %v4950 = vsel %vm620, %v4945, %v4949
        %v4951 = vshrl.u32 %v4845, 16
        %v4953 = vor.u32 %v4951, %v4949
        %v4955 = vshll.u32 %v4846, 16
        %v4957 = vrot.slane %v4955, 1
        %v4958 = vsel %vm620, %v4953, %v4957
        %v4959 = vshrl.u32 %v4846, 16
        %v4961 = vor.u32 %v4959, %v4957
        %v4963 = vshll.u32 %v4847, 16
        %v4965 = vrot.slane %v4963, 1
        %v4966 = vsel %vm620, %v4961, %v4965
        %v4967 = vshrl.u32 %v4847, 16
        %v4969 = vor.u32 %v4967, %v4965
        %v4971 = vshll.u32 %v4848, 16
        %v4973 = vrot.slane %v4971, 1
        %v4974 = vsel %vm620, %v4969, %v4973
        %v4975 = vshrl.u32 %v4848, 16
        %v4977 = vor.u32 %v4975, %v4973
        %v4979 = vshll.u32 %v4849, 16
        %v4981 = vrot.slane %v4979, 1
        %v4982 = vsel %vm620, %v4977, %v4981
        %v4983 = vshrl.u32 %v4849, 16
        %v4985 = vor.u32 %v4983, %v4981
        %v4987 = vshll.u32 %v4850, 16
        %v4989 = vrot.slane %v4987, 1
        %v4990 = vsel %vm620, %v4985, %v4989
        %v4991 = vshrl.u32 %v4850, 16
        %v4993 = vor.u32 %v4991, %v4989
        %v4995 = vshll.u32 %v4851, 16
        %v4997 = vrot.slane %v4995, 1
        %v4998 = vsel %vm620, %v4993, %v4997
        %v4999 = vshrl.u32 %v4851, 16
        %v5001 = vor.u32 %v4999, %v4997
        %v5003 = vshll.u32 %v4852, 16
        %v5005 = vrot.slane %v5003, 1
        %v5006 = vsel %vm620, %v5001, %v5005
        %v5007 = vshrl.u32 %v4852, 16
        %v5009 = vor.u32 %v5007, %v5005
        %v5011 = vshll.u32 %v4853, 16
        %v5013 = vrot.slane %v5011, 1
        %v5014 = vsel %vm620, %v5009, %v5013
        %v5015 = vshrl.u32 %v4853, 16
        %v5017 = vor.u32 %v5015, %v5013
        %v5019 = vshll.u32 %v4854, 16
        %v5021 = vrot.slane %v5019, 1
        %v5022 = vsel %vm620, %v5017, %v5021
        %v5023 = vshrl.u32 %v4854, 16
        %v5025 = vor.u32 %v5023, %v5021
        %v5027 = vshll.u32 %v4855, 16
        %v5029 = vrot.slane %v5027, 1
        %v5030 = vsel %vm620, %v5025, %v5029
        %v5031 = vshrl.u32 %v4855, 16
        %v5033 = vor.u32 %v5031, %v5029
        %v5035 = vshll.u32 %v4856, 16
        %v5037 = vrot.slane %v5035, 1
        %v5038 = vsel %vm620, %v5033, %v5037
        %v5039 = vshrl.u32 %v4856, 16
        %v5041 = vor.u32 %v5039, %v5037
        %v5043 = vshll.u32 %v4857, 16
        %v5045 = vrot.slane %v5043, 1
        %v5046 = vsel %vm620, %v5041, %v5045
        %v5047 = vshrl.u32 %v4857, 16
        %v5049 = vor.u32 %v5047, %v5045
        %v5051 = vshll.u32 %v4858, 16
        %v5053 = vrot.slane %v5051, 1
        %v5054 = vsel %vm620, %v5049, %v5053
        %5079 = vst [vmem:[#allocation5 + $0x8] sm:$0xff] %v4870
        %5080 = vst [vmem:[#allocation5 + $0x50] sm:$0xff] %v4878
        %5081 = vst [vmem:[#allocation5 + $0x98] sm:$0xff] %v4886
        %5082 = vst [vmem:[#allocation5 + $0xe0] sm:$0xff] %v4894
        %5083 = vst [vmem:[#allocation5 + $0x128] sm:$0xff] %v4902
        %5084 = vst [vmem:[#allocation5 + $0x170] sm:$0xff] %v4910
        %5085 = vst [vmem:[#allocation5 + $0x1b8] sm:$0xff] %v4918
        %5086 = vst [vmem:[#allocation5 + $0x200] sm:$0xff] %v4926
        %5087 = vst [vmem:[#allocation5 + $0x248] sm:$0xff] %v4934
        %5088 = vst [vmem:[#allocation5 + $0x290] sm:$0xff] %v4942
        %5089 = vst [vmem:[#allocation5 + $0x2d8] sm:$0xff] %v4950
        %5090 = vst [vmem:[#allocation5 + $0x320] sm:$0xff] %v4958
        %5091 = vst [vmem:[#allocation5 + $0x368] sm:$0xff] %v4966
        %5092 = vst [vmem:[#allocation5 + $0x3b0] sm:$0xff] %v4974
        %5093 = vst [vmem:[#allocation5 + $0x3f8] sm:$0xff] %v4982
        %5094 = vst [vmem:[#allocation5 + $0x440] sm:$0xff] %v4990
        %5095 = vst [vmem:[#allocation5 + $0x488] sm:$0xff] %v4998
        %5096 = vst [vmem:[#allocation5 + $0x4d0] sm:$0xff] %v5006
        %5097 = vst [vmem:[#allocation5 + $0x518] sm:$0xff] %v5014
        %5098 = vst [vmem:[#allocation5 + $0x560] sm:$0xff] %v5022
        %5099 = vst [vmem:[#allocation5 + $0x5a8] sm:$0xff] %v5030
        %5100 = vst [vmem:[#allocation5 + $0x5f0] sm:$0xff] %v5038
        %5101 = vst [vmem:[#allocation5 + $0x638] sm:$0xff] %v5046
        %5102 = vst [vmem:[#allocation5 + $0x680] sm:$0xff] %v5054
        %v5103 = vld [vmem:[#allocation3] sm:$0xfe]
        %v5104 = vld [vmem:[#allocation3 + $0x8] sm:$0xff]
        %v5105 = vld [vmem:[#allocation3 + $0x10] sm:$0xff]
        %v5106 = vld [vmem:[#allocation3 + $0x18] sm:$0xff]
        %v5107 = vld [vmem:[#allocation3 + $0x20] sm:$0xff]
        %v5108 = vld [vmem:[#allocation3 + $0x28] sm:$0xff]
        %v5109 = vld [vmem:[#allocation3 + $0x30] sm:$0xff]
        %v5110 = vld [vmem:[#allocation3 + $0x38] sm:$0xff]
        %v5111 = vld [vmem:[#allocation3 + $0x40] sm:$0xff]
        %v5112 = vld [vmem:[#allocation3 + $0x48] sm:$0xff]
        %v5113 = vld [vmem:[#allocation3 + $0x50] sm:$0xff]
        %v5114 = vld [vmem:[#allocation3 + $0x58] sm:$0xff]
        %v5115 = vld [vmem:[#allocation3 + $0x60] sm:$0xff]
        %v5116 = vld [vmem:[#allocation3 + $0x68] sm:$0xff]
        %v5117 = vld [vmem:[#allocation3 + $0x70] sm:$0xff]
        %v5118 = vld [vmem:[#allocation3 + $0x78] sm:$0xff]
        %v5119 = vld [vmem:[#allocation3 + $0x80] sm:$0xff]
        %v5120 = vld [vmem:[#allocation3 + $0x88] sm:$0xff]
        %v5121 = vld [vmem:[#allocation3 + $0x90] sm:$0xff]
        %v5122 = vld [vmem:[#allocation3 + $0x98] sm:$0xff]
        %v5123 = vld [vmem:[#allocation3 + $0xa0] sm:$0xff]
        %v5124 = vld [vmem:[#allocation3 + $0xa8] sm:$0xff]
        %v5125 = vld [vmem:[#allocation3 + $0xb0] sm:$0xff]
        %v5126 = vld [vmem:[#allocation3 + $0xb8] sm:$0xff]
        %v5127 = vld [vmem:[#allocation3 + $0xc0] sm:$0x1]
        %v5153 = vrot.slane %v5103, 1
        %v5154 = vrot.slane %v5104, 1
        %v5155 = vsel %vm915, %v5153, %v5154
        %v5156 = vrot.slane %v5105, 1
        %v5157 = vsel %vm915, %v5154, %v5156
        %v5158 = vrot.slane %v5106, 1
        %v5159 = vsel %vm915, %v5156, %v5158
        %v5160 = vrot.slane %v5107, 1
        %v5161 = vsel %vm915, %v5158, %v5160
        %v5162 = vrot.slane %v5108, 1
        %v5163 = vsel %vm915, %v5160, %v5162
        %v5164 = vrot.slane %v5109, 1
        %v5165 = vsel %vm915, %v5162, %v5164
        %v5166 = vrot.slane %v5110, 1
        %v5167 = vsel %vm915, %v5164, %v5166
        %v5168 = vrot.slane %v5111, 1
        %v5169 = vsel %vm915, %v5166, %v5168
        %v5170 = vrot.slane %v5112, 1
        %v5171 = vsel %vm915, %v5168, %v5170
        %v5172 = vrot.slane %v5113, 1
        %v5173 = vsel %vm915, %v5170, %v5172
        %v5174 = vrot.slane %v5114, 1
        %v5175 = vsel %vm915, %v5172, %v5174
        %v5176 = vrot.slane %v5115, 1
        %v5177 = vsel %vm915, %v5174, %v5176
        %v5178 = vrot.slane %v5116, 1
        %v5179 = vsel %vm915, %v5176, %v5178
        %v5180 = vrot.slane %v5117, 1
        %v5181 = vsel %vm915, %v5178, %v5180
        %v5182 = vrot.slane %v5118, 1
        %v5183 = vsel %vm915, %v5180, %v5182
        %v5184 = vrot.slane %v5119, 1
        %v5185 = vsel %vm915, %v5182, %v5184
        %v5186 = vrot.slane %v5120, 1
        %v5187 = vsel %vm915, %v5184, %v5186
        %v5188 = vrot.slane %v5121, 1
        %v5189 = vsel %vm915, %v5186, %v5188
        %v5190 = vrot.slane %v5122, 1
        %v5191 = vsel %vm915, %v5188, %v5190
        %v5192 = vrot.slane %v5123, 1
        %v5193 = vsel %vm915, %v5190, %v5192
        %v5194 = vrot.slane %v5124, 1
        %v5195 = vsel %vm915, %v5192, %v5194
        %v5196 = vrot.slane %v5125, 1
        %v5197 = vsel %vm915, %v5194, %v5196
        %v5198 = vrot.slane %v5126, 1
        %v5199 = vsel %vm915, %v5196, %v5198
        %v5200 = vrot.slane %v5127, 1
        %v5201 = vsel %vm915, %v5198, %v5200
        %5226 = vst [vmem:[#allocation5 + $0x10] sm:$0xff] %v5155
        %5227 = vst [vmem:[#allocation5 + $0x58] sm:$0xff] %v5157
        %5228 = vst [vmem:[#allocation5 + $0xa0] sm:$0xff] %v5159
        %5229 = vst [vmem:[#allocation5 + $0xe8] sm:$0xff] %v5161
        %5230 = vst [vmem:[#allocation5 + $0x130] sm:$0xff] %v5163
        %5231 = vst [vmem:[#allocation5 + $0x178] sm:$0xff] %v5165
        %5232 = vst [vmem:[#allocation5 + $0x1c0] sm:$0xff] %v5167
        %5233 = vst [vmem:[#allocation5 + $0x208] sm:$0xff] %v5169
        %5234 = vst [vmem:[#allocation5 + $0x250] sm:$0xff] %v5171
        %5235 = vst [vmem:[#allocation5 + $0x298] sm:$0xff] %v5173
        %5236 = vst [vmem:[#allocation5 + $0x2e0] sm:$0xff] %v5175
        %5237 = vst [vmem:[#allocation5 + $0x328] sm:$0xff] %v5177
        %5238 = vst [vmem:[#allocation5 + $0x370] sm:$0xff] %v5179
        %5239 = vst [vmem:[#allocation5 + $0x3b8] sm:$0xff] %v5181
        %5240 = vst [vmem:[#allocation5 + $0x400] sm:$0xff] %v5183
        %5241 = vst [vmem:[#allocation5 + $0x448] sm:$0xff] %v5185
        %5242 = vst [vmem:[#allocation5 + $0x490] sm:$0xff] %v5187
        %5243 = vst [vmem:[#allocation5 + $0x4d8] sm:$0xff] %v5189
        %5244 = vst [vmem:[#allocation5 + $0x520] sm:$0xff] %v5191
        %5245 = vst [vmem:[#allocation5 + $0x568] sm:$0xff] %v5193
        %5246 = vst [vmem:[#allocation5 + $0x5b0] sm:$0xff] %v5195
        %5247 = vst [vmem:[#allocation5 + $0x5f8] sm:$0xff] %v5197
        %5248 = vst [vmem:[#allocation5 + $0x640] sm:$0xff] %v5199
        %5249 = vst [vmem:[#allocation5 + $0x688] sm:$0xff] %v5201
        %v5250 = vld [vmem:[#allocation3 + $0x8] sm:$0xf0]
        %v5251 = vld [vmem:[#allocation3 + $0x10] sm:$0xff]
        %v5252 = vld [vmem:[#allocation3 + $0x18] sm:$0xff]
        %v5253 = vld [vmem:[#allocation3 + $0x20] sm:$0xff]
        %v5254 = vld [vmem:[#allocation3 + $0x28] sm:$0xff]
        %v5255 = vld [vmem:[#allocation3 + $0x30] sm:$0xff]
        %v5256 = vld [vmem:[#allocation3 + $0x38] sm:$0xff]
        %v5257 = vld [vmem:[#allocation3 + $0x40] sm:$0xff]
        %v5258 = vld [vmem:[#allocation3 + $0x48] sm:$0xff]
        %v5259 = vld [vmem:[#allocation3 + $0x50] sm:$0xff]
        %v5260 = vld [vmem:[#allocation3 + $0x58] sm:$0xff]
        %v5261 = vld [vmem:[#allocation3 + $0x60] sm:$0xff]
        %v5262 = vld [vmem:[#allocation3 + $0x68] sm:$0xff]
        %v5263 = vld [vmem:[#allocation3 + $0x70] sm:$0xff]
        %v5264 = vld [vmem:[#allocation3 + $0x78] sm:$0xff]
        %v5265 = vld [vmem:[#allocation3 + $0x80] sm:$0xff]
        %v5266 = vld [vmem:[#allocation3 + $0x88] sm:$0xff]
        %v5267 = vld [vmem:[#allocation3 + $0x90] sm:$0xff]
        %v5268 = vld [vmem:[#allocation3 + $0x98] sm:$0xff]
        %v5269 = vld [vmem:[#allocation3 + $0xa0] sm:$0xff]
        %v5270 = vld [vmem:[#allocation3 + $0xa8] sm:$0xff]
        %v5271 = vld [vmem:[#allocation3 + $0xb0] sm:$0xff]
        %v5272 = vld [vmem:[#allocation3 + $0xb8] sm:$0xff]
        %v5273 = vld [vmem:[#allocation3 + $0xc0] sm:$0xff]
        %v5274 = vld [vmem:[#allocation3 + $0xc8] sm:$0xf]
        %v5300 = vrot.slane %v5250, 4
        %v5301 = vrot.slane %v5251, 4
        %v5302 = vsel %vm1063, %v5300, %v5301
        %v5303 = vrot.slane %v5252, 4
        %v5304 = vsel %vm1063, %v5301, %v5303
        %v5305 = vrot.slane %v5253, 4
        %v5306 = vsel %vm1063, %v5303, %v5305
        %v5307 = vrot.slane %v5254, 4
        %v5308 = vsel %vm1063, %v5305, %v5307
        %v5309 = vrot.slane %v5255, 4
        %v5310 = vsel %vm1063, %v5307, %v5309
        %v5311 = vrot.slane %v5256, 4
        %v5312 = vsel %vm1063, %v5309, %v5311
        %v5313 = vrot.slane %v5257, 4
        %v5314 = vsel %vm1063, %v5311, %v5313
        %v5315 = vrot.slane %v5258, 4
        %v5316 = vsel %vm1063, %v5313, %v5315
        %v5317 = vrot.slane %v5259, 4
        %v5318 = vsel %vm1063, %v5315, %v5317
        %v5319 = vrot.slane %v5260, 4
        %v5320 = vsel %vm1063, %v5317, %v5319
        %v5321 = vrot.slane %v5261, 4
        %v5322 = vsel %vm1063, %v5319, %v5321
        %v5323 = vrot.slane %v5262, 4
        %v5324 = vsel %vm1063, %v5321, %v5323
        %v5325 = vrot.slane %v5263, 4
        %v5326 = vsel %vm1063, %v5323, %v5325
        %v5327 = vrot.slane %v5264, 4
        %v5328 = vsel %vm1063, %v5325, %v5327
        %v5329 = vrot.slane %v5265, 4
        %v5330 = vsel %vm1063, %v5327, %v5329
        %v5331 = vrot.slane %v5266, 4
        %v5332 = vsel %vm1063, %v5329, %v5331
        %v5333 = vrot.slane %v5267, 4
        %v5334 = vsel %vm1063, %v5331, %v5333
        %v5335 = vrot.slane %v5268, 4
        %v5336 = vsel %vm1063, %v5333, %v5335
        %v5337 = vrot.slane %v5269, 4
        %v5338 = vsel %vm1063, %v5335, %v5337
        %v5339 = vrot.slane %v5270, 4
        %v5340 = vsel %vm1063, %v5337, %v5339
        %v5341 = vrot.slane %v5271, 4
        %v5342 = vsel %vm1063, %v5339, %v5341
        %v5343 = vrot.slane %v5272, 4
        %v5344 = vsel %vm1063, %v5341, %v5343
        %v5345 = vrot.slane %v5273, 4
        %v5346 = vsel %vm1063, %v5343, %v5345
        %v5347 = vrot.slane %v5274, 4
        %v5348 = vsel %vm1063, %v5345, %v5347
        %5373 = vst [vmem:[#allocation5 + $0x18] sm:$0xff] %v5302
        %5374 = vst [vmem:[#allocation5 + $0x60] sm:$0xff] %v5304
        %5375 = vst [vmem:[#allocation5 + $0xa8] sm:$0xff] %v5306
        %5376 = vst [vmem:[#allocation5 + $0xf0] sm:$0xff] %v5308
        %5377 = vst [vmem:[#allocation5 + $0x138] sm:$0xff] %v5310
        %5378 = vst [vmem:[#allocation5 + $0x180] sm:$0xff] %v5312
        %5379 = vst [vmem:[#allocation5 + $0x1c8] sm:$0xff] %v5314
        %5380 = vst [vmem:[#allocation5 + $0x210] sm:$0xff] %v5316
        %5381 = vst [vmem:[#allocation5 + $0x258] sm:$0xff] %v5318
        %5382 = vst [vmem:[#allocation5 + $0x2a0] sm:$0xff] %v5320
        %5383 = vst [vmem:[#allocation5 + $0x2e8] sm:$0xff] %v5322
        %5384 = vst [vmem:[#allocation5 + $0x330] sm:$0xff] %v5324
        %5385 = vst [vmem:[#allocation5 + $0x378] sm:$0xff] %v5326
        %5386 = vst [vmem:[#allocation5 + $0x3c0] sm:$0xff] %v5328
        %5387 = vst [vmem:[#allocation5 + $0x408] sm:$0xff] %v5330
        %5388 = vst [vmem:[#allocation5 + $0x450] sm:$0xff] %v5332
        %5389 = vst [vmem:[#allocation5 + $0x498] sm:$0xff] %v5334
        %5390 = vst [vmem:[#allocation5 + $0x4e0] sm:$0xff] %v5336
        %5391 = vst [vmem:[#allocation5 + $0x528] sm:$0xff] %v5338
        %5392 = vst [vmem:[#allocation5 + $0x570] sm:$0xff] %v5340
        %5393 = vst [vmem:[#allocation5 + $0x5b8] sm:$0xff] %v5342
        %5394 = vst [vmem:[#allocation5 + $0x600] sm:$0xff] %v5344
        %5395 = vst [vmem:[#allocation5 + $0x648] sm:$0xff] %v5346
        %5396 = vst [vmem:[#allocation5 + $0x690] sm:$0xff] %v5348
        %v5397 = vld [vmem:[#allocation3 + $0x8] sm:$0xf0]
        %v5398 = vld [vmem:[#allocation3 + $0x10] sm:$0xff]
        %v5399 = vld [vmem:[#allocation3 + $0x18] sm:$0xff]
        %v5400 = vld [vmem:[#allocation3 + $0x20] sm:$0xff]
        %v5401 = vld [vmem:[#allocation3 + $0x28] sm:$0xff]
        %v5402 = vld [vmem:[#allocation3 + $0x30] sm:$0xff]
        %v5403 = vld [vmem:[#allocation3 + $0x38] sm:$0xff]
        %v5404 = vld [vmem:[#allocation3 + $0x40] sm:$0xff]
        %v5405 = vld [vmem:[#allocation3 + $0x48] sm:$0xff]
        %v5406 = vld [vmem:[#allocation3 + $0x50] sm:$0xff]
        %v5407 = vld [vmem:[#allocation3 + $0x58] sm:$0xff]
        %v5408 = vld [vmem:[#allocation3 + $0x60] sm:$0xff]
        %v5409 = vld [vmem:[#allocation3 + $0x68] sm:$0xff]
        %v5410 = vld [vmem:[#allocation3 + $0x70] sm:$0xff]
        %v5411 = vld [vmem:[#allocation3 + $0x78] sm:$0xff]
        %v5412 = vld [vmem:[#allocation3 + $0x80] sm:$0xff]
        %v5413 = vld [vmem:[#allocation3 + $0x88] sm:$0xff]
        %v5414 = vld [vmem:[#allocation3 + $0x90] sm:$0xff]
        %v5415 = vld [vmem:[#allocation3 + $0x98] sm:$0xff]
        %v5416 = vld [vmem:[#allocation3 + $0xa0] sm:$0xff]
        %v5417 = vld [vmem:[#allocation3 + $0xa8] sm:$0xff]
        %v5418 = vld [vmem:[#allocation3 + $0xb0] sm:$0xff]
        %v5419 = vld [vmem:[#allocation3 + $0xb8] sm:$0xff]
        %v5420 = vld [vmem:[#allocation3 + $0xc0] sm:$0xff]
        %v5421 = vld [vmem:[#allocation3 + $0xc8] sm:$0x1f]
        %v5423 = vshrl.u32 %v5397, 16
        %v5425 = vrot.slane %v5423, 4
        %v5426 = vshll.u32 %v5397, 16
        %v5428 = vrot.slane %v5426, 5
        %v5429 = vor.u32 %v5425, %v5428
        %v5431 = vshrl.u32 %v5398, 16
        %v5433 = vrot.slane %v5431, 4
        %v5434 = vshll.u32 %v5398, 16
        %v5436 = vrot.slane %v5434, 5
        %v5437 = vor.u32 %v5433, %v5436
        %v5438 = vsel %vm1186, %v5429, %v5437
        %v5440 = vshrl.u32 %v5399, 16
        %v5442 = vrot.slane %v5440, 4
        %v5443 = vshll.u32 %v5399, 16
        %v5445 = vrot.slane %v5443, 5
        %v5446 = vor.u32 %v5442, %v5445
        %v5447 = vsel %vm1186, %v5437, %v5446
        %v5449 = vshrl.u32 %v5400, 16
        %v5451 = vrot.slane %v5449, 4
        %v5452 = vshll.u32 %v5400, 16
        %v5454 = vrot.slane %v5452, 5
        %v5455 = vor.u32 %v5451, %v5454
        %v5456 = vsel %vm1186, %v5446, %v5455
        %v5458 = vshrl.u32 %v5401, 16
        %v5460 = vrot.slane %v5458, 4
        %v5461 = vshll.u32 %v5401, 16
        %v5463 = vrot.slane %v5461, 5
        %v5464 = vor.u32 %v5460, %v5463
        %v5465 = vsel %vm1186, %v5455, %v5464
        %v5467 = vshrl.u32 %v5402, 16
        %v5469 = vrot.slane %v5467, 4
        %v5470 = vshll.u32 %v5402, 16
        %v5472 = vrot.slane %v5470, 5
        %v5473 = vor.u32 %v5469, %v5472
        %v5474 = vsel %vm1186, %v5464, %v5473
        %v5476 = vshrl.u32 %v5403, 16
        %v5478 = vrot.slane %v5476, 4
        %v5479 = vshll.u32 %v5403, 16
        %v5481 = vrot.slane %v5479, 5
        %v5482 = vor.u32 %v5478, %v5481
        %v5483 = vsel %vm1186, %v5473, %v5482
        %v5485 = vshrl.u32 %v5404, 16
        %v5487 = vrot.slane %v5485, 4
        %v5488 = vshll.u32 %v5404, 16
        %v5490 = vrot.slane %v5488, 5
        %v5491 = vor.u32 %v5487, %v5490
        %v5492 = vsel %vm1186, %v5482, %v5491
        %v5494 = vshrl.u32 %v5405, 16
        %v5496 = vrot.slane %v5494, 4
        %v5497 = vshll.u32 %v5405, 16
        %v5499 = vrot.slane %v5497, 5
        %v5500 = vor.u32 %v5496, %v5499
        %v5501 = vsel %vm1186, %v5491, %v5500
        %v5503 = vshrl.u32 %v5406, 16
        %v5505 = vrot.slane %v5503, 4
        %v5506 = vshll.u32 %v5406, 16
        %v5508 = vrot.slane %v5506, 5
        %v5509 = vor.u32 %v5505, %v5508
        %v5510 = vsel %vm1186, %v5500, %v5509
        %v5512 = vshrl.u32 %v5407, 16
        %v5514 = vrot.slane %v5512, 4
        %v5515 = vshll.u32 %v5407, 16
        %v5517 = vrot.slane %v5515, 5
        %v5518 = vor.u32 %v5514, %v5517
        %v5519 = vsel %vm1186, %v5509, %v5518
        %v5521 = vshrl.u32 %v5408, 16
        %v5523 = vrot.slane %v5521, 4
        %v5524 = vshll.u32 %v5408, 16
        %v5526 = vrot.slane %v5524, 5
        %v5527 = vor.u32 %v5523, %v5526
        %v5528 = vsel %vm1186, %v5518, %v5527
        %v5530 = vshrl.u32 %v5409, 16
        %v5532 = vrot.slane %v5530, 4
        %v5533 = vshll.u32 %v5409, 16
        %v5535 = vrot.slane %v5533, 5
        %v5536 = vor.u32 %v5532, %v5535
        %v5537 = vsel %vm1186, %v5527, %v5536
        %v5539 = vshrl.u32 %v5410, 16
        %v5541 = vrot.slane %v5539, 4
        %v5542 = vshll.u32 %v5410, 16
        %v5544 = vrot.slane %v5542, 5
        %v5545 = vor.u32 %v5541, %v5544
        %v5546 = vsel %vm1186, %v5536, %v5545
        %v5548 = vshrl.u32 %v5411, 16
        %v5550 = vrot.slane %v5548, 4
        %v5551 = vshll.u32 %v5411, 16
        %v5553 = vrot.slane %v5551, 5
        %v5554 = vor.u32 %v5550, %v5553
        %v5555 = vsel %vm1186, %v5545, %v5554
        %v5557 = vshrl.u32 %v5412, 16
        %v5559 = vrot.slane %v5557, 4
        %v5560 = vshll.u32 %v5412, 16
        %v5562 = vrot.slane %v5560, 5
        %v5563 = vor.u32 %v5559, %v5562
        %v5564 = vsel %vm1186, %v5554, %v5563
        %v5566 = vshrl.u32 %v5413, 16
        %v5568 = vrot.slane %v5566, 4
        %v5569 = vshll.u32 %v5413, 16
        %v5571 = vrot.slane %v5569, 5
        %v5572 = vor.u32 %v5568, %v5571
        %v5573 = vsel %vm1186, %v5563, %v5572
        %v5575 = vshrl.u32 %v5414, 16
        %v5577 = vrot.slane %v5575, 4
        %v5578 = vshll.u32 %v5414, 16
        %v5580 = vrot.slane %v5578, 5
        %v5581 = vor.u32 %v5577, %v5580
        %v5582 = vsel %vm1186, %v5572, %v5581
        %v5584 = vshrl.u32 %v5415, 16
        %v5586 = vrot.slane %v5584, 4
        %v5587 = vshll.u32 %v5415, 16
        %v5589 = vrot.slane %v5587, 5
        %v5590 = vor.u32 %v5586, %v5589
        %v5591 = vsel %vm1186, %v5581, %v5590
        %v5593 = vshrl.u32 %v5416, 16
        %v5595 = vrot.slane %v5593, 4
        %v5596 = vshll.u32 %v5416, 16
        %v5598 = vrot.slane %v5596, 5
        %v5599 = vor.u32 %v5595, %v5598
        %v5600 = vsel %vm1186, %v5590, %v5599
        %v5602 = vshrl.u32 %v5417, 16
        %v5604 = vrot.slane %v5602, 4
        %v5605 = vshll.u32 %v5417, 16
        %v5607 = vrot.slane %v5605, 5
        %v5608 = vor.u32 %v5604, %v5607
        %v5609 = vsel %vm1186, %v5599, %v5608
        %v5611 = vshrl.u32 %v5418, 16
        %v5613 = vrot.slane %v5611, 4
        %v5614 = vshll.u32 %v5418, 16
        %v5616 = vrot.slane %v5614, 5
        %v5617 = vor.u32 %v5613, %v5616
        %v5618 = vsel %vm1186, %v5608, %v5617
        %v5620 = vshrl.u32 %v5419, 16
        %v5622 = vrot.slane %v5620, 4
        %v5623 = vshll.u32 %v5419, 16
        %v5625 = vrot.slane %v5623, 5
        %v5626 = vor.u32 %v5622, %v5625
        %v5627 = vsel %vm1186, %v5617, %v5626
        %v5629 = vshrl.u32 %v5420, 16
        %v5631 = vrot.slane %v5629, 4
        %v5632 = vshll.u32 %v5420, 16
        %v5634 = vrot.slane %v5632, 5
        %v5635 = vor.u32 %v5631, %v5634
        %v5636 = vsel %vm1186, %v5626, %v5635
        %v5638 = vshrl.u32 %v5421, 16
        %v5640 = vrot.slane %v5638, 4
        %v5641 = vshll.u32 %v5421, 16
        %v5643 = vrot.slane %v5641, 5
        %v5644 = vor.u32 %v5640, %v5643
        %v5645 = vsel %vm1186, %v5635, %v5644
        %5670 = vst [vmem:[#allocation5 + $0x20] sm:$0xff] %v5438
        %5671 = vst [vmem:[#allocation5 + $0x68] sm:$0xff] %v5447
        %5672 = vst [vmem:[#allocation5 + $0xb0] sm:$0xff] %v5456
        %5673 = vst [vmem:[#allocation5 + $0xf8] sm:$0xff] %v5465
        %5674 = vst [vmem:[#allocation5 + $0x140] sm:$0xff] %v5474
        %5675 = vst [vmem:[#allocation5 + $0x188] sm:$0xff] %v5483
        %5676 = vst [vmem:[#allocation5 + $0x1d0] sm:$0xff] %v5492
        %5677 = vst [vmem:[#allocation5 + $0x218] sm:$0xff] %v5501
        %5678 = vst [vmem:[#allocation5 + $0x260] sm:$0xff] %v5510
        %5679 = vst [vmem:[#allocation5 + $0x2a8] sm:$0xff] %v5519
        %5680 = vst [vmem:[#allocation5 + $0x2f0] sm:$0xff] %v5528
        %5681 = vst [vmem:[#allocation5 + $0x338] sm:$0xff] %v5537
        %5682 = vst [vmem:[#allocation5 + $0x380] sm:$0xff] %v5546
        %5683 = vst [vmem:[#allocation5 + $0x3c8] sm:$0xff] %v5555
        %5684 = vst [vmem:[#allocation5 + $0x410] sm:$0xff] %v5564
        %5685 = vst [vmem:[#allocation5 + $0x458] sm:$0xff] %v5573
        %5686 = vst [vmem:[#allocation5 + $0x4a0] sm:$0xff] %v5582
        %5687 = vst [vmem:[#allocation5 + $0x4e8] sm:$0xff] %v5591
        %5688 = vst [vmem:[#allocation5 + $0x530] sm:$0xff] %v5600
        %5689 = vst [vmem:[#allocation5 + $0x578] sm:$0xff] %v5609
        %5690 = vst [vmem:[#allocation5 + $0x5c0] sm:$0xff] %v5618
        %5691 = vst [vmem:[#allocation5 + $0x608] sm:$0xff] %v5627
        %5692 = vst [vmem:[#allocation5 + $0x650] sm:$0xff] %v5636
        %5693 = vst [vmem:[#allocation5 + $0x698] sm:$0xff] %v5645
        %v5694 = vld [vmem:[#allocation3 + $0x8] sm:$0xe0]
        %v5695 = vld [vmem:[#allocation3 + $0x10] sm:$0xff]
        %v5696 = vld [vmem:[#allocation3 + $0x18] sm:$0xff]
        %v5697 = vld [vmem:[#allocation3 + $0x20] sm:$0xff]
        %v5698 = vld [vmem:[#allocation3 + $0x28] sm:$0xff]
        %v5699 = vld [vmem:[#allocation3 + $0x30] sm:$0xff]
        %v5700 = vld [vmem:[#allocation3 + $0x38] sm:$0xff]
        %v5701 = vld [vmem:[#allocation3 + $0x40] sm:$0xff]
        %v5702 = vld [vmem:[#allocation3 + $0x48] sm:$0xff]
        %v5703 = vld [vmem:[#allocation3 + $0x50] sm:$0xff]
        %v5704 = vld [vmem:[#allocation3 + $0x58] sm:$0xff]
        %v5705 = vld [vmem:[#allocation3 + $0x60] sm:$0xff]
        %v5706 = vld [vmem:[#allocation3 + $0x68] sm:$0xff]
        %v5707 = vld [vmem:[#allocation3 + $0x70] sm:$0xff]
        %v5708 = vld [vmem:[#allocation3 + $0x78] sm:$0xff]
        %v5709 = vld [vmem:[#allocation3 + $0x80] sm:$0xff]
        %v5710 = vld [vmem:[#allocation3 + $0x88] sm:$0xff]
        %v5711 = vld [vmem:[#allocation3 + $0x90] sm:$0xff]
        %v5712 = vld [vmem:[#allocation3 + $0x98] sm:$0xff]
        %v5713 = vld [vmem:[#allocation3 + $0xa0] sm:$0xff]
        %v5714 = vld [vmem:[#allocation3 + $0xa8] sm:$0xff]
        %v5715 = vld [vmem:[#allocation3 + $0xb0] sm:$0xff]
        %v5716 = vld [vmem:[#allocation3 + $0xb8] sm:$0xff]
        %v5717 = vld [vmem:[#allocation3 + $0xc0] sm:$0xff]
        %v5718 = vld [vmem:[#allocation3 + $0xc8] sm:$0x1f]
        %v5744 = vrot.slane %v5694, 5
        %v5745 = vrot.slane %v5695, 5
        %v5746 = vsel %vm1509, %v5744, %v5745
        %v5747 = vrot.slane %v5696, 5
        %v5748 = vsel %vm1509, %v5745, %v5747
        %v5749 = vrot.slane %v5697, 5
        %v5750 = vsel %vm1509, %v5747, %v5749
        %v5751 = vrot.slane %v5698, 5
        %v5752 = vsel %vm1509, %v5749, %v5751
        %v5753 = vrot.slane %v5699, 5
        %v5754 = vsel %vm1509, %v5751, %v5753
        %v5755 = vrot.slane %v5700, 5
        %v5756 = vsel %vm1509, %v5753, %v5755
        %v5757 = vrot.slane %v5701, 5
        %v5758 = vsel %vm1509, %v5755, %v5757
        %v5759 = vrot.slane %v5702, 5
        %v5760 = vsel %vm1509, %v5757, %v5759
        %v5761 = vrot.slane %v5703, 5
        %v5762 = vsel %vm1509, %v5759, %v5761
        %v5763 = vrot.slane %v5704, 5
        %v5764 = vsel %vm1509, %v5761, %v5763
        %v5765 = vrot.slane %v5705, 5
        %v5766 = vsel %vm1509, %v5763, %v5765
        %v5767 = vrot.slane %v5706, 5
        %v5768 = vsel %vm1509, %v5765, %v5767
        %v5769 = vrot.slane %v5707, 5
        %v5770 = vsel %vm1509, %v5767, %v5769
        %v5771 = vrot.slane %v5708, 5
        %v5772 = vsel %vm1509, %v5769, %v5771
        %v5773 = vrot.slane %v5709, 5
        %v5774 = vsel %vm1509, %v5771, %v5773
        %v5775 = vrot.slane %v5710, 5
        %v5776 = vsel %vm1509, %v5773, %v5775
        %v5777 = vrot.slane %v5711, 5
        %v5778 = vsel %vm1509, %v5775, %v5777
        %v5779 = vrot.slane %v5712, 5
        %v5780 = vsel %vm1509, %v5777, %v5779
        %v5781 = vrot.slane %v5713, 5
        %v5782 = vsel %vm1509, %v5779, %v5781
        %v5783 = vrot.slane %v5714, 5
        %v5784 = vsel %vm1509, %v5781, %v5783
        %v5785 = vrot.slane %v5715, 5
        %v5786 = vsel %vm1509, %v5783, %v5785
        %v5787 = vrot.slane %v5716, 5
        %v5788 = vsel %vm1509, %v5785, %v5787
        %v5789 = vrot.slane %v5717, 5
        %v5790 = vsel %vm1509, %v5787, %v5789
        %v5791 = vrot.slane %v5718, 5
        %v5792 = vsel %vm1509, %v5789, %v5791
        %5817 = vst [vmem:[#allocation5 + $0x28] sm:$0xff] %v5746
        %5818 = vst [vmem:[#allocation5 + $0x70] sm:$0xff] %v5748
        %5819 = vst [vmem:[#allocation5 + $0xb8] sm:$0xff] %v5750
        %5820 = vst [vmem:[#allocation5 + $0x100] sm:$0xff] %v5752
        %5821 = vst [vmem:[#allocation5 + $0x148] sm:$0xff] %v5754
        %5822 = vst [vmem:[#allocation5 + $0x190] sm:$0xff] %v5756
        %5823 = vst [vmem:[#allocation5 + $0x1d8] sm:$0xff] %v5758
        %5824 = vst [vmem:[#allocation5 + $0x220] sm:$0xff] %v5760
        %5825 = vst [vmem:[#allocation5 + $0x268] sm:$0xff] %v5762
        %5826 = vst [vmem:[#allocation5 + $0x2b0] sm:$0xff] %v5764
        %5827 = vst [vmem:[#allocation5 + $0x2f8] sm:$0xff] %v5766
        %5828 = vst [vmem:[#allocation5 + $0x340] sm:$0xff] %v5768
        %5829 = vst [vmem:[#allocation5 + $0x388] sm:$0xff] %v5770
        %5830 = vst [vmem:[#allocation5 + $0x3d0] sm:$0xff] %v5772
        %5831 = vst [vmem:[#allocation5 + $0x418] sm:$0xff] %v5774
        %5832 = vst [vmem:[#allocation5 + $0x460] sm:$0xff] %v5776
        %5833 = vst [vmem:[#allocation5 + $0x4a8] sm:$0xff] %v5778
        %5834 = vst [vmem:[#allocation5 + $0x4f0] sm:$0xff] %v5780
        %5835 = vst [vmem:[#allocation5 + $0x538] sm:$0xff] %v5782
        %5836 = vst [vmem:[#allocation5 + $0x580] sm:$0xff] %v5784
        %5837 = vst [vmem:[#allocation5 + $0x5c8] sm:$0xff] %v5786
        %5838 = vst [vmem:[#allocation5 + $0x610] sm:$0xff] %v5788
        %5839 = vst [vmem:[#allocation5 + $0x658] sm:$0xff] %v5790
        %5840 = vst [vmem:[#allocation5 + $0x6a0] sm:$0xff] %v5792
        %v5841 = vld [vmem:[#allocation3 + $0x18] sm:$0xff]
        %v5842 = vld [vmem:[#allocation3 + $0x20] sm:$0xff]
        %v5843 = vld [vmem:[#allocation3 + $0x28] sm:$0xff]
        %v5844 = vld [vmem:[#allocation3 + $0x30] sm:$0xff]
        %v5845 = vld [vmem:[#allocation3 + $0x38] sm:$0xff]
        %v5846 = vld [vmem:[#allocation3 + $0x40] sm:$0xff]
        %v5847 = vld [vmem:[#allocation3 + $0x48] sm:$0xff]
        %v5848 = vld [vmem:[#allocation3 + $0x50] sm:$0xff]
        %v5849 = vld [vmem:[#allocation3 + $0x58] sm:$0xff]
        %v5850 = vld [vmem:[#allocation3 + $0x60] sm:$0xff]
        %v5851 = vld [vmem:[#allocation3 + $0x68] sm:$0xff]
        %v5852 = vld [vmem:[#allocation3 + $0x70] sm:$0xff]
        %v5853 = vld [vmem:[#allocation3 + $0x78] sm:$0xff]
        %v5854 = vld [vmem:[#allocation3 + $0x80] sm:$0xff]
        %v5855 = vld [vmem:[#allocation3 + $0x88] sm:$0xff]
        %v5856 = vld [vmem:[#allocation3 + $0x90] sm:$0xff]
        %v5857 = vld [vmem:[#allocation3 + $0x98] sm:$0xff]
        %v5858 = vld [vmem:[#allocation3 + $0xa0] sm:$0xff]
        %v5859 = vld [vmem:[#allocation3 + $0xa8] sm:$0xff]
        %v5860 = vld [vmem:[#allocation3 + $0xb0] sm:$0xff]
        %v5861 = vld [vmem:[#allocation3 + $0xb8] sm:$0xff]
        %v5862 = vld [vmem:[#allocation3 + $0xc0] sm:$0xff]
        %v5863 = vld [vmem:[#allocation3 + $0xc8] sm:$0xff]
        %v5864 = vld [vmem:[#allocation3 + $0xd0] sm:$0xff]
        %5865 = vst [vmem:[#allocation5 + $0x30] sm:$0xff] %v5841
        %5866 = vst [vmem:[#allocation5 + $0x78] sm:$0xff] %v5842
        %5867 = vst [vmem:[#allocation5 + $0xc0] sm:$0xff] %v5843
        %5868 = vst [vmem:[#allocation5 + $0x108] sm:$0xff] %v5844
        %5869 = vst [vmem:[#allocation5 + $0x150] sm:$0xff] %v5845
        %5870 = vst [vmem:[#allocation5 + $0x198] sm:$0xff] %v5846
        %5871 = vst [vmem:[#allocation5 + $0x1e0] sm:$0xff] %v5847
        %5872 = vst [vmem:[#allocation5 + $0x228] sm:$0xff] %v5848
        %5873 = vst [vmem:[#allocation5 + $0x270] sm:$0xff] %v5849
        %5874 = vst [vmem:[#allocation5 + $0x2b8] sm:$0xff] %v5850
        %5875 = vst [vmem:[#allocation5 + $0x300] sm:$0xff] %v5851
        %5876 = vst [vmem:[#allocation5 + $0x348] sm:$0xff] %v5852
        %5877 = vst [vmem:[#allocation5 + $0x390] sm:$0xff] %v5853
        %5878 = vst [vmem:[#allocation5 + $0x3d8] sm:$0xff] %v5854
        %5879 = vst [vmem:[#allocation5 + $0x420] sm:$0xff] %v5855
        %5880 = vst [vmem:[#allocation5 + $0x468] sm:$0xff] %v5856
        %5881 = vst [vmem:[#allocation5 + $0x4b0] sm:$0xff] %v5857
        %5882 = vst [vmem:[#allocation5 + $0x4f8] sm:$0xff] %v5858
        %5883 = vst [vmem:[#allocation5 + $0x540] sm:$0xff] %v5859
        %5884 = vst [vmem:[#allocation5 + $0x588] sm:$0xff] %v5860
        %5885 = vst [vmem:[#allocation5 + $0x5d0] sm:$0xff] %v5861
        %5886 = vst [vmem:[#allocation5 + $0x618] sm:$0xff] %v5862
        %5887 = vst [vmem:[#allocation5 + $0x660] sm:$0xff] %v5863
        %5888 = vst [vmem:[#allocation5 + $0x6a8] sm:$0xff] %v5864
        %v5889 = vld [vmem:[#allocation3 + $0x18] sm:$0xff]
        %v5890 = vld [vmem:[#allocation3 + $0x20] sm:$0xff]
        %v5891 = vld [vmem:[#allocation3 + $0x28] sm:$0xff]
        %v5892 = vld [vmem:[#allocation3 + $0x30] sm:$0xff]
        %v5893 = vld [vmem:[#allocation3 + $0x38] sm:$0xff]
        %v5894 = vld [vmem:[#allocation3 + $0x40] sm:$0xff]
        %v5895 = vld [vmem:[#allocation3 + $0x48] sm:$0xff]
        %v5896 = vld [vmem:[#allocation3 + $0x50] sm:$0xff]
        %v5897 = vld [vmem:[#allocation3 + $0x58] sm:$0xff]
        %v5898 = vld [vmem:[#allocation3 + $0x60] sm:$0xff]
        %v5899 = vld [vmem:[#allocation3 + $0x68] sm:$0xff]
        %v5900 = vld [vmem:[#allocation3 + $0x70] sm:$0xff]
        %v5901 = vld [vmem:[#allocation3 + $0x78] sm:$0xff]
        %v5902 = vld [vmem:[#allocation3 + $0x80] sm:$0xff]
        %v5903 = vld [vmem:[#allocation3 + $0x88] sm:$0xff]
        %v5904 = vld [vmem:[#allocation3 + $0x90] sm:$0xff]
        %v5905 = vld [vmem:[#allocation3 + $0x98] sm:$0xff]
        %v5906 = vld [vmem:[#allocation3 + $0xa0] sm:$0xff]
        %v5907 = vld [vmem:[#allocation3 + $0xa8] sm:$0xff]
        %v5908 = vld [vmem:[#allocation3 + $0xb0] sm:$0xff]
        %v5909 = vld [vmem:[#allocation3 + $0xb8] sm:$0xff]
        %v5910 = vld [vmem:[#allocation3 + $0xc0] sm:$0xff]
        %v5911 = vld [vmem:[#allocation3 + $0xc8] sm:$0xff]
        %v5912 = vld [vmem:[#allocation3 + $0xd0] sm:$0xff]
        %v5913 = vld [vmem:[#allocation3 + $0xd8] sm:$0x1]
        %v5915 = vshrl.u32 %v5889, 16
        %v5917 = vshll.u32 %v5889, 16
        %v5919 = vrot.slane %v5917, 1
        %v5920 = vor.u32 %v5915, %v5919
        %v5922 = vshll.u32 %v5890, 16
        %v5924 = vrot.slane %v5922, 1
        %v5925 = vsel %vm620, %v5920, %v5924
        %v5926 = vshrl.u32 %v5890, 16
        %v5928 = vor.u32 %v5926, %v5924
        %v5930 = vshll.u32 %v5891, 16
        %v5932 = vrot.slane %v5930, 1
        %v5933 = vsel %vm620, %v5928, %v5932
        %v5934 = vshrl.u32 %v5891, 16
        %v5936 = vor.u32 %v5934, %v5932
        %v5938 = vshll.u32 %v5892, 16
        %v5940 = vrot.slane %v5938, 1
        %v5941 = vsel %vm620, %v5936, %v5940
        %v5942 = vshrl.u32 %v5892, 16
        %v5944 = vor.u32 %v5942, %v5940
        %v5946 = vshll.u32 %v5893, 16
        %v5948 = vrot.slane %v5946, 1
        %v5949 = vsel %vm620, %v5944, %v5948
        %v5950 = vshrl.u32 %v5893, 16
        %v5952 = vor.u32 %v5950, %v5948
        %v5954 = vshll.u32 %v5894, 16
        %v5956 = vrot.slane %v5954, 1
        %v5957 = vsel %vm620, %v5952, %v5956
        %v5958 = vshrl.u32 %v5894, 16
        %v5960 = vor.u32 %v5958, %v5956
        %v5962 = vshll.u32 %v5895, 16
        %v5964 = vrot.slane %v5962, 1
        %v5965 = vsel %vm620, %v5960, %v5964
        %v5966 = vshrl.u32 %v5895, 16
        %v5968 = vor.u32 %v5966, %v5964
        %v5970 = vshll.u32 %v5896, 16
        %v5972 = vrot.slane %v5970, 1
        %v5973 = vsel %vm620, %v5968, %v5972
        %v5974 = vshrl.u32 %v5896, 16
        %v5976 = vor.u32 %v5974, %v5972
        %v5978 = vshll.u32 %v5897, 16
        %v5980 = vrot.slane %v5978, 1
        %v5981 = vsel %vm620, %v5976, %v5980
        %v5982 = vshrl.u32 %v5897, 16
        %v5984 = vor.u32 %v5982, %v5980
        %v5986 = vshll.u32 %v5898, 16
        %v5988 = vrot.slane %v5986, 1
        %v5989 = vsel %vm620, %v5984, %v5988
        %v5990 = vshrl.u32 %v5898, 16
        %v5992 = vor.u32 %v5990, %v5988
        %v5994 = vshll.u32 %v5899, 16
        %v5996 = vrot.slane %v5994, 1
        %v5997 = vsel %vm620, %v5992, %v5996
        %v5998 = vshrl.u32 %v5899, 16
        %v6000 = vor.u32 %v5998, %v5996
        %v6002 = vshll.u32 %v5900, 16
        %v6004 = vrot.slane %v6002, 1
        %v6005 = vsel %vm620, %v6000, %v6004
        %v6006 = vshrl.u32 %v5900, 16
        %v6008 = vor.u32 %v6006, %v6004
        %v6010 = vshll.u32 %v5901, 16
        %v6012 = vrot.slane %v6010, 1
        %v6013 = vsel %vm620, %v6008, %v6012
        %v6014 = vshrl.u32 %v5901, 16
        %v6016 = vor.u32 %v6014, %v6012
        %v6018 = vshll.u32 %v5902, 16
        %v6020 = vrot.slane %v6018, 1
        %v6021 = vsel %vm620, %v6016, %v6020
        %v6022 = vshrl.u32 %v5902, 16
        %v6024 = vor.u32 %v6022, %v6020
        %v6026 = vshll.u32 %v5903, 16
        %v6028 = vrot.slane %v6026, 1
        %v6029 = vsel %vm620, %v6024, %v6028
        %v6030 = vshrl.u32 %v5903, 16
        %v6032 = vor.u32 %v6030, %v6028
        %v6034 = vshll.u32 %v5904, 16
        %v6036 = vrot.slane %v6034, 1
        %v6037 = vsel %vm620, %v6032, %v6036
        %v6038 = vshrl.u32 %v5904, 16
        %v6040 = vor.u32 %v6038, %v6036
        %v6042 = vshll.u32 %v5905, 16
        %v6044 = vrot.slane %v6042, 1
        %v6045 = vsel %vm620, %v6040, %v6044
        %v6046 = vshrl.u32 %v5905, 16
        %v6048 = vor.u32 %v6046, %v6044
        %v6050 = vshll.u32 %v5906, 16
        %v6052 = vrot.slane %v6050, 1
        %v6053 = vsel %vm620, %v6048, %v6052
        %v6054 = vshrl.u32 %v5906, 16
        %v6056 = vor.u32 %v6054, %v6052
        %v6058 = vshll.u32 %v5907, 16
        %v6060 = vrot.slane %v6058, 1
        %v6061 = vsel %vm620, %v6056, %v6060
        %v6062 = vshrl.u32 %v5907, 16
        %v6064 = vor.u32 %v6062, %v6060
        %v6066 = vshll.u32 %v5908, 16
        %v6068 = vrot.slane %v6066, 1
        %v6069 = vsel %vm620, %v6064, %v6068
        %v6070 = vshrl.u32 %v5908, 16
        %v6072 = vor.u32 %v6070, %v6068
        %v6074 = vshll.u32 %v5909, 16
        %v6076 = vrot.slane %v6074, 1
        %v6077 = vsel %vm620, %v6072, %v6076
        %v6078 = vshrl.u32 %v5909, 16
        %v6080 = vor.u32 %v6078, %v6076
        %v6082 = vshll.u32 %v5910, 16
        %v6084 = vrot.slane %v6082, 1
        %v6085 = vsel %vm620, %v6080, %v6084
        %v6086 = vshrl.u32 %v5910, 16
        %v6088 = vor.u32 %v6086, %v6084
        %v6090 = vshll.u32 %v5911, 16
        %v6092 = vrot.slane %v6090, 1
        %v6093 = vsel %vm620, %v6088, %v6092
        %v6094 = vshrl.u32 %v5911, 16
        %v6096 = vor.u32 %v6094, %v6092
        %v6098 = vshll.u32 %v5912, 16
        %v6100 = vrot.slane %v6098, 1
        %v6101 = vsel %vm620, %v6096, %v6100
        %v6102 = vshrl.u32 %v5912, 16
        %v6104 = vor.u32 %v6102, %v6100
        %v6106 = vshll.u32 %v5913, 16
        %v6108 = vrot.slane %v6106, 1
        %v6109 = vsel %vm620, %v6104, %v6108
        %6134 = vst [vmem:[#allocation5 + $0x38] sm:$0xff] %v5925
        %6135 = vst [vmem:[#allocation5 + $0x80] sm:$0xff] %v5933
        %6136 = vst [vmem:[#allocation5 + $0xc8] sm:$0xff] %v5941
        %6137 = vst [vmem:[#allocation5 + $0x110] sm:$0xff] %v5949
        %6138 = vst [vmem:[#allocation5 + $0x158] sm:$0xff] %v5957
        %6139 = vst [vmem:[#allocation5 + $0x1a0] sm:$0xff] %v5965
        %6140 = vst [vmem:[#allocation5 + $0x1e8] sm:$0xff] %v5973
        %6141 = vst [vmem:[#allocation5 + $0x230] sm:$0xff] %v5981
        %6142 = vst [vmem:[#allocation5 + $0x278] sm:$0xff] %v5989
        %6143 = vst [vmem:[#allocation5 + $0x2c0] sm:$0xff] %v5997
        %6144 = vst [vmem:[#allocation5 + $0x308] sm:$0xff] %v6005
        %6145 = vst [vmem:[#allocation5 + $0x350] sm:$0xff] %v6013
        %6146 = vst [vmem:[#allocation5 + $0x398] sm:$0xff] %v6021
        %6147 = vst [vmem:[#allocation5 + $0x3e0] sm:$0xff] %v6029
        %6148 = vst [vmem:[#allocation5 + $0x428] sm:$0xff] %v6037
        %6149 = vst [vmem:[#allocation5 + $0x470] sm:$0xff] %v6045
        %6150 = vst [vmem:[#allocation5 + $0x4b8] sm:$0xff] %v6053
        %6151 = vst [vmem:[#allocation5 + $0x500] sm:$0xff] %v6061
        %6152 = vst [vmem:[#allocation5 + $0x548] sm:$0xff] %v6069
        %6153 = vst [vmem:[#allocation5 + $0x590] sm:$0xff] %v6077
        %6154 = vst [vmem:[#allocation5 + $0x5d8] sm:$0xff] %v6085
        %6155 = vst [vmem:[#allocation5 + $0x620] sm:$0xff] %v6093
        %6156 = vst [vmem:[#allocation5 + $0x668] sm:$0xff] %v6101
        %6157 = vst [vmem:[#allocation5 + $0x6b0] sm:$0xff] %v6109
        %v6158 = vld [vmem:[#allocation3 + $0x18] sm:$0xfe]
        %v6159 = vld [vmem:[#allocation3 + $0x20] sm:$0xff]
        %v6160 = vld [vmem:[#allocation3 + $0x28] sm:$0xff]
        %v6161 = vld [vmem:[#allocation3 + $0x30] sm:$0xff]
        %v6162 = vld [vmem:[#allocation3 + $0x38] sm:$0xff]
        %v6163 = vld [vmem:[#allocation3 + $0x40] sm:$0xff]
        %v6164 = vld [vmem:[#allocation3 + $0x48] sm:$0xff]
        %v6165 = vld [vmem:[#allocation3 + $0x50] sm:$0xff]
        %v6166 = vld [vmem:[#allocation3 + $0x58] sm:$0xff]
        %v6167 = vld [vmem:[#allocation3 + $0x60] sm:$0xff]
        %v6168 = vld [vmem:[#allocation3 + $0x68] sm:$0xff]
        %v6169 = vld [vmem:[#allocation3 + $0x70] sm:$0xff]
        %v6170 = vld [vmem:[#allocation3 + $0x78] sm:$0xff]
        %v6171 = vld [vmem:[#allocation3 + $0x80] sm:$0xff]
        %v6172 = vld [vmem:[#allocation3 + $0x88] sm:$0xff]
        %v6173 = vld [vmem:[#allocation3 + $0x90] sm:$0xff]
        %v6174 = vld [vmem:[#allocation3 + $0x98] sm:$0xff]
        %v6175 = vld [vmem:[#allocation3 + $0xa0] sm:$0xff]
        %v6176 = vld [vmem:[#allocation3 + $0xa8] sm:$0xff]
        %v6177 = vld [vmem:[#allocation3 + $0xb0] sm:$0xff]
        %v6178 = vld [vmem:[#allocation3 + $0xb8] sm:$0xff]
        %v6179 = vld [vmem:[#allocation3 + $0xc0] sm:$0xff]
        %v6180 = vld [vmem:[#allocation3 + $0xc8] sm:$0xff]
        %v6181 = vld [vmem:[#allocation3 + $0xd0] sm:$0xff]
        %v6182 = vld [vmem:[#allocation3 + $0xd8] sm:$0x1]
        %v6208 = vrot.slane %v6158, 1
        %v6209 = vrot.slane %v6159, 1
        %v6210 = vsel %vm915, %v6208, %v6209
        %v6211 = vrot.slane %v6160, 1
        %v6212 = vsel %vm915, %v6209, %v6211
        %v6213 = vrot.slane %v6161, 1
        %v6214 = vsel %vm915, %v6211, %v6213
        %v6215 = vrot.slane %v6162, 1
        %v6216 = vsel %vm915, %v6213, %v6215
        %v6217 = vrot.slane %v6163, 1
        %v6218 = vsel %vm915, %v6215, %v6217
        %v6219 = vrot.slane %v6164, 1
        %v6220 = vsel %vm915, %v6217, %v6219
        %v6221 = vrot.slane %v6165, 1
        %v6222 = vsel %vm915, %v6219, %v6221
        %v6223 = vrot.slane %v6166, 1
        %v6224 = vsel %vm915, %v6221, %v6223
        %v6225 = vrot.slane %v6167, 1
        %v6226 = vsel %vm915, %v6223, %v6225
        %v6227 = vrot.slane %v6168, 1
        %v6228 = vsel %vm915, %v6225, %v6227
        %v6229 = vrot.slane %v6169, 1
        %v6230 = vsel %vm915, %v6227, %v6229
        %v6231 = vrot.slane %v6170, 1
        %v6232 = vsel %vm915, %v6229, %v6231
        %v6233 = vrot.slane %v6171, 1
        %v6234 = vsel %vm915, %v6231, %v6233
        %v6235 = vrot.slane %v6172, 1
        %v6236 = vsel %vm915, %v6233, %v6235
        %v6237 = vrot.slane %v6173, 1
        %v6238 = vsel %vm915, %v6235, %v6237
        %v6239 = vrot.slane %v6174, 1
        %v6240 = vsel %vm915, %v6237, %v6239
        %v6241 = vrot.slane %v6175, 1
        %v6242 = vsel %vm915, %v6239, %v6241
        %v6243 = vrot.slane %v6176, 1
        %v6244 = vsel %vm915, %v6241, %v6243
        %v6245 = vrot.slane %v6177, 1
        %v6246 = vsel %vm915, %v6243, %v6245
        %v6247 = vrot.slane %v6178, 1
        %v6248 = vsel %vm915, %v6245, %v6247
        %v6249 = vrot.slane %v6179, 1
        %v6250 = vsel %vm915, %v6247, %v6249
        %v6251 = vrot.slane %v6180, 1
        %v6252 = vsel %vm915, %v6249, %v6251
        %v6253 = vrot.slane %v6181, 1
        %v6254 = vsel %vm915, %v6251, %v6253
        %v6255 = vrot.slane %v6182, 1
        %v6256 = vsel %vm915, %v6253, %v6255
        %6281 = vst [vmem:[#allocation5 + $0x40] sm:$0xff] %v6210
        %6282 = vst [vmem:[#allocation5 + $0x88] sm:$0xff] %v6212
        %6283 = vst [vmem:[#allocation5 + $0xd0] sm:$0xff] %v6214
        %6284 = vst [vmem:[#allocation5 + $0x118] sm:$0xff] %v6216
        %6285 = vst [vmem:[#allocation5 + $0x160] sm:$0xff] %v6218
        %6286 = vst [vmem:[#allocation5 + $0x1a8] sm:$0xff] %v6220
        %6287 = vst [vmem:[#allocation5 + $0x1f0] sm:$0xff] %v6222
        %6288 = vst [vmem:[#allocation5 + $0x238] sm:$0xff] %v6224
        %6289 = vst [vmem:[#allocation5 + $0x280] sm:$0xff] %v6226
        %6290 = vst [vmem:[#allocation5 + $0x2c8] sm:$0xff] %v6228
        %6291 = vst [vmem:[#allocation5 + $0x310] sm:$0xff] %v6230
        %6292 = vst [vmem:[#allocation5 + $0x358] sm:$0xff] %v6232
        %6293 = vst [vmem:[#allocation5 + $0x3a0] sm:$0xff] %v6234
        %6294 = vst [vmem:[#allocation5 + $0x3e8] sm:$0xff] %v6236
        %6295 = vst [vmem:[#allocation5 + $0x430] sm:$0xff] %v6238
        %6296 = vst [vmem:[#allocation5 + $0x478] sm:$0xff] %v6240
        %6297 = vst [vmem:[#allocation5 + $0x4c0] sm:$0xff] %v6242
        %6298 = vst [vmem:[#allocation5 + $0x508] sm:$0xff] %v6244
        %6299 = vst [vmem:[#allocation5 + $0x550] sm:$0xff] %v6246
        %6300 = vst [vmem:[#allocation5 + $0x598] sm:$0xff] %v6248
        %6301 = vst [vmem:[#allocation5 + $0x5e0] sm:$0xff] %v6250
        %6302 = vst [vmem:[#allocation5 + $0x628] sm:$0xff] %v6252
        %6303 = vst [vmem:[#allocation5 + $0x670] sm:$0xff] %v6254
        %6304 = vst [vmem:[#allocation5 + $0x6b8] sm:$0xff] %v6256
        %v6305 = vld [vmem:[#allocation5] sm:$0xff]
        %v6306 = vld [vmem:[#allocation5 + $0x8] sm:$0xff]
        %v6307 = vld [vmem:[#allocation5 + $0x10] sm:$0xff]
        %v6308 = vld [vmem:[#allocation5 + $0x18] sm:$0xff]
        %v6309 = vld [vmem:[#allocation5 + $0x20] sm:$0xff]
        %v6310 = vld [vmem:[#allocation5 + $0x28] sm:$0xff]
        %v6311 = vld [vmem:[#allocation5 + $0x30] sm:$0xff]
        %v6312 = vld [vmem:[#allocation5 + $0x38] sm:$0xff]
        %v6313 = vld [vmem:[#allocation5 + $0x40] sm:$0xff]
        %v6314 = vld [vmem:[#allocation5 + $0x48] sm:$0xff]
        %v6315 = vld [vmem:[#allocation5 + $0x50] sm:$0xff]
        %v6316 = vld [vmem:[#allocation5 + $0x58] sm:$0xff]
        %v6317 = vld [vmem:[#allocation5 + $0x60] sm:$0xff]
        %v6318 = vld [vmem:[#allocation5 + $0x68] sm:$0xff]
        %v6319 = vld [vmem:[#allocation5 + $0x70] sm:$0xff]
        %v6320 = vld [vmem:[#allocation5 + $0x78] sm:$0xff]
        %v6321 = vld [vmem:[#allocation5 + $0x80] sm:$0xff]
        %v6322 = vld [vmem:[#allocation5 + $0x88] sm:$0xff]
        %v6323 = vld [vmem:[#allocation5 + $0x90] sm:$0xff]
        %v6324 = vld [vmem:[#allocation5 + $0x98] sm:$0xff]
        %v6325 = vld [vmem:[#allocation5 + $0xa0] sm:$0xff]
        %v6326 = vld [vmem:[#allocation5 + $0xa8] sm:$0xff]
        %v6327 = vld [vmem:[#allocation5 + $0xb0] sm:$0xff]
        %v6328 = vld [vmem:[#allocation5 + $0xb8] sm:$0xff]
        %v6329 = vld [vmem:[#allocation5 + $0xc0] sm:$0xff]
        %v6330 = vld [vmem:[#allocation5 + $0xc8] sm:$0xff]
        %v6331 = vld [vmem:[#allocation5 + $0xd0] sm:$0xff]
        %v6332 = vld [vmem:[#allocation5 + $0xd8] sm:$0xff]
        %v6333 = vld [vmem:[#allocation5 + $0xe0] sm:$0xff]
        %v6334 = vld [vmem:[#allocation5 + $0xe8] sm:$0xff]
        %v6335 = vld [vmem:[#allocation5 + $0xf0] sm:$0xff]
        %v6336 = vld [vmem:[#allocation5 + $0xf8] sm:$0xff]
        %v6337 = vld [vmem:[#allocation5 + $0x100] sm:$0xff]
        %v6338 = vld [vmem:[#allocation5 + $0x108] sm:$0xff]
        %v6339 = vld [vmem:[#allocation5 + $0x110] sm:$0xff]
        %v6340 = vld [vmem:[#allocation5 + $0x118] sm:$0xff]
        %v6341 = vld [vmem:[#allocation5 + $0x120] sm:$0xff]
        %v6342 = vld [vmem:[#allocation5 + $0x128] sm:$0xff]
        %v6343 = vld [vmem:[#allocation5 + $0x130] sm:$0xff]
        %v6344 = vld [vmem:[#allocation5 + $0x138] sm:$0xff]
        %v6345 = vld [vmem:[#allocation5 + $0x140] sm:$0xff]
        %v6346 = vld [vmem:[#allocation5 + $0x148] sm:$0xff]
        %v6347 = vld [vmem:[#allocation5 + $0x150] sm:$0xff]
        %v6348 = vld [vmem:[#allocation5 + $0x158] sm:$0xff]
        %v6349 = vld [vmem:[#allocation5 + $0x160] sm:$0xff]
        %v6350 = vld [vmem:[#allocation5 + $0x168] sm:$0xff]
        %v6351 = vld [vmem:[#allocation5 + $0x170] sm:$0xff]
        %v6352 = vld [vmem:[#allocation5 + $0x178] sm:$0xff]
        %v6353 = vld [vmem:[#allocation5 + $0x180] sm:$0xff]
        %v6354 = vld [vmem:[#allocation5 + $0x188] sm:$0xff]
        %v6355 = vld [vmem:[#allocation5 + $0x190] sm:$0xff]
        %v6356 = vld [vmem:[#allocation5 + $0x198] sm:$0xff]
        %v6357 = vld [vmem:[#allocation5 + $0x1a0] sm:$0xff]
        %v6358 = vld [vmem:[#allocation5 + $0x1a8] sm:$0xff]
        %v6359 = vld [vmem:[#allocation5 + $0x1b0] sm:$0xff]
        %v6360 = vld [vmem:[#allocation5 + $0x1b8] sm:$0xff]
        %v6361 = vld [vmem:[#allocation5 + $0x1c0] sm:$0xff]
        %v6362 = vld [vmem:[#allocation5 + $0x1c8] sm:$0xff]
        %v6363 = vld [vmem:[#allocation5 + $0x1d0] sm:$0xff]
        %v6364 = vld [vmem:[#allocation5 + $0x1d8] sm:$0xff]
        %v6365 = vld [vmem:[#allocation5 + $0x1e0] sm:$0xff]
        %v6366 = vld [vmem:[#allocation5 + $0x1e8] sm:$0xff]
        %v6367 = vld [vmem:[#allocation5 + $0x1f0] sm:$0xff]
        %v6368 = vld [vmem:[#allocation5 + $0x1f8] sm:$0xff]
        %v6369 = vld [vmem:[#allocation5 + $0x200] sm:$0xff]
        %v6370 = vld [vmem:[#allocation5 + $0x208] sm:$0xff]
        %v6371 = vld [vmem:[#allocation5 + $0x210] sm:$0xff]
        %v6372 = vld [vmem:[#allocation5 + $0x218] sm:$0xff]
        %v6373 = vld [vmem:[#allocation5 + $0x220] sm:$0xff]
        %v6374 = vld [vmem:[#allocation5 + $0x228] sm:$0xff]
        %v6375 = vld [vmem:[#allocation5 + $0x230] sm:$0xff]
        %v6376 = vld [vmem:[#allocation5 + $0x238] sm:$0xff]
        %v6377 = vld [vmem:[#allocation5 + $0x240] sm:$0xff]
        %v6378 = vld [vmem:[#allocation5 + $0x248] sm:$0xff]
        %v6379 = vld [vmem:[#allocation5 + $0x250] sm:$0xff]
        %v6380 = vld [vmem:[#allocation5 + $0x258] sm:$0xff]
        %v6381 = vld [vmem:[#allocation5 + $0x260] sm:$0xff]
        %v6382 = vld [vmem:[#allocation5 + $0x268] sm:$0xff]
        %v6383 = vld [vmem:[#allocation5 + $0x270] sm:$0xff]
        %v6384 = vld [vmem:[#allocation5 + $0x278] sm:$0xff]
        %v6385 = vld [vmem:[#allocation5 + $0x280] sm:$0xff]
        %v6386 = vld [vmem:[#allocation5 + $0x288] sm:$0xff]
        %v6387 = vld [vmem:[#allocation5 + $0x290] sm:$0xff]
        %v6388 = vld [vmem:[#allocation5 + $0x298] sm:$0xff]
        %v6389 = vld [vmem:[#allocation5 + $0x2a0] sm:$0xff]
        %v6390 = vld [vmem:[#allocation5 + $0x2a8] sm:$0xff]
        %v6391 = vld [vmem:[#allocation5 + $0x2b0] sm:$0xff]
        %v6392 = vld [vmem:[#allocation5 + $0x2b8] sm:$0xff]
        %v6393 = vld [vmem:[#allocation5 + $0x2c0] sm:$0xff]
        %v6394 = vld [vmem:[#allocation5 + $0x2c8] sm:$0xff]
        %v6395 = vld [vmem:[#allocation5 + $0x2d0] sm:$0xff]
        %v6396 = vld [vmem:[#allocation5 + $0x2d8] sm:$0xff]
        %v6397 = vld [vmem:[#allocation5 + $0x2e0] sm:$0xff]
        %v6398 = vld [vmem:[#allocation5 + $0x2e8] sm:$0xff]
        %v6399 = vld [vmem:[#allocation5 + $0x2f0] sm:$0xff]
        %v6400 = vld [vmem:[#allocation5 + $0x2f8] sm:$0xff]
        %v6401 = vld [vmem:[#allocation5 + $0x300] sm:$0xff]
        %v6402 = vld [vmem:[#allocation5 + $0x308] sm:$0xff]
        %v6403 = vld [vmem:[#allocation5 + $0x310] sm:$0xff]
        %v6404 = vld [vmem:[#allocation5 + $0x318] sm:$0xff]
        %v6405 = vld [vmem:[#allocation5 + $0x320] sm:$0xff]
        %v6406 = vld [vmem:[#allocation5 + $0x328] sm:$0xff]
        %v6407 = vld [vmem:[#allocation5 + $0x330] sm:$0xff]
        %v6408 = vld [vmem:[#allocation5 + $0x338] sm:$0xff]
        %v6409 = vld [vmem:[#allocation5 + $0x340] sm:$0xff]
        %v6410 = vld [vmem:[#allocation5 + $0x348] sm:$0xff]
        %v6411 = vld [vmem:[#allocation5 + $0x350] sm:$0xff]
        %v6412 = vld [vmem:[#allocation5 + $0x358] sm:$0xff]
        %v6413 = vld [vmem:[#allocation5 + $0x360] sm:$0xff]
        %v6414 = vld [vmem:[#allocation5 + $0x368] sm:$0xff]
        %v6415 = vld [vmem:[#allocation5 + $0x370] sm:$0xff]
        %v6416 = vld [vmem:[#allocation5 + $0x378] sm:$0xff]
        %v6417 = vld [vmem:[#allocation5 + $0x380] sm:$0xff]
        %v6418 = vld [vmem:[#allocation5 + $0x388] sm:$0xff]
        %v6419 = vld [vmem:[#allocation5 + $0x390] sm:$0xff]
        %v6420 = vld [vmem:[#allocation5 + $0x398] sm:$0xff]
        %v6421 = vld [vmem:[#allocation5 + $0x3a0] sm:$0xff]
        %v6422 = vld [vmem:[#allocation5 + $0x3a8] sm:$0xff]
        %v6423 = vld [vmem:[#allocation5 + $0x3b0] sm:$0xff]
        %v6424 = vld [vmem:[#allocation5 + $0x3b8] sm:$0xff]
        %v6425 = vld [vmem:[#allocation5 + $0x3c0] sm:$0xff]
        %v6426 = vld [vmem:[#allocation5 + $0x3c8] sm:$0xff]
        %v6427 = vld [vmem:[#allocation5 + $0x3d0] sm:$0xff]
        %v6428 = vld [vmem:[#allocation5 + $0x3d8] sm:$0xff]
        %v6429 = vld [vmem:[#allocation5 + $0x3e0] sm:$0xff]
        %v6430 = vld [vmem:[#allocation5 + $0x3e8] sm:$0xff]
        %v6431 = vld [vmem:[#allocation5 + $0x3f0] sm:$0xff]
        %v6432 = vld [vmem:[#allocation5 + $0x3f8] sm:$0xff]
        %v6433 = vld [vmem:[#allocation5 + $0x400] sm:$0xff]
        %v6434 = vld [vmem:[#allocation5 + $0x408] sm:$0xff]
        %v6435 = vld [vmem:[#allocation5 + $0x410] sm:$0xff]
        %v6436 = vld [vmem:[#allocation5 + $0x418] sm:$0xff]
        %v6437 = vld [vmem:[#allocation5 + $0x420] sm:$0xff]
        %v6438 = vld [vmem:[#allocation5 + $0x428] sm:$0xff]
        %v6439 = vld [vmem:[#allocation5 + $0x430] sm:$0xff]
        %v6440 = vld [vmem:[#allocation5 + $0x438] sm:$0xff]
        %v6441 = vld [vmem:[#allocation5 + $0x440] sm:$0xff]
        %v6442 = vld [vmem:[#allocation5 + $0x448] sm:$0xff]
        %v6443 = vld [vmem:[#allocation5 + $0x450] sm:$0xff]
        %v6444 = vld [vmem:[#allocation5 + $0x458] sm:$0xff]
        %v6445 = vld [vmem:[#allocation5 + $0x460] sm:$0xff]
        %v6446 = vld [vmem:[#allocation5 + $0x468] sm:$0xff]
        %v6447 = vld [vmem:[#allocation5 + $0x470] sm:$0xff]
        %v6448 = vld [vmem:[#allocation5 + $0x478] sm:$0xff]
        %v6449 = vld [vmem:[#allocation5 + $0x480] sm:$0xff]
        %v6450 = vld [vmem:[#allocation5 + $0x488] sm:$0xff]
        %v6451 = vld [vmem:[#allocation5 + $0x490] sm:$0xff]
        %v6452 = vld [vmem:[#allocation5 + $0x498] sm:$0xff]
        %v6453 = vld [vmem:[#allocation5 + $0x4a0] sm:$0xff]
        %v6454 = vld [vmem:[#allocation5 + $0x4a8] sm:$0xff]
        %v6455 = vld [vmem:[#allocation5 + $0x4b0] sm:$0xff]
        %v6456 = vld [vmem:[#allocation5 + $0x4b8] sm:$0xff]
        %v6457 = vld [vmem:[#allocation5 + $0x4c0] sm:$0xff]
        %v6458 = vld [vmem:[#allocation5 + $0x4c8] sm:$0xff]
        %v6459 = vld [vmem:[#allocation5 + $0x4d0] sm:$0xff]
        %v6460 = vld [vmem:[#allocation5 + $0x4d8] sm:$0xff]
        %v6461 = vld [vmem:[#allocation5 + $0x4e0] sm:$0xff]
        %v6462 = vld [vmem:[#allocation5 + $0x4e8] sm:$0xff]
        %v6463 = vld [vmem:[#allocation5 + $0x4f0] sm:$0xff]
        %v6464 = vld [vmem:[#allocation5 + $0x4f8] sm:$0xff]
        %v6465 = vld [vmem:[#allocation5 + $0x500] sm:$0xff]
        %v6466 = vld [vmem:[#allocation5 + $0x508] sm:$0xff]
        %v6467 = vld [vmem:[#allocation5 + $0x510] sm:$0xff]
        %v6468 = vld [vmem:[#allocation5 + $0x518] sm:$0xff]
        %v6469 = vld [vmem:[#allocation5 + $0x520] sm:$0xff]
        %v6470 = vld [vmem:[#allocation5 + $0x528] sm:$0xff]
        %v6471 = vld [vmem:[#allocation5 + $0x530] sm:$0xff]
        %v6472 = vld [vmem:[#allocation5 + $0x538] sm:$0xff]
        %v6473 = vld [vmem:[#allocation5 + $0x540] sm:$0xff]
        %v6474 = vld [vmem:[#allocation5 + $0x548] sm:$0xff]
        %v6475 = vld [vmem:[#allocation5 + $0x550] sm:$0xff]
        %v6476 = vld [vmem:[#allocation5 + $0x558] sm:$0xff]
        %v6477 = vld [vmem:[#allocation5 + $0x560] sm:$0xff]
        %v6478 = vld [vmem:[#allocation5 + $0x568] sm:$0xff]
        %v6479 = vld [vmem:[#allocation5 + $0x570] sm:$0xff]
        %v6480 = vld [vmem:[#allocation5 + $0x578] sm:$0xff]
        %v6481 = vld [vmem:[#allocation5 + $0x580] sm:$0xff]
        %v6482 = vld [vmem:[#allocation5 + $0x588] sm:$0xff]
        %v6483 = vld [vmem:[#allocation5 + $0x590] sm:$0xff]
        %v6484 = vld [vmem:[#allocation5 + $0x598] sm:$0xff]
        %v6485 = vld [vmem:[#allocation5 + $0x5a0] sm:$0xff]
        %v6486 = vld [vmem:[#allocation5 + $0x5a8] sm:$0xff]
        %v6487 = vld [vmem:[#allocation5 + $0x5b0] sm:$0xff]
        %v6488 = vld [vmem:[#allocation5 + $0x5b8] sm:$0xff]
        %v6489 = vld [vmem:[#allocation5 + $0x5c0] sm:$0xff]
        %v6490 = vld [vmem:[#allocation5 + $0x5c8] sm:$0xff]
        %v6491 = vld [vmem:[#allocation5 + $0x5d0] sm:$0xff]
        %v6492 = vld [vmem:[#allocation5 + $0x5d8] sm:$0xff]
        %v6493 = vld [vmem:[#allocation5 + $0x5e0] sm:$0xff]
        %v6494 = vld [vmem:[#allocation5 + $0x5e8] sm:$0xff]
        %v6495 = vld [vmem:[#allocation5 + $0x5f0] sm:$0xff]
        %v6496 = vld [vmem:[#allocation5 + $0x5f8] sm:$0xff]
        %v6497 = vld [vmem:[#allocation5 + $0x600] sm:$0xff]
        %v6498 = vld [vmem:[#allocation5 + $0x608] sm:$0xff]
        %v6499 = vld [vmem:[#allocation5 + $0x610] sm:$0xff]
        %v6500 = vld [vmem:[#allocation5 + $0x618] sm:$0xff]
        %v6501 = vld [vmem:[#allocation5 + $0x620] sm:$0xff]
        %v6502 = vld [vmem:[#allocation5 + $0x628] sm:$0xff]
        %v6503 = vld [vmem:[#allocation5 + $0x630] sm:$0xff]
        %v6504 = vld [vmem:[#allocation5 + $0x638] sm:$0xff]
        %v6505 = vld [vmem:[#allocation5 + $0x640] sm:$0xff]
        %v6506 = vld [vmem:[#allocation5 + $0x648] sm:$0xff]
        %v6507 = vld [vmem:[#allocation5 + $0x650] sm:$0xff]
        %v6508 = vld [vmem:[#allocation5 + $0x658] sm:$0xff]
        %v6509 = vld [vmem:[#allocation5 + $0x660] sm:$0xff]
        %v6510 = vld [vmem:[#allocation5 + $0x668] sm:$0xff]
        %v6511 = vld [vmem:[#allocation5 + $0x670] sm:$0xff]
        %v6512 = vld [vmem:[#allocation5 + $0x678] sm:$0xff]
        %v6513 = vld [vmem:[#allocation5 + $0x680] sm:$0xff]
        %v6514 = vld [vmem:[#allocation5 + $0x688] sm:$0xff]
        %v6515 = vld [vmem:[#allocation5 + $0x690] sm:$0xff]
        %v6516 = vld [vmem:[#allocation5 + $0x698] sm:$0xff]
        %v6517 = vld [vmem:[#allocation5 + $0x6a0] sm:$0xff]
        %v6518 = vld [vmem:[#allocation5 + $0x6a8] sm:$0xff]
        %v6519 = vld [vmem:[#allocation5 + $0x6b0] sm:$0xff]
        %v6520 = vld [vmem:[#allocation5 + $0x6b8] sm:$0xff]
        %v6521 = vld [vmem:[#allocation6] sm:$0xf]
        %v6522 = vld [vmem:[#allocation6 + $0x4] sm:$0xf]
        %v6523 = vld [vmem:[#allocation6 + $0x8] sm:$0xf]
        %v6524 = vld [vmem:[#allocation6 + $0xc] sm:$0xf]
        %v6525 = vld [vmem:[#allocation6 + $0x10] sm:$0xf]
        %v6526 = vld [vmem:[#allocation6 + $0x14] sm:$0xf]
        %v6527 = vld [vmem:[#allocation6 + $0x18] sm:$0xf]
        %v6528 = vld [vmem:[#allocation6 + $0x1c] sm:$0xf]
        %v6529 = vld [vmem:[#allocation6 + $0x20] sm:$0xf]
        %v6530 = vld [vmem:[#allocation6 + $0x24] sm:$0xf]
        %v6531 = vld [vmem:[#allocation6 + $0x28] sm:$0xf]
        %v6532 = vld [vmem:[#allocation6 + $0x2c] sm:$0xf]
        %v6533 = vld [vmem:[#allocation6 + $0x30] sm:$0xf]
        %v6534 = vld [vmem:[#allocation6 + $0x34] sm:$0xf]
        %v6535 = vld [vmem:[#allocation6 + $0x38] sm:$0xf]
        %v6536 = vld [vmem:[#allocation6 + $0x3c] sm:$0xf]
        %v6537 = vld [vmem:[#allocation6 + $0x40] sm:$0xf]
        %v6538 = vld [vmem:[#allocation6 + $0x44] sm:$0xf]
        %v6539 = vld [vmem:[#allocation6 + $0x48] sm:$0xf]
        %v6540 = vld [vmem:[#allocation6 + $0x4c] sm:$0xf]
        %v6541 = vld [vmem:[#allocation6 + $0x50] sm:$0xf]
        %v6542 = vld [vmem:[#allocation6 + $0x54] sm:$0xf]
        %v6543 = vld [vmem:[#allocation6 + $0x58] sm:$0xf]
        %v6544 = vld [vmem:[#allocation6 + $0x5c] sm:$0xf]
        %v6545 = vld [vmem:[#allocation6 + $0x60] sm:$0xf]
        %v6546 = vld [vmem:[#allocation6 + $0x64] sm:$0xf]
        %v6547 = vld [vmem:[#allocation6 + $0x68] sm:$0xf]
        %v6548 = vld [vmem:[#allocation6 + $0x6c] sm:$0xf]
        %v6549 = vld [vmem:[#allocation6 + $0x70] sm:$0xf]
        %v6550 = vld [vmem:[#allocation6 + $0x74] sm:$0xf]
        %v6551 = vld [vmem:[#allocation6 + $0x78] sm:$0xf]
        %v6552 = vld [vmem:[#allocation6 + $0x7c] sm:$0xf]
        %v6553 = vld [vmem:[#allocation6 + $0x80] sm:$0xf]
        %v6554 = vld [vmem:[#allocation6 + $0x84] sm:$0xf]
        %v6555 = vld [vmem:[#allocation6 + $0x88] sm:$0xf]
        %v6556 = vld [vmem:[#allocation6 + $0x8c] sm:$0xf]
        %v6557 = vld [vmem:[#allocation6 + $0x90] sm:$0xf]
        %v6558 = vld [vmem:[#allocation6 + $0x94] sm:$0xf]
        %v6559 = vld [vmem:[#allocation6 + $0x98] sm:$0xf]
        %v6560 = vld [vmem:[#allocation6 + $0x9c] sm:$0xf]
        %v6561 = vld [vmem:[#allocation6 + $0xa0] sm:$0xf]
        %v6562 = vld [vmem:[#allocation6 + $0xa4] sm:$0xf]
        %v6563 = vld [vmem:[#allocation6 + $0xa8] sm:$0xf]
        %v6564 = vld [vmem:[#allocation6 + $0xac] sm:$0xf]
        %v6565 = vld [vmem:[#allocation6 + $0xb0] sm:$0xf]
        %v6566 = vld [vmem:[#allocation6 + $0xb4] sm:$0xf]
        %v6567 = vld [vmem:[#allocation6 + $0xb8] sm:$0xf]
        %v6568 = vld [vmem:[#allocation6 + $0xbc] sm:$0xf]
        %v6569 = vld [vmem:[#allocation6 + $0xc0] sm:$0xf]
        %v6570 = vld [vmem:[#allocation6 + $0xc4] sm:$0xf]
        %v6571 = vld [vmem:[#allocation6 + $0xc8] sm:$0xf]
        %v6572 = vld [vmem:[#allocation6 + $0xcc] sm:$0xf]
        %v6573 = vld [vmem:[#allocation6 + $0xd0] sm:$0xf]
        %v6574 = vld [vmem:[#allocation6 + $0xd4] sm:$0xf]
        %v6575 = vld [vmem:[#allocation6 + $0xd8] sm:$0xf]
        %v6576 = vld [vmem:[#allocation6 + $0xdc] sm:$0xf]
        %v6577 = vld [vmem:[#allocation6 + $0xe0] sm:$0xf]
        %v6578 = vld [vmem:[#allocation6 + $0xe4] sm:$0xf]
        %v6579 = vld [vmem:[#allocation6 + $0xe8] sm:$0xf]
        %v6580 = vld [vmem:[#allocation6 + $0xec] sm:$0xf]
        %v6581 = vld [vmem:[#allocation6 + $0xf0] sm:$0xf]
        %v6582 = vld [vmem:[#allocation6 + $0xf4] sm:$0xf]
        %v6583 = vld [vmem:[#allocation6 + $0xf8] sm:$0xf]
        %v6584 = vld [vmem:[#allocation6 + $0xfc] sm:$0xf]
        %v6585 = vld [vmem:[#allocation6 + $0x100] sm:$0xf]
        %v6586 = vld [vmem:[#allocation6 + $0x104] sm:$0xf]
        %v6587 = vld [vmem:[#allocation6 + $0x108] sm:$0xf]
        %v6588 = vld [vmem:[#allocation6 + $0x10c] sm:$0xf]
        %v6589 = vld [vmem:[#allocation6 + $0x110] sm:$0xf]
        %v6590 = vld [vmem:[#allocation6 + $0x114] sm:$0xf]
        %v6591 = vld [vmem:[#allocation6 + $0x118] sm:$0xf]
        %v6592 = vld [vmem:[#allocation6 + $0x11c] sm:$0xf]
        %v6593 = vld [vmem:[#allocation6 + $0x120] sm:$0xf]
        %v6594 = vld [vmem:[#allocation6 + $0x124] sm:$0xf]
        %v6595 = vld [vmem:[#allocation6 + $0x128] sm:$0xf]
        %v6596 = vld [vmem:[#allocation6 + $0x12c] sm:$0xf]
        %v6597 = vld [vmem:[#allocation6 + $0x130] sm:$0xf]
        %v6598 = vld [vmem:[#allocation6 + $0x134] sm:$0xf]
        %v6599 = vld [vmem:[#allocation6 + $0x138] sm:$0xf]
        %v6600 = vld [vmem:[#allocation6 + $0x13c] sm:$0xf]
        %v6601 = vld [vmem:[#allocation6 + $0x140] sm:$0xf]
        %v6602 = vld [vmem:[#allocation6 + $0x144] sm:$0xf]
        %v6603 = vld [vmem:[#allocation6 + $0x148] sm:$0xf]
        %v6604 = vld [vmem:[#allocation6 + $0x14c] sm:$0xf]
        %v6605 = vld [vmem:[#allocation6 + $0x150] sm:$0xf]
        %v6606 = vld [vmem:[#allocation6 + $0x154] sm:$0xf]
        %v6607 = vld [vmem:[#allocation6 + $0x158] sm:$0xf]
        %v6608 = vld [vmem:[#allocation6 + $0x15c] sm:$0xf]
        %v6609 = vld [vmem:[#allocation6 + $0x160] sm:$0xf]
        %v6610 = vld [vmem:[#allocation6 + $0x164] sm:$0xf]
        %v6611 = vld [vmem:[#allocation6 + $0x168] sm:$0xf]
        %v6612 = vld [vmem:[#allocation6 + $0x16c] sm:$0xf]
        %v6613 = vld [vmem:[#allocation6 + $0x170] sm:$0xf]
        %v6614 = vld [vmem:[#allocation6 + $0x174] sm:$0xf]
        %v6615 = vld [vmem:[#allocation6 + $0x178] sm:$0xf]
        %v6616 = vld [vmem:[#allocation6 + $0x17c] sm:$0xf]
        %v6617 = vld [vmem:[#allocation6 + $0x180] sm:$0xf]
        %v6618 = vld [vmem:[#allocation6 + $0x184] sm:$0xf]
        %v6619 = vld [vmem:[#allocation6 + $0x188] sm:$0xf]
        %v6620 = vld [vmem:[#allocation6 + $0x18c] sm:$0xf]
        %v6621 = vld [vmem:[#allocation6 + $0x190] sm:$0xf]
        %v6622 = vld [vmem:[#allocation6 + $0x194] sm:$0xf]
        %v6623 = vld [vmem:[#allocation6 + $0x198] sm:$0xf]
        %v6624 = vld [vmem:[#allocation6 + $0x19c] sm:$0xf]
        %v6625 = vld [vmem:[#allocation6 + $0x1a0] sm:$0xf]
        %v6626 = vld [vmem:[#allocation6 + $0x1a4] sm:$0xf]
        %v6627 = vld [vmem:[#allocation6 + $0x1a8] sm:$0xf]
        %v6628 = vld [vmem:[#allocation6 + $0x1ac] sm:$0xf]
        %v6629 = vld [vmem:[#allocation6 + $0x1b0] sm:$0xf]
        %v6630 = vld [vmem:[#allocation6 + $0x1b4] sm:$0xf]
        %v6631 = vld [vmem:[#allocation6 + $0x1b8] sm:$0xf]
        %v6632 = vld [vmem:[#allocation6 + $0x1bc] sm:$0xf]
        %v6633 = vld [vmem:[#allocation6 + $0x1c0] sm:$0xf]
        %v6634 = vld [vmem:[#allocation6 + $0x1c4] sm:$0xf]
        %v6635 = vld [vmem:[#allocation6 + $0x1c8] sm:$0xf]
        %v6636 = vld [vmem:[#allocation6 + $0x1cc] sm:$0xf]
        %v6637 = vld [vmem:[#allocation6 + $0x1d0] sm:$0xf]
        %v6638 = vld [vmem:[#allocation6 + $0x1d4] sm:$0xf]
        %v6639 = vld [vmem:[#allocation6 + $0x1d8] sm:$0xf]
        %v6640 = vld [vmem:[#allocation6 + $0x1dc] sm:$0xf]
        %v6641 = vld [vmem:[#allocation6 + $0x1e0] sm:$0xf]
        %v6642 = vld [vmem:[#allocation6 + $0x1e4] sm:$0xf]
        %v6643 = vld [vmem:[#allocation6 + $0x1e8] sm:$0xf]
        %v6644 = vld [vmem:[#allocation6 + $0x1ec] sm:$0xf]
        %v6645 = vld [vmem:[#allocation6 + $0x1f0] sm:$0xf]
        %v6646 = vld [vmem:[#allocation6 + $0x1f4] sm:$0xf]
        %v6647 = vld [vmem:[#allocation6 + $0x1f8] sm:$0xf]
        %v6648 = vld [vmem:[#allocation6 + $0x1fc] sm:$0xf]
        %v6649 = vld [vmem:[#allocation6 + $0x200] sm:$0xf]
        %v6650 = vld [vmem:[#allocation6 + $0x204] sm:$0xf]
        %v6651 = vld [vmem:[#allocation6 + $0x208] sm:$0xf]
        %v6652 = vld [vmem:[#allocation6 + $0x20c] sm:$0xf]
        %v6653 = vld [vmem:[#allocation6 + $0x210] sm:$0xf]
        %v6654 = vld [vmem:[#allocation6 + $0x214] sm:$0xf]
        %v6655 = vld [vmem:[#allocation6 + $0x218] sm:$0xf]
        %v6656 = vld [vmem:[#allocation6 + $0x21c] sm:$0xf]
        %v6657 = vld [vmem:[#allocation6 + $0x220] sm:$0xf]
        %v6658 = vld [vmem:[#allocation6 + $0x224] sm:$0xf]
        %v6659 = vld [vmem:[#allocation6 + $0x228] sm:$0xf]
        %v6660 = vld [vmem:[#allocation6 + $0x22c] sm:$0xf]
        %v6661 = vld [vmem:[#allocation6 + $0x230] sm:$0xf]
        %v6662 = vld [vmem:[#allocation6 + $0x234] sm:$0xf]
        %v6663 = vld [vmem:[#allocation6 + $0x238] sm:$0xf]
        %v6664 = vld [vmem:[#allocation6 + $0x23c] sm:$0xf]
        %v6809 = vunpack.c.l.b16 %v6521
        %v6810 = vunpack.c.l.b16 %v6522
        %v6811 = vunpack.c.l.b16 %v6523
        %v6812 = vunpack.c.l.b16 %v6524
        %v6813 = vunpack.c.l.b16 %v6525
        %v6814 = vunpack.c.l.b16 %v6526
        %v6815 = vunpack.c.l.b16 %v6527
        %v6816 = vunpack.c.l.b16 %v6528
        %v6817 = vunpack.c.l.b16 %v6529
        %v6818 = vunpack.c.l.b16 %v6530
        %v6819 = vunpack.c.l.b16 %v6531
        %v6820 = vunpack.c.l.b16 %v6532
        %v6821 = vunpack.c.l.b16 %v6533
        %v6822 = vunpack.c.l.b16 %v6534
        %v6823 = vunpack.c.l.b16 %v6535
        %v6824 = vunpack.c.l.b16 %v6536
        %v6825 = vunpack.c.l.b16 %v6537
        %v6826 = vunpack.c.l.b16 %v6538
        %v6827 = vunpack.c.l.b16 %v6539
        %v6828 = vunpack.c.l.b16 %v6540
        %v6829 = vunpack.c.l.b16 %v6541
        %v6830 = vunpack.c.l.b16 %v6542
        %v6831 = vunpack.c.l.b16 %v6543
        %v6832 = vunpack.c.l.b16 %v6544
        %v6833 = vunpack.c.l.b16 %v6545
        %v6834 = vunpack.c.l.b16 %v6546
        %v6835 = vunpack.c.l.b16 %v6547
        %v6836 = vunpack.c.l.b16 %v6548
        %v6837 = vunpack.c.l.b16 %v6549
        %v6838 = vunpack.c.l.b16 %v6550
        %v6839 = vunpack.c.l.b16 %v6551
        %v6840 = vunpack.c.l.b16 %v6552
        %v6841 = vunpack.c.l.b16 %v6553
        %v6842 = vunpack.c.l.b16 %v6554
        %v6843 = vunpack.c.l.b16 %v6555
        %v6844 = vunpack.c.l.b16 %v6556
        %v6845 = vunpack.c.l.b16 %v6557
        %v6846 = vunpack.c.l.b16 %v6558
        %v6847 = vunpack.c.l.b16 %v6559
        %v6848 = vunpack.c.l.b16 %v6560
        %v6849 = vunpack.c.l.b16 %v6561
        %v6850 = vunpack.c.l.b16 %v6562
        %v6851 = vunpack.c.l.b16 %v6563
        %v6852 = vunpack.c.l.b16 %v6564
        %v6853 = vunpack.c.l.b16 %v6565
        %v6854 = vunpack.c.l.b16 %v6566
        %v6855 = vunpack.c.l.b16 %v6567
        %v6856 = vunpack.c.l.b16 %v6568
        %v6857 = vunpack.c.l.b16 %v6569
        %v6858 = vunpack.c.l.b16 %v6570
        %v6859 = vunpack.c.l.b16 %v6571
        %v6860 = vunpack.c.l.b16 %v6572
        %v6861 = vunpack.c.l.b16 %v6573
        %v6862 = vunpack.c.l.b16 %v6574
        %v6863 = vunpack.c.l.b16 %v6575
        %v6864 = vunpack.c.l.b16 %v6576
        %v6865 = vunpack.c.l.b16 %v6577
        %v6866 = vunpack.c.l.b16 %v6578
        %v6867 = vunpack.c.l.b16 %v6579
        %v6868 = vunpack.c.l.b16 %v6580
        %v6869 = vunpack.c.l.b16 %v6581
        %v6870 = vunpack.c.l.b16 %v6582
        %v6871 = vunpack.c.l.b16 %v6583
        %v6872 = vunpack.c.l.b16 %v6584
        %v6873 = vunpack.c.l.b16 %v6585
        %v6874 = vunpack.c.l.b16 %v6586
        %v6875 = vunpack.c.l.b16 %v6587
        %v6876 = vunpack.c.l.b16 %v6588
        %v6877 = vunpack.c.l.b16 %v6589
        %v6878 = vunpack.c.l.b16 %v6590
        %v6879 = vunpack.c.l.b16 %v6591
        %v6880 = vunpack.c.l.b16 %v6592
        %v6881 = vunpack.c.l.b16 %v6593
        %v6882 = vunpack.c.l.b16 %v6594
        %v6883 = vunpack.c.l.b16 %v6595
        %v6884 = vunpack.c.l.b16 %v6596
        %v6885 = vunpack.c.l.b16 %v6597
        %v6886 = vunpack.c.l.b16 %v6598
        %v6887 = vunpack.c.l.b16 %v6599
        %v6888 = vunpack.c.l.b16 %v6600
        %v6889 = vunpack.c.l.b16 %v6601
        %v6890 = vunpack.c.l.b16 %v6602
        %v6891 = vunpack.c.l.b16 %v6603
        %v6892 = vunpack.c.l.b16 %v6604
        %v6893 = vunpack.c.l.b16 %v6605
        %v6894 = vunpack.c.l.b16 %v6606
        %v6895 = vunpack.c.l.b16 %v6607
        %v6896 = vunpack.c.l.b16 %v6608
        %v6897 = vunpack.c.l.b16 %v6609
        %v6898 = vunpack.c.l.b16 %v6610
        %v6899 = vunpack.c.l.b16 %v6611
        %v6900 = vunpack.c.l.b16 %v6612
        %v6901 = vunpack.c.l.b16 %v6613
        %v6902 = vunpack.c.l.b16 %v6614
        %v6903 = vunpack.c.l.b16 %v6615
        %v6904 = vunpack.c.l.b16 %v6616
        %v6905 = vunpack.c.l.b16 %v6617
        %v6906 = vunpack.c.l.b16 %v6618
        %v6907 = vunpack.c.l.b16 %v6619
        %v6908 = vunpack.c.l.b16 %v6620
        %v6909 = vunpack.c.l.b16 %v6621
        %v6910 = vunpack.c.l.b16 %v6622
        %v6911 = vunpack.c.l.b16 %v6623
        %v6912 = vunpack.c.l.b16 %v6624
        %v6913 = vunpack.c.l.b16 %v6625
        %v6914 = vunpack.c.l.b16 %v6626
        %v6915 = vunpack.c.l.b16 %v6627
        %v6916 = vunpack.c.l.b16 %v6628
        %v6917 = vunpack.c.l.b16 %v6629
        %v6918 = vunpack.c.l.b16 %v6630
        %v6919 = vunpack.c.l.b16 %v6631
        %v6920 = vunpack.c.l.b16 %v6632
        %v6921 = vunpack.c.l.b16 %v6633
        %v6922 = vunpack.c.l.b16 %v6634
        %v6923 = vunpack.c.l.b16 %v6635
        %v6924 = vunpack.c.l.b16 %v6636
        %v6925 = vunpack.c.l.b16 %v6637
        %v6926 = vunpack.c.l.b16 %v6638
        %v6927 = vunpack.c.l.b16 %v6639
        %v6928 = vunpack.c.l.b16 %v6640
        %v6929 = vunpack.c.l.b16 %v6641
        %v6930 = vunpack.c.l.b16 %v6642
        %v6931 = vunpack.c.l.b16 %v6643
        %v6932 = vunpack.c.l.b16 %v6644
        %v6933 = vunpack.c.l.b16 %v6645
        %v6934 = vunpack.c.l.b16 %v6646
        %v6935 = vunpack.c.l.b16 %v6647
        %v6936 = vunpack.c.l.b16 %v6648
        %v6937 = vunpack.c.l.b16 %v6649
        %v6938 = vunpack.c.l.b16 %v6650
        %v6939 = vunpack.c.l.b16 %v6651
        %v6940 = vunpack.c.l.b16 %v6652
        %v6941 = vunpack.c.l.b16 %v6653
        %v6942 = vunpack.c.l.b16 %v6654
        %v6943 = vunpack.c.l.b16 %v6655
        %v6944 = vunpack.c.l.b16 %v6656
        %v6945 = vunpack.c.l.b16 %v6657
        %v6946 = vunpack.c.l.b16 %v6658
        %v6947 = vunpack.c.l.b16 %v6659
        %v6948 = vunpack.c.l.b16 %v6660
        %v6949 = vunpack.c.l.b16 %v6661
        %v6950 = vunpack.c.l.b16 %v6662
        %v6951 = vunpack.c.l.b16 %v6663
        %v6952 = vunpack.c.l.b16 %v6664
        %v6953 = vpack.c.b16 %v6810, %v6809
        %v6954 = vpack.c.b16 %v6812, %v6811
        %v6955 = vpack.c.b16 %v6814, %v6813
        %v6956 = vpack.c.b16 %v6816, %v6815
        %v6957 = vpack.c.b16 %v6818, %v6817
        %v6958 = vpack.c.b16 %v6820, %v6819
        %v6959 = vpack.c.b16 %v6822, %v6821
        %v6960 = vpack.c.b16 %v6824, %v6823
        %v6961 = vpack.c.b16 %v6826, %v6825
        %v6962 = vpack.c.b16 %v6828, %v6827
        %v6963 = vpack.c.b16 %v6830, %v6829
        %v6964 = vpack.c.b16 %v6832, %v6831
        %v6965 = vpack.c.b16 %v6834, %v6833
        %v6966 = vpack.c.b16 %v6836, %v6835
        %v6967 = vpack.c.b16 %v6838, %v6837
        %v6968 = vpack.c.b16 %v6840, %v6839
        %v6969 = vpack.c.b16 %v6842, %v6841
        %v6970 = vpack.c.b16 %v6844, %v6843
        %v6971 = vpack.c.b16 %v6846, %v6845
        %v6972 = vpack.c.b16 %v6848, %v6847
        %v6973 = vpack.c.b16 %v6850, %v6849
        %v6974 = vpack.c.b16 %v6852, %v6851
        %v6975 = vpack.c.b16 %v6854, %v6853
        %v6976 = vpack.c.b16 %v6856, %v6855
        %v6977 = vpack.c.b16 %v6858, %v6857
        %v6978 = vpack.c.b16 %v6860, %v6859
        %v6979 = vpack.c.b16 %v6862, %v6861
        %v6980 = vpack.c.b16 %v6864, %v6863
        %v6981 = vpack.c.b16 %v6866, %v6865
        %v6982 = vpack.c.b16 %v6868, %v6867
        %v6983 = vpack.c.b16 %v6870, %v6869
        %v6984 = vpack.c.b16 %v6872, %v6871
        %v6985 = vpack.c.b16 %v6874, %v6873
        %v6986 = vpack.c.b16 %v6876, %v6875
        %v6987 = vpack.c.b16 %v6878, %v6877
        %v6988 = vpack.c.b16 %v6880, %v6879
        %v6989 = vpack.c.b16 %v6882, %v6881
        %v6990 = vpack.c.b16 %v6884, %v6883
        %v6991 = vpack.c.b16 %v6886, %v6885
        %v6992 = vpack.c.b16 %v6888, %v6887
        %v6993 = vpack.c.b16 %v6890, %v6889
        %v6994 = vpack.c.b16 %v6892, %v6891
        %v6995 = vpack.c.b16 %v6894, %v6893
        %v6996 = vpack.c.b16 %v6896, %v6895
        %v6997 = vpack.c.b16 %v6898, %v6897
        %v6998 = vpack.c.b16 %v6900, %v6899
        %v6999 = vpack.c.b16 %v6902, %v6901
        %v7000 = vpack.c.b16 %v6904, %v6903
        %v7001 = vpack.c.b16 %v6906, %v6905
        %v7002 = vpack.c.b16 %v6908, %v6907
        %v7003 = vpack.c.b16 %v6910, %v6909
        %v7004 = vpack.c.b16 %v6912, %v6911
        %v7005 = vpack.c.b16 %v6914, %v6913
        %v7006 = vpack.c.b16 %v6916, %v6915
        %v7007 = vpack.c.b16 %v6918, %v6917
        %v7008 = vpack.c.b16 %v6920, %v6919
        %v7009 = vpack.c.b16 %v6922, %v6921
        %v7010 = vpack.c.b16 %v6924, %v6923
        %v7011 = vpack.c.b16 %v6926, %v6925
        %v7012 = vpack.c.b16 %v6928, %v6927
        %v7013 = vpack.c.b16 %v6930, %v6929
        %v7014 = vpack.c.b16 %v6932, %v6931
        %v7015 = vpack.c.b16 %v6934, %v6933
        %v7016 = vpack.c.b16 %v6936, %v6935
        %v7017 = vpack.c.b16 %v6938, %v6937
        %v7018 = vpack.c.b16 %v6940, %v6939
        %v7019 = vpack.c.b16 %v6942, %v6941
        %v7020 = vpack.c.b16 %v6944, %v6943
        %v7021 = vpack.c.b16 %v6946, %v6945
        %v7022 = vpack.c.b16 %v6948, %v6947
        %v7023 = vpack.c.b16 %v6950, %v6949
        %v7024 = vpack.c.b16 %v6952, %v6951
        %7097 = vmatprep.subr.bf16.mxu0 0
        %7098 = vmatpush1.bf16.msra.mxu0 %v6953
        %7099 = vmatprep.subr.bf16.mxu0 0
        %7100 = vmatpush1.bf16.msra.mxu0 %v6954
        %7101 = vmatprep.subr.bf16.mxu0 0
        %7102 = vmatpush1.bf16.msra.mxu0 %v6955
        %7103 = vmatprep.subr.bf16.mxu0 0
        %7104 = vmatpush1.bf16.msra.mxu0 %v6956
        %7105 = vmatprep.subr.bf16.mxu0 0
        %7106 = vmatpush1.bf16.msra.mxu0 %v6957
        %7107 = vmatprep.subr.bf16.mxu0 0
        %7108 = vmatpush1.bf16.msra.mxu0 %v6958
        %7109 = vmatprep.subr.bf16.mxu0 0
        %7110 = vmatpush1.bf16.msra.mxu0 %v6959
        %7111 = vmatprep.subr.bf16.mxu0 0
        %7112 = vmatpush1.bf16.msra.mxu0 %v6960
        %7113 = vmatprep.subr.bf16.mxu0 0
        %7114 = vmatpush1.bf16.msra.mxu0 %v6961
        %7115 = vmatprep.subr.bf16.mxu0 0
        %7116 = vmatpush1.bf16.msra.mxu0 %v6962
        %7117 = vmatprep.subr.bf16.mxu0 0
        %7118 = vmatpush1.bf16.msra.mxu0 %v6963
        %7119 = vmatprep.subr.bf16.mxu0 0
        %7120 = vmatpush1.bf16.msra.mxu0 %v6964
        %7121 = vmatprep.subr.bf16.mxu0 0
        %7122 = vmatpush1.bf16.msra.mxu0 %v6965
        %7123 = vmatprep.subr.bf16.mxu0 0
        %7124 = vmatpush1.bf16.msra.mxu0 %v6966
        %7125 = vmatprep.subr.bf16.mxu0 0
        %7126 = vmatpush1.bf16.msra.mxu0 %v6967
        %7127 = vmatprep.subr.bf16.mxu0 0
        %7128 = vmatpush1.bf16.msra.mxu0 %v6968
        %7129 = vmatprep.mubr.bf16.mxu0 %v6306
        %7130 = vmatmul.mubr.bf16.gmra.mrb[0].mxu0 %v6305
        %v7131 = vpop.f32.mrb[0].mxu0
        %v7132 = vadd.f32 0.0, %v7131
        %v7133 = vpop.f32.mrb[0].mxu0
        %v7134 = vpop.f32.mrb[0].mxu0
        %v7135 = vadd.f32 0.0, %v7134
        %v7136 = vpop.f32.mrb[0].mxu0
        %7137 = vmatprep.mubr.bf16.mxu0 %v6315
        %7138 = vmatmul.mubr.bf16.gmra.mrb[0].mxu0 %v6314
        %v7139 = vpop.f32.mrb[0].mxu0
        %v7140 = vadd.f32 0.0, %v7139
        %v7141 = vpop.f32.mrb[0].mxu0
        %v7142 = vpop.f32.mrb[0].mxu0
        %v7143 = vadd.f32 0.0, %v7142
        %v7144 = vpop.f32.mrb[0].mxu0
        %7145 = vmatprep.mubr.bf16.mxu0 %v6324
        %7146 = vmatmul.mubr.bf16.gmra.mrb[0].mxu0 %v6323
        %v7147 = vpop.f32.mrb[0].mxu0
        %v7148 = vadd.f32 0.0, %v7147
        %v7149 = vpop.f32.mrb[0].mxu0
        %v7150 = vpop.f32.mrb[0].mxu0
        %v7151 = vadd.f32 0.0, %v7150
        %v7152 = vpop.f32.mrb[0].mxu0
        %7153 = vmatprep.mubr.bf16.mxu0 %v6333
        %7154 = vmatmul.mubr.bf16.gmra.mrb[0].mxu0 %v6332
        %v7155 = vpop.f32.mrb[0].mxu0
        %v7156 = vadd.f32 0.0, %v7155
        %v7157 = vpop.f32.mrb[0].mxu0
        %v7158 = vpop.f32.mrb[0].mxu0
        %v7159 = vadd.f32 0.0, %v7158
        %v7160 = vpop.f32.mrb[0].mxu0
        %7161 = vmatprep.mubr.bf16.mxu0 %v6342
        %7162 = vmatmul.mubr.bf16.gmra.mrb[0].mxu0 %v6341
        %v7163 = vpop.f32.mrb[0].mxu0
        %v7164 = vadd.f32 0.0, %v7163
        %v7165 = vpop.f32.mrb[0].mxu0
        %v7166 = vpop.f32.mrb[0].mxu0
        %v7167 = vadd.f32 0.0, %v7166
        %v7168 = vpop.f32.mrb[0].mxu0
        %7169 = vmatprep.mubr.bf16.mxu0 %v6351
        %7170 = vmatmul.mubr.bf16.gmra.mrb[0].mxu0 %v6350
        %v7171 = vpop.f32.mrb[0].mxu0
        %v7172 = vadd.f32 0.0, %v7171
        %v7173 = vpop.f32.mrb[0].mxu0
        %v7174 = vpop.f32.mrb[0].mxu0
        %v7175 = vadd.f32 0.0, %v7174
        %v7176 = vpop.f32.mrb[0].mxu0
        %7177 = vmatprep.mubr.bf16.mxu0 %v6360
        %7178 = vmatmul.mubr.bf16.gmra.mrb[0].mxu0 %v6359
        %v7179 = vpop.f32.mrb[0].mxu0
        %v7180 = vadd.f32 0.0, %v7179
        %v7181 = vpop.f32.mrb[0].mxu0
        %v7182 = vpop.f32.mrb[0].mxu0
        %v7183 = vadd.f32 0.0, %v7182
        %v7184 = vpop.f32.mrb[0].mxu0
        %7185 = vmatprep.mubr.bf16.mxu0 %v6369
        %7186 = vmatmul.mubr.bf16.gmra.mrb[0].mxu0 %v6368
        %v7187 = vpop.f32.mrb[0].mxu0
        %v7188 = vadd.f32 0.0, %v7187
        %v7189 = vpop.f32.mrb[0].mxu0
        %v7190 = vpop.f32.mrb[0].mxu0
        %v7191 = vadd.f32 0.0, %v7190
        %v7192 = vpop.f32.mrb[0].mxu0
        %7193 = vmatprep.mubr.bf16.mxu0 %v6378
        %7194 = vmatmul.mubr.bf16.gmra.mrb[0].mxu0 %v6377
        %v7195 = vpop.f32.mrb[0].mxu0
        %v7196 = vadd.f32 0.0, %v7195
        %v7197 = vpop.f32.mrb[0].mxu0
        %v7198 = vpop.f32.mrb[0].mxu0
        %v7199 = vadd.f32 0.0, %v7198
        %v7200 = vpop.f32.mrb[0].mxu0
        %7201 = vmatprep.mubr.bf16.mxu0 %v6387
        %7202 = vmatmul.mubr.bf16.gmra.mrb[0].mxu0 %v6386
        %v7203 = vpop.f32.mrb[0].mxu0
        %v7204 = vadd.f32 0.0, %v7203
        %v7205 = vpop.f32.mrb[0].mxu0
        %v7206 = vpop.f32.mrb[0].mxu0
        %v7207 = vadd.f32 0.0, %v7206
        %v7208 = vpop.f32.mrb[0].mxu0
        %7209 = vmatprep.mubr.bf16.mxu0 %v6396
        %7210 = vmatmul.mubr.bf16.gmra.mrb[0].mxu0 %v6395
        %v7211 = vpop.f32.mrb[0].mxu0
        %v7212 = vadd.f32 0.0, %v7211
        %v7213 = vpop.f32.mrb[0].mxu0
        %v7214 = vpop.f32.mrb[0].mxu0
        %v7215 = vadd.f32 0.0, %v7214
        %v7216 = vpop.f32.mrb[0].mxu0
        %7217 = vmatprep.mubr.bf16.mxu0 %v6405
        %7218 = vmatmul.mubr.bf16.gmra.mrb[0].mxu0 %v6404
        %v7219 = vpop.f32.mrb[0].mxu0
        %v7220 = vadd.f32 0.0, %v7219
        %v7221 = vpop.f32.mrb[0].mxu0
        %v7222 = vpop.f32.mrb[0].mxu0
        %v7223 = vadd.f32 0.0, %v7222
        %v7224 = vpop.f32.mrb[0].mxu0
        %7225 = vmatprep.mubr.bf16.mxu0 %v6414
        %7226 = vmatmul.mubr.bf16.gmra.mrb[0].mxu0 %v6413
        %v7227 = vpop.f32.mrb[0].mxu0
        %v7228 = vadd.f32 0.0, %v7227
        %v7229 = vpop.f32.mrb[0].mxu0
        %v7230 = vpop.f32.mrb[0].mxu0
        %v7231 = vadd.f32 0.0, %v7230
        %v7232 = vpop.f32.mrb[0].mxu0
        %7233 = vmatprep.mubr.bf16.mxu0 %v6423
        %7234 = vmatmul.mubr.bf16.gmra.mrb[0].mxu0 %v6422
        %v7235 = vpop.f32.mrb[0].mxu0
        %v7236 = vadd.f32 0.0, %v7235
        %v7237 = vpop.f32.mrb[0].mxu0
        %v7238 = vpop.f32.mrb[0].mxu0
        %v7239 = vadd.f32 0.0, %v7238
        %v7240 = vpop.f32.mrb[0].mxu0
        %7241 = vmatprep.mubr.bf16.mxu0 %v6432
        %7242 = vmatmul.mubr.bf16.gmra.mrb[0].mxu0 %v6431
        %v7243 = vpop.f32.mrb[0].mxu0
        %v7244 = vadd.f32 0.0, %v7243
        %v7245 = vpop.f32.mrb[0].mxu0
        %v7246 = vpop.f32.mrb[0].mxu0
        %v7247 = vadd.f32 0.0, %v7246
        %v7248 = vpop.f32.mrb[0].mxu0
        %7249 = vmatprep.mubr.bf16.mxu0 %v6441
        %7250 = vmatmul.mubr.bf16.gmra.mrb[0].mxu0 %v6440
        %v7251 = vpop.f32.mrb[0].mxu0
        %v7252 = vadd.f32 0.0, %v7251
        %v7253 = vpop.f32.mrb[0].mxu0
        %v7254 = vpop.f32.mrb[0].mxu0
        %v7255 = vadd.f32 0.0, %v7254
        %v7256 = vpop.f32.mrb[0].mxu0
        %7257 = vmatprep.mubr.bf16.mxu0 %v6450
        %7258 = vmatmul.mubr.bf16.gmra.mrb[0].mxu0 %v6449
        %v7259 = vpop.f32.mrb[0].mxu0
        %v7260 = vadd.f32 0.0, %v7259
        %v7261 = vpop.f32.mrb[0].mxu0
        %v7262 = vpop.f32.mrb[0].mxu0
        %v7263 = vadd.f32 0.0, %v7262
        %v7264 = vpop.f32.mrb[0].mxu0
        %7265 = vmatprep.mubr.bf16.mxu0 %v6459
        %7266 = vmatmul.mubr.bf16.gmra.mrb[0].mxu0 %v6458
        %v7267 = vpop.f32.mrb[0].mxu0
        %v7268 = vadd.f32 0.0, %v7267
        %v7269 = vpop.f32.mrb[0].mxu0
        %v7270 = vpop.f32.mrb[0].mxu0
        %v7271 = vadd.f32 0.0, %v7270
        %v7272 = vpop.f32.mrb[0].mxu0
        %7273 = vmatprep.mubr.bf16.mxu0 %v6468
        %7274 = vmatmul.mubr.bf16.gmra.mrb[0].mxu0 %v6467
        %v7275 = vpop.f32.mrb[0].mxu0
        %v7276 = vadd.f32 0.0, %v7275
        %v7277 = vpop.f32.mrb[0].mxu0
        %v7278 = vpop.f32.mrb[0].mxu0
        %v7279 = vadd.f32 0.0, %v7278
        %v7280 = vpop.f32.mrb[0].mxu0
        %7281 = vmatprep.mubr.bf16.mxu0 %v6477
        %7282 = vmatmul.mubr.bf16.gmra.mrb[0].mxu0 %v6476
        %v7283 = vpop.f32.mrb[0].mxu0
        %v7284 = vadd.f32 0.0, %v7283
        %v7285 = vpop.f32.mrb[0].mxu0
        %v7286 = vpop.f32.mrb[0].mxu0
        %v7287 = vadd.f32 0.0, %v7286
        %v7288 = vpop.f32.mrb[0].mxu0
        %7289 = vmatprep.mubr.bf16.mxu0 %v6486
        %7290 = vmatmul.mubr.bf16.gmra.mrb[0].mxu0 %v6485
        %v7291 = vpop.f32.mrb[0].mxu0
        %v7292 = vadd.f32 0.0, %v7291
        %v7293 = vpop.f32.mrb[0].mxu0
        %v7294 = vpop.f32.mrb[0].mxu0
        %v7295 = vadd.f32 0.0, %v7294
        %v7296 = vpop.f32.mrb[0].mxu0
        %7297 = vmatprep.mubr.bf16.mxu0 %v6495
        %7298 = vmatmul.mubr.bf16.gmra.mrb[0].mxu0 %v6494
        %v7299 = vpop.f32.mrb[0].mxu0
        %v7300 = vadd.f32 0.0, %v7299
        %v7301 = vpop.f32.mrb[0].mxu0
        %v7302 = vpop.f32.mrb[0].mxu0
        %v7303 = vadd.f32 0.0, %v7302
        %v7304 = vpop.f32.mrb[0].mxu0
        %7305 = vmatprep.mubr.bf16.mxu0 %v6504
        %7306 = vmatmul.mubr.bf16.gmra.mrb[0].mxu0 %v6503
        %v7307 = vpop.f32.mrb[0].mxu0
        %v7308 = vadd.f32 0.0, %v7307
        %v7309 = vpop.f32.mrb[0].mxu0
        %v7310 = vpop.f32.mrb[0].mxu0
        %v7311 = vadd.f32 0.0, %v7310
        %v7312 = vpop.f32.mrb[0].mxu0
        %7313 = vmatprep.mubr.bf16.mxu0 %v6513
        %7314 = vmatmul.mubr.bf16.gmra.mrb[0].mxu0 %v6512
        %v7315 = vpop.f32.mrb[0].mxu0
        %v7316 = vadd.f32 0.0, %v7315
        %v7317 = vpop.f32.mrb[0].mxu0
        %v7318 = vpop.f32.mrb[0].mxu0
        %v7319 = vadd.f32 0.0, %v7318
        %v7320 = vpop.f32.mrb[0].mxu0
        %7321 = vdwg.mxu0
        %7322 = vmatprep.subr.bf16.mxu0 0
        %7323 = vmatpush1.bf16.msra.mxu0 %v6969
        %7324 = vmatprep.subr.bf16.mxu0 0
        %7325 = vmatpush1.bf16.msra.mxu0 %v6970
        %7326 = vmatprep.subr.bf16.mxu0 0
        %7327 = vmatpush1.bf16.msra.mxu0 %v6971
        %7328 = vmatprep.subr.bf16.mxu0 0
        %7329 = vmatpush1.bf16.msra.mxu0 %v6972
        %7330 = vmatprep.subr.bf16.mxu0 0
        %7331 = vmatpush1.bf16.msra.mxu0 %v6973
        %7332 = vmatprep.subr.bf16.mxu0 0
        %7333 = vmatpush1.bf16.msra.mxu0 %v6974
        %7334 = vmatprep.subr.bf16.mxu0 0
        %7335 = vmatpush1.bf16.msra.mxu0 %v6975
        %7336 = vmatprep.subr.bf16.mxu0 0
        %7337 = vmatpush1.bf16.msra.mxu0 %v6976
        %7338 = vmatprep.subr.bf16.mxu0 0
        %7339 = vmatpush1.bf16.msra.mxu0 %v6977
        %7340 = vmatprep.subr.bf16.mxu0 0
        %7341 = vmatpush1.bf16.msra.mxu0 %v6978
        %7342 = vmatprep.subr.bf16.mxu0 0
        %7343 = vmatpush1.bf16.msra.mxu0 %v6979
        %7344 = vmatprep.subr.bf16.mxu0 0
        %7345 = vmatpush1.bf16.msra.mxu0 %v6980
        %7346 = vmatprep.subr.bf16.mxu0 0
        %7347 = vmatpush1.bf16.msra.mxu0 %v6981
        %7348 = vmatprep.subr.bf16.mxu0 0
        %7349 = vmatpush1.bf16.msra.mxu0 %v6982
        %7350 = vmatprep.subr.bf16.mxu0 0
        %7351 = vmatpush1.bf16.msra.mxu0 %v6983
        %7352 = vmatprep.subr.bf16.mxu0 0
        %7353 = vmatpush1.bf16.msra.mxu0 %v6984
        %7354 = vmatprep.mubr.bf16.mxu0 %v6308
        %7355 = vmatmul.mubr.bf16.gmra.mrb[0].mxu0 %v6307
        %v7356 = vpop.f32.mrb[0].mxu0
        %v7357 = vadd.f32 %v7132, %v7356
        %v7358 = vpop.f32.mrb[0].mxu0
        %v7359 = vpop.f32.mrb[0].mxu0
        %v7360 = vadd.f32 %v7135, %v7359
        %v7361 = vpop.f32.mrb[0].mxu0
        %7362 = vmatprep.mubr.bf16.mxu0 %v6317
        %7363 = vmatmul.mubr.bf16.gmra.mrb[0].mxu0 %v6316
        %v7364 = vpop.f32.mrb[0].mxu0
        %v7365 = vadd.f32 %v7140, %v7364
        %v7366 = vpop.f32.mrb[0].mxu0
        %v7367 = vpop.f32.mrb[0].mxu0
        %v7368 = vadd.f32 %v7143, %v7367
        %v7369 = vpop.f32.mrb[0].mxu0
        %7370 = vmatprep.mubr.bf16.mxu0 %v6326
        %7371 = vmatmul.mubr.bf16.gmra.mrb[0].mxu0 %v6325
        %v7372 = vpop.f32.mrb[0].mxu0
        %v7373 = vadd.f32 %v7148, %v7372
        %v7374 = vpop.f32.mrb[0].mxu0
        %v7375 = vpop.f32.mrb[0].mxu0
        %v7376 = vadd.f32 %v7151, %v7375
        %v7377 = vpop.f32.mrb[0].mxu0
        %7378 = vmatprep.mubr.bf16.mxu0 %v6335
        %7379 = vmatmul.mubr.bf16.gmra.mrb[0].mxu0 %v6334
        %v7380 = vpop.f32.mrb[0].mxu0
        %v7381 = vadd.f32 %v7156, %v7380
        %v7382 = vpop.f32.mrb[0].mxu0
        %v7383 = vpop.f32.mrb[0].mxu0
        %v7384 = vadd.f32 %v7159, %v7383
        %v7385 = vpop.f32.mrb[0].mxu0
        %7386 = vmatprep.mubr.bf16.mxu0 %v6344
        %7387 = vmatmul.mubr.bf16.gmra.mrb[0].mxu0 %v6343
        %v7388 = vpop.f32.mrb[0].mxu0
        %v7389 = vadd.f32 %v7164, %v7388
        %v7390 = vpop.f32.mrb[0].mxu0
        %v7391 = vpop.f32.mrb[0].mxu0
        %v7392 = vadd.f32 %v7167, %v7391
        %v7393 = vpop.f32.mrb[0].mxu0
        %7394 = vmatprep.mubr.bf16.mxu0 %v6353
        %7395 = vmatmul.mubr.bf16.gmra.mrb[0].mxu0 %v6352
        %v7396 = vpop.f32.mrb[0].mxu0
        %v7397 = vadd.f32 %v7172, %v7396
        %v7398 = vpop.f32.mrb[0].mxu0
        %v7399 = vpop.f32.mrb[0].mxu0
        %v7400 = vadd.f32 %v7175, %v7399
        %v7401 = vpop.f32.mrb[0].mxu0
        %7402 = vmatprep.mubr.bf16.mxu0 %v6362
        %7403 = vmatmul.mubr.bf16.gmra.mrb[0].mxu0 %v6361
        %v7404 = vpop.f32.mrb[0].mxu0
        %v7405 = vadd.f32 %v7180, %v7404
        %v7406 = vpop.f32.mrb[0].mxu0
        %v7407 = vpop.f32.mrb[0].mxu0
        %v7408 = vadd.f32 %v7183, %v7407
        %v7409 = vpop.f32.mrb[0].mxu0
        %7410 = vmatprep.mubr.bf16.mxu0 %v6371
        %7411 = vmatmul.mubr.bf16.gmra.mrb[0].mxu0 %v6370
        %v7412 = vpop.f32.mrb[0].mxu0
        %v7413 = vadd.f32 %v7188, %v7412
        %v7414 = vpop.f32.mrb[0].mxu0
        %v7415 = vpop.f32.mrb[0].mxu0
        %v7416 = vadd.f32 %v7191, %v7415
        %v7417 = vpop.f32.mrb[0].mxu0
        %7418 = vmatprep.mubr.bf16.mxu0 %v6380
        %7419 = vmatmul.mubr.bf16.gmra.mrb[0].mxu0 %v6379
        %v7420 = vpop.f32.mrb[0].mxu0
        %v7421 = vadd.f32 %v7196, %v7420
        %v7422 = vpop.f32.mrb[0].mxu0
        %v7423 = vpop.f32.mrb[0].mxu0
        %v7424 = vadd.f32 %v7199, %v7423
        %v7425 = vpop.f32.mrb[0].mxu0
        %7426 = vmatprep.mubr.bf16.mxu0 %v6389
        %7427 = vmatmul.mubr.bf16.gmra.mrb[0].mxu0 %v6388
        %v7428 = vpop.f32.mrb[0].mxu0
        %v7429 = vadd.f32 %v7204, %v7428
        %v7430 = vpop.f32.mrb[0].mxu0
        %v7431 = vpop.f32.mrb[0].mxu0
        %v7432 = vadd.f32 %v7207, %v7431
        %v7433 = vpop.f32.mrb[0].mxu0
        %7434 = vmatprep.mubr.bf16.mxu0 %v6398
        %7435 = vmatmul.mubr.bf16.gmra.mrb[0].mxu0 %v6397
        %v7436 = vpop.f32.mrb[0].mxu0
        %v7437 = vadd.f32 %v7212, %v7436
        %v7438 = vpop.f32.mrb[0].mxu0
        %v7439 = vpop.f32.mrb[0].mxu0
        %v7440 = vadd.f32 %v7215, %v7439
        %v7441 = vpop.f32.mrb[0].mxu0
        %7442 = vmatprep.mubr.bf16.mxu0 %v6407
        %7443 = vmatmul.mubr.bf16.gmra.mrb[0].mxu0 %v6406
        %v7444 = vpop.f32.mrb[0].mxu0
        %v7445 = vadd.f32 %v7220, %v7444
        %v7446 = vpop.f32.mrb[0].mxu0
        %v7447 = vpop.f32.mrb[0].mxu0
        %v7448 = vadd.f32 %v7223, %v7447
        %v7449 = vpop.f32.mrb[0].mxu0
        %7450 = vmatprep.mubr.bf16.mxu0 %v6416
        %7451 = vmatmul.mubr.bf16.gmra.mrb[0].mxu0 %v6415
        %v7452 = vpop.f32.mrb[0].mxu0
        %v7453 = vadd.f32 %v7228, %v7452
        %v7454 = vpop.f32.mrb[0].mxu0
        %v7455 = vpop.f32.mrb[0].mxu0
        %v7456 = vadd.f32 %v7231, %v7455
        %v7457 = vpop.f32.mrb[0].mxu0
        %7458 = vmatprep.mubr.bf16.mxu0 %v6425
        %7459 = vmatmul.mubr.bf16.gmra.mrb[0].mxu0 %v6424
        %v7460 = vpop.f32.mrb[0].mxu0
        %v7461 = vadd.f32 %v7236, %v7460
        %v7462 = vpop.f32.mrb[0].mxu0
        %v7463 = vpop.f32.mrb[0].mxu0
        %v7464 = vadd.f32 %v7239, %v7463
        %v7465 = vpop.f32.mrb[0].mxu0
        %7466 = vmatprep.mubr.bf16.mxu0 %v6434
        %7467 = vmatmul.mubr.bf16.gmra.mrb[0].mxu0 %v6433
        %v7468 = vpop.f32.mrb[0].mxu0
        %v7469 = vadd.f32 %v7244, %v7468
        %v7470 = vpop.f32.mrb[0].mxu0
        %v7471 = vpop.f32.mrb[0].mxu0
        %v7472 = vadd.f32 %v7247, %v7471
        %v7473 = vpop.f32.mrb[0].mxu0
        %7474 = vmatprep.mubr.bf16.mxu0 %v6443
        %7475 = vmatmul.mubr.bf16.gmra.mrb[0].mxu0 %v6442
        %v7476 = vpop.f32.mrb[0].mxu0
        %v7477 = vadd.f32 %v7252, %v7476
        %v7478 = vpop.f32.mrb[0].mxu0
        %v7479 = vpop.f32.mrb[0].mxu0
        %v7480 = vadd.f32 %v7255, %v7479
        %v7481 = vpop.f32.mrb[0].mxu0
        %7482 = vmatprep.mubr.bf16.mxu0 %v6452
        %7483 = vmatmul.mubr.bf16.gmra.mrb[0].mxu0 %v6451
        %v7484 = vpop.f32.mrb[0].mxu0
        %v7485 = vadd.f32 %v7260, %v7484
        %v7486 = vpop.f32.mrb[0].mxu0
        %v7487 = vpop.f32.mrb[0].mxu0
        %v7488 = vadd.f32 %v7263, %v7487
        %v7489 = vpop.f32.mrb[0].mxu0
        %7490 = vmatprep.mubr.bf16.mxu0 %v6461
        %7491 = vmatmul.mubr.bf16.gmra.mrb[0].mxu0 %v6460
        %v7492 = vpop.f32.mrb[0].mxu0
        %v7493 = vadd.f32 %v7268, %v7492
        %v7494 = vpop.f32.mrb[0].mxu0
        %v7495 = vpop.f32.mrb[0].mxu0
        %v7496 = vadd.f32 %v7271, %v7495
        %v7497 = vpop.f32.mrb[0].mxu0
        %7498 = vmatprep.mubr.bf16.mxu0 %v6470
        %7499 = vmatmul.mubr.bf16.gmra.mrb[0].mxu0 %v6469
        %v7500 = vpop.f32.mrb[0].mxu0
        %v7501 = vadd.f32 %v7276, %v7500
        %v7502 = vpop.f32.mrb[0].mxu0
        %v7503 = vpop.f32.mrb[0].mxu0
        %v7504 = vadd.f32 %v7279, %v7503
        %v7505 = vpop.f32.mrb[0].mxu0
        %7506 = vmatprep.mubr.bf16.mxu0 %v6479
        %7507 = vmatmul.mubr.bf16.gmra.mrb[0].mxu0 %v6478
        %v7508 = vpop.f32.mrb[0].mxu0
        %v7509 = vadd.f32 %v7284, %v7508
        %v7510 = vpop.f32.mrb[0].mxu0
        %v7511 = vpop.f32.mrb[0].mxu0
        %v7512 = vadd.f32 %v7287, %v7511
        %v7513 = vpop.f32.mrb[0].mxu0
        %7514 = vmatprep.mubr.bf16.mxu0 %v6488
        %7515 = vmatmul.mubr.bf16.gmra.mrb[0].mxu0 %v6487
        %v7516 = vpop.f32.mrb[0].mxu0
        %v7517 = vadd.f32 %v7292, %v7516
        %v7518 = vpop.f32.mrb[0].mxu0
        %v7519 = vpop.f32.mrb[0].mxu0
        %v7520 = vadd.f32 %v7295, %v7519
        %v7521 = vpop.f32.mrb[0].mxu0
        %7522 = vmatprep.mubr.bf16.mxu0 %v6497
        %7523 = vmatmul.mubr.bf16.gmra.mrb[0].mxu0 %v6496
        %v7524 = vpop.f32.mrb[0].mxu0
        %v7525 = vadd.f32 %v7300, %v7524
        %v7526 = vpop.f32.mrb[0].mxu0
        %v7527 = vpop.f32.mrb[0].mxu0
        %v7528 = vadd.f32 %v7303, %v7527
        %v7529 = vpop.f32.mrb[0].mxu0
        %7530 = vmatprep.mubr.bf16.mxu0 %v6506
        %7531 = vmatmul.mubr.bf16.gmra.mrb[0].mxu0 %v6505
        %v7532 = vpop.f32.mrb[0].mxu0
        %v7533 = vadd.f32 %v7308, %v7532
        %v7534 = vpop.f32.mrb[0].mxu0
        %v7535 = vpop.f32.mrb[0].mxu0
        %v7536 = vadd.f32 %v7311, %v7535
        %v7537 = vpop.f32.mrb[0].mxu0
        %7538 = vmatprep.mubr.bf16.mxu0 %v6515
        %7539 = vmatmul.mubr.bf16.gmra.mrb[0].mxu0 %v6514
        %v7540 = vpop.f32.mrb[0].mxu0
        %v7541 = vadd.f32 %v7316, %v7540
        %v7542 = vpop.f32.mrb[0].mxu0
        %v7543 = vpop.f32.mrb[0].mxu0
        %v7544 = vadd.f32 %v7319, %v7543
        %v7545 = vpop.f32.mrb[0].mxu0
        %7546 = vdwg.mxu0
        %7547 = vmatprep.subr.bf16.mxu0 0
        %7548 = vmatpush1.bf16.msra.mxu0 %v6985
        %7549 = vmatprep.subr.bf16.mxu0 0
        %7550 = vmatpush1.bf16.msra.mxu0 %v6986
        %7551 = vmatprep.subr.bf16.mxu0 0
        %7552 = vmatpush1.bf16.msra.mxu0 %v6987
        %7553 = vmatprep.subr.bf16.mxu0 0
        %7554 = vmatpush1.bf16.msra.mxu0 %v6988
        %7555 = vmatprep.subr.bf16.mxu0 0
        %7556 = vmatpush1.bf16.msra.mxu0 %v6989
        %7557 = vmatprep.subr.bf16.mxu0 0
        %7558 = vmatpush1.bf16.msra.mxu0 %v6990
        %7559 = vmatprep.subr.bf16.mxu0 0
        %7560 = vmatpush1.bf16.msra.mxu0 %v6991
        %7561 = vmatprep.subr.bf16.mxu0 0
        %7562 = vmatpush1.bf16.msra.mxu0 %v6992
        %7563 = vmatprep.subr.bf16.mxu0 0
        %7564 = vmatpush1.bf16.msra.mxu0 %v6993
        %7565 = vmatprep.subr.bf16.mxu0 0
        %7566 = vmatpush1.bf16.msra.mxu0 %v6994
        %7567 = vmatprep.subr.bf16.mxu0 0
        %7568 = vmatpush1.bf16.msra.mxu0 %v6995
        %7569 = vmatprep.subr.bf16.mxu0 0
        %7570 = vmatpush1.bf16.msra.mxu0 %v6996
        %7571 = vmatprep.subr.bf16.mxu0 0
        %7572 = vmatpush1.bf16.msra.mxu0 %v6997
        %7573 = vmatprep.subr.bf16.mxu0 0
        %7574 = vmatpush1.bf16.msra.mxu0 %v6998
        %7575 = vmatprep.subr.bf16.mxu0 0
        %7576 = vmatpush1.bf16.msra.mxu0 %v6999
        %7577 = vmatprep.subr.bf16.mxu0 0
        %7578 = vmatpush1.bf16.msra.mxu0 %v7000
        %7579 = vmatprep.mubr.bf16.mxu0 %v6310
        %7580 = vmatmul.mubr.bf16.gmra.mrb[0].mxu0 %v6309
        %v7581 = vpop.f32.mrb[0].mxu0
        %v7582 = vadd.f32 %v7357, %v7581
        %v7583 = vpop.f32.mrb[0].mxu0
        %v7584 = vpop.f32.mrb[0].mxu0
        %v7585 = vadd.f32 %v7360, %v7584
        %v7586 = vpop.f32.mrb[0].mxu0
        %7587 = vmatprep.mubr.bf16.mxu0 %v6319
        %7588 = vmatmul.mubr.bf16.gmra.mrb[0].mxu0 %v6318
        %v7589 = vpop.f32.mrb[0].mxu0
        %v7590 = vadd.f32 %v7365, %v7589
        %v7591 = vpop.f32.mrb[0].mxu0
        %v7592 = vpop.f32.mrb[0].mxu0
        %v7593 = vadd.f32 %v7368, %v7592
        %v7594 = vpop.f32.mrb[0].mxu0
        %7595 = vmatprep.mubr.bf16.mxu0 %v6328
        %7596 = vmatmul.mubr.bf16.gmra.mrb[0].mxu0 %v6327
        %v7597 = vpop.f32.mrb[0].mxu0
        %v7598 = vadd.f32 %v7373, %v7597
        %v7599 = vpop.f32.mrb[0].mxu0
        %v7600 = vpop.f32.mrb[0].mxu0
        %v7601 = vadd.f32 %v7376, %v7600
        %v7602 = vpop.f32.mrb[0].mxu0
        %7603 = vmatprep.mubr.bf16.mxu0 %v6337
        %7604 = vmatmul.mubr.bf16.gmra.mrb[0].mxu0 %v6336
        %v7605 = vpop.f32.mrb[0].mxu0
        %v7606 = vadd.f32 %v7381, %v7605
        %v7607 = vpop.f32.mrb[0].mxu0
        %v7608 = vpop.f32.mrb[0].mxu0
        %v7609 = vadd.f32 %v7384, %v7608
        %v7610 = vpop.f32.mrb[0].mxu0
        %7611 = vmatprep.mubr.bf16.mxu0 %v6346
        %7612 = vmatmul.mubr.bf16.gmra.mrb[0].mxu0 %v6345
        %v7613 = vpop.f32.mrb[0].mxu0
        %v7614 = vadd.f32 %v7389, %v7613
        %v7615 = vpop.f32.mrb[0].mxu0
        %v7616 = vpop.f32.mrb[0].mxu0
        %v7617 = vadd.f32 %v7392, %v7616
        %v7618 = vpop.f32.mrb[0].mxu0
        %7619 = vmatprep.mubr.bf16.mxu0 %v6355
        %7620 = vmatmul.mubr.bf16.gmra.mrb[0].mxu0 %v6354
        %v7621 = vpop.f32.mrb[0].mxu0
        %v7622 = vadd.f32 %v7397, %v7621
        %v7623 = vpop.f32.mrb[0].mxu0
        %v7624 = vpop.f32.mrb[0].mxu0
        %v7625 = vadd.f32 %v7400, %v7624
        %v7626 = vpop.f32.mrb[0].mxu0
        %7627 = vmatprep.mubr.bf16.mxu0 %v6364
        %7628 = vmatmul.mubr.bf16.gmra.mrb[0].mxu0 %v6363
        %v7629 = vpop.f32.mrb[0].mxu0
        %v7630 = vadd.f32 %v7405, %v7629
        %v7631 = vpop.f32.mrb[0].mxu0
        %v7632 = vpop.f32.mrb[0].mxu0
        %v7633 = vadd.f32 %v7408, %v7632
        %v7634 = vpop.f32.mrb[0].mxu0
        %7635 = vmatprep.mubr.bf16.mxu0 %v6373
        %7636 = vmatmul.mubr.bf16.gmra.mrb[0].mxu0 %v6372
        %v7637 = vpop.f32.mrb[0].mxu0
        %v7638 = vadd.f32 %v7413, %v7637
        %v7639 = vpop.f32.mrb[0].mxu0
        %v7640 = vpop.f32.mrb[0].mxu0
        %v7641 = vadd.f32 %v7416, %v7640
        %v7642 = vpop.f32.mrb[0].mxu0
        %7643 = vmatprep.mubr.bf16.mxu0 %v6382
        %7644 = vmatmul.mubr.bf16.gmra.mrb[0].mxu0 %v6381
        %v7645 = vpop.f32.mrb[0].mxu0
        %v7646 = vadd.f32 %v7421, %v7645
        %v7647 = vpop.f32.mrb[0].mxu0
        %v7648 = vpop.f32.mrb[0].mxu0
        %v7649 = vadd.f32 %v7424, %v7648
        %v7650 = vpop.f32.mrb[0].mxu0
        %7651 = vmatprep.mubr.bf16.mxu0 %v6391
        %7652 = vmatmul.mubr.bf16.gmra.mrb[0].mxu0 %v6390
        %v7653 = vpop.f32.mrb[0].mxu0
        %v7654 = vadd.f32 %v7429, %v7653
        %v7655 = vpop.f32.mrb[0].mxu0
        %v7656 = vpop.f32.mrb[0].mxu0
        %v7657 = vadd.f32 %v7432, %v7656
        %v7658 = vpop.f32.mrb[0].mxu0
        %7659 = vmatprep.mubr.bf16.mxu0 %v6400
        %7660 = vmatmul.mubr.bf16.gmra.mrb[0].mxu0 %v6399
        %v7661 = vpop.f32.mrb[0].mxu0
        %v7662 = vadd.f32 %v7437, %v7661
        %v7663 = vpop.f32.mrb[0].mxu0
        %v7664 = vpop.f32.mrb[0].mxu0
        %v7665 = vadd.f32 %v7440, %v7664
        %v7666 = vpop.f32.mrb[0].mxu0
        %7667 = vmatprep.mubr.bf16.mxu0 %v6409
        %7668 = vmatmul.mubr.bf16.gmra.mrb[0].mxu0 %v6408
        %v7669 = vpop.f32.mrb[0].mxu0
        %v7670 = vadd.f32 %v7445, %v7669
        %v7671 = vpop.f32.mrb[0].mxu0
        %v7672 = vpop.f32.mrb[0].mxu0
        %v7673 = vadd.f32 %v7448, %v7672
        %v7674 = vpop.f32.mrb[0].mxu0
        %7675 = vmatprep.mubr.bf16.mxu0 %v6418
        %7676 = vmatmul.mubr.bf16.gmra.mrb[0].mxu0 %v6417
        %v7677 = vpop.f32.mrb[0].mxu0
        %v7678 = vadd.f32 %v7453, %v7677
        %v7679 = vpop.f32.mrb[0].mxu0
        %v7680 = vpop.f32.mrb[0].mxu0
        %v7681 = vadd.f32 %v7456, %v7680
        %v7682 = vpop.f32.mrb[0].mxu0
        %7683 = vmatprep.mubr.bf16.mxu0 %v6427
        %7684 = vmatmul.mubr.bf16.gmra.mrb[0].mxu0 %v6426
        %v7685 = vpop.f32.mrb[0].mxu0
        %v7686 = vadd.f32 %v7461, %v7685
        %v7687 = vpop.f32.mrb[0].mxu0
        %v7688 = vpop.f32.mrb[0].mxu0
        %v7689 = vadd.f32 %v7464, %v7688
        %v7690 = vpop.f32.mrb[0].mxu0
        %7691 = vmatprep.mubr.bf16.mxu0 %v6436
        %7692 = vmatmul.mubr.bf16.gmra.mrb[0].mxu0 %v6435
        %v7693 = vpop.f32.mrb[0].mxu0
        %v7694 = vadd.f32 %v7469, %v7693
        %v7695 = vpop.f32.mrb[0].mxu0
        %v7696 = vpop.f32.mrb[0].mxu0
        %v7697 = vadd.f32 %v7472, %v7696
        %v7698 = vpop.f32.mrb[0].mxu0
        %7699 = vmatprep.mubr.bf16.mxu0 %v6445
        %7700 = vmatmul.mubr.bf16.gmra.mrb[0].mxu0 %v6444
        %v7701 = vpop.f32.mrb[0].mxu0
        %v7702 = vadd.f32 %v7477, %v7701
        %v7703 = vpop.f32.mrb[0].mxu0
        %v7704 = vpop.f32.mrb[0].mxu0
        %v7705 = vadd.f32 %v7480, %v7704
        %v7706 = vpop.f32.mrb[0].mxu0
        %7707 = vmatprep.mubr.bf16.mxu0 %v6454
        %7708 = vmatmul.mubr.bf16.gmra.mrb[0].mxu0 %v6453
        %v7709 = vpop.f32.mrb[0].mxu0
        %v7710 = vadd.f32 %v7485, %v7709
        %v7711 = vpop.f32.mrb[0].mxu0
        %v7712 = vpop.f32.mrb[0].mxu0
        %v7713 = vadd.f32 %v7488, %v7712
        %v7714 = vpop.f32.mrb[0].mxu0
        %7715 = vmatprep.mubr.bf16.mxu0 %v6463
        %7716 = vmatmul.mubr.bf16.gmra.mrb[0].mxu0 %v6462
        %v7717 = vpop.f32.mrb[0].mxu0
        %v7718 = vadd.f32 %v7493, %v7717
        %v7719 = vpop.f32.mrb[0].mxu0
        %v7720 = vpop.f32.mrb[0].mxu0
        %v7721 = vadd.f32 %v7496, %v7720
        %v7722 = vpop.f32.mrb[0].mxu0
        %7723 = vmatprep.mubr.bf16.mxu0 %v6472
        %7724 = vmatmul.mubr.bf16.gmra.mrb[0].mxu0 %v6471
        %v7725 = vpop.f32.mrb[0].mxu0
        %v7726 = vadd.f32 %v7501, %v7725
        %v7727 = vpop.f32.mrb[0].mxu0
        %v7728 = vpop.f32.mrb[0].mxu0
        %v7729 = vadd.f32 %v7504, %v7728
        %v7730 = vpop.f32.mrb[0].mxu0
        %7731 = vmatprep.mubr.bf16.mxu0 %v6481
        %7732 = vmatmul.mubr.bf16.gmra.mrb[0].mxu0 %v6480
        %v7733 = vpop.f32.mrb[0].mxu0
        %v7734 = vadd.f32 %v7509, %v7733
        %v7735 = vpop.f32.mrb[0].mxu0
        %v7736 = vpop.f32.mrb[0].mxu0
        %v7737 = vadd.f32 %v7512, %v7736
        %v7738 = vpop.f32.mrb[0].mxu0
        %7739 = vmatprep.mubr.bf16.mxu0 %v6490
        %7740 = vmatmul.mubr.bf16.gmra.mrb[0].mxu0 %v6489
        %v7741 = vpop.f32.mrb[0].mxu0
        %v7742 = vadd.f32 %v7517, %v7741
        %v7743 = vpop.f32.mrb[0].mxu0
        %v7744 = vpop.f32.mrb[0].mxu0
        %v7745 = vadd.f32 %v7520, %v7744
        %v7746 = vpop.f32.mrb[0].mxu0
        %7747 = vmatprep.mubr.bf16.mxu0 %v6499
        %7748 = vmatmul.mubr.bf16.gmra.mrb[0].mxu0 %v6498
        %v7749 = vpop.f32.mrb[0].mxu0
        %v7750 = vadd.f32 %v7525, %v7749
        %v7751 = vpop.f32.mrb[0].mxu0
        %v7752 = vpop.f32.mrb[0].mxu0
        %v7753 = vadd.f32 %v7528, %v7752
        %v7754 = vpop.f32.mrb[0].mxu0
        %7755 = vmatprep.mubr.bf16.mxu0 %v6508
        %7756 = vmatmul.mubr.bf16.gmra.mrb[0].mxu0 %v6507
        %v7757 = vpop.f32.mrb[0].mxu0
        %v7758 = vadd.f32 %v7533, %v7757
        %v7759 = vpop.f32.mrb[0].mxu0
        %v7760 = vpop.f32.mrb[0].mxu0
        %v7761 = vadd.f32 %v7536, %v7760
        %v7762 = vpop.f32.mrb[0].mxu0
        %7763 = vmatprep.mubr.bf16.mxu0 %v6517
        %7764 = vmatmul.mubr.bf16.gmra.mrb[0].mxu0 %v6516
        %v7765 = vpop.f32.mrb[0].mxu0
        %v7766 = vadd.f32 %v7541, %v7765
        %v7767 = vpop.f32.mrb[0].mxu0
        %v7768 = vpop.f32.mrb[0].mxu0
        %v7769 = vadd.f32 %v7544, %v7768
        %v7770 = vpop.f32.mrb[0].mxu0
        %7771 = vdwg.mxu0
        %7772 = vmatprep.subr.bf16.mxu0 0
        %7773 = vmatpush1.bf16.msra.mxu0 %v7001
        %7774 = vmatprep.subr.bf16.mxu0 0
        %7775 = vmatpush1.bf16.msra.mxu0 %v7002
        %7776 = vmatprep.subr.bf16.mxu0 0
        %7777 = vmatpush1.bf16.msra.mxu0 %v7003
        %7778 = vmatprep.subr.bf16.mxu0 0
        %7779 = vmatpush1.bf16.msra.mxu0 %v7004
        %7780 = vmatprep.subr.bf16.mxu0 0
        %7781 = vmatpush1.bf16.msra.mxu0 %v7005
        %7782 = vmatprep.subr.bf16.mxu0 0
        %7783 = vmatpush1.bf16.msra.mxu0 %v7006
        %7784 = vmatprep.subr.bf16.mxu0 0
        %7785 = vmatpush1.bf16.msra.mxu0 %v7007
        %7786 = vmatprep.subr.bf16.mxu0 0
        %7787 = vmatpush1.bf16.msra.mxu0 %v7008
        %7788 = vmatprep.subr.bf16.mxu0 0
        %7789 = vmatpush1.bf16.msra.mxu0 %v7009
        %7790 = vmatprep.subr.bf16.mxu0 0
        %7791 = vmatpush1.bf16.msra.mxu0 %v7010
        %7792 = vmatprep.subr.bf16.mxu0 0
        %7793 = vmatpush1.bf16.msra.mxu0 %v7011
        %7794 = vmatprep.subr.bf16.mxu0 0
        %7795 = vmatpush1.bf16.msra.mxu0 %v7012
        %7796 = vmatprep.subr.bf16.mxu0 0
        %7797 = vmatpush1.bf16.msra.mxu0 %v7013
        %7798 = vmatprep.subr.bf16.mxu0 0
        %7799 = vmatpush1.bf16.msra.mxu0 %v7014
        %7800 = vmatprep.subr.bf16.mxu0 0
        %7801 = vmatpush1.bf16.msra.mxu0 %v7015
        %7802 = vmatprep.subr.bf16.mxu0 0
        %7803 = vmatpush1.bf16.msra.mxu0 %v7016
        %7804 = vmatprep.mubr.bf16.mxu0 %v6312
        %7805 = vmatmul.mubr.bf16.gmra.mrb[0].mxu0 %v6311
        %v7806 = vpop.f32.mrb[0].mxu0
        %v7807 = vadd.f32 %v7582, %v7806
        %v7808 = vpop.f32.mrb[0].mxu0
        %v7809 = vpop.f32.mrb[0].mxu0
        %v7810 = vadd.f32 %v7585, %v7809
        %v7811 = vpop.f32.mrb[0].mxu0
        %7812 = vmatprep.mubr.bf16.mxu0 %v6321
        %7813 = vmatmul.mubr.bf16.gmra.mrb[0].mxu0 %v6320
        %v7814 = vpop.f32.mrb[0].mxu0
        %v7815 = vadd.f32 %v7590, %v7814
        %v7816 = vpop.f32.mrb[0].mxu0
        %v7817 = vpop.f32.mrb[0].mxu0
        %v7818 = vadd.f32 %v7593, %v7817
        %v7819 = vpop.f32.mrb[0].mxu0
        %7820 = vmatprep.mubr.bf16.mxu0 %v6330
        %7821 = vmatmul.mubr.bf16.gmra.mrb[0].mxu0 %v6329
        %v7822 = vpop.f32.mrb[0].mxu0
        %v7823 = vadd.f32 %v7598, %v7822
        %v7824 = vpop.f32.mrb[0].mxu0
        %v7825 = vpop.f32.mrb[0].mxu0
        %v7826 = vadd.f32 %v7601, %v7825
        %v7827 = vpop.f32.mrb[0].mxu0
        %7828 = vmatprep.mubr.bf16.mxu0 %v6339
        %7829 = vmatmul.mubr.bf16.gmra.mrb[0].mxu0 %v6338
        %v7830 = vpop.f32.mrb[0].mxu0
        %v7831 = vadd.f32 %v7606, %v7830
        %v7832 = vpop.f32.mrb[0].mxu0
        %v7833 = vpop.f32.mrb[0].mxu0
        %v7834 = vadd.f32 %v7609, %v7833
        %v7835 = vpop.f32.mrb[0].mxu0
        %7836 = vmatprep.mubr.bf16.mxu0 %v6348
        %7837 = vmatmul.mubr.bf16.gmra.mrb[0].mxu0 %v6347
        %v7838 = vpop.f32.mrb[0].mxu0
        %v7839 = vadd.f32 %v7614, %v7838
        %v7840 = vpop.f32.mrb[0].mxu0
        %v7841 = vpop.f32.mrb[0].mxu0
        %v7842 = vadd.f32 %v7617, %v7841
        %v7843 = vpop.f32.mrb[0].mxu0
        %7844 = vmatprep.mubr.bf16.mxu0 %v6357
        %7845 = vmatmul.mubr.bf16.gmra.mrb[0].mxu0 %v6356
        %v7846 = vpop.f32.mrb[0].mxu0
        %v7847 = vadd.f32 %v7622, %v7846
        %v7848 = vpop.f32.mrb[0].mxu0
        %v7849 = vpop.f32.mrb[0].mxu0
        %v7850 = vadd.f32 %v7625, %v7849
        %v7851 = vpop.f32.mrb[0].mxu0
        %7852 = vmatprep.mubr.bf16.mxu0 %v6366
        %7853 = vmatmul.mubr.bf16.gmra.mrb[0].mxu0 %v6365
        %v7854 = vpop.f32.mrb[0].mxu0
        %v7855 = vadd.f32 %v7630, %v7854
        %v7856 = vpop.f32.mrb[0].mxu0
        %v7857 = vpop.f32.mrb[0].mxu0
        %v7858 = vadd.f32 %v7633, %v7857
        %v7859 = vpop.f32.mrb[0].mxu0
        %7860 = vmatprep.mubr.bf16.mxu0 %v6375
        %7861 = vmatmul.mubr.bf16.gmra.mrb[0].mxu0 %v6374
        %v7862 = vpop.f32.mrb[0].mxu0
        %v7863 = vadd.f32 %v7638, %v7862
        %v7864 = vpop.f32.mrb[0].mxu0
        %v7865 = vpop.f32.mrb[0].mxu0
        %v7866 = vadd.f32 %v7641, %v7865
        %v7867 = vpop.f32.mrb[0].mxu0
        %7868 = vmatprep.mubr.bf16.mxu0 %v6384
        %7869 = vmatmul.mubr.bf16.gmra.mrb[0].mxu0 %v6383
        %v7870 = vpop.f32.mrb[0].mxu0
        %v7871 = vadd.f32 %v7646, %v7870
        %v7872 = vpop.f32.mrb[0].mxu0
        %v7873 = vpop.f32.mrb[0].mxu0
        %v7874 = vadd.f32 %v7649, %v7873
        %v7875 = vpop.f32.mrb[0].mxu0
        %7876 = vmatprep.mubr.bf16.mxu0 %v6393
        %7877 = vmatmul.mubr.bf16.gmra.mrb[0].mxu0 %v6392
        %v7878 = vpop.f32.mrb[0].mxu0
        %v7879 = vadd.f32 %v7654, %v7878
        %v7880 = vpop.f32.mrb[0].mxu0
        %v7881 = vpop.f32.mrb[0].mxu0
        %v7882 = vadd.f32 %v7657, %v7881
        %v7883 = vpop.f32.mrb[0].mxu0
        %7884 = vmatprep.mubr.bf16.mxu0 %v6402
        %7885 = vmatmul.mubr.bf16.gmra.mrb[0].mxu0 %v6401
        %v7886 = vpop.f32.mrb[0].mxu0
        %v7887 = vadd.f32 %v7662, %v7886
        %v7888 = vpop.f32.mrb[0].mxu0
        %v7889 = vpop.f32.mrb[0].mxu0
        %v7890 = vadd.f32 %v7665, %v7889
        %v7891 = vpop.f32.mrb[0].mxu0
        %7892 = vmatprep.mubr.bf16.mxu0 %v6411
        %7893 = vmatmul.mubr.bf16.gmra.mrb[0].mxu0 %v6410
        %v7894 = vpop.f32.mrb[0].mxu0
        %v7895 = vadd.f32 %v7670, %v7894
        %v7896 = vpop.f32.mrb[0].mxu0
        %v7897 = vpop.f32.mrb[0].mxu0
        %v7898 = vadd.f32 %v7673, %v7897
        %v7899 = vpop.f32.mrb[0].mxu0
        %7900 = vmatprep.mubr.bf16.mxu0 %v6420
        %7901 = vmatmul.mubr.bf16.gmra.mrb[0].mxu0 %v6419
        %v7902 = vpop.f32.mrb[0].mxu0
        %v7903 = vadd.f32 %v7678, %v7902
        %v7904 = vpop.f32.mrb[0].mxu0
        %v7905 = vpop.f32.mrb[0].mxu0
        %v7906 = vadd.f32 %v7681, %v7905
        %v7907 = vpop.f32.mrb[0].mxu0
        %7908 = vmatprep.mubr.bf16.mxu0 %v6429
        %7909 = vmatmul.mubr.bf16.gmra.mrb[0].mxu0 %v6428
        %v7910 = vpop.f32.mrb[0].mxu0
        %v7911 = vadd.f32 %v7686, %v7910
        %v7912 = vpop.f32.mrb[0].mxu0
        %v7913 = vpop.f32.mrb[0].mxu0
        %v7914 = vadd.f32 %v7689, %v7913
        %v7915 = vpop.f32.mrb[0].mxu0
        %7916 = vmatprep.mubr.bf16.mxu0 %v6438
        %7917 = vmatmul.mubr.bf16.gmra.mrb[0].mxu0 %v6437
        %v7918 = vpop.f32.mrb[0].mxu0
        %v7919 = vadd.f32 %v7694, %v7918
        %v7920 = vpop.f32.mrb[0].mxu0
        %v7921 = vpop.f32.mrb[0].mxu0
        %v7922 = vadd.f32 %v7697, %v7921
        %v7923 = vpop.f32.mrb[0].mxu0
        %7924 = vmatprep.mubr.bf16.mxu0 %v6447
        %7925 = vmatmul.mubr.bf16.gmra.mrb[0].mxu0 %v6446
        %v7926 = vpop.f32.mrb[0].mxu0
        %v7927 = vadd.f32 %v7702, %v7926
        %v7928 = vpop.f32.mrb[0].mxu0
        %v7929 = vpop.f32.mrb[0].mxu0
        %v7930 = vadd.f32 %v7705, %v7929
        %v7931 = vpop.f32.mrb[0].mxu0
        %7932 = vmatprep.mubr.bf16.mxu0 %v6456
        %7933 = vmatmul.mubr.bf16.gmra.mrb[0].mxu0 %v6455
        %v7934 = vpop.f32.mrb[0].mxu0
        %v7935 = vadd.f32 %v7710, %v7934
        %v7936 = vpop.f32.mrb[0].mxu0
        %v7937 = vpop.f32.mrb[0].mxu0
        %v7938 = vadd.f32 %v7713, %v7937
        %v7939 = vpop.f32.mrb[0].mxu0
        %7940 = vmatprep.mubr.bf16.mxu0 %v6465
        %7941 = vmatmul.mubr.bf16.gmra.mrb[0].mxu0 %v6464
        %v7942 = vpop.f32.mrb[0].mxu0
        %v7943 = vadd.f32 %v7718, %v7942
        %v7944 = vpop.f32.mrb[0].mxu0
        %v7945 = vpop.f32.mrb[0].mxu0
        %v7946 = vadd.f32 %v7721, %v7945
        %v7947 = vpop.f32.mrb[0].mxu0
        %7948 = vmatprep.mubr.bf16.mxu0 %v6474
        %7949 = vmatmul.mubr.bf16.gmra.mrb[0].mxu0 %v6473
        %v7950 = vpop.f32.mrb[0].mxu0
        %v7951 = vadd.f32 %v7726, %v7950
        %v7952 = vpop.f32.mrb[0].mxu0
        %v7953 = vpop.f32.mrb[0].mxu0
        %v7954 = vadd.f32 %v7729, %v7953
        %v7955 = vpop.f32.mrb[0].mxu0
        %7956 = vmatprep.mubr.bf16.mxu0 %v6483
        %7957 = vmatmul.mubr.bf16.gmra.mrb[0].mxu0 %v6482
        %v7958 = vpop.f32.mrb[0].mxu0
        %v7959 = vadd.f32 %v7734, %v7958
        %v7960 = vpop.f32.mrb[0].mxu0
        %v7961 = vpop.f32.mrb[0].mxu0
        %v7962 = vadd.f32 %v7737, %v7961
        %v7963 = vpop.f32.mrb[0].mxu0
        %7964 = vmatprep.mubr.bf16.mxu0 %v6492
        %7965 = vmatmul.mubr.bf16.gmra.mrb[0].mxu0 %v6491
        %v7966 = vpop.f32.mrb[0].mxu0
        %v7967 = vadd.f32 %v7742, %v7966
        %v7968 = vpop.f32.mrb[0].mxu0
        %v7969 = vpop.f32.mrb[0].mxu0
        %v7970 = vadd.f32 %v7745, %v7969
        %v7971 = vpop.f32.mrb[0].mxu0
        %7972 = vmatprep.mubr.bf16.mxu0 %v6501
        %7973 = vmatmul.mubr.bf16.gmra.mrb[0].mxu0 %v6500
        %v7974 = vpop.f32.mrb[0].mxu0
        %v7975 = vadd.f32 %v7750, %v7974
        %v7976 = vpop.f32.mrb[0].mxu0
        %v7977 = vpop.f32.mrb[0].mxu0
        %v7978 = vadd.f32 %v7753, %v7977
        %v7979 = vpop.f32.mrb[0].mxu0
        %7980 = vmatprep.mubr.bf16.mxu0 %v6510
        %7981 = vmatmul.mubr.bf16.gmra.mrb[0].mxu0 %v6509
        %v7982 = vpop.f32.mrb[0].mxu0
        %v7983 = vadd.f32 %v7758, %v7982
        %v7984 = vpop.f32.mrb[0].mxu0
        %v7985 = vpop.f32.mrb[0].mxu0
        %v7986 = vadd.f32 %v7761, %v7985
        %v7987 = vpop.f32.mrb[0].mxu0
        %7988 = vmatprep.mubr.bf16.mxu0 %v6519
        %7989 = vmatmul.mubr.bf16.gmra.mrb[0].mxu0 %v6518
        %v7990 = vpop.f32.mrb[0].mxu0
        %v7991 = vadd.f32 %v7766, %v7990
        %v7992 = vpop.f32.mrb[0].mxu0
        %v7993 = vpop.f32.mrb[0].mxu0
        %v7994 = vadd.f32 %v7769, %v7993
        %v7995 = vpop.f32.mrb[0].mxu0
        %7996 = vdwg.mxu0
        %7997 = vmatprep.subr.bf16.mxu0 0
        %7998 = vmatpush1.bf16.msra.mxu0 %v7017
        %7999 = vmatprep.subr.bf16.mxu0 0
        %8000 = vmatpush1.bf16.msra.mxu0 %v7018
        %8001 = vmatprep.subr.bf16.mxu0 0
        %8002 = vmatpush1.bf16.msra.mxu0 %v7019
        %8003 = vmatprep.subr.bf16.mxu0 0
        %8004 = vmatpush1.bf16.msra.mxu0 %v7020
        %8005 = vmatprep.subr.bf16.mxu0 0
        %8006 = vmatpush1.bf16.msra.mxu0 %v7021
        %8007 = vmatprep.subr.bf16.mxu0 0
        %8008 = vmatpush1.bf16.msra.mxu0 %v7022
        %8009 = vmatprep.subr.bf16.mxu0 0
        %8010 = vmatpush1.bf16.msra.mxu0 %v7023
        %8011 = vmatprep.subr.bf16.mxu0 0
        %8012 = vmatpush1.bf16.msra.mxu0 %v7024
        %8013 = vmatprep.subr.bf16.mxu0 0
        %8014 = vmatpush1.bf16.msra.mxu0 0
        %8015 = vmatprep.subr.bf16.mxu0 0
        %8016 = vmatpush1.bf16.msra.mxu0 0
        %8017 = vmatprep.subr.bf16.mxu0 0
        %8018 = vmatpush1.bf16.msra.mxu0 0
        %8019 = vmatprep.subr.bf16.mxu0 0
        %8020 = vmatpush1.bf16.msra.mxu0 0
        %8021 = vmatprep.subr.bf16.mxu0 0
        %8022 = vmatpush1.bf16.msra.mxu0 0
        %8023 = vmatprep.subr.bf16.mxu0 0
        %8024 = vmatpush1.bf16.msra.mxu0 0
        %8025 = vmatprep.subr.bf16.mxu0 0
        %8026 = vmatpush1.bf16.msra.mxu0 0
        %8027 = vmatprep.subr.bf16.mxu0 0
        %8028 = vmatpush1.bf16.msra.mxu0 0
        %8029 = vmatprep.mubr.bf16.mxu0 0
        %8030 = vmatmul.mubr.bf16.gmra.mrb[0].mxu0 %v6313
        %v8031 = vpop.f32.mrb[0].mxu0
        %v8032 = vadd.f32 %v7807, %v8031
        %v8033 = vpop.f32.mrb[0].mxu0
        %v8034 = vpop.f32.mrb[0].mxu0
        %v8035 = vadd.f32 %v7810, %v8034
        %v8036 = vpop.f32.mrb[0].mxu0
        %8037 = vmatprep.mubr.bf16.mxu0 0
        %8038 = vmatmul.mubr.bf16.gmra.mrb[0].mxu0 %v6322
        %v8039 = vpop.f32.mrb[0].mxu0
        %v8040 = vadd.f32 %v7815, %v8039
        %v8041 = vpop.f32.mrb[0].mxu0
        %v8042 = vpop.f32.mrb[0].mxu0
        %v8043 = vadd.f32 %v7818, %v8042
        %v8044 = vpop.f32.mrb[0].mxu0
        %8045 = vmatprep.mubr.bf16.mxu0 0
        %8046 = vmatmul.mubr.bf16.gmra.mrb[0].mxu0 %v6331
        %v8047 = vpop.f32.mrb[0].mxu0
        %v8048 = vadd.f32 %v7823, %v8047
        %v8049 = vpop.f32.mrb[0].mxu0
        %v8050 = vpop.f32.mrb[0].mxu0
        %v8051 = vadd.f32 %v7826, %v8050
        %v8052 = vpop.f32.mrb[0].mxu0
        %8053 = vmatprep.mubr.bf16.mxu0 0
        %8054 = vmatmul.mubr.bf16.gmra.mrb[0].mxu0 %v6340
        %v8055 = vpop.f32.mrb[0].mxu0
        %v8056 = vadd.f32 %v7831, %v8055
        %v8057 = vpop.f32.mrb[0].mxu0
        %v8058 = vpop.f32.mrb[0].mxu0
        %v8059 = vadd.f32 %v7834, %v8058
        %v8060 = vpop.f32.mrb[0].mxu0
        %8061 = vmatprep.mubr.bf16.mxu0 0
        %8062 = vmatmul.mubr.bf16.gmra.mrb[0].mxu0 %v6349
        %v8063 = vpop.f32.mrb[0].mxu0
        %v8064 = vadd.f32 %v7839, %v8063
        %v8065 = vpop.f32.mrb[0].mxu0
        %v8066 = vpop.f32.mrb[0].mxu0
        %v8067 = vadd.f32 %v7842, %v8066
        %v8068 = vpop.f32.mrb[0].mxu0
        %8069 = vmatprep.mubr.bf16.mxu0 0
        %8070 = vmatmul.mubr.bf16.gmra.mrb[0].mxu0 %v6358
        %v8071 = vpop.f32.mrb[0].mxu0
        %v8072 = vadd.f32 %v7847, %v8071
        %v8073 = vpop.f32.mrb[0].mxu0
        %v8074 = vpop.f32.mrb[0].mxu0
        %v8075 = vadd.f32 %v7850, %v8074
        %v8076 = vpop.f32.mrb[0].mxu0
        %8077 = vmatprep.mubr.bf16.mxu0 0
        %8078 = vmatmul.mubr.bf16.gmra.mrb[0].mxu0 %v6367
        %v8079 = vpop.f32.mrb[0].mxu0
        %v8080 = vadd.f32 %v7855, %v8079
        %v8081 = vpop.f32.mrb[0].mxu0
        %v8082 = vpop.f32.mrb[0].mxu0
        %v8083 = vadd.f32 %v7858, %v8082
        %v8084 = vpop.f32.mrb[0].mxu0
        %8085 = vmatprep.mubr.bf16.mxu0 0
        %8086 = vmatmul.mubr.bf16.gmra.mrb[0].mxu0 %v6376
        %v8087 = vpop.f32.mrb[0].mxu0
        %v8088 = vadd.f32 %v7863, %v8087
        %v8089 = vpop.f32.mrb[0].mxu0
        %v8090 = vpop.f32.mrb[0].mxu0
        %v8091 = vadd.f32 %v7866, %v8090
        %v8092 = vpop.f32.mrb[0].mxu0
        %8093 = vmatprep.mubr.bf16.mxu0 0
        %8094 = vmatmul.mubr.bf16.gmra.mrb[0].mxu0 %v6385
        %v8095 = vpop.f32.mrb[0].mxu0
        %v8096 = vadd.f32 %v7871, %v8095
        %v8097 = vpop.f32.mrb[0].mxu0
        %v8098 = vpop.f32.mrb[0].mxu0
        %v8099 = vadd.f32 %v7874, %v8098
        %v8100 = vpop.f32.mrb[0].mxu0
        %8101 = vmatprep.mubr.bf16.mxu0 0
        %8102 = vmatmul.mubr.bf16.gmra.mrb[0].mxu0 %v6394
        %v8103 = vpop.f32.mrb[0].mxu0
        %v8104 = vadd.f32 %v7879, %v8103
        %v8105 = vpop.f32.mrb[0].mxu0
        %v8106 = vpop.f32.mrb[0].mxu0
        %v8107 = vadd.f32 %v7882, %v8106
        %v8108 = vpop.f32.mrb[0].mxu0
        %8109 = vmatprep.mubr.bf16.mxu0 0
        %8110 = vmatmul.mubr.bf16.gmra.mrb[0].mxu0 %v6403
        %v8111 = vpop.f32.mrb[0].mxu0
        %v8112 = vadd.f32 %v7887, %v8111
        %v8113 = vpop.f32.mrb[0].mxu0
        %v8114 = vpop.f32.mrb[0].mxu0
        %v8115 = vadd.f32 %v7890, %v8114
        %v8116 = vpop.f32.mrb[0].mxu0
        %8117 = vmatprep.mubr.bf16.mxu0 0
        %8118 = vmatmul.mubr.bf16.gmra.mrb[0].mxu0 %v6412
        %v8119 = vpop.f32.mrb[0].mxu0
        %v8120 = vadd.f32 %v7895, %v8119
        %v8121 = vpop.f32.mrb[0].mxu0
        %v8122 = vpop.f32.mrb[0].mxu0
        %v8123 = vadd.f32 %v7898, %v8122
        %v8124 = vpop.f32.mrb[0].mxu0
        %8125 = vmatprep.mubr.bf16.mxu0 0
        %8126 = vmatmul.mubr.bf16.gmra.mrb[0].mxu0 %v6421
        %v8127 = vpop.f32.mrb[0].mxu0
        %v8128 = vadd.f32 %v7903, %v8127
        %v8129 = vpop.f32.mrb[0].mxu0
        %v8130 = vpop.f32.mrb[0].mxu0
        %v8131 = vadd.f32 %v7906, %v8130
        %v8132 = vpop.f32.mrb[0].mxu0
        %8133 = vmatprep.mubr.bf16.mxu0 0
        %8134 = vmatmul.mubr.bf16.gmra.mrb[0].mxu0 %v6430
        %v8135 = vpop.f32.mrb[0].mxu0
        %v8136 = vadd.f32 %v7911, %v8135
        %v8137 = vpop.f32.mrb[0].mxu0
        %v8138 = vpop.f32.mrb[0].mxu0
        %v8139 = vadd.f32 %v7914, %v8138
        %v8140 = vpop.f32.mrb[0].mxu0
        %8141 = vmatprep.mubr.bf16.mxu0 0
        %8142 = vmatmul.mubr.bf16.gmra.mrb[0].mxu0 %v6439
        %v8143 = vpop.f32.mrb[0].mxu0
        %v8144 = vadd.f32 %v7919, %v8143
        %v8145 = vpop.f32.mrb[0].mxu0
        %v8146 = vpop.f32.mrb[0].mxu0
        %v8147 = vadd.f32 %v7922, %v8146
        %v8148 = vpop.f32.mrb[0].mxu0
        %8149 = vmatprep.mubr.bf16.mxu0 0
        %8150 = vmatmul.mubr.bf16.gmra.mrb[0].mxu0 %v6448
        %v8151 = vpop.f32.mrb[0].mxu0
        %v8152 = vadd.f32 %v7927, %v8151
        %v8153 = vpop.f32.mrb[0].mxu0
        %v8154 = vpop.f32.mrb[0].mxu0
        %v8155 = vadd.f32 %v7930, %v8154
        %v8156 = vpop.f32.mrb[0].mxu0
        %8157 = vmatprep.mubr.bf16.mxu0 0
        %8158 = vmatmul.mubr.bf16.gmra.mrb[0].mxu0 %v6457
        %v8159 = vpop.f32.mrb[0].mxu0
        %v8160 = vadd.f32 %v7935, %v8159
        %v8161 = vpop.f32.mrb[0].mxu0
        %v8162 = vpop.f32.mrb[0].mxu0
        %v8163 = vadd.f32 %v7938, %v8162
        %v8164 = vpop.f32.mrb[0].mxu0
        %8165 = vmatprep.mubr.bf16.mxu0 0
        %8166 = vmatmul.mubr.bf16.gmra.mrb[0].mxu0 %v6466
        %v8167 = vpop.f32.mrb[0].mxu0
        %v8168 = vadd.f32 %v7943, %v8167
        %v8169 = vpop.f32.mrb[0].mxu0
        %v8170 = vpop.f32.mrb[0].mxu0
        %v8171 = vadd.f32 %v7946, %v8170
        %v8172 = vpop.f32.mrb[0].mxu0
        %8173 = vmatprep.mubr.bf16.mxu0 0
        %8174 = vmatmul.mubr.bf16.gmra.mrb[0].mxu0 %v6475
        %v8175 = vpop.f32.mrb[0].mxu0
        %v8176 = vadd.f32 %v7951, %v8175
        %v8177 = vpop.f32.mrb[0].mxu0
        %v8178 = vpop.f32.mrb[0].mxu0
        %v8179 = vadd.f32 %v7954, %v8178
        %v8180 = vpop.f32.mrb[0].mxu0
        %8181 = vmatprep.mubr.bf16.mxu0 0
        %8182 = vmatmul.mubr.bf16.gmra.mrb[0].mxu0 %v6484
        %v8183 = vpop.f32.mrb[0].mxu0
        %v8184 = vadd.f32 %v7959, %v8183
        %v8185 = vpop.f32.mrb[0].mxu0
        %v8186 = vpop.f32.mrb[0].mxu0
        %v8187 = vadd.f32 %v7962, %v8186
        %v8188 = vpop.f32.mrb[0].mxu0
        %8189 = vmatprep.mubr.bf16.mxu0 0
        %8190 = vmatmul.mubr.bf16.gmra.mrb[0].mxu0 %v6493
        %v8191 = vpop.f32.mrb[0].mxu0
        %v8192 = vadd.f32 %v7967, %v8191
        %v8193 = vpop.f32.mrb[0].mxu0
        %v8194 = vpop.f32.mrb[0].mxu0
        %v8195 = vadd.f32 %v7970, %v8194
        %v8196 = vpop.f32.mrb[0].mxu0
        %8197 = vmatprep.mubr.bf16.mxu0 0
        %8198 = vmatmul.mubr.bf16.gmra.mrb[0].mxu0 %v6502
        %v8199 = vpop.f32.mrb[0].mxu0
        %v8200 = vadd.f32 %v7975, %v8199
        %v8201 = vpop.f32.mrb[0].mxu0
        %v8202 = vpop.f32.mrb[0].mxu0
        %v8203 = vadd.f32 %v7978, %v8202
        %v8204 = vpop.f32.mrb[0].mxu0
        %8205 = vmatprep.mubr.bf16.mxu0 0
        %8206 = vmatmul.mubr.bf16.gmra.mrb[0].mxu0 %v6511
        %v8207 = vpop.f32.mrb[0].mxu0
        %v8208 = vadd.f32 %v7983, %v8207
        %v8209 = vpop.f32.mrb[0].mxu0
        %v8210 = vpop.f32.mrb[0].mxu0
        %v8211 = vadd.f32 %v7986, %v8210
        %v8212 = vpop.f32.mrb[0].mxu0
        %8213 = vmatprep.mubr.bf16.mxu0 0
        %8214 = vmatmul.mubr.bf16.gmra.mrb[0].mxu0 %v6520
        %v8215 = vpop.f32.mrb[0].mxu0
        %v8216 = vadd.f32 %v7991, %v8215
        %v8217 = vpop.f32.mrb[0].mxu0
        %v8218 = vpop.f32.mrb[0].mxu0
        %v8219 = vadd.f32 %v7994, %v8218
        %v8220 = vpop.f32.mrb[0].mxu0
        %8221 = vdwg.mxu0
        %v8222 = vld [vmem:[%s4 + $0x2] sm:$0x1]
        %v8223 = vlaneseq
        %v8224 = vshrl.u32 %v8223, 7
        %v8225 = vsub.s32 0, %v8224
        %v8226 = vrot.slane %v8222, %v8225
        %v8227 = vmul.f32 %v8032, %v8226
        %v8228 = vmul.f32 %v8035, %v8226
        %v8229 = vmul.f32 %v8040, %v8226
        %v8230 = vmul.f32 %v8043, %v8226
        %v8231 = vmul.f32 %v8048, %v8226
        %v8232 = vmul.f32 %v8051, %v8226
        %v8233 = vmul.f32 %v8056, %v8226
        %v8234 = vmul.f32 %v8059, %v8226
        %v8235 = vmul.f32 %v8064, %v8226
        %v8236 = vmul.f32 %v8067, %v8226
        %v8237 = vmul.f32 %v8072, %v8226
        %v8238 = vmul.f32 %v8075, %v8226
        %v8239 = vmul.f32 %v8080, %v8226
        %v8240 = vmul.f32 %v8083, %v8226
        %v8241 = vmul.f32 %v8088, %v8226
        %v8242 = vmul.f32 %v8091, %v8226
        %v8243 = vmul.f32 %v8096, %v8226
        %v8244 = vmul.f32 %v8099, %v8226
        %v8245 = vmul.f32 %v8104, %v8226
        %v8246 = vmul.f32 %v8107, %v8226
        %v8247 = vmul.f32 %v8112, %v8226
        %v8248 = vmul.f32 %v8115, %v8226
        %v8249 = vmul.f32 %v8120, %v8226
        %v8250 = vmul.f32 %v8123, %v8226
        %v8251 = vmul.f32 %v8128, %v8226
        %v8252 = vmul.f32 %v8131, %v8226
        %v8253 = vmul.f32 %v8136, %v8226
        %v8254 = vmul.f32 %v8139, %v8226
        %v8255 = vmul.f32 %v8144, %v8226
        %v8256 = vmul.f32 %v8147, %v8226
        %v8257 = vmul.f32 %v8152, %v8226
        %v8258 = vmul.f32 %v8155, %v8226
        %v8259 = vmul.f32 %v8160, %v8226
        %v8260 = vmul.f32 %v8163, %v8226
        %v8261 = vmul.f32 %v8168, %v8226
        %v8262 = vmul.f32 %v8171, %v8226
        %v8263 = vmul.f32 %v8176, %v8226
        %v8264 = vmul.f32 %v8179, %v8226
        %v8265 = vmul.f32 %v8184, %v8226
        %v8266 = vmul.f32 %v8187, %v8226
        %v8267 = vmul.f32 %v8192, %v8226
        %v8268 = vmul.f32 %v8195, %v8226
        %v8269 = vmul.f32 %v8200, %v8226
        %v8270 = vmul.f32 %v8203, %v8226
        %v8271 = vmul.f32 %v8208, %v8226
        %v8272 = vmul.f32 %v8211, %v8226
        %v8273 = vmul.f32 %v8216, %v8226
        %v8274 = vmul.f32 %v8219, %v8226
        %v8275 = vld [vmem:[%s4 + $0x3] sm:$0x1]
        %v8276 = vlaneseq
        %v8277 = vshrl.u32 %v8276, 7
        %v8278 = vsub.s32 0, %v8277
        %v8279 = vrot.slane %v8275, %v8278
        %v8280 = vadd.f32 %v8227, %v8279
        %v8281 = vadd.f32 %v8228, %v8279
        %v8282 = vadd.f32 %v8229, %v8279
        %v8283 = vadd.f32 %v8230, %v8279
        %v8284 = vadd.f32 %v8231, %v8279
        %v8285 = vadd.f32 %v8232, %v8279
        %v8286 = vadd.f32 %v8233, %v8279
        %v8287 = vadd.f32 %v8234, %v8279
        %v8288 = vadd.f32 %v8235, %v8279
        %v8289 = vadd.f32 %v8236, %v8279
        %v8290 = vadd.f32 %v8237, %v8279
        %v8291 = vadd.f32 %v8238, %v8279
        %v8292 = vadd.f32 %v8239, %v8279
        %v8293 = vadd.f32 %v8240, %v8279
        %v8294 = vadd.f32 %v8241, %v8279
        %v8295 = vadd.f32 %v8242, %v8279
        %v8296 = vadd.f32 %v8243, %v8279
        %v8297 = vadd.f32 %v8244, %v8279
        %v8298 = vadd.f32 %v8245, %v8279
        %v8299 = vadd.f32 %v8246, %v8279
        %v8300 = vadd.f32 %v8247, %v8279
        %v8301 = vadd.f32 %v8248, %v8279
        %v8302 = vadd.f32 %v8249, %v8279
        %v8303 = vadd.f32 %v8250, %v8279
        %v8304 = vadd.f32 %v8251, %v8279
        %v8305 = vadd.f32 %v8252, %v8279
        %v8306 = vadd.f32 %v8253, %v8279
        %v8307 = vadd.f32 %v8254, %v8279
        %v8308 = vadd.f32 %v8255, %v8279
        %v8309 = vadd.f32 %v8256, %v8279
        %v8310 = vadd.f32 %v8257, %v8279
        %v8311 = vadd.f32 %v8258, %v8279
        %v8312 = vadd.f32 %v8259, %v8279
        %v8313 = vadd.f32 %v8260, %v8279
        %v8314 = vadd.f32 %v8261, %v8279
        %v8315 = vadd.f32 %v8262, %v8279
        %v8316 = vadd.f32 %v8263, %v8279
        %v8317 = vadd.f32 %v8264, %v8279
        %v8318 = vadd.f32 %v8265, %v8279
        %v8319 = vadd.f32 %v8266, %v8279
        %v8320 = vadd.f32 %v8267, %v8279
        %v8321 = vadd.f32 %v8268, %v8279
        %v8322 = vadd.f32 %v8269, %v8279
        %v8323 = vadd.f32 %v8270, %v8279
        %v8324 = vadd.f32 %v8271, %v8279
        %v8325 = vadd.f32 %v8272, %v8279
        %v8326 = vadd.f32 %v8273, %v8279
        %v8327 = vadd.f32 %v8274, %v8279
        %v8328 = vld [vmem:[#allocation2 + $0x8] sm:$0xf0]
        %v8329 = vld [vmem:[#allocation2 + $0x10] sm:$0xff]
        %v8330 = vld [vmem:[#allocation2 + $0x18] sm:$0xff]
        %v8331 = vld [vmem:[#allocation2 + $0x20] sm:$0xff]
        %v8332 = vld [vmem:[#allocation2 + $0x28] sm:$0xff]
        %v8333 = vld [vmem:[#allocation2 + $0x30] sm:$0xff]
        %v8334 = vld [vmem:[#allocation2 + $0x38] sm:$0xff]
        %v8335 = vld [vmem:[#allocation2 + $0x40] sm:$0xff]
        %v8336 = vld [vmem:[#allocation2 + $0x48] sm:$0xff]
        %v8337 = vld [vmem:[#allocation2 + $0x50] sm:$0xff]
        %v8338 = vld [vmem:[#allocation2 + $0x58] sm:$0xff]
        %v8339 = vld [vmem:[#allocation2 + $0x60] sm:$0xff]
        %v8340 = vld [vmem:[#allocation2 + $0x68] sm:$0xff]
        %v8341 = vld [vmem:[#allocation2 + $0x70] sm:$0xff]
        %v8342 = vld [vmem:[#allocation2 + $0x78] sm:$0xff]
        %v8343 = vld [vmem:[#allocation2 + $0x80] sm:$0xff]
        %v8344 = vld [vmem:[#allocation2 + $0x88] sm:$0xff]
        %v8345 = vld [vmem:[#allocation2 + $0x90] sm:$0xff]
        %v8346 = vld [vmem:[#allocation2 + $0x98] sm:$0xff]
        %v8347 = vld [vmem:[#allocation2 + $0xa0] sm:$0xff]
        %v8348 = vld [vmem:[#allocation2 + $0xa8] sm:$0xff]
        %v8349 = vld [vmem:[#allocation2 + $0xb0] sm:$0xff]
        %v8350 = vld [vmem:[#allocation2 + $0xb8] sm:$0xff]
        %v8351 = vld [vmem:[#allocation2 + $0xc0] sm:$0xff]
        %v8352 = vld [vmem:[#allocation2 + $0xc8] sm:$0x1f]
        %v8353 = vld [vmem:[%s3] sm:$0xf]
        %v8354 = vld [vmem:[%s3 + $0x4] sm:$0xf]
        %v8355 = vld [vmem:[%s3 + $0x8] sm:$0xf]
        %v8356 = vld [vmem:[%s3 + $0xc] sm:$0xf]
        %v8357 = vld [vmem:[%s3 + $0x10] sm:$0xf]
        %v8358 = vld [vmem:[%s3 + $0x14] sm:$0xf]
        %v8359 = vld [vmem:[%s3 + $0x18] sm:$0xf]
        %v8360 = vld [vmem:[%s3 + $0x1c] sm:$0xf]
        %v8361 = vld [vmem:[%s3 + $0x20] sm:$0xf]
        %v8362 = vld [vmem:[%s3 + $0x24] sm:$0xf]
        %v8363 = vld [vmem:[%s3 + $0x28] sm:$0xf]
        %v8364 = vld [vmem:[%s3 + $0x2c] sm:$0xf]
        %v8365 = vld [vmem:[%s3 + $0x30] sm:$0xf]
        %v8366 = vld [vmem:[%s3 + $0x34] sm:$0xf]
        %v8367 = vld [vmem:[%s3 + $0x38] sm:$0xf]
        %v8368 = vld [vmem:[%s3 + $0x3c] sm:$0xf]
        %v8370 = vshrl.u32 %v8328, 16
        %v8372 = vrot.slane %v8370, 4
        %v8373 = vshll.u32 %v8328, 16
        %v8375 = vrot.slane %v8373, 5
        %v8376 = vor.u32 %v8372, %v8375
        %v8378 = vshrl.u32 %v8329, 16
        %v8380 = vrot.slane %v8378, 4
        %v8381 = vshll.u32 %v8329, 16
        %v8383 = vrot.slane %v8381, 5
        %v8384 = vor.u32 %v8380, %v8383
        %v8385 = vsel %vm1186, %v8376, %v8384
        %v8387 = vshrl.u32 %v8330, 16
        %v8389 = vrot.slane %v8387, 4
        %v8390 = vshll.u32 %v8330, 16
        %v8392 = vrot.slane %v8390, 5
        %v8393 = vor.u32 %v8389, %v8392
        %v8394 = vsel %vm1186, %v8384, %v8393
        %v8396 = vshrl.u32 %v8331, 16
        %v8398 = vrot.slane %v8396, 4
        %v8399 = vshll.u32 %v8331, 16
        %v8401 = vrot.slane %v8399, 5
        %v8402 = vor.u32 %v8398, %v8401
        %v8403 = vsel %vm1186, %v8393, %v8402
        %v8405 = vshrl.u32 %v8332, 16
        %v8407 = vrot.slane %v8405, 4
        %v8408 = vshll.u32 %v8332, 16
        %v8410 = vrot.slane %v8408, 5
        %v8411 = vor.u32 %v8407, %v8410
        %v8412 = vsel %vm1186, %v8402, %v8411
        %v8414 = vshrl.u32 %v8333, 16
        %v8416 = vrot.slane %v8414, 4
        %v8417 = vshll.u32 %v8333, 16
        %v8419 = vrot.slane %v8417, 5
        %v8420 = vor.u32 %v8416, %v8419
        %v8421 = vsel %vm1186, %v8411, %v8420
        %v8423 = vshrl.u32 %v8334, 16
        %v8425 = vrot.slane %v8423, 4
        %v8426 = vshll.u32 %v8334, 16
        %v8428 = vrot.slane %v8426, 5
        %v8429 = vor.u32 %v8425, %v8428
        %v8430 = vsel %vm1186, %v8420, %v8429
        %v8432 = vshrl.u32 %v8335, 16
        %v8434 = vrot.slane %v8432, 4
        %v8435 = vshll.u32 %v8335, 16
        %v8437 = vrot.slane %v8435, 5
        %v8438 = vor.u32 %v8434, %v8437
        %v8439 = vsel %vm1186, %v8429, %v8438
        %v8441 = vshrl.u32 %v8336, 16
        %v8443 = vrot.slane %v8441, 4
        %v8444 = vshll.u32 %v8336, 16
        %v8446 = vrot.slane %v8444, 5
        %v8447 = vor.u32 %v8443, %v8446
        %v8448 = vsel %vm1186, %v8438, %v8447
        %v8450 = vshrl.u32 %v8337, 16
        %v8452 = vrot.slane %v8450, 4
        %v8453 = vshll.u32 %v8337, 16
        %v8455 = vrot.slane %v8453, 5
        %v8456 = vor.u32 %v8452, %v8455
        %v8457 = vsel %vm1186, %v8447, %v8456
        %v8459 = vshrl.u32 %v8338, 16
        %v8461 = vrot.slane %v8459, 4
        %v8462 = vshll.u32 %v8338, 16
        %v8464 = vrot.slane %v8462, 5
        %v8465 = vor.u32 %v8461, %v8464
        %v8466 = vsel %vm1186, %v8456, %v8465
        %v8468 = vshrl.u32 %v8339, 16
        %v8470 = vrot.slane %v8468, 4
        %v8471 = vshll.u32 %v8339, 16
        %v8473 = vrot.slane %v8471, 5
        %v8474 = vor.u32 %v8470, %v8473
        %v8475 = vsel %vm1186, %v8465, %v8474
        %v8477 = vshrl.u32 %v8340, 16
        %v8479 = vrot.slane %v8477, 4
        %v8480 = vshll.u32 %v8340, 16
        %v8482 = vrot.slane %v8480, 5
        %v8483 = vor.u32 %v8479, %v8482
        %v8484 = vsel %vm1186, %v8474, %v8483
        %v8486 = vshrl.u32 %v8341, 16
        %v8488 = vrot.slane %v8486, 4
        %v8489 = vshll.u32 %v8341, 16
        %v8491 = vrot.slane %v8489, 5
        %v8492 = vor.u32 %v8488, %v8491
        %v8493 = vsel %vm1186, %v8483, %v8492
        %v8495 = vshrl.u32 %v8342, 16
        %v8497 = vrot.slane %v8495, 4
        %v8498 = vshll.u32 %v8342, 16
        %v8500 = vrot.slane %v8498, 5
        %v8501 = vor.u32 %v8497, %v8500
        %v8502 = vsel %vm1186, %v8492, %v8501
        %v8504 = vshrl.u32 %v8343, 16
        %v8506 = vrot.slane %v8504, 4
        %v8507 = vshll.u32 %v8343, 16
        %v8509 = vrot.slane %v8507, 5
        %v8510 = vor.u32 %v8506, %v8509
        %v8511 = vsel %vm1186, %v8501, %v8510
        %v8513 = vshrl.u32 %v8344, 16
        %v8515 = vrot.slane %v8513, 4
        %v8516 = vshll.u32 %v8344, 16
        %v8518 = vrot.slane %v8516, 5
        %v8519 = vor.u32 %v8515, %v8518
        %v8520 = vsel %vm1186, %v8510, %v8519
        %v8522 = vshrl.u32 %v8345, 16
        %v8524 = vrot.slane %v8522, 4
        %v8525 = vshll.u32 %v8345, 16
        %v8527 = vrot.slane %v8525, 5
        %v8528 = vor.u32 %v8524, %v8527
        %v8529 = vsel %vm1186, %v8519, %v8528
        %v8531 = vshrl.u32 %v8346, 16
        %v8533 = vrot.slane %v8531, 4
        %v8534 = vshll.u32 %v8346, 16
        %v8536 = vrot.slane %v8534, 5
        %v8537 = vor.u32 %v8533, %v8536
        %v8538 = vsel %vm1186, %v8528, %v8537
        %v8540 = vshrl.u32 %v8347, 16
        %v8542 = vrot.slane %v8540, 4
        %v8543 = vshll.u32 %v8347, 16
        %v8545 = vrot.slane %v8543, 5
        %v8546 = vor.u32 %v8542, %v8545
        %v8547 = vsel %vm1186, %v8537, %v8546
        %v8549 = vshrl.u32 %v8348, 16
        %v8551 = vrot.slane %v8549, 4
        %v8552 = vshll.u32 %v8348, 16
        %v8554 = vrot.slane %v8552, 5
        %v8555 = vor.u32 %v8551, %v8554
        %v8556 = vsel %vm1186, %v8546, %v8555
        %v8558 = vshrl.u32 %v8349, 16
        %v8560 = vrot.slane %v8558, 4
        %v8561 = vshll.u32 %v8349, 16
        %v8563 = vrot.slane %v8561, 5
        %v8564 = vor.u32 %v8560, %v8563
        %v8565 = vsel %vm1186, %v8555, %v8564
        %v8567 = vshrl.u32 %v8350, 16
        %v8569 = vrot.slane %v8567, 4
        %v8570 = vshll.u32 %v8350, 16
        %v8572 = vrot.slane %v8570, 5
        %v8573 = vor.u32 %v8569, %v8572
        %v8574 = vsel %vm1186, %v8564, %v8573
        %v8576 = vshrl.u32 %v8351, 16
        %v8578 = vrot.slane %v8576, 4
        %v8579 = vshll.u32 %v8351, 16
        %v8581 = vrot.slane %v8579, 5
        %v8582 = vor.u32 %v8578, %v8581
        %v8583 = vsel %vm1186, %v8573, %v8582
        %v8585 = vshrl.u32 %v8352, 16
        %v8587 = vrot.slane %v8585, 4
        %v8588 = vshll.u32 %v8352, 16
        %v8590 = vrot.slane %v8588, 5
        %v8591 = vor.u32 %v8587, %v8590
        %v8592 = vsel %vm1186, %v8582, %v8591
        %v8633 = vunpack.c.l.b16 %v8353
        %v8634 = vunpack.c.l.b16 %v8354
        %v8635 = vunpack.c.l.b16 %v8355
        %v8636 = vunpack.c.l.b16 %v8356
        %v8637 = vunpack.c.l.b16 %v8357
        %v8638 = vunpack.c.l.b16 %v8358
        %v8639 = vunpack.c.l.b16 %v8359
        %v8640 = vunpack.c.l.b16 %v8360
        %v8641 = vunpack.c.l.b16 %v8361
        %v8642 = vunpack.c.l.b16 %v8362
        %v8643 = vunpack.c.l.b16 %v8363
        %v8644 = vunpack.c.l.b16 %v8364
        %v8645 = vunpack.c.l.b16 %v8365
        %v8646 = vunpack.c.l.b16 %v8366
        %v8647 = vunpack.c.l.b16 %v8367
        %v8648 = vunpack.c.l.b16 %v8368
        %v8649 = vpack.c.b16 %v8634, %v8633
        %v8650 = vpack.c.b16 %v8636, %v8635
        %v8651 = vpack.c.b16 %v8638, %v8637
        %v8652 = vpack.c.b16 %v8640, %v8639
        %v8653 = vpack.c.b16 %v8642, %v8641
        %v8654 = vpack.c.b16 %v8644, %v8643
        %v8655 = vpack.c.b16 %v8646, %v8645
        %v8656 = vpack.c.b16 %v8648, %v8647
        %8665 = vmatprep.subr.bf16.mxu0 0
        %8666 = vmatpush1.bf16.msra.mxu0 %v8649
        %8667 = vmatprep.subr.bf16.mxu0 0
        %8668 = vmatpush1.bf16.msra.mxu0 %v8650
        %8669 = vmatprep.subr.bf16.mxu0 0
        %8670 = vmatpush1.bf16.msra.mxu0 %v8651
        %8671 = vmatprep.subr.bf16.mxu0 0
        %8672 = vmatpush1.bf16.msra.mxu0 %v8652
        %8673 = vmatprep.subr.bf16.mxu0 0
        %8674 = vmatpush1.bf16.msra.mxu0 %v8653
        %8675 = vmatprep.subr.bf16.mxu0 0
        %8676 = vmatpush1.bf16.msra.mxu0 %v8654
        %8677 = vmatprep.subr.bf16.mxu0 0
        %8678 = vmatpush1.bf16.msra.mxu0 %v8655
        %8679 = vmatprep.subr.bf16.mxu0 0
        %8680 = vmatpush1.bf16.msra.mxu0 %v8656
        %8681 = vmatprep.subr.bf16.mxu0 0
        %8682 = vmatpush1.bf16.msra.mxu0 0
        %8683 = vmatprep.subr.bf16.mxu0 0
        %8684 = vmatpush1.bf16.msra.mxu0 0
        %8685 = vmatprep.subr.bf16.mxu0 0
        %8686 = vmatpush1.bf16.msra.mxu0 0
        %8687 = vmatprep.subr.bf16.mxu0 0
        %8688 = vmatpush1.bf16.msra.mxu0 0
        %8689 = vmatprep.subr.bf16.mxu0 0
        %8690 = vmatpush1.bf16.msra.mxu0 0
        %8691 = vmatprep.subr.bf16.mxu0 0
        %8692 = vmatpush1.bf16.msra.mxu0 0
        %8693 = vmatprep.subr.bf16.mxu0 0
        %8694 = vmatpush1.bf16.msra.mxu0 0
        %8695 = vmatprep.subr.bf16.mxu0 0
        %8696 = vmatpush1.bf16.msra.mxu0 0
        %8697 = vmatprep.mubr.bf16.mxu0 0
        %8698 = vmatmul.mubr.bf16.gmra.mrb[0].mxu0 %v8385
        %v8699 = vpop.f32.mrb[0].mxu0
        %v8700 = vadd.f32 0.0, %v8699
        %v8701 = vpop.f32.mrb[0].mxu0
        %v8702 = vpop.f32.mrb[0].mxu0
        %v8703 = vadd.f32 0.0, %v8702
        %v8704 = vpop.f32.mrb[0].mxu0
        %8705 = vmatprep.mubr.bf16.mxu0 0
        %8706 = vmatmul.mubr.bf16.gmra.mrb[0].mxu0 %v8394
        %v8707 = vpop.f32.mrb[0].mxu0
        %v8708 = vadd.f32 0.0, %v8707
        %v8709 = vpop.f32.mrb[0].mxu0
        %v8710 = vpop.f32.mrb[0].mxu0
        %v8711 = vadd.f32 0.0, %v8710
        %v8712 = vpop.f32.mrb[0].mxu0
        %8713 = vmatprep.mubr.bf16.mxu0 0
        %8714 = vmatmul.mubr.bf16.gmra.mrb[0].mxu0 %v8403
        %v8715 = vpop.f32.mrb[0].mxu0
        %v8716 = vadd.f32 0.0, %v8715
        %v8717 = vpop.f32.mrb[0].mxu0
        %v8718 = vpop.f32.mrb[0].mxu0
        %v8719 = vadd.f32 0.0, %v8718
        %v8720 = vpop.f32.mrb[0].mxu0
        %8721 = vmatprep.mubr.bf16.mxu0 0
        %8722 = vmatmul.mubr.bf16.gmra.mrb[0].mxu0 %v8412
        %v8723 = vpop.f32.mrb[0].mxu0
        %v8724 = vadd.f32 0.0, %v8723
        %v8725 = vpop.f32.mrb[0].mxu0
        %v8726 = vpop.f32.mrb[0].mxu0
        %v8727 = vadd.f32 0.0, %v8726
        %v8728 = vpop.f32.mrb[0].mxu0
        %8729 = vmatprep.mubr.bf16.mxu0 0
        %8730 = vmatmul.mubr.bf16.gmra.mrb[0].mxu0 %v8421
        %v8731 = vpop.f32.mrb[0].mxu0
        %v8732 = vadd.f32 0.0, %v8731
        %v8733 = vpop.f32.mrb[0].mxu0
        %v8734 = vpop.f32.mrb[0].mxu0
        %v8735 = vadd.f32 0.0, %v8734
        %v8736 = vpop.f32.mrb[0].mxu0
        %8737 = vmatprep.mubr.bf16.mxu0 0
        %8738 = vmatmul.mubr.bf16.gmra.mrb[0].mxu0 %v8430
        %v8739 = vpop.f32.mrb[0].mxu0
        %v8740 = vadd.f32 0.0, %v8739
        %v8741 = vpop.f32.mrb[0].mxu0
        %v8742 = vpop.f32.mrb[0].mxu0
        %v8743 = vadd.f32 0.0, %v8742
        %v8744 = vpop.f32.mrb[0].mxu0
        %8745 = vmatprep.mubr.bf16.mxu0 0
        %8746 = vmatmul.mubr.bf16.gmra.mrb[0].mxu0 %v8439
        %v8747 = vpop.f32.mrb[0].mxu0
        %v8748 = vadd.f32 0.0, %v8747
        %v8749 = vpop.f32.mrb[0].mxu0
        %v8750 = vpop.f32.mrb[0].mxu0
        %v8751 = vadd.f32 0.0, %v8750
        %v8752 = vpop.f32.mrb[0].mxu0
        %8753 = vmatprep.mubr.bf16.mxu0 0
        %8754 = vmatmul.mubr.bf16.gmra.mrb[0].mxu0 %v8448
        %v8755 = vpop.f32.mrb[0].mxu0
        %v8756 = vadd.f32 0.0, %v8755
        %v8757 = vpop.f32.mrb[0].mxu0
        %v8758 = vpop.f32.mrb[0].mxu0
        %v8759 = vadd.f32 0.0, %v8758
        %v8760 = vpop.f32.mrb[0].mxu0
        %8761 = vmatprep.mubr.bf16.mxu0 0
        %8762 = vmatmul.mubr.bf16.gmra.mrb[0].mxu0 %v8457
        %v8763 = vpop.f32.mrb[0].mxu0
        %v8764 = vadd.f32 0.0, %v8763
        %v8765 = vpop.f32.mrb[0].mxu0
        %v8766 = vpop.f32.mrb[0].mxu0
        %v8767 = vadd.f32 0.0, %v8766
        %v8768 = vpop.f32.mrb[0].mxu0
        %8769 = vmatprep.mubr.bf16.mxu0 0
        %8770 = vmatmul.mubr.bf16.gmra.mrb[0].mxu0 %v8466
        %v8771 = vpop.f32.mrb[0].mxu0
        %v8772 = vadd.f32 0.0, %v8771
        %v8773 = vpop.f32.mrb[0].mxu0
        %v8774 = vpop.f32.mrb[0].mxu0
        %v8775 = vadd.f32 0.0, %v8774
        %v8776 = vpop.f32.mrb[0].mxu0
        %8777 = vmatprep.mubr.bf16.mxu0 0
        %8778 = vmatmul.mubr.bf16.gmra.mrb[0].mxu0 %v8475
        %v8779 = vpop.f32.mrb[0].mxu0
        %v8780 = vadd.f32 0.0, %v8779
        %v8781 = vpop.f32.mrb[0].mxu0
        %v8782 = vpop.f32.mrb[0].mxu0
        %v8783 = vadd.f32 0.0, %v8782
        %v8784 = vpop.f32.mrb[0].mxu0
        %8785 = vmatprep.mubr.bf16.mxu0 0
        %8786 = vmatmul.mubr.bf16.gmra.mrb[0].mxu0 %v8484
        %v8787 = vpop.f32.mrb[0].mxu0
        %v8788 = vadd.f32 0.0, %v8787
        %v8789 = vpop.f32.mrb[0].mxu0
        %v8790 = vpop.f32.mrb[0].mxu0
        %v8791 = vadd.f32 0.0, %v8790
        %v8792 = vpop.f32.mrb[0].mxu0
        %8793 = vmatprep.mubr.bf16.mxu0 0
        %8794 = vmatmul.mubr.bf16.gmra.mrb[0].mxu0 %v8493
        %v8795 = vpop.f32.mrb[0].mxu0
        %v8796 = vadd.f32 0.0, %v8795
        %v8797 = vpop.f32.mrb[0].mxu0
        %v8798 = vpop.f32.mrb[0].mxu0
        %v8799 = vadd.f32 0.0, %v8798
        %v8800 = vpop.f32.mrb[0].mxu0
        %8801 = vmatprep.mubr.bf16.mxu0 0
        %8802 = vmatmul.mubr.bf16.gmra.mrb[0].mxu0 %v8502
        %v8803 = vpop.f32.mrb[0].mxu0
        %v8804 = vadd.f32 0.0, %v8803
        %v8805 = vpop.f32.mrb[0].mxu0
        %v8806 = vpop.f32.mrb[0].mxu0
        %v8807 = vadd.f32 0.0, %v8806
        %v8808 = vpop.f32.mrb[0].mxu0
        %8809 = vmatprep.mubr.bf16.mxu0 0
        %8810 = vmatmul.mubr.bf16.gmra.mrb[0].mxu0 %v8511
        %v8811 = vpop.f32.mrb[0].mxu0
        %v8812 = vadd.f32 0.0, %v8811
        %v8813 = vpop.f32.mrb[0].mxu0
        %v8814 = vpop.f32.mrb[0].mxu0
        %v8815 = vadd.f32 0.0, %v8814
        %v8816 = vpop.f32.mrb[0].mxu0
        %8817 = vmatprep.mubr.bf16.mxu0 0
        %8818 = vmatmul.mubr.bf16.gmra.mrb[0].mxu0 %v8520
        %v8819 = vpop.f32.mrb[0].mxu0
        %v8820 = vadd.f32 0.0, %v8819
        %v8821 = vpop.f32.mrb[0].mxu0
        %v8822 = vpop.f32.mrb[0].mxu0
        %v8823 = vadd.f32 0.0, %v8822
        %v8824 = vpop.f32.mrb[0].mxu0
        %8825 = vmatprep.mubr.bf16.mxu0 0
        %8826 = vmatmul.mubr.bf16.gmra.mrb[0].mxu0 %v8529
        %v8827 = vpop.f32.mrb[0].mxu0
        %v8828 = vadd.f32 0.0, %v8827
        %v8829 = vpop.f32.mrb[0].mxu0
        %v8830 = vpop.f32.mrb[0].mxu0
        %v8831 = vadd.f32 0.0, %v8830
        %v8832 = vpop.f32.mrb[0].mxu0
        %8833 = vmatprep.mubr.bf16.mxu0 0
        %8834 = vmatmul.mubr.bf16.gmra.mrb[0].mxu0 %v8538
        %v8835 = vpop.f32.mrb[0].mxu0
        %v8836 = vadd.f32 0.0, %v8835
        %v8837 = vpop.f32.mrb[0].mxu0
        %v8838 = vpop.f32.mrb[0].mxu0
        %v8839 = vadd.f32 0.0, %v8838
        %v8840 = vpop.f32.mrb[0].mxu0
        %8841 = vmatprep.mubr.bf16.mxu0 0
        %8842 = vmatmul.mubr.bf16.gmra.mrb[0].mxu0 %v8547
        %v8843 = vpop.f32.mrb[0].mxu0
        %v8844 = vadd.f32 0.0, %v8843
        %v8845 = vpop.f32.mrb[0].mxu0
        %v8846 = vpop.f32.mrb[0].mxu0
        %v8847 = vadd.f32 0.0, %v8846
        %v8848 = vpop.f32.mrb[0].mxu0
        %8849 = vmatprep.mubr.bf16.mxu0 0
        %8850 = vmatmul.mubr.bf16.gmra.mrb[0].mxu0 %v8556
        %v8851 = vpop.f32.mrb[0].mxu0
        %v8852 = vadd.f32 0.0, %v8851
        %v8853 = vpop.f32.mrb[0].mxu0
        %v8854 = vpop.f32.mrb[0].mxu0
        %v8855 = vadd.f32 0.0, %v8854
        %v8856 = vpop.f32.mrb[0].mxu0
        %8857 = vmatprep.mubr.bf16.mxu0 0
        %8858 = vmatmul.mubr.bf16.gmra.mrb[0].mxu0 %v8565
        %v8859 = vpop.f32.mrb[0].mxu0
        %v8860 = vadd.f32 0.0, %v8859
        %v8861 = vpop.f32.mrb[0].mxu0
        %v8862 = vpop.f32.mrb[0].mxu0
        %v8863 = vadd.f32 0.0, %v8862
        %v8864 = vpop.f32.mrb[0].mxu0
        %8865 = vmatprep.mubr.bf16.mxu0 0
        %8866 = vmatmul.mubr.bf16.gmra.mrb[0].mxu0 %v8574
        %v8867 = vpop.f32.mrb[0].mxu0
        %v8868 = vadd.f32 0.0, %v8867
        %v8869 = vpop.f32.mrb[0].mxu0
        %v8870 = vpop.f32.mrb[0].mxu0
        %v8871 = vadd.f32 0.0, %v8870
        %v8872 = vpop.f32.mrb[0].mxu0
        %8873 = vmatprep.mubr.bf16.mxu0 0
        %8874 = vmatmul.mubr.bf16.gmra.mrb[0].mxu0 %v8583
        %v8875 = vpop.f32.mrb[0].mxu0
        %v8876 = vadd.f32 0.0, %v8875
        %v8877 = vpop.f32.mrb[0].mxu0
        %v8878 = vpop.f32.mrb[0].mxu0
        %v8879 = vadd.f32 0.0, %v8878
        %v8880 = vpop.f32.mrb[0].mxu0
        %8881 = vmatprep.mubr.bf16.mxu0 0
        %8882 = vmatmul.mubr.bf16.gmra.mrb[0].mxu0 %v8592
        %v8883 = vpop.f32.mrb[0].mxu0
        %v8884 = vadd.f32 0.0, %v8883
        %v8885 = vpop.f32.mrb[0].mxu0
        %v8886 = vpop.f32.mrb[0].mxu0
        %v8887 = vadd.f32 0.0, %v8886
        %v8888 = vpop.f32.mrb[0].mxu0
        %8889 = vdwg.mxu0
        %v8890 = vld [vmem:[%s4 + $0x4] sm:$0x1]
        %v8891 = vlaneseq
        %v8892 = vshrl.u32 %v8891, 7
        %v8893 = vsub.s32 0, %v8892
        %v8894 = vrot.slane %v8890, %v8893
        %v8895 = vmul.f32 %v8700, %v8894
        %v8896 = vmul.f32 %v8703, %v8894
        %v8897 = vmul.f32 %v8708, %v8894
        %v8898 = vmul.f32 %v8711, %v8894
        %v8899 = vmul.f32 %v8716, %v8894
        %v8900 = vmul.f32 %v8719, %v8894
        %v8901 = vmul.f32 %v8724, %v8894
        %v8902 = vmul.f32 %v8727, %v8894
        %v8903 = vmul.f32 %v8732, %v8894
        %v8904 = vmul.f32 %v8735, %v8894
        %v8905 = vmul.f32 %v8740, %v8894
        %v8906 = vmul.f32 %v8743, %v8894
        %v8907 = vmul.f32 %v8748, %v8894
        %v8908 = vmul.f32 %v8751, %v8894
        %v8909 = vmul.f32 %v8756, %v8894
        %v8910 = vmul.f32 %v8759, %v8894
        %v8911 = vmul.f32 %v8764, %v8894
        %v8912 = vmul.f32 %v8767, %v8894
        %v8913 = vmul.f32 %v8772, %v8894
        %v8914 = vmul.f32 %v8775, %v8894
        %v8915 = vmul.f32 %v8780, %v8894
        %v8916 = vmul.f32 %v8783, %v8894
        %v8917 = vmul.f32 %v8788, %v8894
        %v8918 = vmul.f32 %v8791, %v8894
        %v8919 = vmul.f32 %v8796, %v8894
        %v8920 = vmul.f32 %v8799, %v8894
        %v8921 = vmul.f32 %v8804, %v8894
        %v8922 = vmul.f32 %v8807, %v8894
        %v8923 = vmul.f32 %v8812, %v8894
        %v8924 = vmul.f32 %v8815, %v8894
        %v8925 = vmul.f32 %v8820, %v8894
        %v8926 = vmul.f32 %v8823, %v8894
        %v8927 = vmul.f32 %v8828, %v8894
        %v8928 = vmul.f32 %v8831, %v8894
        %v8929 = vmul.f32 %v8836, %v8894
        %v8930 = vmul.f32 %v8839, %v8894
        %v8931 = vmul.f32 %v8844, %v8894
        %v8932 = vmul.f32 %v8847, %v8894
        %v8933 = vmul.f32 %v8852, %v8894
        %v8934 = vmul.f32 %v8855, %v8894
        %v8935 = vmul.f32 %v8860, %v8894
        %v8936 = vmul.f32 %v8863, %v8894
        %v8937 = vmul.f32 %v8868, %v8894
        %v8938 = vmul.f32 %v8871, %v8894
        %v8939 = vmul.f32 %v8876, %v8894
        %v8940 = vmul.f32 %v8879, %v8894
        %v8941 = vmul.f32 %v8884, %v8894
        %v8942 = vmul.f32 %v8887, %v8894
        %v8943 = vld [vmem:[%s4 + $0x5] sm:$0x1]
        %v8944 = vlaneseq
        %v8945 = vshrl.u32 %v8944, 7
        %v8946 = vsub.s32 0, %v8945
        %v8947 = vrot.slane %v8943, %v8946
        %v8948 = vadd.f32 %v8895, %v8947
        %v8949 = vadd.f32 %v8896, %v8947
        %v8950 = vadd.f32 %v8897, %v8947
        %v8951 = vadd.f32 %v8898, %v8947
        %v8952 = vadd.f32 %v8899, %v8947
        %v8953 = vadd.f32 %v8900, %v8947
        %v8954 = vadd.f32 %v8901, %v8947
        %v8955 = vadd.f32 %v8902, %v8947
        %v8956 = vadd.f32 %v8903, %v8947
        %v8957 = vadd.f32 %v8904, %v8947
        %v8958 = vadd.f32 %v8905, %v8947
        %v8959 = vadd.f32 %v8906, %v8947
        %v8960 = vadd.f32 %v8907, %v8947
        %v8961 = vadd.f32 %v8908, %v8947
        %v8962 = vadd.f32 %v8909, %v8947
        %v8963 = vadd.f32 %v8910, %v8947
        %v8964 = vadd.f32 %v8911, %v8947
        %v8965 = vadd.f32 %v8912, %v8947
        %v8966 = vadd.f32 %v8913, %v8947
        %v8967 = vadd.f32 %v8914, %v8947
        %v8968 = vadd.f32 %v8915, %v8947
        %v8969 = vadd.f32 %v8916, %v8947
        %v8970 = vadd.f32 %v8917, %v8947
        %v8971 = vadd.f32 %v8918, %v8947
        %v8972 = vadd.f32 %v8919, %v8947
        %v8973 = vadd.f32 %v8920, %v8947
        %v8974 = vadd.f32 %v8921, %v8947
        %v8975 = vadd.f32 %v8922, %v8947
        %v8976 = vadd.f32 %v8923, %v8947
        %v8977 = vadd.f32 %v8924, %v8947
        %v8978 = vadd.f32 %v8925, %v8947
        %v8979 = vadd.f32 %v8926, %v8947
        %v8980 = vadd.f32 %v8927, %v8947
        %v8981 = vadd.f32 %v8928, %v8947
        %v8982 = vadd.f32 %v8929, %v8947
        %v8983 = vadd.f32 %v8930, %v8947
        %v8984 = vadd.f32 %v8931, %v8947
        %v8985 = vadd.f32 %v8932, %v8947
        %v8986 = vadd.f32 %v8933, %v8947
        %v8987 = vadd.f32 %v8934, %v8947
        %v8988 = vadd.f32 %v8935, %v8947
        %v8989 = vadd.f32 %v8936, %v8947
        %v8990 = vadd.f32 %v8937, %v8947
        %v8991 = vadd.f32 %v8938, %v8947
        %v8992 = vadd.f32 %v8939, %v8947
        %v8993 = vadd.f32 %v8940, %v8947
        %v8994 = vadd.f32 %v8941, %v8947
        %v8995 = vadd.f32 %v8942, %v8947
        %v8996 = vadd.f32 %v8280, %v8948
        %v8997 = vadd.f32 %v8281, %v8949
        %v8998 = vadd.f32 %v8282, %v8950
        %v8999 = vadd.f32 %v8283, %v8951
        %v9000 = vadd.f32 %v8284, %v8952
        %v9001 = vadd.f32 %v8285, %v8953
        %v9002 = vadd.f32 %v8286, %v8954
        %v9003 = vadd.f32 %v8287, %v8955
        %v9004 = vadd.f32 %v8288, %v8956
        %v9005 = vadd.f32 %v8289, %v8957
        %v9006 = vadd.f32 %v8290, %v8958
        %v9007 = vadd.f32 %v8291, %v8959
        %v9008 = vadd.f32 %v8292, %v8960
        %v9009 = vadd.f32 %v8293, %v8961
        %v9010 = vadd.f32 %v8294, %v8962
        %v9011 = vadd.f32 %v8295, %v8963
        %v9012 = vadd.f32 %v8296, %v8964
        %v9013 = vadd.f32 %v8297, %v8965
        %v9014 = vadd.f32 %v8298, %v8966
        %v9015 = vadd.f32 %v8299, %v8967
        %v9016 = vadd.f32 %v8300, %v8968
        %v9017 = vadd.f32 %v8301, %v8969
        %v9018 = vadd.f32 %v8302, %v8970
        %v9019 = vadd.f32 %v8303, %v8971
        %v9020 = vadd.f32 %v8304, %v8972
        %v9021 = vadd.f32 %v8305, %v8973
        %v9022 = vadd.f32 %v8306, %v8974
        %v9023 = vadd.f32 %v8307, %v8975
        %v9024 = vadd.f32 %v8308, %v8976
        %v9025 = vadd.f32 %v8309, %v8977
        %v9026 = vadd.f32 %v8310, %v8978
        %v9027 = vadd.f32 %v8311, %v8979
        %v9028 = vadd.f32 %v8312, %v8980
        %v9029 = vadd.f32 %v8313, %v8981
        %v9030 = vadd.f32 %v8314, %v8982
        %v9031 = vadd.f32 %v8315, %v8983
        %v9032 = vadd.f32 %v8316, %v8984
        %v9033 = vadd.f32 %v8317, %v8985
        %v9034 = vadd.f32 %v8318, %v8986
        %v9035 = vadd.f32 %v8319, %v8987
        %v9036 = vadd.f32 %v8320, %v8988
        %v9037 = vadd.f32 %v8321, %v8989
        %v9038 = vadd.f32 %v8322, %v8990
        %v9039 = vadd.f32 %v8323, %v8991
        %v9040 = vadd.f32 %v8324, %v8992
        %v9041 = vadd.f32 %v8325, %v8993
        %v9042 = vadd.f32 %v8326, %v8994
        %v9043 = vadd.f32 %v8327, %v8995
        %v9044 = vmax.f32 %v8996, 0.0
        %v9045 = vmax.f32 %v8997, 0.0
        %v9046 = vmax.f32 %v8998, 0.0
        %v9047 = vmax.f32 %v8999, 0.0
        %v9048 = vmax.f32 %v9000, 0.0
        %v9049 = vmax.f32 %v9001, 0.0
        %v9050 = vmax.f32 %v9002, 0.0
        %v9051 = vmax.f32 %v9003, 0.0
        %v9052 = vmax.f32 %v9004, 0.0
        %v9053 = vmax.f32 %v9005, 0.0
        %v9054 = vmax.f32 %v9006, 0.0
        %v9055 = vmax.f32 %v9007, 0.0
        %v9056 = vmax.f32 %v9008, 0.0
        %v9057 = vmax.f32 %v9009, 0.0
        %v9058 = vmax.f32 %v9010, 0.0
        %v9059 = vmax.f32 %v9011, 0.0
        %v9060 = vmax.f32 %v9012, 0.0
        %v9061 = vmax.f32 %v9013, 0.0
        %v9062 = vmax.f32 %v9014, 0.0
        %v9063 = vmax.f32 %v9015, 0.0
        %v9064 = vmax.f32 %v9016, 0.0
        %v9065 = vmax.f32 %v9017, 0.0
        %v9066 = vmax.f32 %v9018, 0.0
        %v9067 = vmax.f32 %v9019, 0.0
        %v9068 = vmax.f32 %v9020, 0.0
        %v9069 = vmax.f32 %v9021, 0.0
        %v9070 = vmax.f32 %v9022, 0.0
        %v9071 = vmax.f32 %v9023, 0.0
        %v9072 = vmax.f32 %v9024, 0.0
        %v9073 = vmax.f32 %v9025, 0.0
        %v9074 = vmax.f32 %v9026, 0.0
        %v9075 = vmax.f32 %v9027, 0.0
        %v9076 = vmax.f32 %v9028, 0.0
        %v9077 = vmax.f32 %v9029, 0.0
        %v9078 = vmax.f32 %v9030, 0.0
        %v9079 = vmax.f32 %v9031, 0.0
        %v9080 = vmax.f32 %v9032, 0.0
        %v9081 = vmax.f32 %v9033, 0.0
        %v9082 = vmax.f32 %v9034, 0.0
        %v9083 = vmax.f32 %v9035, 0.0
        %v9084 = vmax.f32 %v9036, 0.0
        %v9085 = vmax.f32 %v9037, 0.0
        %v9086 = vmax.f32 %v9038, 0.0
        %v9087 = vmax.f32 %v9039, 0.0
        %v9088 = vmax.f32 %v9040, 0.0
        %v9089 = vmax.f32 %v9041, 0.0
        %v9090 = vmax.f32 %v9042, 0.0
        %v9091 = vmax.f32 %v9043, 0.0
        %9092 = vst [vmem:[%s259] sm:$0xff] %v9044
        %9093 = vst [vmem:[%s259 + $0x8] sm:$0xff] %v9045
        %9094 = vst [vmem:[%s259 + $0x10] sm:$0xff] %v9046
        %9095 = vst [vmem:[%s259 + $0x18] sm:$0xff] %v9047
        %9096 = vst [vmem:[%s259 + $0x20] sm:$0xff] %v9048
        %9097 = vst [vmem:[%s259 + $0x28] sm:$0xff] %v9049
        %9098 = vst [vmem:[%s259 + $0x30] sm:$0xff] %v9050
        %9099 = vst [vmem:[%s259 + $0x38] sm:$0xff] %v9051
        %9100 = vst [vmem:[%s259 + $0x40] sm:$0xff] %v9052
        %9101 = vst [vmem:[%s259 + $0x48] sm:$0xff] %v9053
        %9102 = vst [vmem:[%s259 + $0x50] sm:$0xff] %v9054
        %9103 = vst [vmem:[%s259 + $0x58] sm:$0xff] %v9055
        %9104 = vst [vmem:[%s259 + $0x60] sm:$0xff] %v9056
        %9105 = vst [vmem:[%s259 + $0x68] sm:$0xff] %v9057
        %9106 = vst [vmem:[%s259 + $0x70] sm:$0xff] %v9058
        %9107 = vst [vmem:[%s259 + $0x78] sm:$0xff] %v9059
        %9108 = vst [vmem:[%s259 + $0x80] sm:$0xff] %v9060
        %9109 = vst [vmem:[%s259 + $0x88] sm:$0xff] %v9061
        %9110 = vst [vmem:[%s259 + $0x90] sm:$0xff] %v9062
        %9111 = vst [vmem:[%s259 + $0x98] sm:$0xff] %v9063
        %9112 = vst [vmem:[%s259 + $0xa0] sm:$0xff] %v9064
        %9113 = vst [vmem:[%s259 + $0xa8] sm:$0xff] %v9065
        %9114 = vst [vmem:[%s259 + $0xb0] sm:$0xff] %v9066
        %9115 = vst [vmem:[%s259 + $0xb8] sm:$0xff] %v9067
        %9116 = vst [vmem:[%s259 + $0xc0] sm:$0xff] %v9068
        %9117 = vst [vmem:[%s259 + $0xc8] sm:$0xff] %v9069
        %9118 = vst [vmem:[%s259 + $0xd0] sm:$0xff] %v9070
        %9119 = vst [vmem:[%s259 + $0xd8] sm:$0xff] %v9071
        %9120 = vst [vmem:[%s259 + $0xe0] sm:$0xff] %v9072
        %9121 = vst [vmem:[%s259 + $0xe8] sm:$0xff] %v9073
        %9122 = vst [vmem:[%s259 + $0xf0] sm:$0xff] %v9074
        %9123 = vst [vmem:[%s259 + $0xf8] sm:$0xff] %v9075
        %9124 = vst [vmem:[%s259 + $0x100] sm:$0xff] %v9076
        %9125 = vst [vmem:[%s259 + $0x108] sm:$0xff] %v9077
        %9126 = vst [vmem:[%s259 + $0x110] sm:$0xff] %v9078
        %9127 = vst [vmem:[%s259 + $0x118] sm:$0xff] %v9079
        %9128 = vst [vmem:[%s259 + $0x120] sm:$0xff] %v9080
        %9129 = vst [vmem:[%s259 + $0x128] sm:$0xff] %v9081
        %9130 = vst [vmem:[%s259 + $0x130] sm:$0xff] %v9082
        %9131 = vst [vmem:[%s259 + $0x138] sm:$0xff] %v9083
        %9132 = vst [vmem:[%s259 + $0x140] sm:$0xff] %v9084
        %9133 = vst [vmem:[%s259 + $0x148] sm:$0xff] %v9085
        %9134 = vst [vmem:[%s259 + $0x150] sm:$0xff] %v9086
        %9135 = vst [vmem:[%s259 + $0x158] sm:$0xff] %v9087
        %9136 = vst [vmem:[%s259 + $0x160] sm:$0xff] %v9088
        %9137 = vst [vmem:[%s259 + $0x168] sm:$0xff] %v9089
        %9138 = vst [vmem:[%s259 + $0x170] sm:$0xff] %v9090
        %9139 = vst [vmem:[%s259 + $0x178] sm:$0xff] %v9091
        %s9140 = sand.u32 %s160, 1
        %s9141 = scalar_lea.sflag [#allocation8], %s9140
        %s9142 = sand.u32 %s160, 1
        %s9143 = smul.addr %s9142, 384
        %s9144 = scalar_lea.vmem [#allocation9], %s9143
        // Predicated region
        $region49: #{tpu_custom_call.1} parent=43 // pred_check
          %p9145 = pneg %p170
        $region50: #{tpu_custom_call.1} parent=43 // pred_check_branch
          %9147 = sbr.rel (%p9145) target = $region52
        $region51: #{tpu_custom_call.1} parent=43 // pred_region
          %s9149 = ssub.s32 6144, 6144
          %9150 = vsyncadd %s9141, %s9149
          %s9151 = smul.addr %s21, 48
          %s9152 = smul.addr %s9151, 128
          %s9153 = scalar_lea.hbm %s6, %s9152
          %s9154 = sshll.u32 %s9144, 4
          %s9155 = int_to_ptr.vmem [resolvable:$true] %s9154
          %9160 = dma.vmem_to_hbm [thread:$0]  %s9155, 6144, %s9153, %s9141, 128, 128, 8
        $region52: #{tpu_custom_call.1} parent=43 // pred_fallthru
          _
      $region44: #{tpu_custom_call.1} parent=5 // pred_fallthru
        _
      %p9161 = scmp.le.s32.totalorder 2, %s16
      // Predicated region
      $region53: #{tpu_custom_call.1} parent=5 // pred_check
        %p9162 = pneg %p9161
      $region54: #{tpu_custom_call.1} parent=5 // pred_check_branch
        %9164 = sbr.rel (%p9162) target = $region56
      $region55: #{tpu_custom_call.1} parent=5 // pred_region
        %s9165 = ssub.s32 %s16, 2
        // Predicated region
        $region57: #{tpu_custom_call.1} parent=55 // pred_check
          %p9166 = pneg %p176
        $region58: #{tpu_custom_call.1} parent=55 // pred_check_branch
          %9168 = sbr.rel (%p9166) target = $region60
        $region59: #{tpu_custom_call.1} parent=55 // pred_region
          %s9169 = sand.u32 %s161, 1
          %s9170 = scalar_lea.sflag [#allocation8], %s9169
          %s9171 = sand.u32 %s161, 1
          %s9172 = smul.addr %s9171, 384
          %s9173 = scalar_lea.vmem [#allocation9], %s9172
          %9174 = dma.done %s9170, 6144
        $region60: #{tpu_custom_call.1} parent=55 // pred_fallthru
          _
      $region56: #{tpu_custom_call.1} parent=5 // pred_fallthru
        _
    $region6: #{tpu_custom_call.1} parent=1 // loop_footer
      %s20 = sadd.s32 1, %s16
    $region7: #{tpu_custom_call.1} parent=1 // loop_footer_branch
      %15 = sbr.rel target = $region3
    $region8: #{tpu_custom_call.1} parent=1 // loop_exit
      _
    %9175 = vsyncpa [#allocation7], 1
    %s9176 = scalar_lea.sflag [#allocation7], 1
    %9177 = vsyncpa %s9176, 1
    %9178 = vsyncpa [#allocation8], 1
    %s9179 = scalar_lea.sflag [#allocation8], 1
    %9180 = vsyncpa %s9179, 1

</llo_original>
